<compile_context>
chip_gen: v5e
topology: v5e:2x2
jax: 0.10.0
libtpu: 0.0.40
codegen_flags: <defaults>
</compile_context>

<pallas_src>
import functools

import jax
import jax.numpy as jnp
import numpy as np
from jax import lax
from jax.experimental import pallas as pl
from jax.experimental.pallas import tpu as pltpu


# ----------------------------------------------------------------------------
# Fused Inception kernel (one batch image per grid step)
# ----------------------------------------------------------------------------
def inception_kernel(x_ref, w1_ref, b1_ref, w3_ref, b3_ref, w5_ref, b5_ref,
                     wd_ref, bd_ref, o_ref, bmid_ref, cmid_ref, pool_ref, *,
                     H, W, CA, CBR, CB, CCR, CC, CD):
    """Fused forward of the whole Inception module for one image.

    x_ref  : (1, H, W, Cin)     unpadded input block (compute dtype)
    w1_ref : (Cin, CA+CBR+CCR)  fused 1x1 weights (a_1x1 | b_reduce | c_reduce)
    w3_ref : (9, CBR, CB)       3x3 weights, tap-major (kh*3+kw)
    w5_ref : (25, CCR, CC)      5x5 weights, tap-major (kh*5+kw)
    wd_ref : (Cin, CD)          pool-proj 1x1 weights
    b*_ref : (1, C)             f32 biases
    o_ref  : (1, H, W, CA+CB+CC+CD)  channel-concatenated f32 output
    bmid_ref: (H+2, W+2, CBR)   VMEM scratch, zero halo (3x3 conv input)
    cmid_ref: (H+4, W+4, CCR)   VMEM scratch, zero halo (5x5 conv input)
    pool_ref: (H+2, W+2, Cin)   VMEM scratch, -inf-ish halo (3x3 max-pool)
    """
    f32 = jnp.float32
    Cin = x_ref.shape[-1]
    C1 = CA + CBR + CCR
    cdt = bmid_ref.dtype                       # compute dtype (bf16 or f32)

    x = x_ref[0]                               # (H, W, Cin)
    xm = x.reshape(H * W, Cin)

    # ---- stage 1: fused 1x1 convs on the interior only, f32 acc, ReLU ------
    y1 = jnp.dot(xm, w1_ref[...], preferred_element_type=f32) + b1_ref[...]
    y1 = jnp.maximum(y1, 0.0)                  # (H*W, C1) f32

    a_out = y1[:, 0:CA]                        # branch a is done

    # Zero-halo intermediates for the spatial convs.  Re-zeroing every grid
    # step (cheap) keeps the scratch correct under megacore batch sharding;
    # the interior is overwritten right after.
    bmid_ref[...] = jnp.zeros_like(bmid_ref)
    cmid_ref[...] = jnp.zeros_like(cmid_ref)
    bmid_ref[1:1 + H, 1:1 + W, :] = (
        y1[:, CA:CA + CBR].reshape(H, W, CBR).astype(cdt))
    cmid_ref[2:2 + H, 2:2 + W, :] = (
        y1[:, CA + CBR:C1].reshape(H, W, CCR).astype(cdt))

    # ---- branch b: 3x3 conv (pad 1) as 9 per-tap MXU matmuls, ReLU ---------
    acc_b = jnp.zeros((H * W, CB), f32)
    for kh in range(3):
        for kw in range(3):
            tap = bmid_ref[kh:kh + H, kw:kw + W, :].reshape(H * W, CBR)
            acc_b = acc_b + jnp.dot(tap, w3_ref[kh * 3 + kw],
                                    preferred_element_type=f32)
    b_out = jnp.maximum(acc_b + b3_ref[...], 0.0)

    # ---- branch c: 5x5 conv (pad 2) as 25 per-tap MXU matmuls, ReLU --------
    acc_c = jnp.zeros((H * W, CC), f32)
    for kh in range(5):
        for kw in range(5):
            tap = cmid_ref[kh:kh + H, kw:kw + W, :].reshape(H * W, CCR)
            acc_c = acc_c + jnp.dot(tap, w5_ref[kh * 5 + kw],
                                    preferred_element_type=f32)
    c_out = jnp.maximum(acc_c + b5_ref[...], 0.0)

    # ---- branch d: 3x3 max-pool (stride 1, pad 1) separable + 1x1 proj -----
    # finfo.min (finite) halo: every window contains >=1 real value, and even a
    # hypothetical all-halo window yields finfo.min rather than NaN via -inf.
    neg = float(jnp.finfo(cdt).min)
    pool_ref[...] = jnp.full(pool_ref.shape, neg, cdt)
    pool_ref[1:1 + H, 1:1 + W, :] = x
    rmax = jnp.maximum(jnp.maximum(pool_ref[0:H, :, :], pool_ref[1:1 + H, :, :]),
                       pool_ref[2:2 + H, :, :])                 # (H, W+2, Cin)
    pooled = jnp.maximum(jnp.maximum(rmax[:, 0:W, :], rmax[:, 1:1 + W, :]),
                         rmax[:, 2:2 + W, :]).reshape(H * W, Cin)
    d_out = jnp.maximum(
        jnp.dot(pooled, wd_ref[...], preferred_element_type=f32) + bd_ref[...],
        0.0)

    # ---- single concatenated store (torch.cat along channels) --------------
    out = jnp.concatenate([a_out, b_out, c_out, d_out], axis=-1)  # (H*W, Ctot)
    o_ref[...] = out.reshape(1, H, W, CA + CB + CC + CD).astype(o_ref.dtype)


# ----------------------------------------------------------------------------
# Wrapper: weight fusion, casts, BlockSpecs, grid over batch
# ----------------------------------------------------------------------------
def inception_fused(x_nhwc, params, *, compute_dtype=jnp.bfloat16):
    N, H, W, Cin = x_nhwc.shape

    wa, ba = params["a_1x1"]
    wbr, bbr = params["b_red"]
    wb3, bb3 = params["b_3x3"]
    wcr, bcr = params["c_red"]
    wc5, bc5 = params["c_5x5"]
    wdp, bdp = params["d_proj"]
    CA, CBR, CB = wa.shape[-1], wbr.shape[-1], wb3.shape[-1]
    CCR, CC, CD = wcr.shape[-1], wc5.shape[-1], wdp.shape[-1]
    C1 = CA + CBR + CCR
    Ctot = CA + CB + CC + CD
    cdt = compute_dtype

    # Fuse the three 1x1 convs that read x into one weight matrix; reshape the
    # 3x3/5x5 weights into tap-major layout (matching the per-tap slices).
    x_c = x_nhwc.astype(cdt)
    w1 = jnp.concatenate([wa.reshape(Cin, CA), wbr.reshape(Cin, CBR),
                          wcr.reshape(Cin, CCR)], axis=-1).astype(cdt)
    b1 = jnp.concatenate([ba, bbr, bcr]).reshape(1, C1).astype(jnp.float32)
    w3 = wb3.reshape(9, CBR, CB).astype(cdt)
    b3 = bb3.reshape(1, CB).astype(jnp.float32)
    w5 = wc5.reshape(25, CCR, CC).astype(cdt)
    b5 = bc5.reshape(1, CC).astype(jnp.float32)
    wd = wdp.reshape(Cin, CD).astype(cdt)
    bd = bdp.reshape(1, CD).astype(jnp.float32)

    kern = functools.partial(inception_kernel, H=H, W=W, CA=CA, CBR=CBR, CB=CB,
                             CCR=CCR, CC=CC, CD=CD)

    return pl.pallas_call(
        kern,
        out_shape=jax.ShapeDtypeStruct((N, H, W, Ctot), jnp.float32),
        grid=(N,),
        in_specs=[
            pl.BlockSpec((1, H, W, Cin), lambda n: (n, 0, 0, 0)),
            pl.BlockSpec((Cin, C1), lambda n: (0, 0)),
            pl.BlockSpec((1, C1), lambda n: (0, 0)),
            pl.BlockSpec((9, CBR, CB), lambda n: (0, 0, 0)),
            pl.BlockSpec((1, CB), lambda n: (0, 0)),
            pl.BlockSpec((25, CCR, CC), lambda n: (0, 0, 0)),
            pl.BlockSpec((1, CC), lambda n: (0, 0)),
            pl.BlockSpec((Cin, CD), lambda n: (0, 0)),
            pl.BlockSpec((1, CD), lambda n: (0, 0)),
        ],
        out_specs=pl.BlockSpec((1, H, W, Ctot), lambda n: (n, 0, 0, 0)),
        scratch_shapes=[
            pltpu.VMEM((H + 2, W + 2, CBR), cdt),   # 3x3 conv input, zero halo
            pltpu.VMEM((H + 4, W + 4, CCR), cdt),   # 5x5 conv input, zero halo
            pltpu.VMEM((H + 2, W + 2, Cin), cdt),   # max-pool input, -inf halo
        ],
        compiler_params=pltpu.CompilerParams(
            dimension_semantics=("parallel",),        # batch across TCs
            vmem_limit_bytes=48 * 1024 * 1024,
        ),
    )(x_c, w1, b1, w3, b3, w5, b5, wd, bd)


# ----------------------------------------------------------------------------
# Parameters (PyTorch Conv2d-style init) + public forward (NCHW in/out)
# ----------------------------------------------------------------------------
def init_conv_params(key, kh, kw, cin, cout):
    k1, k2 = jax.random.split(key)
    bound = 1.0 / np.sqrt(kh * kw * cin)
    w = jax.random.uniform(k1, (kh, kw, cin, cout), jnp.float32, -bound, bound)
    b = jax.random.uniform(k2, (cout,), jnp.float32, -bound, bound)
    return w, b


def init_inception_params(key, inplane, a1x1, b_red, b3x3, c_red, c5x5,
                          pool_proj):
    keys = jax.random.split(key, 6)
    return {
        "a_1x1":  init_conv_params(keys[0], 1, 1, inplane, a1x1),
        "b_red":  init_conv_params(keys[1], 1, 1, inplane, b_red),
        "b_3x3":  init_conv_params(keys[2], 3, 3, b_red, b3x3),
        "c_red":  init_conv_params(keys[3], 1, 1, inplane, c_red),
        "c_5x5":  init_conv_params(keys[4], 5, 5, c_red, c5x5),
        "d_proj": init_conv_params(keys[5], 1, 1, inplane, pool_proj),
    }


@functools.partial(jax.jit, static_argnames=("compute_dtype",))
def inception_forward(x_nchw, params, compute_dtype=jnp.bfloat16):
    x = jnp.transpose(x_nchw, (0, 2, 3, 1))          # NCHW -> NHWC
    out = inception_fused(x, params, compute_dtype=compute_dtype)
    return jnp.transpose(out, (0, 3, 1, 2))          # back to NCHW


# ----------------------------------------------------------------------------
# Pure-JAX reference (for correctness check)
# ----------------------------------------------------------------------------
def ref_conv_relu(x, w, b, pad):
    y = lax.conv_general_dilated(
        x, w, window_strides=(1, 1), padding=((pad, pad), (pad, pad)),
        dimension_numbers=("NHWC", "HWIO", "NHWC"),
        precision=lax.Precision.HIGHEST)
    return jnp.maximum(y + b, 0.0)


def ref_forward(x_nchw, params):
    x = jnp.transpose(x_nchw, (0, 2, 3, 1))
    a = ref_conv_relu(x, *params["a_1x1"], pad=0)
    b = ref_conv_relu(ref_conv_relu(x, *params["b_red"], pad=0),
                      *params["b_3x3"], pad=1)
    c = ref_conv_relu(ref_conv_relu(x, *params["c_red"], pad=0),
                      *params["c_5x5"], pad=2)
    d = lax.reduce_window(x, -jnp.inf, lax.max, (1, 3, 3, 1), (1, 1, 1, 1),
                          ((0, 0), (1, 1), (1, 1), (0, 0)))
    d = ref_conv_relu(d, *params["d_proj"], pad=0)
    out = jnp.concatenate([a, b, c, d], axis=-1)
    return jnp.transpose(out, (0, 3, 1, 2))


# ----------------------------------------------------------------------------
if __name__ == "__main__":
    key = jax.random.PRNGKey(0)
    kx, kp = jax.random.split(key)

    # Small shapes: batch=2, inplane=4, spatial 16x16.
    N, Cin, H, W = 2, 4, 16, 16
    a1x1, b_red, b3x3, c_red, c5x5, pool_proj = 8, 4, 8, 4, 8, 8

    x = jax.random.normal(kx, (N, Cin, H, W), jnp.float32)
    params = init_inception_params(kp, Cin, a1x1, b_red, b3x3, c_red, c5x5,
                                   pool_proj)

    ref = jax.block_until_ready(ref_forward(x, params))
    expected_channels = a1x1 + b3x3 + c5x5 + pool_proj

    # Exact-path check: f32 compute inside the kernel vs f32 XLA reference.
    out_f32 = jax.block_until_ready(
        inception_forward(x, params, compute_dtype=jnp.float32))
    assert out_f32.shape == (N, expected_channels, H, W), out_f32.shape
    np.testing.assert_allclose(np.asarray(out_f32), np.asarray(ref),
                               atol=2e-3, rtol=2e-3)

    # Default path: bf16 compute with f32 accumulation (MXU-native on v6e/v7x).
    out_bf16 = jax.block_until_ready(inception_forward(x, params))
    assert out_bf16.shape == (N, expected_channels, H, W), out_bf16.shape
    np.testing.assert_allclose(np.asarray(out_bf16), np.asarray(ref),
                               atol=5e-2, rtol=5e-2)

    print("KERNEL_OK")
</pallas_src>

<mosaic_0001>
module attributes {stable_mosaic.version = 11 : i64} {
  func.func @inception_kernel(%arg0: i32, %arg1: memref<1x16x16x4xf32, #tpu.memory_space<vmem>>, %arg2: memref<4x16xf32, #tpu.memory_space<vmem>>, %arg3: memref<1x16xf32, #tpu.memory_space<vmem>>, %arg4: memref<9x4x8xf32, #tpu.memory_space<vmem>>, %arg5: memref<1x8xf32, #tpu.memory_space<vmem>>, %arg6: memref<25x4x8xf32, #tpu.memory_space<vmem>>, %arg7: memref<1x8xf32, #tpu.memory_space<vmem>>, %arg8: memref<4x8xf32, #tpu.memory_space<vmem>>, %arg9: memref<1x8xf32, #tpu.memory_space<vmem>>, %arg10: memref<1x16x16x32xf32, #tpu.memory_space<vmem>>, %arg11: memref<18x18x4xf32, #tpu.memory_space<vmem>>, %arg12: memref<20x20x4xf32, #tpu.memory_space<vmem>>, %arg13: memref<18x18x4xf32, #tpu.memory_space<vmem>>) attributes {dimension_semantics = [#tpu.dimension_semantics<parallel>], iteration_bounds = array<i64: 2>, scalar_prefetch = 0 : i64, scratch_operands = 3 : i64, tpu.core_type = #tpu.core_type<tc>, window_params = [{transform_indices = @transform_0, window_bounds = array<i64: 1, 16, 16, 4>}, {pipeline_mode = #tpu.pipeline_mode<synchronous>, transform_indices = @transform_1, window_bounds = array<i64: 4, 16>}, {pipeline_mode = #tpu.pipeline_mode<synchronous>, transform_indices = @transform_2, window_bounds = array<i64: 1, 16>}, {pipeline_mode = #tpu.pipeline_mode<synchronous>, transform_indices = @transform_3, window_bounds = array<i64: 9, 4, 8>}, {pipeline_mode = #tpu.pipeline_mode<synchronous>, transform_indices = @transform_4, window_bounds = array<i64: 1, 8>}, {pipeline_mode = #tpu.pipeline_mode<synchronous>, transform_indices = @transform_5, window_bounds = array<i64: 25, 4, 8>}, {pipeline_mode = #tpu.pipeline_mode<synchronous>, transform_indices = @transform_6, window_bounds = array<i64: 1, 8>}, {pipeline_mode = #tpu.pipeline_mode<synchronous>, transform_indices = @transform_7, window_bounds = array<i64: 4, 8>}, {pipeline_mode = #tpu.pipeline_mode<synchronous>, transform_indices = @transform_8, window_bounds = array<i64: 1, 8>}, {transform_indices = @transform_9, window_bounds = array<i64: 1, 16, 16, 32>}]} {
    %c0 = arith.constant 0 : index
    %c0_0 = arith.constant 0 : index
    %c0_1 = arith.constant 0 : index
    %c0_2 = arith.constant 0 : index
    %0 = vector.load %arg1[%c0, %c0_0, %c0_1, %c0_2] : memref<1x16x16x4xf32, #tpu.memory_space<vmem>>, vector<1x16x16x4xf32>
    %1 = vector.shape_cast %0 : vector<1x16x16x4xf32> to vector<16x16x4xf32>
    %2 = vector.shape_cast %1 : vector<16x16x4xf32> to vector<256x4xf32>
    %c0_3 = arith.constant 0 : index
    %c0_4 = arith.constant 0 : index
    %3 = vector.load %arg2[%c0_3, %c0_4] : memref<4x16xf32, #tpu.memory_space<vmem>>, vector<4x16xf32>
    %cst = arith.constant dense<0.000000e+00> : vector<256x16xf32>
    %4 = tpu.matmul %2, %3, %cst {dimension_numbers = #tpu.dot_dimension_numbers<[1], [0], [0], [1], [0, 0, 1, 1], [], []>} : vector<256x4xf32>, vector<4x16xf32>, vector<256x16xf32> -> vector<256x16xf32>
    %c0_5 = arith.constant 0 : index
    %c0_6 = arith.constant 0 : index
    %5 = vector.load %arg3[%c0_5, %c0_6] : memref<1x16xf32, #tpu.memory_space<vmem>>, vector<1x16xf32>
    %6 = vector.broadcast %5 : vector<1x16xf32> to vector<256x16xf32>
    %7 = arith.addf %4, %6 : vector<256x16xf32>
    %cst_7 = arith.constant 0.000000e+00 : f32
    %8 = vector.broadcast %cst_7 : f32 to vector<256x16xf32>
    %9 = arith.maximumf %7, %8 : vector<256x16xf32>
    %10 = vector.extract_strided_slice %9 {offsets = [0, 0], sizes = [256, 8], strides = [1, 1]} : vector<256x16xf32> to vector<256x8xf32>
    %cst_8 = arith.constant 0.000000e+00 : f32
    %11 = vector.broadcast %cst_8 : f32 to vector<18x18x4xf32>
    %c0_9 = arith.constant 0 : index
    %c0_10 = arith.constant 0 : index
    %c0_11 = arith.constant 0 : index
    %12 = vector.load %arg11[%c0_9, %c0_10, %c0_11] : memref<18x18x4xf32, #tpu.memory_space<vmem>>, vector<18x18x4xf32>
    tpu.vector_store %arg11[%c0_9, %c0_10, %c0_11], %11 {strides = array<i32>} : memref<18x18x4xf32, #tpu.memory_space<vmem>>, vector<18x18x4xf32>,
    %cst_12 = arith.constant 0.000000e+00 : f32
    %13 = vector.broadcast %cst_12 : f32 to vector<20x20x4xf32>
    %c0_13 = arith.constant 0 : index
    %c0_14 = arith.constant 0 : index
    %c0_15 = arith.constant 0 : index
    %14 = vector.load %arg12[%c0_13, %c0_14, %c0_15] : memref<20x20x4xf32, #tpu.memory_space<vmem>>, vector<20x20x4xf32>
    tpu.vector_store %arg12[%c0_13, %c0_14, %c0_15], %13 {strides = array<i32>} : memref<20x20x4xf32, #tpu.memory_space<vmem>>, vector<20x20x4xf32>,
    %15 = vector.extract_strided_slice %9 {offsets = [0, 8], sizes = [256, 4], strides = [1, 1]} : vector<256x16xf32> to vector<256x4xf32>
    %16 = vector.shape_cast %15 : vector<256x4xf32> to vector<16x16x4xf32>
    %c1 = arith.constant 1 : index
    %c1_16 = arith.constant 1 : index
    %c0_17 = arith.constant 0 : index
    %17 = vector.load %arg11[%c1, %c1_16, %c0_17] : memref<18x18x4xf32, #tpu.memory_space<vmem>>, vector<16x16x4xf32>
    tpu.vector_store %arg11[%c1, %c1_16, %c0_17], %16 {strides = array<i32>} : memref<18x18x4xf32, #tpu.memory_space<vmem>>, vector<16x16x4xf32>,
    %18 = vector.extract_strided_slice %9 {offsets = [0, 12], sizes = [256, 4], strides = [1, 1]} : vector<256x16xf32> to vector<256x4xf32>
    %19 = vector.shape_cast %18 : vector<256x4xf32> to vector<16x16x4xf32>
    %c2 = arith.constant 2 : index
    %c2_18 = arith.constant 2 : index
    %c0_19 = arith.constant 0 : index
    %20 = vector.load %arg12[%c2, %c2_18, %c0_19] : memref<20x20x4xf32, #tpu.memory_space<vmem>>, vector<16x16x4xf32>
    tpu.vector_store %arg12[%c2, %c2_18, %c0_19], %19 {strides = array<i32>} : memref<20x20x4xf32, #tpu.memory_space<vmem>>, vector<16x16x4xf32>,
    %cst_20 = arith.constant 0.000000e+00 : f32
    %21 = vector.broadcast %cst_20 : f32 to vector<256x8xf32>
    %c0_21 = arith.constant 0 : index
    %c0_22 = arith.constant 0 : index
    %c0_23 = arith.constant 0 : index
    %22 = vector.load %arg11[%c0_21, %c0_22, %c0_23] : memref<18x18x4xf32, #tpu.memory_space<vmem>>, vector<16x16x4xf32>
    %23 = vector.shape_cast %22 : vector<16x16x4xf32> to vector<256x4xf32>
    %c0_24 = arith.constant 0 : index
    %c0_25 = arith.constant 0 : index
    %c0_26 = arith.constant 0 : index
    %24 = vector.load %arg4[%c0_24, %c0_25, %c0_26] : memref<9x4x8xf32, #tpu.memory_space<vmem>>, vector<1x4x8xf32>
    %25 = vector.shape_cast %24 : vector<1x4x8xf32> to vector<4x8xf32>
    %cst_27 = arith.constant dense<0.000000e+00> : vector<256x8xf32>
    %26 = tpu.matmul %23, %25, %cst_27 {dimension_numbers = #tpu.dot_dimension_numbers<[1], [0], [0], [1], [0, 0, 1, 1], [], []>} : vector<256x4xf32>, vector<4x8xf32>, vector<256x8xf32> -> vector<256x8xf32>
    %27 = arith.addf %21, %26 : vector<256x8xf32>
    %c0_28 = arith.constant 0 : index
    %c1_29 = arith.constant 1 : index
    %c0_30 = arith.constant 0 : index
    %28 = vector.load %arg11[%c0_28, %c1_29, %c0_30] : memref<18x18x4xf32, #tpu.memory_space<vmem>>, vector<16x16x4xf32>
    %29 = vector.shape_cast %28 : vector<16x16x4xf32> to vector<256x4xf32>
    %c1_31 = arith.constant 1 : index
    %c0_32 = arith.constant 0 : index
    %c0_33 = arith.constant 0 : index
    %30 = vector.load %arg4[%c1_31, %c0_32, %c0_33] : memref<9x4x8xf32, #tpu.memory_space<vmem>>, vector<1x4x8xf32>
    %31 = vector.shape_cast %30 : vector<1x4x8xf32> to vector<4x8xf32>
    %cst_34 = arith.constant dense<0.000000e+00> : vector<256x8xf32>
    %32 = tpu.matmul %29, %31, %cst_34 {dimension_numbers = #tpu.dot_dimension_numbers<[1], [0], [0], [1], [0, 0, 1, 1], [], []>} : vector<256x4xf32>, vector<4x8xf32>, vector<256x8xf32> -> vector<256x8xf32>
    %33 = arith.addf %27, %32 : vector<256x8xf32>
    %c0_35 = arith.constant 0 : index
    %c2_36 = arith.constant 2 : index
    %c0_37 = arith.constant 0 : index
    %34 = vector.load %arg11[%c0_35, %c2_36, %c0_37] : memref<18x18x4xf32, #tpu.memory_space<vmem>>, vector<16x16x4xf32>
    %35 = vector.shape_cast %34 : vector<16x16x4xf32> to vector<256x4xf32>
    %c2_38 = arith.constant 2 : index
    %c0_39 = arith.constant 0 : index
    %c0_40 = arith.constant 0 : index
    %36 = vector.load %arg4[%c2_38, %c0_39, %c0_40] : memref<9x4x8xf32, #tpu.memory_space<vmem>>, vector<1x4x8xf32>
    %37 = vector.shape_cast %36 : vector<1x4x8xf32> to vector<4x8xf32>
    %cst_41 = arith.constant dense<0.000000e+00> : vector<256x8xf32>
    %38 = tpu.matmul %35, %37, %cst_41 {dimension_numbers = #tpu.dot_dimension_numbers<[1], [0], [0], [1], [0, 0, 1, 1], [], []>} : vector<256x4xf32>, vector<4x8xf32>, vector<256x8xf32> -> vector<256x8xf32>
    %39 = arith.addf %33, %38 : vector<256x8xf32>
    %c1_42 = arith.constant 1 : index
    %c0_43 = arith.constant 0 : index
    %c0_44 = arith.constant 0 : index
    %40 = vector.load %arg11[%c1_42, %c0_43, %c0_44] : memref<18x18x4xf32, #tpu.memory_space<vmem>>, vector<16x16x4xf32>
    %41 = vector.shape_cast %40 : vector<16x16x4xf32> to vector<256x4xf32>
    %c3 = arith.constant 3 : index
    %c0_45 = arith.constant 0 : index
    %c0_46 = arith.constant 0 : index
    %42 = vector.load %arg4[%c3, %c0_45, %c0_46] : memref<9x4x8xf32, #tpu.memory_space<vmem>>, vector<1x4x8xf32>
    %43 = vector.shape_cast %42 : vector<1x4x8xf32> to vector<4x8xf32>
    %cst_47 = arith.constant dense<0.000000e+00> : vector<256x8xf32>
    %44 = tpu.matmul %41, %43, %cst_47 {dimension_numbers = #tpu.dot_dimension_numbers<[1], [0], [0], [1], [0, 0, 1, 1], [], []>} : vector<256x4xf32>, vector<4x8xf32>, vector<256x8xf32> -> vector<256x8xf32>
    %45 = arith.addf %39, %44 : vector<256x8xf32>
    %c1_48 = arith.constant 1 : index
    %c1_49 = arith.constant 1 : index
    %c0_50 = arith.constant 0 : index
    %46 = vector.load %arg11[%c1_48, %c1_49, %c0_50] : memref<18x18x4xf32, #tpu.memory_space<vmem>>, vector<16x16x4xf32>
    %47 = vector.shape_cast %46 : vector<16x16x4xf32> to vector<256x4xf32>
    %c4 = arith.constant 4 : index
    %c0_51 = arith.constant 0 : index
    %c0_52 = arith.constant 0 : index
    %48 = vector.load %arg4[%c4, %c0_51, %c0_52] : memref<9x4x8xf32, #tpu.memory_space<vmem>>, vector<1x4x8xf32>
    %49 = vector.shape_cast %48 : vector<1x4x8xf32> to vector<4x8xf32>
    %cst_53 = arith.constant dense<0.000000e+00> : vector<256x8xf32>
    %50 = tpu.matmul %47, %49, %cst_53 {dimension_numbers = #tpu.dot_dimension_numbers<[1], [0], [0], [1], [0, 0, 1, 1], [], []>} : vector<256x4xf32>, vector<4x8xf32>, vector<256x8xf32> -> vector<256x8xf32>
    %51 = arith.addf %45, %50 : vector<256x8xf32>
    %c1_54 = arith.constant 1 : index
    %c2_55 = arith.constant 2 : index
    %c0_56 = arith.constant 0 : index
    %52 = vector.load %arg11[%c1_54, %c2_55, %c0_56] : memref<18x18x4xf32, #tpu.memory_space<vmem>>, vector<16x16x4xf32>
    %53 = vector.shape_cast %52 : vector<16x16x4xf32> to vector<256x4xf32>
    %c5 = arith.constant 5 : index
    %c0_57 = arith.constant 0 : index
    %c0_58 = arith.constant 0 : index
    %54 = vector.load %arg4[%c5, %c0_57, %c0_58] : memref<9x4x8xf32, #tpu.memory_space<vmem>>, vector<1x4x8xf32>
    %55 = vector.shape_cast %54 : vector<1x4x8xf32> to vector<4x8xf32>
    %cst_59 = arith.constant dense<0.000000e+00> : vector<256x8xf32>
    %56 = tpu.matmul %53, %55, %cst_59 {dimension_numbers = #tpu.dot_dimension_numbers<[1], [0], [0], [1], [0, 0, 1, 1], [], []>} : vector<256x4xf32>, vector<4x8xf32>, vector<256x8xf32> -> vector<256x8xf32>
    %57 = arith.addf %51, %56 : vector<256x8xf32>
    %c2_60 = arith.constant 2 : index
    %c0_61 = arith.constant 0 : index
    %c0_62 = arith.constant 0 : index
    %58 = vector.load %arg11[%c2_60, %c0_61, %c0_62] : memref<18x18x4xf32, #tpu.memory_space<vmem>>, vector<16x16x4xf32>
    %59 = vector.shape_cast %58 : vector<16x16x4xf32> to vector<256x4xf32>
    %c6 = arith.constant 6 : index
    %c0_63 = arith.constant 0 : index
    %c0_64 = arith.constant 0 : index
    %60 = vector.load %arg4[%c6, %c0_63, %c0_64] : memref<9x4x8xf32, #tpu.memory_space<vmem>>, vector<1x4x8xf32>
    %61 = vector.shape_cast %60 : vector<1x4x8xf32> to vector<4x8xf32>
    %cst_65 = arith.constant dense<0.000000e+00> : vector<256x8xf32>
    %62 = tpu.matmul %59, %61, %cst_65 {dimension_numbers = #tpu.dot_dimension_numbers<[1], [0], [0], [1], [0, 0, 1, 1], [], []>} : vector<256x4xf32>, vector<4x8xf32>, vector<256x8xf32> -> vector<256x8xf32>
    %63 = arith.addf %57, %62 : vector<256x8xf32>
    %c2_66 = arith.constant 2 : index
    %c1_67 = arith.constant 1 : index
    %c0_68 = arith.constant 0 : index
    %64 = vector.load %arg11[%c2_66, %c1_67, %c0_68] : memref<18x18x4xf32, #tpu.memory_space<vmem>>, vector<16x16x4xf32>
    %65 = vector.shape_cast %64 : vector<16x16x4xf32> to vector<256x4xf32>
    %c7 = arith.constant 7 : index
    %c0_69 = arith.constant 0 : index
    %c0_70 = arith.constant 0 : index
    %66 = vector.load %arg4[%c7, %c0_69, %c0_70] : memref<9x4x8xf32, #tpu.memory_space<vmem>>, vector<1x4x8xf32>
    %67 = vector.shape_cast %66 : vector<1x4x8xf32> to vector<4x8xf32>
    %cst_71 = arith.constant dense<0.000000e+00> : vector<256x8xf32>
    %68 = tpu.matmul %65, %67, %cst_71 {dimension_numbers = #tpu.dot_dimension_numbers<[1], [0], [0], [1], [0, 0, 1, 1], [], []>} : vector<256x4xf32>, vector<4x8xf32>, vector<256x8xf32> -> vector<256x8xf32>
    %69 = arith.addf %63, %68 : vector<256x8xf32>
    %c2_72 = arith.constant 2 : index
    %c2_73 = arith.constant 2 : index
    %c0_74 = arith.constant 0 : index
    %70 = vector.load %arg11[%c2_72, %c2_73, %c0_74] : memref<18x18x4xf32, #tpu.memory_space<vmem>>, vector<16x16x4xf32>
    %71 = vector.shape_cast %70 : vector<16x16x4xf32> to vector<256x4xf32>
    %c8 = arith.constant 8 : index
    %c0_75 = arith.constant 0 : index
    %c0_76 = arith.constant 0 : index
    %72 = vector.load %arg4[%c8, %c0_75, %c0_76] : memref<9x4x8xf32, #tpu.memory_space<vmem>>, vector<1x4x8xf32>
    %73 = vector.shape_cast %72 : vector<1x4x8xf32> to vector<4x8xf32>
    %cst_77 = arith.constant dense<0.000000e+00> : vector<256x8xf32>
    %74 = tpu.matmul %71, %73, %cst_77 {dimension_numbers = #tpu.dot_dimension_numbers<[1], [0], [0], [1], [0, 0, 1, 1], [], []>} : vector<256x4xf32>, vector<4x8xf32>, vector<256x8xf32> -> vector<256x8xf32>
    %75 = arith.addf %69, %74 : vector<256x8xf32>
    %c0_78 = arith.constant 0 : index
    %c0_79 = arith.constant 0 : index
    %76 = vector.load %arg5[%c0_78, %c0_79] : memref<1x8xf32, #tpu.memory_space<vmem>>, vector<1x8xf32>
    %77 = vector.broadcast %76 : vector<1x8xf32> to vector<256x8xf32>
    %78 = arith.addf %75, %77 : vector<256x8xf32>
    %cst_80 = arith.constant 0.000000e+00 : f32
    %79 = vector.broadcast %cst_80 : f32 to vector<256x8xf32>
    %80 = arith.maximumf %78, %79 : vector<256x8xf32>
    %cst_81 = arith.constant 0.000000e+00 : f32
    %81 = vector.broadcast %cst_81 : f32 to vector<256x8xf32>
    %c0_82 = arith.constant 0 : index
    %c0_83 = arith.constant 0 : index
    %c0_84 = arith.constant 0 : index
    %82 = vector.load %arg12[%c0_82, %c0_83, %c0_84] : memref<20x20x4xf32, #tpu.memory_space<vmem>>, vector<16x16x4xf32>
    %83 = vector.shape_cast %82 : vector<16x16x4xf32> to vector<256x4xf32>
    %c0_85 = arith.constant 0 : index
    %c0_86 = arith.constant 0 : index
    %c0_87 = arith.constant 0 : index
    %84 = vector.load %arg6[%c0_85, %c0_86, %c0_87] : memref<25x4x8xf32, #tpu.memory_space<vmem>>, vector<1x4x8xf32>
    %85 = vector.shape_cast %84 : vector<1x4x8xf32> to vector<4x8xf32>
    %cst_88 = arith.constant dense<0.000000e+00> : vector<256x8xf32>
    %86 = tpu.matmul %83, %85, %cst_88 {dimension_numbers = #tpu.dot_dimension_numbers<[1], [0], [0], [1], [0, 0, 1, 1], [], []>} : vector<256x4xf32>, vector<4x8xf32>, vector<256x8xf32> -> vector<256x8xf32>
    %87 = arith.addf %81, %86 : vector<256x8xf32>
    %c0_89 = arith.constant 0 : index
    %c1_90 = arith.constant 1 : index
    %c0_91 = arith.constant 0 : index
    %88 = vector.load %arg12[%c0_89, %c1_90, %c0_91] : memref<20x20x4xf32, #tpu.memory_space<vmem>>, vector<16x16x4xf32>
    %89 = vector.shape_cast %88 : vector<16x16x4xf32> to vector<256x4xf32>
    %c1_92 = arith.constant 1 : index
    %c0_93 = arith.constant 0 : index
    %c0_94 = arith.constant 0 : index
    %90 = vector.load %arg6[%c1_92, %c0_93, %c0_94] : memref<25x4x8xf32, #tpu.memory_space<vmem>>, vector<1x4x8xf32>
    %91 = vector.shape_cast %90 : vector<1x4x8xf32> to vector<4x8xf32>
    %cst_95 = arith.constant dense<0.000000e+00> : vector<256x8xf32>
    %92 = tpu.matmul %89, %91, %cst_95 {dimension_numbers = #tpu.dot_dimension_numbers<[1], [0], [0], [1], [0, 0, 1, 1], [], []>} : vector<256x4xf32>, vector<4x8xf32>, vector<256x8xf32> -> vector<256x8xf32>
    %93 = arith.addf %87, %92 : vector<256x8xf32>
    %c0_96 = arith.constant 0 : index
    %c2_97 = arith.constant 2 : index
    %c0_98 = arith.constant 0 : index
    %94 = vector.load %arg12[%c0_96, %c2_97, %c0_98] : memref<20x20x4xf32, #tpu.memory_space<vmem>>, vector<16x16x4xf32>
    %95 = vector.shape_cast %94 : vector<16x16x4xf32> to vector<256x4xf32>
    %c2_99 = arith.constant 2 : index
    %c0_100 = arith.constant 0 : index
    %c0_101 = arith.constant 0 : index
    %96 = vector.load %arg6[%c2_99, %c0_100, %c0_101] : memref<25x4x8xf32, #tpu.memory_space<vmem>>, vector<1x4x8xf32>
    %97 = vector.shape_cast %96 : vector<1x4x8xf32> to vector<4x8xf32>
    %cst_102 = arith.constant dense<0.000000e+00> : vector<256x8xf32>
    %98 = tpu.matmul %95, %97, %cst_102 {dimension_numbers = #tpu.dot_dimension_numbers<[1], [0], [0], [1], [0, 0, 1, 1], [], []>} : vector<256x4xf32>, vector<4x8xf32>, vector<256x8xf32> -> vector<256x8xf32>
    %99 = arith.addf %93, %98 : vector<256x8xf32>
    %c0_103 = arith.constant 0 : index
    %c3_104 = arith.constant 3 : index
    %c0_105 = arith.constant 0 : index
    %100 = vector.load %arg12[%c0_103, %c3_104, %c0_105] : memref<20x20x4xf32, #tpu.memory_space<vmem>>, vector<16x16x4xf32>
    %101 = vector.shape_cast %100 : vector<16x16x4xf32> to vector<256x4xf32>
    %c3_106 = arith.constant 3 : index
    %c0_107 = arith.constant 0 : index
    %c0_108 = arith.constant 0 : index
    %102 = vector.load %arg6[%c3_106, %c0_107, %c0_108] : memref<25x4x8xf32, #tpu.memory_space<vmem>>, vector<1x4x8xf32>
    %103 = vector.shape_cast %102 : vector<1x4x8xf32> to vector<4x8xf32>
    %cst_109 = arith.constant dense<0.000000e+00> : vector<256x8xf32>
    %104 = tpu.matmul %101, %103, %cst_109 {dimension_numbers = #tpu.dot_dimension_numbers<[1], [0], [0], [1], [0, 0, 1, 1], [], []>} : vector<256x4xf32>, vector<4x8xf32>, vector<256x8xf32> -> vector<256x8xf32>
    %105 = arith.addf %99, %104 : vector<256x8xf32>
    %c0_110 = arith.constant 0 : index
    %c4_111 = arith.constant 4 : index
    %c0_112 = arith.constant 0 : index
    %106 = vector.load %arg12[%c0_110, %c4_111, %c0_112] : memref<20x20x4xf32, #tpu.memory_space<vmem>>, vector<16x16x4xf32>
    %107 = vector.shape_cast %106 : vector<16x16x4xf32> to vector<256x4xf32>
    %c4_113 = arith.constant 4 : index
    %c0_114 = arith.constant 0 : index
    %c0_115 = arith.constant 0 : index
    %108 = vector.load %arg6[%c4_113, %c0_114, %c0_115] : memref<25x4x8xf32, #tpu.memory_space<vmem>>, vector<1x4x8xf32>
    %109 = vector.shape_cast %108 : vector<1x4x8xf32> to vector<4x8xf32>
    %cst_116 = arith.constant dense<0.000000e+00> : vector<256x8xf32>
    %110 = tpu.matmul %107, %109, %cst_116 {dimension_numbers = #tpu.dot_dimension_numbers<[1], [0], [0], [1], [0, 0, 1, 1], [], []>} : vector<256x4xf32>, vector<4x8xf32>, vector<256x8xf32> -> vector<256x8xf32>
    %111 = arith.addf %105, %110 : vector<256x8xf32>
    %c1_117 = arith.constant 1 : index
    %c0_118 = arith.constant 0 : index
    %c0_119 = arith.constant 0 : index
    %112 = vector.load %arg12[%c1_117, %c0_118, %c0_119] : memref<20x20x4xf32, #tpu.memory_space<vmem>>, vector<16x16x4xf32>
    %113 = vector.shape_cast %112 : vector<16x16x4xf32> to vector<256x4xf32>
    %c5_120 = arith.constant 5 : index
    %c0_121 = arith.constant 0 : index
    %c0_122 = arith.constant 0 : index
    %114 = vector.load %arg6[%c5_120, %c0_121, %c0_122] : memref<25x4x8xf32, #tpu.memory_space<vmem>>, vector<1x4x8xf32>
    %115 = vector.shape_cast %114 : vector<1x4x8xf32> to vector<4x8xf32>
    %cst_123 = arith.constant dense<0.000000e+00> : vector<256x8xf32>
    %116 = tpu.matmul %113, %115, %cst_123 {dimension_numbers = #tpu.dot_dimension_numbers<[1], [0], [0], [1], [0, 0, 1, 1], [], []>} : vector<256x4xf32>, vector<4x8xf32>, vector<256x8xf32> -> vector<256x8xf32>
    %117 = arith.addf %111, %116 : vector<256x8xf32>
    %c1_124 = arith.constant 1 : index
    %c1_125 = arith.constant 1 : index
    %c0_126 = arith.constant 0 : index
    %118 = vector.load %arg12[%c1_124, %c1_125, %c0_126] : memref<20x20x4xf32, #tpu.memory_space<vmem>>, vector<16x16x4xf32>
    %119 = vector.shape_cast %118 : vector<16x16x4xf32> to vector<256x4xf32>
    %c6_127 = arith.constant 6 : index
    %c0_128 = arith.constant 0 : index
    %c0_129 = arith.constant 0 : index
    %120 = vector.load %arg6[%c6_127, %c0_128, %c0_129] : memref<25x4x8xf32, #tpu.memory_space<vmem>>, vector<1x4x8xf32>
    %121 = vector.shape_cast %120 : vector<1x4x8xf32> to vector<4x8xf32>
    %cst_130 = arith.constant dense<0.000000e+00> : vector<256x8xf32>
    %122 = tpu.matmul %119, %121, %cst_130 {dimension_numbers = #tpu.dot_dimension_numbers<[1], [0], [0], [1], [0, 0, 1, 1], [], []>} : vector<256x4xf32>, vector<4x8xf32>, vector<256x8xf32> -> vector<256x8xf32>
    %123 = arith.addf %117, %122 : vector<256x8xf32>
    %c1_131 = arith.constant 1 : index
    %c2_132 = arith.constant 2 : index
    %c0_133 = arith.constant 0 : index
    %124 = vector.load %arg12[%c1_131, %c2_132, %c0_133] : memref<20x20x4xf32, #tpu.memory_space<vmem>>, vector<16x16x4xf32>
    %125 = vector.shape_cast %124 : vector<16x16x4xf32> to vector<256x4xf32>
    %c7_134 = arith.constant 7 : index
    %c0_135 = arith.constant 0 : index
    %c0_136 = arith.constant 0 : index
    %126 = vector.load %arg6[%c7_134, %c0_135, %c0_136] : memref<25x4x8xf32, #tpu.memory_space<vmem>>, vector<1x4x8xf32>
    %127 = vector.shape_cast %126 : vector<1x4x8xf32> to vector<4x8xf32>
    %cst_137 = arith.constant dense<0.000000e+00> : vector<256x8xf32>
    %128 = tpu.matmul %125, %127, %cst_137 {dimension_numbers = #tpu.dot_dimension_numbers<[1], [0], [0], [1], [0, 0, 1, 1], [], []>} : vector<256x4xf32>, vector<4x8xf32>, vector<256x8xf32> -> vector<256x8xf32>
    %129 = arith.addf %123, %128 : vector<256x8xf32>
    %c1_138 = arith.constant 1 : index
    %c3_139 = arith.constant 3 : index
    %c0_140 = arith.constant 0 : index
    %130 = vector.load %arg12[%c1_138, %c3_139, %c0_140] : memref<20x20x4xf32, #tpu.memory_space<vmem>>, vector<16x16x4xf32>
    %131 = vector.shape_cast %130 : vector<16x16x4xf32> to vector<256x4xf32>
    %c8_141 = arith.constant 8 : index
    %c0_142 = arith.constant 0 : index
    %c0_143 = arith.constant 0 : index
    %132 = vector.load %arg6[%c8_141, %c0_142, %c0_143] : memref<25x4x8xf32, #tpu.memory_space<vmem>>, vector<1x4x8xf32>
    %133 = vector.shape_cast %132 : vector<1x4x8xf32> to vector<4x8xf32>
    %cst_144 = arith.constant dense<0.000000e+00> : vector<256x8xf32>
    %134 = tpu.matmul %131, %133, %cst_144 {dimension_numbers = #tpu.dot_dimension_numbers<[1], [0], [0], [1], [0, 0, 1, 1], [], []>} : vector<256x4xf32>, vector<4x8xf32>, vector<256x8xf32> -> vector<256x8xf32>
    %135 = arith.addf %129, %134 : vector<256x8xf32>
    %c1_145 = arith.constant 1 : index
    %c4_146 = arith.constant 4 : index
    %c0_147 = arith.constant 0 : index
    %136 = vector.load %arg12[%c1_145, %c4_146, %c0_147] : memref<20x20x4xf32, #tpu.memory_space<vmem>>, vector<16x16x4xf32>
    %137 = vector.shape_cast %136 : vector<16x16x4xf32> to vector<256x4xf32>
    %c9 = arith.constant 9 : index
    %c0_148 = arith.constant 0 : index
    %c0_149 = arith.constant 0 : index
    %138 = vector.load %arg6[%c9, %c0_148, %c0_149] : memref<25x4x8xf32, #tpu.memory_space<vmem>>, vector<1x4x8xf32>
    %139 = vector.shape_cast %138 : vector<1x4x8xf32> to vector<4x8xf32>
    %cst_150 = arith.constant dense<0.000000e+00> : vector<256x8xf32>
    %140 = tpu.matmul %137, %139, %cst_150 {dimension_numbers = #tpu.dot_dimension_numbers<[1], [0], [0], [1], [0, 0, 1, 1], [], []>} : vector<256x4xf32>, vector<4x8xf32>, vector<256x8xf32> -> vector<256x8xf32>
    %141 = arith.addf %135, %140 : vector<256x8xf32>
    %c2_151 = arith.constant 2 : index
    %c0_152 = arith.constant 0 : index
    %c0_153 = arith.constant 0 : index
    %142 = vector.load %arg12[%c2_151, %c0_152, %c0_153] : memref<20x20x4xf32, #tpu.memory_space<vmem>>, vector<16x16x4xf32>
    %143 = vector.shape_cast %142 : vector<16x16x4xf32> to vector<256x4xf32>
    %c10 = arith.constant 10 : index
    %c0_154 = arith.constant 0 : index
    %c0_155 = arith.constant 0 : index
    %144 = vector.load %arg6[%c10, %c0_154, %c0_155] : memref<25x4x8xf32, #tpu.memory_space<vmem>>, vector<1x4x8xf32>
    %145 = vector.shape_cast %144 : vector<1x4x8xf32> to vector<4x8xf32>
    %cst_156 = arith.constant dense<0.000000e+00> : vector<256x8xf32>
    %146 = tpu.matmul %143, %145, %cst_156 {dimension_numbers = #tpu.dot_dimension_numbers<[1], [0], [0], [1], [0, 0, 1, 1], [], []>} : vector<256x4xf32>, vector<4x8xf32>, vector<256x8xf32> -> vector<256x8xf32>
    %147 = arith.addf %141, %146 : vector<256x8xf32>
    %c2_157 = arith.constant 2 : index
    %c1_158 = arith.constant 1 : index
    %c0_159 = arith.constant 0 : index
    %148 = vector.load %arg12[%c2_157, %c1_158, %c0_159] : memref<20x20x4xf32, #tpu.memory_space<vmem>>, vector<16x16x4xf32>
    %149 = vector.shape_cast %148 : vector<16x16x4xf32> to vector<256x4xf32>
    %c11 = arith.constant 11 : index
    %c0_160 = arith.constant 0 : index
    %c0_161 = arith.constant 0 : index
    %150 = vector.load %arg6[%c11, %c0_160, %c0_161] : memref<25x4x8xf32, #tpu.memory_space<vmem>>, vector<1x4x8xf32>
    %151 = vector.shape_cast %150 : vector<1x4x8xf32> to vector<4x8xf32>
    %cst_162 = arith.constant dense<0.000000e+00> : vector<256x8xf32>
    %152 = tpu.matmul %149, %151, %cst_162 {dimension_numbers = #tpu.dot_dimension_numbers<[1], [0], [0], [1], [0, 0, 1, 1], [], []>} : vector<256x4xf32>, vector<4x8xf32>, vector<256x8xf32> -> vector<256x8xf32>
    %153 = arith.addf %147, %152 : vector<256x8xf32>
    %c2_163 = arith.constant 2 : index
    %c2_164 = arith.constant 2 : index
    %c0_165 = arith.constant 0 : index
    %154 = vector.load %arg12[%c2_163, %c2_164, %c0_165] : memref<20x20x4xf32, #tpu.memory_space<vmem>>, vector<16x16x4xf32>
    %155 = vector.shape_cast %154 : vector<16x16x4xf32> to vector<256x4xf32>
    %c12 = arith.constant 12 : index
    %c0_166 = arith.constant 0 : index
    %c0_167 = arith.constant 0 : index
    %156 = vector.load %arg6[%c12, %c0_166, %c0_167] : memref<25x4x8xf32, #tpu.memory_space<vmem>>, vector<1x4x8xf32>
    %157 = vector.shape_cast %156 : vector<1x4x8xf32> to vector<4x8xf32>
    %cst_168 = arith.constant dense<0.000000e+00> : vector<256x8xf32>
    %158 = tpu.matmul %155, %157, %cst_168 {dimension_numbers = #tpu.dot_dimension_numbers<[1], [0], [0], [1], [0, 0, 1, 1], [], []>} : vector<256x4xf32>, vector<4x8xf32>, vector<256x8xf32> -> vector<256x8xf32>
    %159 = arith.addf %153, %158 : vector<256x8xf32>
    %c2_169 = arith.constant 2 : index
    %c3_170 = arith.constant 3 : index
    %c0_171 = arith.constant 0 : index
    %160 = vector.load %arg12[%c2_169, %c3_170, %c0_171] : memref<20x20x4xf32, #tpu.memory_space<vmem>>, vector<16x16x4xf32>
    %161 = vector.shape_cast %160 : vector<16x16x4xf32> to vector<256x4xf32>
    %c13 = arith.constant 13 : index
    %c0_172 = arith.constant 0 : index
    %c0_173 = arith.constant 0 : index
    %162 = vector.load %arg6[%c13, %c0_172, %c0_173] : memref<25x4x8xf32, #tpu.memory_space<vmem>>, vector<1x4x8xf32>
    %163 = vector.shape_cast %162 : vector<1x4x8xf32> to vector<4x8xf32>
    %cst_174 = arith.constant dense<0.000000e+00> : vector<256x8xf32>
    %164 = tpu.matmul %161, %163, %cst_174 {dimension_numbers = #tpu.dot_dimension_numbers<[1], [0], [0], [1], [0, 0, 1, 1], [], []>} : vector<256x4xf32>, vector<4x8xf32>, vector<256x8xf32> -> vector<256x8xf32>
    %165 = arith.addf %159, %164 : vector<256x8xf32>
    %c2_175 = arith.constant 2 : index
    %c4_176 = arith.constant 4 : index
    %c0_177 = arith.constant 0 : index
    %166 = vector.load %arg12[%c2_175, %c4_176, %c0_177] : memref<20x20x4xf32, #tpu.memory_space<vmem>>, vector<16x16x4xf32>
    %167 = vector.shape_cast %166 : vector<16x16x4xf32> to vector<256x4xf32>
    %c14 = arith.constant 14 : index
    %c0_178 = arith.constant 0 : index
    %c0_179 = arith.constant 0 : index
    %168 = vector.load %arg6[%c14, %c0_178, %c0_179] : memref<25x4x8xf32, #tpu.memory_space<vmem>>, vector<1x4x8xf32>
    %169 = vector.shape_cast %168 : vector<1x4x8xf32> to vector<4x8xf32>
    %cst_180 = arith.constant dense<0.000000e+00> : vector<256x8xf32>
    %170 = tpu.matmul %167, %169, %cst_180 {dimension_numbers = #tpu.dot_dimension_numbers<[1], [0], [0], [1], [0, 0, 1, 1], [], []>} : vector<256x4xf32>, vector<4x8xf32>, vector<256x8xf32> -> vector<256x8xf32>
    %171 = arith.addf %165, %170 : vector<256x8xf32>
    %c3_181 = arith.constant 3 : index
    %c0_182 = arith.constant 0 : index
    %c0_183 = arith.constant 0 : index
    %172 = vector.load %arg12[%c3_181, %c0_182, %c0_183] : memref<20x20x4xf32, #tpu.memory_space<vmem>>, vector<16x16x4xf32>
    %173 = vector.shape_cast %172 : vector<16x16x4xf32> to vector<256x4xf32>
    %c15 = arith.constant 15 : index
    %c0_184 = arith.constant 0 : index
    %c0_185 = arith.constant 0 : index
    %174 = vector.load %arg6[%c15, %c0_184, %c0_185] : memref<25x4x8xf32, #tpu.memory_space<vmem>>, vector<1x4x8xf32>
    %175 = vector.shape_cast %174 : vector<1x4x8xf32> to vector<4x8xf32>
    %cst_186 = arith.constant dense<0.000000e+00> : vector<256x8xf32>
    %176 = tpu.matmul %173, %175, %cst_186 {dimension_numbers = #tpu.dot_dimension_numbers<[1], [0], [0], [1], [0, 0, 1, 1], [], []>} : vector<256x4xf32>, vector<4x8xf32>, vector<256x8xf32> -> vector<256x8xf32>
    %177 = arith.addf %171, %176 : vector<256x8xf32>
    %c3_187 = arith.constant 3 : index
    %c1_188 = arith.constant 1 : index
    %c0_189 = arith.constant 0 : index
    %178 = vector.load %arg12[%c3_187, %c1_188, %c0_189] : memref<20x20x4xf32, #tpu.memory_space<vmem>>, vector<16x16x4xf32>
    %179 = vector.shape_cast %178 : vector<16x16x4xf32> to vector<256x4xf32>
    %c16 = arith.constant 16 : index
    %c0_190 = arith.constant 0 : index
    %c0_191 = arith.constant 0 : index
    %180 = vector.load %arg6[%c16, %c0_190, %c0_191] : memref<25x4x8xf32, #tpu.memory_space<vmem>>, vector<1x4x8xf32>
    %181 = vector.shape_cast %180 : vector<1x4x8xf32> to vector<4x8xf32>
    %cst_192 = arith.constant dense<0.000000e+00> : vector<256x8xf32>
    %182 = tpu.matmul %179, %181, %cst_192 {dimension_numbers = #tpu.dot_dimension_numbers<[1], [0], [0], [1], [0, 0, 1, 1], [], []>} : vector<256x4xf32>, vector<4x8xf32>, vector<256x8xf32> -> vector<256x8xf32>
    %183 = arith.addf %177, %182 : vector<256x8xf32>
    %c3_193 = arith.constant 3 : index
    %c2_194 = arith.constant 2 : index
    %c0_195 = arith.constant 0 : index
    %184 = vector.load %arg12[%c3_193, %c2_194, %c0_195] : memref<20x20x4xf32, #tpu.memory_space<vmem>>, vector<16x16x4xf32>
    %185 = vector.shape_cast %184 : vector<16x16x4xf32> to vector<256x4xf32>
    %c17 = arith.constant 17 : index
    %c0_196 = arith.constant 0 : index
    %c0_197 = arith.constant 0 : index
    %186 = vector.load %arg6[%c17, %c0_196, %c0_197] : memref<25x4x8xf32, #tpu.memory_space<vmem>>, vector<1x4x8xf32>
    %187 = vector.shape_cast %186 : vector<1x4x8xf32> to vector<4x8xf32>
    %cst_198 = arith.constant dense<0.000000e+00> : vector<256x8xf32>
    %188 = tpu.matmul %185, %187, %cst_198 {dimension_numbers = #tpu.dot_dimension_numbers<[1], [0], [0], [1], [0, 0, 1, 1], [], []>} : vector<256x4xf32>, vector<4x8xf32>, vector<256x8xf32> -> vector<256x8xf32>
    %189 = arith.addf %183, %188 : vector<256x8xf32>
    %c3_199 = arith.constant 3 : index
    %c3_200 = arith.constant 3 : index
    %c0_201 = arith.constant 0 : index
    %190 = vector.load %arg12[%c3_199, %c3_200, %c0_201] : memref<20x20x4xf32, #tpu.memory_space<vmem>>, vector<16x16x4xf32>
    %191 = vector.shape_cast %190 : vector<16x16x4xf32> to vector<256x4xf32>
    %c18 = arith.constant 18 : index
    %c0_202 = arith.constant 0 : index
    %c0_203 = arith.constant 0 : index
    %192 = vector.load %arg6[%c18, %c0_202, %c0_203] : memref<25x4x8xf32, #tpu.memory_space<vmem>>, vector<1x4x8xf32>
    %193 = vector.shape_cast %192 : vector<1x4x8xf32> to vector<4x8xf32>
    %cst_204 = arith.constant dense<0.000000e+00> : vector<256x8xf32>
    %194 = tpu.matmul %191, %193, %cst_204 {dimension_numbers = #tpu.dot_dimension_numbers<[1], [0], [0], [1], [0, 0, 1, 1], [], []>} : vector<256x4xf32>, vector<4x8xf32>, vector<256x8xf32> -> vector<256x8xf32>
    %195 = arith.addf %189, %194 : vector<256x8xf32>
    %c3_205 = arith.constant 3 : index
    %c4_206 = arith.constant 4 : index
    %c0_207 = arith.constant 0 : index
    %196 = vector.load %arg12[%c3_205, %c4_206, %c0_207] : memref<20x20x4xf32, #tpu.memory_space<vmem>>, vector<16x16x4xf32>
    %197 = vector.shape_cast %196 : vector<16x16x4xf32> to vector<256x4xf32>
    %c19 = arith.constant 19 : index
    %c0_208 = arith.constant 0 : index
    %c0_209 = arith.constant 0 : index
    %198 = vector.load %arg6[%c19, %c0_208, %c0_209] : memref<25x4x8xf32, #tpu.memory_space<vmem>>, vector<1x4x8xf32>
    %199 = vector.shape_cast %198 : vector<1x4x8xf32> to vector<4x8xf32>
    %cst_210 = arith.constant dense<0.000000e+00> : vector<256x8xf32>
    %200 = tpu.matmul %197, %199, %cst_210 {dimension_numbers = #tpu.dot_dimension_numbers<[1], [0], [0], [1], [0, 0, 1, 1], [], []>} : vector<256x4xf32>, vector<4x8xf32>, vector<256x8xf32> -> vector<256x8xf32>
    %201 = arith.addf %195, %200 : vector<256x8xf32>
    %c4_211 = arith.constant 4 : index
    %c0_212 = arith.constant 0 : index
    %c0_213 = arith.constant 0 : index
    %202 = vector.load %arg12[%c4_211, %c0_212, %c0_213] : memref<20x20x4xf32, #tpu.memory_space<vmem>>, vector<16x16x4xf32>
    %203 = vector.shape_cast %202 : vector<16x16x4xf32> to vector<256x4xf32>
    %c20 = arith.constant 20 : index
    %c0_214 = arith.constant 0 : index
    %c0_215 = arith.constant 0 : index
    %204 = vector.load %arg6[%c20, %c0_214, %c0_215] : memref<25x4x8xf32, #tpu.memory_space<vmem>>, vector<1x4x8xf32>
    %205 = vector.shape_cast %204 : vector<1x4x8xf32> to vector<4x8xf32>
    %cst_216 = arith.constant dense<0.000000e+00> : vector<256x8xf32>
    %206 = tpu.matmul %203, %205, %cst_216 {dimension_numbers = #tpu.dot_dimension_numbers<[1], [0], [0], [1], [0, 0, 1, 1], [], []>} : vector<256x4xf32>, vector<4x8xf32>, vector<256x8xf32> -> vector<256x8xf32>
    %207 = arith.addf %201, %206 : vector<256x8xf32>
    %c4_217 = arith.constant 4 : index
    %c1_218 = arith.constant 1 : index
    %c0_219 = arith.constant 0 : index
    %208 = vector.load %arg12[%c4_217, %c1_218, %c0_219] : memref<20x20x4xf32, #tpu.memory_space<vmem>>, vector<16x16x4xf32>
    %209 = vector.shape_cast %208 : vector<16x16x4xf32> to vector<256x4xf32>
    %c21 = arith.constant 21 : index
    %c0_220 = arith.constant 0 : index
    %c0_221 = arith.constant 0 : index
    %210 = vector.load %arg6[%c21, %c0_220, %c0_221] : memref<25x4x8xf32, #tpu.memory_space<vmem>>, vector<1x4x8xf32>
    %211 = vector.shape_cast %210 : vector<1x4x8xf32> to vector<4x8xf32>
    %cst_222 = arith.constant dense<0.000000e+00> : vector<256x8xf32>
    %212 = tpu.matmul %209, %211, %cst_222 {dimension_numbers = #tpu.dot_dimension_numbers<[1], [0], [0], [1], [0, 0, 1, 1], [], []>} : vector<256x4xf32>, vector<4x8xf32>, vector<256x8xf32> -> vector<256x8xf32>
    %213 = arith.addf %207, %212 : vector<256x8xf32>
    %c4_223 = arith.constant 4 : index
    %c2_224 = arith.constant 2 : index
    %c0_225 = arith.constant 0 : index
    %214 = vector.load %arg12[%c4_223, %c2_224, %c0_225] : memref<20x20x4xf32, #tpu.memory_space<vmem>>, vector<16x16x4xf32>
    %215 = vector.shape_cast %214 : vector<16x16x4xf32> to vector<256x4xf32>
    %c22 = arith.constant 22 : index
    %c0_226 = arith.constant 0 : index
    %c0_227 = arith.constant 0 : index
    %216 = vector.load %arg6[%c22, %c0_226, %c0_227] : memref<25x4x8xf32, #tpu.memory_space<vmem>>, vector<1x4x8xf32>
    %217 = vector.shape_cast %216 : vector<1x4x8xf32> to vector<4x8xf32>
    %cst_228 = arith.constant dense<0.000000e+00> : vector<256x8xf32>
    %218 = tpu.matmul %215, %217, %cst_228 {dimension_numbers = #tpu.dot_dimension_numbers<[1], [0], [0], [1], [0, 0, 1, 1], [], []>} : vector<256x4xf32>, vector<4x8xf32>, vector<256x8xf32> -> vector<256x8xf32>
    %219 = arith.addf %213, %218 : vector<256x8xf32>
    %c4_229 = arith.constant 4 : index
    %c3_230 = arith.constant 3 : index
    %c0_231 = arith.constant 0 : index
    %220 = vector.load %arg12[%c4_229, %c3_230, %c0_231] : memref<20x20x4xf32, #tpu.memory_space<vmem>>, vector<16x16x4xf32>
    %221 = vector.shape_cast %220 : vector<16x16x4xf32> to vector<256x4xf32>
    %c23 = arith.constant 23 : index
    %c0_232 = arith.constant 0 : index
    %c0_233 = arith.constant 0 : index
    %222 = vector.load %arg6[%c23, %c0_232, %c0_233] : memref<25x4x8xf32, #tpu.memory_space<vmem>>, vector<1x4x8xf32>
    %223 = vector.shape_cast %222 : vector<1x4x8xf32> to vector<4x8xf32>
    %cst_234 = arith.constant dense<0.000000e+00> : vector<256x8xf32>
    %224 = tpu.matmul %221, %223, %cst_234 {dimension_numbers = #tpu.dot_dimension_numbers<[1], [0], [0], [1], [0, 0, 1, 1], [], []>} : vector<256x4xf32>, vector<4x8xf32>, vector<256x8xf32> -> vector<256x8xf32>
    %225 = arith.addf %219, %224 : vector<256x8xf32>
    %c4_235 = arith.constant 4 : index
    %c4_236 = arith.constant 4 : index
    %c0_237 = arith.constant 0 : index
    %226 = vector.load %arg12[%c4_235, %c4_236, %c0_237] : memref<20x20x4xf32, #tpu.memory_space<vmem>>, vector<16x16x4xf32>
    %227 = vector.shape_cast %226 : vector<16x16x4xf32> to vector<256x4xf32>
    %c24 = arith.constant 24 : index
    %c0_238 = arith.constant 0 : index
    %c0_239 = arith.constant 0 : index
    %228 = vector.load %arg6[%c24, %c0_238, %c0_239] : memref<25x4x8xf32, #tpu.memory_space<vmem>>, vector<1x4x8xf32>
    %229 = vector.shape_cast %228 : vector<1x4x8xf32> to vector<4x8xf32>
    %cst_240 = arith.constant dense<0.000000e+00> : vector<256x8xf32>
    %230 = tpu.matmul %227, %229, %cst_240 {dimension_numbers = #tpu.dot_dimension_numbers<[1], [0], [0], [1], [0, 0, 1, 1], [], []>} : vector<256x4xf32>, vector<4x8xf32>, vector<256x8xf32> -> vector<256x8xf32>
    %231 = arith.addf %225, %230 : vector<256x8xf32>
    %c0_241 = arith.constant 0 : index
    %c0_242 = arith.constant 0 : index
    %232 = vector.load %arg7[%c0_241, %c0_242] : memref<1x8xf32, #tpu.memory_space<vmem>>, vector<1x8xf32>
    %233 = vector.broadcast %232 : vector<1x8xf32> to vector<256x8xf32>
    %234 = arith.addf %231, %233 : vector<256x8xf32>
    %cst_243 = arith.constant 0.000000e+00 : f32
    %235 = vector.broadcast %cst_243 : f32 to vector<256x8xf32>
    %236 = arith.maximumf %234, %235 : vector<256x8xf32>
    %cst_244 = arith.constant -3.40282347E+38 : f32
    %237 = vector.broadcast %cst_244 : f32 to vector<18x18x4xf32>
    %c0_245 = arith.constant 0 : index
    %c0_246 = arith.constant 0 : index
    %c0_247 = arith.constant 0 : index
    %238 = vector.load %arg13[%c0_245, %c0_246, %c0_247] : memref<18x18x4xf32, #tpu.memory_space<vmem>>, vector<18x18x4xf32>
    tpu.vector_store %arg13[%c0_245, %c0_246, %c0_247], %237 {strides = array<i32>} : memref<18x18x4xf32, #tpu.memory_space<vmem>>, vector<18x18x4xf32>,
    %c1_248 = arith.constant 1 : index
    %c1_249 = arith.constant 1 : index
    %c0_250 = arith.constant 0 : index
    %239 = vector.load %arg13[%c1_248, %c1_249, %c0_250] : memref<18x18x4xf32, #tpu.memory_space<vmem>>, vector<16x16x4xf32>
    tpu.vector_store %arg13[%c1_248, %c1_249, %c0_250], %1 {strides = array<i32>} : memref<18x18x4xf32, #tpu.memory_space<vmem>>, vector<16x16x4xf32>,
    %c0_251 = arith.constant 0 : index
    %c0_252 = arith.constant 0 : index
    %c0_253 = arith.constant 0 : index
    %240 = vector.load %arg13[%c0_251, %c0_252, %c0_253] : memref<18x18x4xf32, #tpu.memory_space<vmem>>, vector<16x18x4xf32>
    %c1_254 = arith.constant 1 : index
    %c0_255 = arith.constant 0 : index
    %c0_256 = arith.constant 0 : index
    %241 = vector.load %arg13[%c1_254, %c0_255, %c0_256] : memref<18x18x4xf32, #tpu.memory_space<vmem>>, vector<16x18x4xf32>
    %242 = arith.maximumf %240, %241 : vector<16x18x4xf32>
    %c2_257 = arith.constant 2 : index
    %c0_258 = arith.constant 0 : index
    %c0_259 = arith.constant 0 : index
    %243 = vector.load %arg13[%c2_257, %c0_258, %c0_259] : memref<18x18x4xf32, #tpu.memory_space<vmem>>, vector<16x18x4xf32>
    %244 = arith.maximumf %242, %243 : vector<16x18x4xf32>
    %245 = vector.extract_strided_slice %244 {offsets = [0, 0, 0], sizes = [16, 16, 4], strides = [1, 1, 1]} : vector<16x18x4xf32> to vector<16x16x4xf32>
    %246 = vector.extract_strided_slice %244 {offsets = [0, 1, 0], sizes = [16, 16, 4], strides = [1, 1, 1]} : vector<16x18x4xf32> to vector<16x16x4xf32>
    %247 = arith.maximumf %245, %246 : vector<16x16x4xf32>
    %248 = vector.extract_strided_slice %244 {offsets = [0, 2, 0], sizes = [16, 16, 4], strides = [1, 1, 1]} : vector<16x18x4xf32> to vector<16x16x4xf32>
    %249 = arith.maximumf %247, %248 : vector<16x16x4xf32>
    %250 = vector.shape_cast %249 : vector<16x16x4xf32> to vector<256x4xf32>
    %c0_260 = arith.constant 0 : index
    %c0_261 = arith.constant 0 : index
    %251 = vector.load %arg8[%c0_260, %c0_261] : memref<4x8xf32, #tpu.memory_space<vmem>>, vector<4x8xf32>
    %cst_262 = arith.constant dense<0.000000e+00> : vector<256x8xf32>
    %252 = tpu.matmul %250, %251, %cst_262 {dimension_numbers = #tpu.dot_dimension_numbers<[1], [0], [0], [1], [0, 0, 1, 1], [], []>} : vector<256x4xf32>, vector<4x8xf32>, vector<256x8xf32> -> vector<256x8xf32>
    %c0_263 = arith.constant 0 : index
    %c0_264 = arith.constant 0 : index
    %253 = vector.load %arg9[%c0_263, %c0_264] : memref<1x8xf32, #tpu.memory_space<vmem>>, vector<1x8xf32>
    %254 = vector.broadcast %253 : vector<1x8xf32> to vector<256x8xf32>
    %255 = arith.addf %252, %254 : vector<256x8xf32>
    %cst_265 = arith.constant 0.000000e+00 : f32
    %256 = vector.broadcast %cst_265 : f32 to vector<256x8xf32>
    %257 = arith.maximumf %255, %256 : vector<256x8xf32>
    %258 = tpu.concatenate %10, %80, %236, %257 in 1 : vector<256x8xf32>, vector<256x8xf32>, vector<256x8xf32>, vector<256x8xf32> -> vector<256x32xf32>
    %259 = vector.shape_cast %258 : vector<256x32xf32> to vector<1x16x16x32xf32>
    %c0_266 = arith.constant 0 : index
    %c0_267 = arith.constant 0 : index
    %c0_268 = arith.constant 0 : index
    %c0_269 = arith.constant 0 : index
    %260 = vector.load %arg10[%c0_266, %c0_267, %c0_268, %c0_269] : memref<1x16x16x32xf32, #tpu.memory_space<vmem>>, vector<1x16x16x32xf32>
    tpu.vector_store %arg10[%c0_266, %c0_267, %c0_268, %c0_269], %259 {strides = array<i32>} : memref<1x16x16x32xf32, #tpu.memory_space<vmem>>, vector<1x16x16x32xf32>,
    return
  }
  func.func @transform_0(%arg0: i32) -> (i32, i32, i32, i32) {
    %c0_i32 = arith.constant 0 : i32
    %c0_i32_0 = arith.constant 0 : i32
    %c0_i32_1 = arith.constant 0 : i32
    %c0_i32_2 = arith.constant 0 : i32
    return %arg0, %c0_i32, %c0_i32_0, %c0_i32_1 : i32, i32, i32, i32
  }
  func.func @transform_1(%arg0: i32) -> (i32, i32) {
    %c0_i32 = arith.constant 0 : i32
    %c0_i32_0 = arith.constant 0 : i32
    %c0_i32_1 = arith.constant 0 : i32
    return %c0_i32, %c0_i32_0 : i32, i32
  }
  func.func @transform_2(%arg0: i32) -> (i32, i32) {
    %c0_i32 = arith.constant 0 : i32
    %c0_i32_0 = arith.constant 0 : i32
    %c0_i32_1 = arith.constant 0 : i32
    return %c0_i32, %c0_i32_0 : i32, i32
  }
  func.func @transform_3(%arg0: i32) -> (i32, i32, i32) {
    %c0_i32 = arith.constant 0 : i32
    %c0_i32_0 = arith.constant 0 : i32
    %c0_i32_1 = arith.constant 0 : i32
    %c0_i32_2 = arith.constant 0 : i32
    return %c0_i32, %c0_i32_0, %c0_i32_1 : i32, i32, i32
  }
  func.func @transform_4(%arg0: i32) -> (i32, i32) {
    %c0_i32 = arith.constant 0 : i32
    %c0_i32_0 = arith.constant 0 : i32
    %c0_i32_1 = arith.constant 0 : i32
    return %c0_i32, %c0_i32_0 : i32, i32
  }
  func.func @transform_5(%arg0: i32) -> (i32, i32, i32) {
    %c0_i32 = arith.constant 0 : i32
    %c0_i32_0 = arith.constant 0 : i32
    %c0_i32_1 = arith.constant 0 : i32
    %c0_i32_2 = arith.constant 0 : i32
    return %c0_i32, %c0_i32_0, %c0_i32_1 : i32, i32, i32
  }
  func.func @transform_6(%arg0: i32) -> (i32, i32) {
    %c0_i32 = arith.constant 0 : i32
    %c0_i32_0 = arith.constant 0 : i32
    %c0_i32_1 = arith.constant 0 : i32
    return %c0_i32, %c0_i32_0 : i32, i32
  }
  func.func @transform_7(%arg0: i32) -> (i32, i32) {
    %c0_i32 = arith.constant 0 : i32
    %c0_i32_0 = arith.constant 0 : i32
    %c0_i32_1 = arith.constant 0 : i32
    return %c0_i32, %c0_i32_0 : i32, i32
  }
  func.func @transform_8(%arg0: i32) -> (i32, i32) {
    %c0_i32 = arith.constant 0 : i32
    %c0_i32_0 = arith.constant 0 : i32
    %c0_i32_1 = arith.constant 0 : i32
    return %c0_i32, %c0_i32_0 : i32, i32
  }
  func.func @transform_9(%arg0: i32) -> (i32, i32, i32, i32) {
    %c0_i32 = arith.constant 0 : i32
    %c0_i32_0 = arith.constant 0 : i32
    %c0_i32_1 = arith.constant 0 : i32
    %c0_i32_2 = arith.constant 0 : i32
    return %arg0, %c0_i32, %c0_i32_0, %c0_i32_1 : i32, i32, i32, i32
  }
}

</mosaic_0001>

<llo_original>
// kernel: inception_forward.1
$region0: #{inception_forward.1}
  #allocation0 [shape = 'u32[]', space=smem, size = 0x4, offset = 0x4, fixed_abs, tag = 'smem constant byte address 0x4 - core index']
  #allocation1 [shape = 'u32[72,128]{1,0:T(1,128)}', space=vmem, size = 0x9000, scoped, tag = 'internal scratch']
  #allocation2 [shape = 'f32[18,18,4]{2,1,0:T(8,128)}', space=vmem, size = 0x36000, scoped, tag = 'scratch operand']
  #allocation3 [shape = 'f32[20,20,4]{2,1,0:T(8,128)}', space=vmem, size = 0x3c000, scoped, tag = 'scratch operand']
  #allocation4 [shape = 'f32[18,18,4]{2,1,0:T(8,128)}', space=vmem, size = 0x36000, scoped, tag = 'scratch operand']
  %s0 = inlined_call_operand.vmem [shape: f32[2,16,16,4], index: 0, kind: input, shape index: {}]
  %s1 = inlined_call_operand.vmem [shape: f32[4,16], index: 1, kind: input, shape index: {}]
  %s2 = inlined_call_operand.vmem [shape: f32[1,16], index: 2, kind: input, shape index: {}]
  %s3 = inlined_call_operand.vmem [shape: f32[9,4,8], index: 3, kind: input, shape index: {}]
  %s4 = inlined_call_operand.vmem [shape: f32[1,8], index: 4, kind: input, shape index: {}]
  %s5 = inlined_call_operand.vmem [shape: f32[25,4,8], index: 5, kind: input, shape index: {}]
  %s6 = inlined_call_operand.vmem [shape: f32[1,8], index: 6, kind: input, shape index: {}]
  %s7 = inlined_call_operand.vmem [shape: f32[4,8], index: 7, kind: input, shape index: {}]
  %s8 = inlined_call_operand.vmem [shape: f32[1,8], index: 8, kind: input, shape index: {}]
  %s9 = inlined_call_operand.hbm [shape: f32[2,16,16,32], index: 9, kind: output, shape index: {}]
  %s10 = sld [smem:[#allocation0]]
  $region69: #{inception_forward.1} parent=0
    _
  %s12 = ssub.s32 1, %s10
  %s13 = scalar_select 0, %s12, %s10
  $region1: #{inception_forward.1} parent=0
    #allocation5 [shape = 'u8[262144]{0}', space=vmem, size = 0x40000, scoped, tag = 'output window, operand 0']
    #allocation6 [shape = 's32[2]{0}', space=sflag, size = 0x8, scoped, tag = 'scoped memory for inception_forward.1']
    %14 = vsyncpa [#allocation6], 0
    %s15 = scalar_lea.sflag [#allocation6], 1
    %16 = vsyncpa %s15, 0
    loop: start=0, step=1, limit=4
    $region2: #{inception_forward.1} parent=1 // loop_pre_header
      _
    $region3: #{inception_forward.1} parent=1 // loop_header
      %s18 = sphi 0, %s22
      %p19 = scmp.ge.s32.totalorder %s18, 4
      %s28 = sphi 0, %s30
      %s31 = sphi 0, %s28
      %s32 = sphi 0, %s31
      %s48 = sphi 0, %s32
      %s52 = sphi 0, %s52
      %s54 = sphi 0, %s52
      %s55 = sphi 0, %s54
      %s69 = sphi 0, %s55
      %s73 = sphi 0, %s73
      %s75 = sphi 0, %s73
      %s76 = sphi 0, %s75
      %s90 = sphi 0, %s76
      %s94 = sphi 0, %s94
      %s96 = sphi 0, %s94
      %s97 = sphi 0, %s96
      %s111 = sphi 0, %s97
      %s115 = sphi 0, %s115
      %s117 = sphi 0, %s115
      %s118 = sphi 0, %s117
      %s132 = sphi 0, %s118
      %s136 = sphi 0, %s136
      %s138 = sphi 0, %s136
      %s139 = sphi 0, %s138
      %s153 = sphi 0, %s139
      %s157 = sphi 0, %s157
      %s159 = sphi 0, %s157
      %s160 = sphi 0, %s159
      %s174 = sphi 0, %s160
      %s178 = sphi 0, %s178
      %s180 = sphi 0, %s178
      %s181 = sphi 0, %s180
      %s195 = sphi 0, %s181
      %s199 = sphi 0, %s199
      %s201 = sphi 0, %s199
      %s202 = sphi 0, %s201
      %s216 = sphi 0, %s202
      %s222 = sphi 0, %s224
      %s225 = sphi 0, %s222
      %s226 = sphi 0, %s225
      %s242 = sphi 0, %s226
    $region4: #{inception_forward.1} parent=1 // loop_header_branch
      %21 = sbr.rel (%p19) target = $region8
    $region5: #{inception_forward.1} parent=1 // loop_body
      %s23 = ssub.s32 %s18, 1
      %s24 = ssub.s32 %s18, 2
      %s25 = sadd.s32 %s18, 1
      %s26 = ssub.s32 %s18, %s25
      %p27 = scmp.eq.s32.totalorder %s26, 0
      %s29 = sadd.s32 %s28, 1
      %s30 = scalar_select %p27, %s28, %s29
      %p33 = pneg %p27
      %p34 = scmp.eq.s32.totalorder %s18, 1
      %p35 = por %p33, %p34
      %p36 = scmp.ne.s32.totalorder %s28, %s31
      %p37 = scmp.eq.s32.totalorder %s18, 0
      %p38 = por %p36, %p37
      %p39 = scmp.ne.s32.totalorder %s28, %s31
      %p40 = scmp.eq.s32.totalorder %s23, 1
      %p41 = por %p39, %p40
      %p42 = scmp.ne.s32.totalorder %s31, %s32
      %p43 = scmp.eq.s32.totalorder %s23, 0
      %p44 = por %p42, %p43
      %p45 = scmp.ne.s32.totalorder %s31, %s32
      %p46 = scmp.eq.s32.totalorder %s24, 1
      %p47 = por %p45, %p46
      %p49 = scmp.ne.s32.totalorder %s32, %s48
      %p50 = scmp.eq.s32.totalorder %s24, 0
      %p51 = por %p49, %p50
      %s53 = sadd.s32 %s52, 1
      %p56 = scmp.eq.s32.totalorder %s18, 1
      %p57 = scmp.ne.s32.totalorder %s52, %s54
      %p58 = scmp.eq.s32.totalorder %s18, 0
      %p59 = por %p57, %p58
      %p60 = scmp.ne.s32.totalorder %s52, %s54
      %p61 = scmp.eq.s32.totalorder %s23, 1
      %p62 = por %p60, %p61
      %p63 = scmp.ne.s32.totalorder %s54, %s55
      %p64 = scmp.eq.s32.totalorder %s23, 0
      %p65 = por %p63, %p64
      %p66 = scmp.ne.s32.totalorder %s54, %s55
      %p67 = scmp.eq.s32.totalorder %s24, 1
      %p68 = por %p66, %p67
      %p70 = scmp.ne.s32.totalorder %s55, %s69
      %p71 = scmp.eq.s32.totalorder %s24, 0
      %p72 = por %p70, %p71
      %s74 = sadd.s32 %s73, 1
      %p77 = scmp.eq.s32.totalorder %s18, 1
      %p78 = scmp.ne.s32.totalorder %s73, %s75
      %p79 = scmp.eq.s32.totalorder %s18, 0
      %p80 = por %p78, %p79
      %p81 = scmp.ne.s32.totalorder %s73, %s75
      %p82 = scmp.eq.s32.totalorder %s23, 1
      %p83 = por %p81, %p82
      %p84 = scmp.ne.s32.totalorder %s75, %s76
      %p85 = scmp.eq.s32.totalorder %s23, 0
      %p86 = por %p84, %p85
      %p87 = scmp.ne.s32.totalorder %s75, %s76
      %p88 = scmp.eq.s32.totalorder %s24, 1
      %p89 = por %p87, %p88
      %p91 = scmp.ne.s32.totalorder %s76, %s90
      %p92 = scmp.eq.s32.totalorder %s24, 0
      %p93 = por %p91, %p92
      %s95 = sadd.s32 %s94, 1
      %p98 = scmp.eq.s32.totalorder %s18, 1
      %p99 = scmp.ne.s32.totalorder %s94, %s96
      %p100 = scmp.eq.s32.totalorder %s18, 0
      %p101 = por %p99, %p100
      %p102 = scmp.ne.s32.totalorder %s94, %s96
      %p103 = scmp.eq.s32.totalorder %s23, 1
      %p104 = por %p102, %p103
      %p105 = scmp.ne.s32.totalorder %s96, %s97
      %p106 = scmp.eq.s32.totalorder %s23, 0
      %p107 = por %p105, %p106
      %p108 = scmp.ne.s32.totalorder %s96, %s97
      %p109 = scmp.eq.s32.totalorder %s24, 1
      %p110 = por %p108, %p109
      %p112 = scmp.ne.s32.totalorder %s97, %s111
      %p113 = scmp.eq.s32.totalorder %s24, 0
      %p114 = por %p112, %p113
      %s116 = sadd.s32 %s115, 1
      %p119 = scmp.eq.s32.totalorder %s18, 1
      %p120 = scmp.ne.s32.totalorder %s115, %s117
      %p121 = scmp.eq.s32.totalorder %s18, 0
      %p122 = por %p120, %p121
      %p123 = scmp.ne.s32.totalorder %s115, %s117
      %p124 = scmp.eq.s32.totalorder %s23, 1
      %p125 = por %p123, %p124
      %p126 = scmp.ne.s32.totalorder %s117, %s118
      %p127 = scmp.eq.s32.totalorder %s23, 0
      %p128 = por %p126, %p127
      %p129 = scmp.ne.s32.totalorder %s117, %s118
      %p130 = scmp.eq.s32.totalorder %s24, 1
      %p131 = por %p129, %p130
      %p133 = scmp.ne.s32.totalorder %s118, %s132
      %p134 = scmp.eq.s32.totalorder %s24, 0
      %p135 = por %p133, %p134
      %s137 = sadd.s32 %s136, 1
      %p140 = scmp.eq.s32.totalorder %s18, 1
      %p141 = scmp.ne.s32.totalorder %s136, %s138
      %p142 = scmp.eq.s32.totalorder %s18, 0
      %p143 = por %p141, %p142
      %p144 = scmp.ne.s32.totalorder %s136, %s138
      %p145 = scmp.eq.s32.totalorder %s23, 1
      %p146 = por %p144, %p145
      %p147 = scmp.ne.s32.totalorder %s138, %s139
      %p148 = scmp.eq.s32.totalorder %s23, 0
      %p149 = por %p147, %p148
      %p150 = scmp.ne.s32.totalorder %s138, %s139
      %p151 = scmp.eq.s32.totalorder %s24, 1
      %p152 = por %p150, %p151
      %p154 = scmp.ne.s32.totalorder %s139, %s153
      %p155 = scmp.eq.s32.totalorder %s24, 0
      %p156 = por %p154, %p155
      %s158 = sadd.s32 %s157, 1
      %p161 = scmp.eq.s32.totalorder %s18, 1
      %p162 = scmp.ne.s32.totalorder %s157, %s159
      %p163 = scmp.eq.s32.totalorder %s18, 0
      %p164 = por %p162, %p163
      %p165 = scmp.ne.s32.totalorder %s157, %s159
      %p166 = scmp.eq.s32.totalorder %s23, 1
      %p167 = por %p165, %p166
      %p168 = scmp.ne.s32.totalorder %s159, %s160
      %p169 = scmp.eq.s32.totalorder %s23, 0
      %p170 = por %p168, %p169
      %p171 = scmp.ne.s32.totalorder %s159, %s160
      %p172 = scmp.eq.s32.totalorder %s24, 1
      %p173 = por %p171, %p172
      %p175 = scmp.ne.s32.totalorder %s160, %s174
      %p176 = scmp.eq.s32.totalorder %s24, 0
      %p177 = por %p175, %p176
      %s179 = sadd.s32 %s178, 1
      %p182 = scmp.eq.s32.totalorder %s18, 1
      %p183 = scmp.ne.s32.totalorder %s178, %s180
      %p184 = scmp.eq.s32.totalorder %s18, 0
      %p185 = por %p183, %p184
      %p186 = scmp.ne.s32.totalorder %s178, %s180
      %p187 = scmp.eq.s32.totalorder %s23, 1
      %p188 = por %p186, %p187
      %p189 = scmp.ne.s32.totalorder %s180, %s181
      %p190 = scmp.eq.s32.totalorder %s23, 0
      %p191 = por %p189, %p190
      %p192 = scmp.ne.s32.totalorder %s180, %s181
      %p193 = scmp.eq.s32.totalorder %s24, 1
      %p194 = por %p192, %p193
      %p196 = scmp.ne.s32.totalorder %s181, %s195
      %p197 = scmp.eq.s32.totalorder %s24, 0
      %p198 = por %p196, %p197
      %s200 = sadd.s32 %s199, 1
      %p203 = scmp.eq.s32.totalorder %s18, 1
      %p204 = scmp.ne.s32.totalorder %s199, %s201
      %p205 = scmp.eq.s32.totalorder %s18, 0
      %p206 = por %p204, %p205
      %p207 = scmp.ne.s32.totalorder %s199, %s201
      %p208 = scmp.eq.s32.totalorder %s23, 1
      %p209 = por %p207, %p208
      %p210 = scmp.ne.s32.totalorder %s201, %s202
      %p211 = scmp.eq.s32.totalorder %s23, 0
      %p212 = por %p210, %p211
      %p213 = scmp.ne.s32.totalorder %s201, %s202
      %p214 = scmp.eq.s32.totalorder %s24, 1
      %p215 = por %p213, %p214
      %p217 = scmp.ne.s32.totalorder %s202, %s216
      %p218 = scmp.eq.s32.totalorder %s24, 0
      %p219 = por %p217, %p218
      %s220 = ssub.s32 %s18, %s25
      %p221 = scmp.eq.s32.totalorder %s220, 0
      %s223 = sadd.s32 %s222, 1
      %s224 = scalar_select %p221, %s222, %s223
      %p227 = pneg %p221
      %p228 = scmp.eq.s32.totalorder %s18, 1
      %p229 = por %p227, %p228
      %p230 = scmp.ne.s32.totalorder %s222, %s225
      %p231 = scmp.eq.s32.totalorder %s18, 0
      %p232 = por %p230, %p231
      %p233 = scmp.ne.s32.totalorder %s222, %s225
      %p234 = scmp.eq.s32.totalorder %s23, 1
      %p235 = por %p233, %p234
      %p236 = scmp.ne.s32.totalorder %s225, %s226
      %p237 = scmp.eq.s32.totalorder %s23, 0
      %p238 = por %p236, %p237
      %p239 = scmp.ne.s32.totalorder %s225, %s226
      %p240 = scmp.eq.s32.totalorder %s24, 1
      %p241 = por %p239, %p240
      %p243 = scmp.ne.s32.totalorder %s226, %s242
      %p244 = scmp.eq.s32.totalorder %s24, 0
      %p245 = por %p243, %p244
      %p246 = scmp.le.s32.totalorder 1, %s18
      %p247 = scmp.lt.s32.totalorder %s18, 3
      %p248 = pnand %p246, %p247
      %p249 = pneg %p248
      // Predicated region
      $region9: #{inception_forward.1} parent=5 // pred_check
        _
      $region10: #{inception_forward.1} parent=5 // pred_check_branch
        %251 = sbr.rel (%p248) target = $region12
      $region11: #{inception_forward.1} parent=5 // pred_region
        %s252 = ssub.s32 %s18, 1
        // Predicated region
        $region13: #{inception_forward.1} parent=11 // pred_check
          %p253 = pneg %p65
        $region14: #{inception_forward.1} parent=11 // pred_check_branch
          %255 = sbr.rel (%p253) target = $region16
        $region15: #{inception_forward.1} parent=11 // pred_region
          _
        $region16: #{inception_forward.1} parent=11 // pred_fallthru
          _
        // Predicated region
        $region17: #{inception_forward.1} parent=11 // pred_check
          %p256 = pneg %p86
        $region18: #{inception_forward.1} parent=11 // pred_check_branch
          %258 = sbr.rel (%p256) target = $region20
        $region19: #{inception_forward.1} parent=11 // pred_region
          _
        $region20: #{inception_forward.1} parent=11 // pred_fallthru
          _
        // Predicated region
        $region21: #{inception_forward.1} parent=11 // pred_check
          %p259 = pneg %p107
        $region22: #{inception_forward.1} parent=11 // pred_check_branch
          %261 = sbr.rel (%p259) target = $region24
        $region23: #{inception_forward.1} parent=11 // pred_region
          _
        $region24: #{inception_forward.1} parent=11 // pred_fallthru
          _
        // Predicated region
        $region25: #{inception_forward.1} parent=11 // pred_check
          %p262 = pneg %p128
        $region26: #{inception_forward.1} parent=11 // pred_check_branch
          %264 = sbr.rel (%p262) target = $region28
        $region27: #{inception_forward.1} parent=11 // pred_region
          _
        $region28: #{inception_forward.1} parent=11 // pred_fallthru
          _
        // Predicated region
        $region29: #{inception_forward.1} parent=11 // pred_check
          %p265 = pneg %p149
        $region30: #{inception_forward.1} parent=11 // pred_check_branch
          %267 = sbr.rel (%p265) target = $region32
        $region31: #{inception_forward.1} parent=11 // pred_region
          _
        $region32: #{inception_forward.1} parent=11 // pred_fallthru
          _
        // Predicated region
        $region33: #{inception_forward.1} parent=11 // pred_check
          %p268 = pneg %p170
        $region34: #{inception_forward.1} parent=11 // pred_check_branch
          %270 = sbr.rel (%p268) target = $region36
        $region35: #{inception_forward.1} parent=11 // pred_region
          _
        $region36: #{inception_forward.1} parent=11 // pred_fallthru
          _
        // Predicated region
        $region37: #{inception_forward.1} parent=11 // pred_check
          %p271 = pneg %p191
        $region38: #{inception_forward.1} parent=11 // pred_check_branch
          %273 = sbr.rel (%p271) target = $region40
        $region39: #{inception_forward.1} parent=11 // pred_region
          _
        $region40: #{inception_forward.1} parent=11 // pred_fallthru
          _
        // Predicated region
        $region41: #{inception_forward.1} parent=11 // pred_check
          %p274 = pneg %p212
        $region42: #{inception_forward.1} parent=11 // pred_check_branch
          %276 = sbr.rel (%p274) target = $region44
        $region43: #{inception_forward.1} parent=11 // pred_region
          _
        $region44: #{inception_forward.1} parent=11 // pred_fallthru
          _
      $region12: #{inception_forward.1} parent=5 // pred_fallthru
        _
      %p277 = scmp.lt.s32.totalorder %s18, 2
      // Predicated region
      $region45: #{inception_forward.1} parent=5 // pred_check
        %p278 = pneg %p277
      $region46: #{inception_forward.1} parent=5 // pred_check_branch
        %280 = sbr.rel (%p278) target = $region48
      $region47: #{inception_forward.1} parent=5 // pred_region
        // Predicated region
        $region49: #{inception_forward.1} parent=47 // pred_check
          %p281 = pneg %p38
        $region50: #{inception_forward.1} parent=47 // pred_check_branch
          %283 = sbr.rel (%p281) target = $region52
        $region51: #{inception_forward.1} parent=47 // pred_region
          %p284 = scmp.lt.s32.totalorder %s18, 1
          %s285 = scalar_select %p284, %s18, 1
          %s286 = smul.addr %s285, 32
          %s287 = smul.addr %s286, 8
          %s288 = scalar_lea.vmem %s0, %s287
        $region52: #{inception_forward.1} parent=47 // pred_fallthru
          _
      $region48: #{inception_forward.1} parent=5 // pred_fallthru
        _
      %p289 = scmp.le.s32.totalorder 1, %s18
      %p290 = scmp.lt.s32.totalorder %s18, 3
      %p291 = pnand %p289, %p290
      %p292 = pneg %p291
      // Predicated region
      $region53: #{inception_forward.1} parent=5 // pred_check
        _
      $region54: #{inception_forward.1} parent=5 // pred_check_branch
        %294 = sbr.rel (%p291) target = $region56
      $region55: #{inception_forward.1} parent=5 // pred_region
        %s295 = ssub.s32 %s18, 1
        %p296 = scmp.lt.s32.totalorder %s23, 1
        %s297 = scalar_select %p296, %s23, 1
        %s298 = smul.addr %s297, 32
        %s299 = smul.addr %s298, 8
        %s300 = scalar_lea.vmem %s0, %s299
        %p301 = pneg %p44
        %p302 = pneg %p41
        %p303 = pneg %p65
        %p304 = pneg %p62
        %p305 = pneg %p86
        %p306 = pneg %p83
        %p307 = pneg %p107
        %p308 = pneg %p104
        %p309 = pneg %p128
        %p310 = pneg %p125
        %p311 = pneg %p149
        %p312 = pneg %p146
        %p313 = pneg %p170
        %p314 = pneg %p167
        %p315 = pneg %p191
        %p316 = pneg %p188
        %p317 = pneg %p212
        %p318 = pneg %p209
        %p319 = pneg %p238
        %p320 = pneg %p235
        %s321 = sand.u32 %s225, 1
        %s322 = scalar_lea.sflag [#allocation6], %s321
        %s323 = sand.u32 %s225, 1
        %s324 = smul.addr %s323, 256
        %s325 = scalar_lea.vmem [#allocation5], %s324
        %p326 = scmp.lt.s32.totalorder %s23, 1
        %s327 = scalar_select %p326, %s23, 1
        %s328 = smul.addr %s327, 32
        %s329 = smul.addr %s328, 8
        %s330 = scalar_lea.vmem %s0, %s329
        %v331 = vld [vmem:[%s330] sm:$0xff]
        %v332 = vld [vmem:[%s330 + $0x8] sm:$0xff]
        %v333 = vld [vmem:[%s330 + $0x10] sm:$0xff]
        %v334 = vld [vmem:[%s330 + $0x18] sm:$0xff]
        %v335 = vld [vmem:[%s330 + $0x20] sm:$0xff]
        %v336 = vld [vmem:[%s330 + $0x28] sm:$0xff]
        %v337 = vld [vmem:[%s330 + $0x30] sm:$0xff]
        %v338 = vld [vmem:[%s330 + $0x38] sm:$0xff]
        %v339 = vld [vmem:[%s330 + $0x40] sm:$0xff]
        %v340 = vld [vmem:[%s330 + $0x48] sm:$0xff]
        %v341 = vld [vmem:[%s330 + $0x50] sm:$0xff]
        %v342 = vld [vmem:[%s330 + $0x58] sm:$0xff]
        %v343 = vld [vmem:[%s330 + $0x60] sm:$0xff]
        %v344 = vld [vmem:[%s330 + $0x68] sm:$0xff]
        %v345 = vld [vmem:[%s330 + $0x70] sm:$0xff]
        %v346 = vld [vmem:[%s330 + $0x78] sm:$0xff]
        %v347 = vld [vmem:[%s330 + $0x80] sm:$0xff]
        %v348 = vld [vmem:[%s330 + $0x88] sm:$0xff]
        %v349 = vld [vmem:[%s330 + $0x90] sm:$0xff]
        %v350 = vld [vmem:[%s330 + $0x98] sm:$0xff]
        %v351 = vld [vmem:[%s330 + $0xa0] sm:$0xff]
        %v352 = vld [vmem:[%s330 + $0xa8] sm:$0xff]
        %v353 = vld [vmem:[%s330 + $0xb0] sm:$0xff]
        %v354 = vld [vmem:[%s330 + $0xb8] sm:$0xff]
        %v355 = vld [vmem:[%s330 + $0xc0] sm:$0xff]
        %v356 = vld [vmem:[%s330 + $0xc8] sm:$0xff]
        %v357 = vld [vmem:[%s330 + $0xd0] sm:$0xff]
        %v358 = vld [vmem:[%s330 + $0xd8] sm:$0xff]
        %v359 = vld [vmem:[%s330 + $0xe0] sm:$0xff]
        %v360 = vld [vmem:[%s330 + $0xe8] sm:$0xff]
        %v361 = vld [vmem:[%s330 + $0xf0] sm:$0xff]
        %v362 = vld [vmem:[%s330 + $0xf8] sm:$0xff]
        %v363 = vld [vmem:[%s1] sm:$0xf]
        %v364 = vld [vmem:[%s2] sm:$0x1]
        %v366 = vperm.slane %v364, 0
        %vm368 = vcmask 31744
        %v370 = vsel %vm368, %v331, 0
        %v373 = vsel %vm368, %v332, 0
        %v376 = vsel %vm368, %v333, 0
        %v379 = vsel %vm368, %v334, 0
        %v382 = vsel %vm368, %v335, 0
        %v385 = vsel %vm368, %v336, 0
        %v388 = vsel %vm368, %v337, 0
        %v391 = vsel %vm368, %v338, 0
        %v394 = vsel %vm368, %v339, 0
        %v397 = vsel %vm368, %v340, 0
        %v400 = vsel %vm368, %v341, 0
        %v403 = vsel %vm368, %v342, 0
        %v406 = vsel %vm368, %v343, 0
        %v409 = vsel %vm368, %v344, 0
        %v412 = vsel %vm368, %v345, 0
        %v415 = vsel %vm368, %v346, 0
        %v418 = vsel %vm368, %v347, 0
        %v421 = vsel %vm368, %v348, 0
        %v424 = vsel %vm368, %v349, 0
        %v427 = vsel %vm368, %v350, 0
        %v430 = vsel %vm368, %v351, 0
        %v433 = vsel %vm368, %v352, 0
        %v436 = vsel %vm368, %v353, 0
        %v439 = vsel %vm368, %v354, 0
        %v442 = vsel %vm368, %v355, 0
        %v445 = vsel %vm368, %v356, 0
        %v448 = vsel %vm368, %v357, 0
        %v451 = vsel %vm368, %v358, 0
        %v454 = vsel %vm368, %v359, 0
        %v457 = vsel %vm368, %v360, 0
        %v460 = vsel %vm368, %v361, 0
        %v463 = vsel %vm368, %v362, 0
        %vm465 = vcmask 1043456
        %v467 = vsel %vm465, %v363, 0
        %469 = vmatpush.msra.mxu0 0.0
        %470 = vmatpush.msra.mxu0 0.0
        %471 = vmatpush.msra.mxu0 0.0
        %472 = vmatpush.msra.mxu0 0.0
        %473 = vmatpush.msra.mxu0 0.0
        %474 = vmatpush.msra.mxu0 0.0
        %475 = vmatpush.msra.mxu0 0.0
        %476 = vmatpush.msra.mxu0 0.0
        %477 = vmatpush.msra.mxu0 0.0
        %478 = vmatpush.msra.mxu0 0.0
        %479 = vmatpush.msra.mxu0 0.0
        %480 = vmatpush.msra.mxu0 0.0
        %481 = vmatpush.msra.mxu0 0.0
        %482 = vmatpush.msra.mxu0 0.0
        %483 = vmatpush.msra.mxu0 0.0
        %484 = vmatpush.msra.mxu0 %v467
        %485 = vmatmul.f32.gmra.mxu0 %v370
        %v486 = vpop.f32.mrf.mxu0
        %v487 = vadd.f32 %v366, %v486
        %488 = vmatmul.f32.gmra.mxu0 %v373
        %v489 = vpop.f32.mrf.mxu0
        %v490 = vadd.f32 %v366, %v489
        %491 = vmatmul.f32.gmra.mxu0 %v376
        %v492 = vpop.f32.mrf.mxu0
        %v493 = vadd.f32 %v366, %v492
        %494 = vmatmul.f32.gmra.mxu0 %v379
        %v495 = vpop.f32.mrf.mxu0
        %v496 = vadd.f32 %v366, %v495
        %497 = vmatmul.f32.gmra.mxu0 %v382
        %v498 = vpop.f32.mrf.mxu0
        %v499 = vadd.f32 %v366, %v498
        %500 = vmatmul.f32.gmra.mxu0 %v385
        %v501 = vpop.f32.mrf.mxu0
        %v502 = vadd.f32 %v366, %v501
        %503 = vmatmul.f32.gmra.mxu0 %v388
        %v504 = vpop.f32.mrf.mxu0
        %v505 = vadd.f32 %v366, %v504
        %506 = vmatmul.f32.gmra.mxu0 %v391
        %v507 = vpop.f32.mrf.mxu0
        %v508 = vadd.f32 %v366, %v507
        %509 = vmatmul.f32.gmra.mxu0 %v394
        %v510 = vpop.f32.mrf.mxu0
        %v511 = vadd.f32 %v366, %v510
        %512 = vmatmul.f32.gmra.mxu0 %v397
        %v513 = vpop.f32.mrf.mxu0
        %v514 = vadd.f32 %v366, %v513
        %515 = vmatmul.f32.gmra.mxu0 %v400
        %v516 = vpop.f32.mrf.mxu0
        %v517 = vadd.f32 %v366, %v516
        %518 = vmatmul.f32.gmra.mxu0 %v403
        %v519 = vpop.f32.mrf.mxu0
        %v520 = vadd.f32 %v366, %v519
        %521 = vmatmul.f32.gmra.mxu0 %v406
        %v522 = vpop.f32.mrf.mxu0
        %v523 = vadd.f32 %v366, %v522
        %524 = vmatmul.f32.gmra.mxu0 %v409
        %v525 = vpop.f32.mrf.mxu0
        %v526 = vadd.f32 %v366, %v525
        %527 = vmatmul.f32.gmra.mxu0 %v412
        %v528 = vpop.f32.mrf.mxu0
        %v529 = vadd.f32 %v366, %v528
        %530 = vmatmul.f32.gmra.mxu0 %v415
        %v531 = vpop.f32.mrf.mxu0
        %v532 = vadd.f32 %v366, %v531
        %533 = vmatmul.f32.gmra.mxu0 %v418
        %v534 = vpop.f32.mrf.mxu0
        %v535 = vadd.f32 %v366, %v534
        %536 = vmatmul.f32.gmra.mxu0 %v421
        %v537 = vpop.f32.mrf.mxu0
        %v538 = vadd.f32 %v366, %v537
        %539 = vmatmul.f32.gmra.mxu0 %v424
        %v540 = vpop.f32.mrf.mxu0
        %v541 = vadd.f32 %v366, %v540
        %542 = vmatmul.f32.gmra.mxu0 %v427
        %v543 = vpop.f32.mrf.mxu0
        %v544 = vadd.f32 %v366, %v543
        %545 = vmatmul.f32.gmra.mxu0 %v430
        %v546 = vpop.f32.mrf.mxu0
        %v547 = vadd.f32 %v366, %v546
        %548 = vmatmul.f32.gmra.mxu0 %v433
        %v549 = vpop.f32.mrf.mxu0
        %v550 = vadd.f32 %v366, %v549
        %551 = vmatmul.f32.gmra.mxu0 %v436
        %v552 = vpop.f32.mrf.mxu0
        %v553 = vadd.f32 %v366, %v552
        %554 = vmatmul.f32.gmra.mxu0 %v439
        %v555 = vpop.f32.mrf.mxu0
        %v556 = vadd.f32 %v366, %v555
        %557 = vmatmul.f32.gmra.mxu0 %v442
        %v558 = vpop.f32.mrf.mxu0
        %v559 = vadd.f32 %v366, %v558
        %560 = vmatmul.f32.gmra.mxu0 %v445
        %v561 = vpop.f32.mrf.mxu0
        %v562 = vadd.f32 %v366, %v561
        %563 = vmatmul.f32.gmra.mxu0 %v448
        %v564 = vpop.f32.mrf.mxu0
        %v565 = vadd.f32 %v366, %v564
        %566 = vmatmul.f32.gmra.mxu0 %v451
        %v567 = vpop.f32.mrf.mxu0
        %v568 = vadd.f32 %v366, %v567
        %569 = vmatmul.f32.gmra.mxu0 %v454
        %v570 = vpop.f32.mrf.mxu0
        %v571 = vadd.f32 %v366, %v570
        %572 = vmatmul.f32.gmra.mxu0 %v457
        %v573 = vpop.f32.mrf.mxu0
        %v574 = vadd.f32 %v366, %v573
        %575 = vmatmul.f32.gmra.mxu0 %v460
        %v576 = vpop.f32.mrf.mxu0
        %v577 = vadd.f32 %v366, %v576
        %578 = vmatmul.f32.gmra.mxu0 %v463
        %v579 = vpop.f32.mrf.mxu0
        %v580 = vadd.f32 %v366, %v579
        %581 = vdwg.mxu0
        %v582 = vmax.f32 %v487, 0.0
        %v583 = vmax.f32 %v490, 0.0
        %v584 = vmax.f32 %v493, 0.0
        %v585 = vmax.f32 %v496, 0.0
        %v586 = vmax.f32 %v499, 0.0
        %v587 = vmax.f32 %v502, 0.0
        %v588 = vmax.f32 %v505, 0.0
        %v589 = vmax.f32 %v508, 0.0
        %v590 = vmax.f32 %v511, 0.0
        %v591 = vmax.f32 %v514, 0.0
        %v592 = vmax.f32 %v517, 0.0
        %v593 = vmax.f32 %v520, 0.0
        %v594 = vmax.f32 %v523, 0.0
        %v595 = vmax.f32 %v526, 0.0
        %v596 = vmax.f32 %v529, 0.0
        %v597 = vmax.f32 %v532, 0.0
        %v598 = vmax.f32 %v535, 0.0
        %v599 = vmax.f32 %v538, 0.0
        %v600 = vmax.f32 %v541, 0.0
        %v601 = vmax.f32 %v544, 0.0
        %v602 = vmax.f32 %v547, 0.0
        %v603 = vmax.f32 %v550, 0.0
        %v604 = vmax.f32 %v553, 0.0
        %v605 = vmax.f32 %v556, 0.0
        %v606 = vmax.f32 %v559, 0.0
        %v607 = vmax.f32 %v562, 0.0
        %v608 = vmax.f32 %v565, 0.0
        %v609 = vmax.f32 %v568, 0.0
        %v610 = vmax.f32 %v571, 0.0
        %v611 = vmax.f32 %v574, 0.0
        %v612 = vmax.f32 %v577, 0.0
        %v613 = vmax.f32 %v580, 0.0
        %614 = vst.msk [vmem:[#allocation2] sm:$0xff] %vm368, 0.0
        %615 = vst.msk [vmem:[#allocation2 + $0x8] sm:$0xff] %vm368, 0.0
        %vm616 = vcmask 25600
        %617 = vst.msk [vmem:[#allocation2 + $0x10] sm:$0x3] %vm616, 0.0
        %618 = vst.msk [vmem:[#allocation2 + $0x18] sm:$0xff] %vm368, 0.0
        %619 = vst.msk [vmem:[#allocation2 + $0x20] sm:$0xff] %vm368, 0.0
        %620 = vst.msk [vmem:[#allocation2 + $0x28] sm:$0x3] %vm616, 0.0
        %621 = vst.msk [vmem:[#allocation2 + $0x30] sm:$0xff] %vm368, 0.0
        %622 = vst.msk [vmem:[#allocation2 + $0x38] sm:$0xff] %vm368, 0.0
        %623 = vst.msk [vmem:[#allocation2 + $0x40] sm:$0x3] %vm616, 0.0
        %624 = vst.msk [vmem:[#allocation2 + $0x48] sm:$0xff] %vm368, 0.0
        %625 = vst.msk [vmem:[#allocation2 + $0x50] sm:$0xff] %vm368, 0.0
        %626 = vst.msk [vmem:[#allocation2 + $0x58] sm:$0x3] %vm616, 0.0
        %627 = vst.msk [vmem:[#allocation2 + $0x60] sm:$0xff] %vm368, 0.0
        %628 = vst.msk [vmem:[#allocation2 + $0x68] sm:$0xff] %vm368, 0.0
        %629 = vst.msk [vmem:[#allocation2 + $0x70] sm:$0x3] %vm616, 0.0
        %630 = vst.msk [vmem:[#allocation2 + $0x78] sm:$0xff] %vm368, 0.0
        %631 = vst.msk [vmem:[#allocation2 + $0x80] sm:$0xff] %vm368, 0.0
        %632 = vst.msk [vmem:[#allocation2 + $0x88] sm:$0x3] %vm616, 0.0
        %633 = vst.msk [vmem:[#allocation2 + $0x90] sm:$0xff] %vm368, 0.0
        %634 = vst.msk [vmem:[#allocation2 + $0x98] sm:$0xff] %vm368, 0.0
        %635 = vst.msk [vmem:[#allocation2 + $0xa0] sm:$0x3] %vm616, 0.0
        %636 = vst.msk [vmem:[#allocation2 + $0xa8] sm:$0xff] %vm368, 0.0
        %637 = vst.msk [vmem:[#allocation2 + $0xb0] sm:$0xff] %vm368, 0.0
        %638 = vst.msk [vmem:[#allocation2 + $0xb8] sm:$0x3] %vm616, 0.0
        %639 = vst.msk [vmem:[#allocation2 + $0xc0] sm:$0xff] %vm368, 0.0
        %640 = vst.msk [vmem:[#allocation2 + $0xc8] sm:$0xff] %vm368, 0.0
        %641 = vst.msk [vmem:[#allocation2 + $0xd0] sm:$0x3] %vm616, 0.0
        %642 = vst.msk [vmem:[#allocation2 + $0xd8] sm:$0xff] %vm368, 0.0
        %643 = vst.msk [vmem:[#allocation2 + $0xe0] sm:$0xff] %vm368, 0.0
        %644 = vst.msk [vmem:[#allocation2 + $0xe8] sm:$0x3] %vm616, 0.0
        %645 = vst.msk [vmem:[#allocation2 + $0xf0] sm:$0xff] %vm368, 0.0
        %646 = vst.msk [vmem:[#allocation2 + $0xf8] sm:$0xff] %vm368, 0.0
        %647 = vst.msk [vmem:[#allocation2 + $0x100] sm:$0x3] %vm616, 0.0
        %648 = vst.msk [vmem:[#allocation2 + $0x108] sm:$0xff] %vm368, 0.0
        %649 = vst.msk [vmem:[#allocation2 + $0x110] sm:$0xff] %vm368, 0.0
        %650 = vst.msk [vmem:[#allocation2 + $0x118] sm:$0x3] %vm616, 0.0
        %651 = vst.msk [vmem:[#allocation2 + $0x120] sm:$0xff] %vm368, 0.0
        %652 = vst.msk [vmem:[#allocation2 + $0x128] sm:$0xff] %vm368, 0.0
        %653 = vst.msk [vmem:[#allocation2 + $0x130] sm:$0x3] %vm616, 0.0
        %654 = vst.msk [vmem:[#allocation2 + $0x138] sm:$0xff] %vm368, 0.0
        %655 = vst.msk [vmem:[#allocation2 + $0x140] sm:$0xff] %vm368, 0.0
        %656 = vst.msk [vmem:[#allocation2 + $0x148] sm:$0x3] %vm616, 0.0
        %657 = vst.msk [vmem:[#allocation2 + $0x150] sm:$0xff] %vm368, 0.0
        %658 = vst.msk [vmem:[#allocation2 + $0x158] sm:$0xff] %vm368, 0.0
        %659 = vst.msk [vmem:[#allocation2 + $0x160] sm:$0x3] %vm616, 0.0
        %660 = vst.msk [vmem:[#allocation2 + $0x168] sm:$0xff] %vm368, 0.0
        %661 = vst.msk [vmem:[#allocation2 + $0x170] sm:$0xff] %vm368, 0.0
        %662 = vst.msk [vmem:[#allocation2 + $0x178] sm:$0x3] %vm616, 0.0
        %663 = vst.msk [vmem:[#allocation2 + $0x180] sm:$0xff] %vm368, 0.0
        %664 = vst.msk [vmem:[#allocation2 + $0x188] sm:$0xff] %vm368, 0.0
        %665 = vst.msk [vmem:[#allocation2 + $0x190] sm:$0x3] %vm616, 0.0
        %666 = vst.msk [vmem:[#allocation2 + $0x198] sm:$0xff] %vm368, 0.0
        %667 = vst.msk [vmem:[#allocation2 + $0x1a0] sm:$0xff] %vm368, 0.0
        %668 = vst.msk [vmem:[#allocation2 + $0x1a8] sm:$0x3] %vm616, 0.0
        %669 = vst.msk [vmem:[#allocation3] sm:$0xff] %vm368, 0.0
        %670 = vst.msk [vmem:[#allocation3 + $0x8] sm:$0xff] %vm368, 0.0
        %vm671 = vcmask 27648
        %672 = vst.msk [vmem:[#allocation3 + $0x10] sm:$0xf] %vm671, 0.0
        %673 = vst.msk [vmem:[#allocation3 + $0x18] sm:$0xff] %vm368, 0.0
        %674 = vst.msk [vmem:[#allocation3 + $0x20] sm:$0xff] %vm368, 0.0
        %675 = vst.msk [vmem:[#allocation3 + $0x28] sm:$0xf] %vm671, 0.0
        %676 = vst.msk [vmem:[#allocation3 + $0x30] sm:$0xff] %vm368, 0.0
        %677 = vst.msk [vmem:[#allocation3 + $0x38] sm:$0xff] %vm368, 0.0
        %678 = vst.msk [vmem:[#allocation3 + $0x40] sm:$0xf] %vm671, 0.0
        %679 = vst.msk [vmem:[#allocation3 + $0x48] sm:$0xff] %vm368, 0.0
        %680 = vst.msk [vmem:[#allocation3 + $0x50] sm:$0xff] %vm368, 0.0
        %681 = vst.msk [vmem:[#allocation3 + $0x58] sm:$0xf] %vm671, 0.0
        %682 = vst.msk [vmem:[#allocation3 + $0x60] sm:$0xff] %vm368, 0.0
        %683 = vst.msk [vmem:[#allocation3 + $0x68] sm:$0xff] %vm368, 0.0
        %684 = vst.msk [vmem:[#allocation3 + $0x70] sm:$0xf] %vm671, 0.0
        %685 = vst.msk [vmem:[#allocation3 + $0x78] sm:$0xff] %vm368, 0.0
        %686 = vst.msk [vmem:[#allocation3 + $0x80] sm:$0xff] %vm368, 0.0
        %687 = vst.msk [vmem:[#allocation3 + $0x88] sm:$0xf] %vm671, 0.0
        %688 = vst.msk [vmem:[#allocation3 + $0x90] sm:$0xff] %vm368, 0.0
        %689 = vst.msk [vmem:[#allocation3 + $0x98] sm:$0xff] %vm368, 0.0
        %690 = vst.msk [vmem:[#allocation3 + $0xa0] sm:$0xf] %vm671, 0.0
        %691 = vst.msk [vmem:[#allocation3 + $0xa8] sm:$0xff] %vm368, 0.0
        %692 = vst.msk [vmem:[#allocation3 + $0xb0] sm:$0xff] %vm368, 0.0
        %693 = vst.msk [vmem:[#allocation3 + $0xb8] sm:$0xf] %vm671, 0.0
        %694 = vst.msk [vmem:[#allocation3 + $0xc0] sm:$0xff] %vm368, 0.0
        %695 = vst.msk [vmem:[#allocation3 + $0xc8] sm:$0xff] %vm368, 0.0
        %696 = vst.msk [vmem:[#allocation3 + $0xd0] sm:$0xf] %vm671, 0.0
        %697 = vst.msk [vmem:[#allocation3 + $0xd8] sm:$0xff] %vm368, 0.0
        %698 = vst.msk [vmem:[#allocation3 + $0xe0] sm:$0xff] %vm368, 0.0
        %699 = vst.msk [vmem:[#allocation3 + $0xe8] sm:$0xf] %vm671, 0.0
        %700 = vst.msk [vmem:[#allocation3 + $0xf0] sm:$0xff] %vm368, 0.0
        %701 = vst.msk [vmem:[#allocation3 + $0xf8] sm:$0xff] %vm368, 0.0
        %702 = vst.msk [vmem:[#allocation3 + $0x100] sm:$0xf] %vm671, 0.0
        %703 = vst.msk [vmem:[#allocation3 + $0x108] sm:$0xff] %vm368, 0.0
        %704 = vst.msk [vmem:[#allocation3 + $0x110] sm:$0xff] %vm368, 0.0
        %705 = vst.msk [vmem:[#allocation3 + $0x118] sm:$0xf] %vm671, 0.0
        %706 = vst.msk [vmem:[#allocation3 + $0x120] sm:$0xff] %vm368, 0.0
        %707 = vst.msk [vmem:[#allocation3 + $0x128] sm:$0xff] %vm368, 0.0
        %708 = vst.msk [vmem:[#allocation3 + $0x130] sm:$0xf] %vm671, 0.0
        %709 = vst.msk [vmem:[#allocation3 + $0x138] sm:$0xff] %vm368, 0.0
        %710 = vst.msk [vmem:[#allocation3 + $0x140] sm:$0xff] %vm368, 0.0
        %711 = vst.msk [vmem:[#allocation3 + $0x148] sm:$0xf] %vm671, 0.0
        %712 = vst.msk [vmem:[#allocation3 + $0x150] sm:$0xff] %vm368, 0.0
        %713 = vst.msk [vmem:[#allocation3 + $0x158] sm:$0xff] %vm368, 0.0
        %714 = vst.msk [vmem:[#allocation3 + $0x160] sm:$0xf] %vm671, 0.0
        %715 = vst.msk [vmem:[#allocation3 + $0x168] sm:$0xff] %vm368, 0.0
        %716 = vst.msk [vmem:[#allocation3 + $0x170] sm:$0xff] %vm368, 0.0
        %717 = vst.msk [vmem:[#allocation3 + $0x178] sm:$0xf] %vm671, 0.0
        %718 = vst.msk [vmem:[#allocation3 + $0x180] sm:$0xff] %vm368, 0.0
        %719 = vst.msk [vmem:[#allocation3 + $0x188] sm:$0xff] %vm368, 0.0
        %720 = vst.msk [vmem:[#allocation3 + $0x190] sm:$0xf] %vm671, 0.0
        %721 = vst.msk [vmem:[#allocation3 + $0x198] sm:$0xff] %vm368, 0.0
        %722 = vst.msk [vmem:[#allocation3 + $0x1a0] sm:$0xff] %vm368, 0.0
        %723 = vst.msk [vmem:[#allocation3 + $0x1a8] sm:$0xf] %vm671, 0.0
        %724 = vst.msk [vmem:[#allocation3 + $0x1b0] sm:$0xff] %vm368, 0.0
        %725 = vst.msk [vmem:[#allocation3 + $0x1b8] sm:$0xff] %vm368, 0.0
        %726 = vst.msk [vmem:[#allocation3 + $0x1c0] sm:$0xf] %vm671, 0.0
        %727 = vst.msk [vmem:[#allocation3 + $0x1c8] sm:$0xff] %vm368, 0.0
        %728 = vst.msk [vmem:[#allocation3 + $0x1d0] sm:$0xff] %vm368, 0.0
        %729 = vst.msk [vmem:[#allocation3 + $0x1d8] sm:$0xf] %vm671, 0.0
        %762 = vrot.lane.b32.xlu0 %v582, 120
        %v763 = vpop.permute.xlu0 %762
        %764 = vrot.lane.b32.xlu0 %v583, 120
        %v765 = vpop.permute.xlu0 %764
        %766 = vrot.lane.b32.xlu0 %v584, 120
        %v767 = vpop.permute.xlu0 %766
        %768 = vrot.lane.b32.xlu0 %v585, 120
        %v769 = vpop.permute.xlu0 %768
        %770 = vrot.lane.b32.xlu0 %v586, 120
        %v771 = vpop.permute.xlu0 %770
        %772 = vrot.lane.b32.xlu0 %v587, 120
        %v773 = vpop.permute.xlu0 %772
        %774 = vrot.lane.b32.xlu0 %v588, 120
        %v775 = vpop.permute.xlu0 %774
        %776 = vrot.lane.b32.xlu0 %v589, 120
        %v777 = vpop.permute.xlu0 %776
        %778 = vrot.lane.b32.xlu0 %v590, 120
        %v779 = vpop.permute.xlu0 %778
        %780 = vrot.lane.b32.xlu0 %v591, 120
        %v781 = vpop.permute.xlu0 %780
        %782 = vrot.lane.b32.xlu0 %v592, 120
        %v783 = vpop.permute.xlu0 %782
        %784 = vrot.lane.b32.xlu0 %v593, 120
        %v785 = vpop.permute.xlu0 %784
        %786 = vrot.lane.b32.xlu0 %v594, 120
        %v787 = vpop.permute.xlu0 %786
        %788 = vrot.lane.b32.xlu0 %v595, 120
        %v789 = vpop.permute.xlu0 %788
        %790 = vrot.lane.b32.xlu0 %v596, 120
        %v791 = vpop.permute.xlu0 %790
        %792 = vrot.lane.b32.xlu0 %v597, 120
        %v793 = vpop.permute.xlu0 %792
        %794 = vrot.lane.b32.xlu0 %v598, 120
        %v795 = vpop.permute.xlu0 %794
        %796 = vrot.lane.b32.xlu0 %v599, 120
        %v797 = vpop.permute.xlu0 %796
        %798 = vrot.lane.b32.xlu0 %v600, 120
        %v799 = vpop.permute.xlu0 %798
        %800 = vrot.lane.b32.xlu0 %v601, 120
        %v801 = vpop.permute.xlu0 %800
        %802 = vrot.lane.b32.xlu0 %v602, 120
        %v803 = vpop.permute.xlu0 %802
        %804 = vrot.lane.b32.xlu0 %v603, 120
        %v805 = vpop.permute.xlu0 %804
        %806 = vrot.lane.b32.xlu0 %v604, 120
        %v807 = vpop.permute.xlu0 %806
        %808 = vrot.lane.b32.xlu0 %v605, 120
        %v809 = vpop.permute.xlu0 %808
        %810 = vrot.lane.b32.xlu0 %v606, 120
        %v811 = vpop.permute.xlu0 %810
        %812 = vrot.lane.b32.xlu0 %v607, 120
        %v813 = vpop.permute.xlu0 %812
        %814 = vrot.lane.b32.xlu0 %v608, 120
        %v815 = vpop.permute.xlu0 %814
        %816 = vrot.lane.b32.xlu0 %v609, 120
        %v817 = vpop.permute.xlu0 %816
        %818 = vrot.lane.b32.xlu0 %v610, 120
        %v819 = vpop.permute.xlu0 %818
        %820 = vrot.lane.b32.xlu0 %v611, 120
        %v821 = vpop.permute.xlu0 %820
        %822 = vrot.lane.b32.xlu0 %v612, 120
        %v823 = vpop.permute.xlu0 %822
        %824 = vrot.lane.b32.xlu0 %v613, 120
        %v825 = vpop.permute.xlu0 %824
        %s858 = scalar_lea.vmem [#allocation2], 24
        %859 = vst.msk [vmem:[%s858 + $0x1] sm:$0xff] %vm368, %v763
        %860 = vst.msk [vmem:[%s858 + $0x9] sm:$0xff] %vm368, %v765
        %861 = vst.msk [vmem:[%s858 + $0x19] sm:$0xff] %vm368, %v767
        %862 = vst.msk [vmem:[%s858 + $0x21] sm:$0xff] %vm368, %v769
        %863 = vst.msk [vmem:[%s858 + $0x31] sm:$0xff] %vm368, %v771
        %864 = vst.msk [vmem:[%s858 + $0x39] sm:$0xff] %vm368, %v773
        %865 = vst.msk [vmem:[%s858 + $0x49] sm:$0xff] %vm368, %v775
        %866 = vst.msk [vmem:[%s858 + $0x51] sm:$0xff] %vm368, %v777
        %867 = vst.msk [vmem:[%s858 + $0x61] sm:$0xff] %vm368, %v779
        %868 = vst.msk [vmem:[%s858 + $0x69] sm:$0xff] %vm368, %v781
        %869 = vst.msk [vmem:[%s858 + $0x79] sm:$0xff] %vm368, %v783
        %870 = vst.msk [vmem:[%s858 + $0x81] sm:$0xff] %vm368, %v785
        %871 = vst.msk [vmem:[%s858 + $0x91] sm:$0xff] %vm368, %v787
        %872 = vst.msk [vmem:[%s858 + $0x99] sm:$0xff] %vm368, %v789
        %873 = vst.msk [vmem:[%s858 + $0xa9] sm:$0xff] %vm368, %v791
        %874 = vst.msk [vmem:[%s858 + $0xb1] sm:$0xff] %vm368, %v793
        %875 = vst.msk [vmem:[%s858 + $0xc1] sm:$0xff] %vm368, %v795
        %876 = vst.msk [vmem:[%s858 + $0xc9] sm:$0xff] %vm368, %v797
        %877 = vst.msk [vmem:[%s858 + $0xd9] sm:$0xff] %vm368, %v799
        %878 = vst.msk [vmem:[%s858 + $0xe1] sm:$0xff] %vm368, %v801
        %879 = vst.msk [vmem:[%s858 + $0xf1] sm:$0xff] %vm368, %v803
        %880 = vst.msk [vmem:[%s858 + $0xf9] sm:$0xff] %vm368, %v805
        %881 = vst.msk [vmem:[%s858 + $0x109] sm:$0xff] %vm368, %v807
        %882 = vst.msk [vmem:[%s858 + $0x111] sm:$0xff] %vm368, %v809
        %883 = vst.msk [vmem:[%s858 + $0x121] sm:$0xff] %vm368, %v811
        %884 = vst.msk [vmem:[%s858 + $0x129] sm:$0xff] %vm368, %v813
        %885 = vst.msk [vmem:[%s858 + $0x139] sm:$0xff] %vm368, %v815
        %886 = vst.msk [vmem:[%s858 + $0x141] sm:$0xff] %vm368, %v817
        %887 = vst.msk [vmem:[%s858 + $0x151] sm:$0xff] %vm368, %v819
        %888 = vst.msk [vmem:[%s858 + $0x159] sm:$0xff] %vm368, %v821
        %889 = vst.msk [vmem:[%s858 + $0x169] sm:$0xff] %vm368, %v823
        %890 = vst.msk [vmem:[%s858 + $0x171] sm:$0xff] %vm368, %v825
        %891 = vrot.lane.b32.xlu0 %v582, 116
        %v892 = vpop.permute.xlu0 %891
        %893 = vrot.lane.b32.xlu0 %v583, 116
        %v894 = vpop.permute.xlu0 %893
        %895 = vrot.lane.b32.xlu0 %v584, 116
        %v896 = vpop.permute.xlu0 %895
        %897 = vrot.lane.b32.xlu0 %v585, 116
        %v898 = vpop.permute.xlu0 %897
        %899 = vrot.lane.b32.xlu0 %v586, 116
        %v900 = vpop.permute.xlu0 %899
        %901 = vrot.lane.b32.xlu0 %v587, 116
        %v902 = vpop.permute.xlu0 %901
        %903 = vrot.lane.b32.xlu0 %v588, 116
        %v904 = vpop.permute.xlu0 %903
        %905 = vrot.lane.b32.xlu0 %v589, 116
        %v906 = vpop.permute.xlu0 %905
        %907 = vrot.lane.b32.xlu0 %v590, 116
        %v908 = vpop.permute.xlu0 %907
        %909 = vrot.lane.b32.xlu0 %v591, 116
        %v910 = vpop.permute.xlu0 %909
        %911 = vrot.lane.b32.xlu0 %v592, 116
        %v912 = vpop.permute.xlu0 %911
        %913 = vrot.lane.b32.xlu0 %v593, 116
        %v914 = vpop.permute.xlu0 %913
        %915 = vrot.lane.b32.xlu0 %v594, 116
        %v916 = vpop.permute.xlu0 %915
        %917 = vrot.lane.b32.xlu0 %v595, 116
        %v918 = vpop.permute.xlu0 %917
        %919 = vrot.lane.b32.xlu0 %v596, 116
        %v920 = vpop.permute.xlu0 %919
        %921 = vrot.lane.b32.xlu0 %v597, 116
        %v922 = vpop.permute.xlu0 %921
        %923 = vrot.lane.b32.xlu0 %v598, 116
        %v924 = vpop.permute.xlu0 %923
        %925 = vrot.lane.b32.xlu0 %v599, 116
        %v926 = vpop.permute.xlu0 %925
        %927 = vrot.lane.b32.xlu0 %v600, 116
        %v928 = vpop.permute.xlu0 %927
        %929 = vrot.lane.b32.xlu0 %v601, 116
        %v930 = vpop.permute.xlu0 %929
        %931 = vrot.lane.b32.xlu0 %v602, 116
        %v932 = vpop.permute.xlu0 %931
        %933 = vrot.lane.b32.xlu0 %v603, 116
        %v934 = vpop.permute.xlu0 %933
        %935 = vrot.lane.b32.xlu0 %v604, 116
        %v936 = vpop.permute.xlu0 %935
        %937 = vrot.lane.b32.xlu0 %v605, 116
        %v938 = vpop.permute.xlu0 %937
        %939 = vrot.lane.b32.xlu0 %v606, 116
        %v940 = vpop.permute.xlu0 %939
        %941 = vrot.lane.b32.xlu0 %v607, 116
        %v942 = vpop.permute.xlu0 %941
        %943 = vrot.lane.b32.xlu0 %v608, 116
        %v944 = vpop.permute.xlu0 %943
        %945 = vrot.lane.b32.xlu0 %v609, 116
        %v946 = vpop.permute.xlu0 %945
        %947 = vrot.lane.b32.xlu0 %v610, 116
        %v948 = vpop.permute.xlu0 %947
        %949 = vrot.lane.b32.xlu0 %v611, 116
        %v950 = vpop.permute.xlu0 %949
        %951 = vrot.lane.b32.xlu0 %v612, 116
        %v952 = vpop.permute.xlu0 %951
        %953 = vrot.lane.b32.xlu0 %v613, 116
        %v954 = vpop.permute.xlu0 %953
        %s987 = scalar_lea.vmem [#allocation3], 48
        %988 = vst.msk [vmem:[%s987 + $0x2] sm:$0xff] %vm368, %v892
        %989 = vst.msk [vmem:[%s987 + $0xa] sm:$0xff] %vm368, %v894
        %990 = vst.msk [vmem:[%s987 + $0x1a] sm:$0xff] %vm368, %v896
        %991 = vst.msk [vmem:[%s987 + $0x22] sm:$0xff] %vm368, %v898
        %992 = vst.msk [vmem:[%s987 + $0x32] sm:$0xff] %vm368, %v900
        %993 = vst.msk [vmem:[%s987 + $0x3a] sm:$0xff] %vm368, %v902
        %994 = vst.msk [vmem:[%s987 + $0x4a] sm:$0xff] %vm368, %v904
        %995 = vst.msk [vmem:[%s987 + $0x52] sm:$0xff] %vm368, %v906
        %996 = vst.msk [vmem:[%s987 + $0x62] sm:$0xff] %vm368, %v908
        %997 = vst.msk [vmem:[%s987 + $0x6a] sm:$0xff] %vm368, %v910
        %998 = vst.msk [vmem:[%s987 + $0x7a] sm:$0xff] %vm368, %v912
        %999 = vst.msk [vmem:[%s987 + $0x82] sm:$0xff] %vm368, %v914
        %1000 = vst.msk [vmem:[%s987 + $0x92] sm:$0xff] %vm368, %v916
        %1001 = vst.msk [vmem:[%s987 + $0x9a] sm:$0xff] %vm368, %v918
        %1002 = vst.msk [vmem:[%s987 + $0xaa] sm:$0xff] %vm368, %v920
        %1003 = vst.msk [vmem:[%s987 + $0xb2] sm:$0xff] %vm368, %v922
        %1004 = vst.msk [vmem:[%s987 + $0xc2] sm:$0xff] %vm368, %v924
        %1005 = vst.msk [vmem:[%s987 + $0xca] sm:$0xff] %vm368, %v926
        %1006 = vst.msk [vmem:[%s987 + $0xda] sm:$0xff] %vm368, %v928
        %1007 = vst.msk [vmem:[%s987 + $0xe2] sm:$0xff] %vm368, %v930
        %1008 = vst.msk [vmem:[%s987 + $0xf2] sm:$0xff] %vm368, %v932
        %1009 = vst.msk [vmem:[%s987 + $0xfa] sm:$0xff] %vm368, %v934
        %1010 = vst.msk [vmem:[%s987 + $0x10a] sm:$0xff] %vm368, %v936
        %1011 = vst.msk [vmem:[%s987 + $0x112] sm:$0xff] %vm368, %v938
        %1012 = vst.msk [vmem:[%s987 + $0x122] sm:$0xff] %vm368, %v940
        %1013 = vst.msk [vmem:[%s987 + $0x12a] sm:$0xff] %vm368, %v942
        %1014 = vst.msk [vmem:[%s987 + $0x13a] sm:$0xff] %vm368, %v944
        %1015 = vst.msk [vmem:[%s987 + $0x142] sm:$0xff] %vm368, %v946
        %1016 = vst.msk [vmem:[%s987 + $0x152] sm:$0xff] %vm368, %v948
        %1017 = vst.msk [vmem:[%s987 + $0x15a] sm:$0xff] %vm368, %v950
        %1018 = vst.msk [vmem:[%s987 + $0x16a] sm:$0xff] %vm368, %v952
        %1019 = vst.msk [vmem:[%s987 + $0x172] sm:$0xff] %vm368, %v954
        %v1020 = vld [vmem:[#allocation2] sm:$0xff]
        %v1021 = vld [vmem:[#allocation2 + $0x8] sm:$0xff]
        %v1022 = vld [vmem:[#allocation2 + $0x18] sm:$0xff]
        %v1023 = vld [vmem:[#allocation2 + $0x20] sm:$0xff]
        %v1024 = vld [vmem:[#allocation2 + $0x30] sm:$0xff]
        %v1025 = vld [vmem:[#allocation2 + $0x38] sm:$0xff]
        %v1026 = vld [vmem:[#allocation2 + $0x48] sm:$0xff]
        %v1027 = vld [vmem:[#allocation2 + $0x50] sm:$0xff]
        %v1028 = vld [vmem:[#allocation2 + $0x60] sm:$0xff]
        %v1029 = vld [vmem:[#allocation2 + $0x68] sm:$0xff]
        %v1030 = vld [vmem:[#allocation2 + $0x78] sm:$0xff]
        %v1031 = vld [vmem:[#allocation2 + $0x80] sm:$0xff]
        %v1032 = vld [vmem:[#allocation2 + $0x90] sm:$0xff]
        %v1033 = vld [vmem:[#allocation2 + $0x98] sm:$0xff]
        %v1034 = vld [vmem:[#allocation2 + $0xa8] sm:$0xff]
        %v1035 = vld [vmem:[#allocation2 + $0xb0] sm:$0xff]
        %v1036 = vld [vmem:[#allocation2 + $0xc0] sm:$0xff]
        %v1037 = vld [vmem:[#allocation2 + $0xc8] sm:$0xff]
        %v1038 = vld [vmem:[#allocation2 + $0xd8] sm:$0xff]
        %v1039 = vld [vmem:[#allocation2 + $0xe0] sm:$0xff]
        %v1040 = vld [vmem:[#allocation2 + $0xf0] sm:$0xff]
        %v1041 = vld [vmem:[#allocation2 + $0xf8] sm:$0xff]
        %v1042 = vld [vmem:[#allocation2 + $0x108] sm:$0xff]
        %v1043 = vld [vmem:[#allocation2 + $0x110] sm:$0xff]
        %v1044 = vld [vmem:[#allocation2 + $0x120] sm:$0xff]
        %v1045 = vld [vmem:[#allocation2 + $0x128] sm:$0xff]
        %v1046 = vld [vmem:[#allocation2 + $0x138] sm:$0xff]
        %v1047 = vld [vmem:[#allocation2 + $0x140] sm:$0xff]
        %v1048 = vld [vmem:[#allocation2 + $0x150] sm:$0xff]
        %v1049 = vld [vmem:[#allocation2 + $0x158] sm:$0xff]
        %v1050 = vld [vmem:[#allocation2 + $0x168] sm:$0xff]
        %v1051 = vld [vmem:[#allocation2 + $0x170] sm:$0xff]
        %v1052 = vld [vmem:[%s3] sm:$0xf]
        %v1053 = vld [vmem:[#allocation2 + $0x1] sm:$0xff]
        %v1054 = vld [vmem:[#allocation2 + $0x9] sm:$0xff]
        %v1055 = vld [vmem:[#allocation2 + $0x19] sm:$0xff]
        %v1056 = vld [vmem:[#allocation2 + $0x21] sm:$0xff]
        %v1057 = vld [vmem:[#allocation2 + $0x31] sm:$0xff]
        %v1058 = vld [vmem:[#allocation2 + $0x39] sm:$0xff]
        %v1059 = vld [vmem:[#allocation2 + $0x49] sm:$0xff]
        %v1060 = vld [vmem:[#allocation2 + $0x51] sm:$0xff]
        %v1061 = vld [vmem:[#allocation2 + $0x61] sm:$0xff]
        %v1062 = vld [vmem:[#allocation2 + $0x69] sm:$0xff]
        %v1063 = vld [vmem:[#allocation2 + $0x79] sm:$0xff]
        %v1064 = vld [vmem:[#allocation2 + $0x81] sm:$0xff]
        %v1065 = vld [vmem:[#allocation2 + $0x91] sm:$0xff]
        %v1066 = vld [vmem:[#allocation2 + $0x99] sm:$0xff]
        %v1067 = vld [vmem:[#allocation2 + $0xa9] sm:$0xff]
        %v1068 = vld [vmem:[#allocation2 + $0xb1] sm:$0xff]
        %v1069 = vld [vmem:[#allocation2 + $0xc1] sm:$0xff]
        %v1070 = vld [vmem:[#allocation2 + $0xc9] sm:$0xff]
        %v1071 = vld [vmem:[#allocation2 + $0xd9] sm:$0xff]
        %v1072 = vld [vmem:[#allocation2 + $0xe1] sm:$0xff]
        %v1073 = vld [vmem:[#allocation2 + $0xf1] sm:$0xff]
        %v1074 = vld [vmem:[#allocation2 + $0xf9] sm:$0xff]
        %v1075 = vld [vmem:[#allocation2 + $0x109] sm:$0xff]
        %v1076 = vld [vmem:[#allocation2 + $0x111] sm:$0xff]
        %v1077 = vld [vmem:[#allocation2 + $0x121] sm:$0xff]
        %v1078 = vld [vmem:[#allocation2 + $0x129] sm:$0xff]
        %v1079 = vld [vmem:[#allocation2 + $0x139] sm:$0xff]
        %v1080 = vld [vmem:[#allocation2 + $0x141] sm:$0xff]
        %v1081 = vld [vmem:[#allocation2 + $0x151] sm:$0xff]
        %v1082 = vld [vmem:[#allocation2 + $0x159] sm:$0xff]
        %v1083 = vld [vmem:[#allocation2 + $0x169] sm:$0xff]
        %v1084 = vld [vmem:[#allocation2 + $0x171] sm:$0xff]
        %s1085 = scalar_lea.vmem %s3, 4
        %v1086 = vld [vmem:[%s1085] sm:$0xf]
        %v1088 = vsel %vm368, %v1053, 0
        %v1091 = vsel %vm368, %v1054, 0
        %v1094 = vsel %vm368, %v1055, 0
        %v1097 = vsel %vm368, %v1056, 0
        %v1100 = vsel %vm368, %v1057, 0
        %v1103 = vsel %vm368, %v1058, 0
        %v1106 = vsel %vm368, %v1059, 0
        %v1109 = vsel %vm368, %v1060, 0
        %v1112 = vsel %vm368, %v1061, 0
        %v1115 = vsel %vm368, %v1062, 0
        %v1118 = vsel %vm368, %v1063, 0
        %v1121 = vsel %vm368, %v1064, 0
        %v1124 = vsel %vm368, %v1065, 0
        %v1127 = vsel %vm368, %v1066, 0
        %v1130 = vsel %vm368, %v1067, 0
        %v1133 = vsel %vm368, %v1068, 0
        %v1136 = vsel %vm368, %v1069, 0
        %v1139 = vsel %vm368, %v1070, 0
        %v1142 = vsel %vm368, %v1071, 0
        %v1145 = vsel %vm368, %v1072, 0
        %v1148 = vsel %vm368, %v1073, 0
        %v1151 = vsel %vm368, %v1074, 0
        %v1154 = vsel %vm368, %v1075, 0
        %v1157 = vsel %vm368, %v1076, 0
        %v1160 = vsel %vm368, %v1077, 0
        %v1163 = vsel %vm368, %v1078, 0
        %v1166 = vsel %vm368, %v1079, 0
        %v1169 = vsel %vm368, %v1080, 0
        %v1172 = vsel %vm368, %v1081, 0
        %v1175 = vsel %vm368, %v1082, 0
        %v1178 = vsel %vm368, %v1083, 0
        %v1181 = vsel %vm368, %v1084, 0
        %v1184 = vsel %vm465, %v1086, 0
        %1186 = vmatpush.msra.mxu0 0.0
        %1187 = vmatpush.msra.mxu0 0.0
        %1188 = vmatpush.msra.mxu0 0.0
        %1189 = vmatpush.msra.mxu0 0.0
        %1190 = vmatpush.msra.mxu0 0.0
        %1191 = vmatpush.msra.mxu0 0.0
        %1192 = vmatpush.msra.mxu0 0.0
        %1193 = vmatpush.msra.mxu0 0.0
        %1194 = vmatpush.msra.mxu0 0.0
        %1195 = vmatpush.msra.mxu0 0.0
        %1196 = vmatpush.msra.mxu0 0.0
        %1197 = vmatpush.msra.mxu0 0.0
        %1198 = vmatpush.msra.mxu0 0.0
        %1199 = vmatpush.msra.mxu0 0.0
        %1200 = vmatpush.msra.mxu0 0.0
        %1201 = vmatpush.msra.mxu0 %v1184
        %1202 = vmatmul.f32.gmra.mxu0 %v1088
        %v1203 = vpop.f32.mrf.mxu0
        %v1204 = vadd.f32 0.0, %v1203
        %1205 = vmatmul.f32.gmra.mxu0 %v1091
        %v1206 = vpop.f32.mrf.mxu0
        %v1207 = vadd.f32 0.0, %v1206
        %1208 = vmatmul.f32.gmra.mxu0 %v1094
        %v1209 = vpop.f32.mrf.mxu0
        %v1210 = vadd.f32 0.0, %v1209
        %1211 = vmatmul.f32.gmra.mxu0 %v1097
        %v1212 = vpop.f32.mrf.mxu0
        %v1213 = vadd.f32 0.0, %v1212
        %1214 = vmatmul.f32.gmra.mxu0 %v1100
        %v1215 = vpop.f32.mrf.mxu0
        %v1216 = vadd.f32 0.0, %v1215
        %1217 = vmatmul.f32.gmra.mxu0 %v1103
        %v1218 = vpop.f32.mrf.mxu0
        %v1219 = vadd.f32 0.0, %v1218
        %1220 = vmatmul.f32.gmra.mxu0 %v1106
        %v1221 = vpop.f32.mrf.mxu0
        %v1222 = vadd.f32 0.0, %v1221
        %1223 = vmatmul.f32.gmra.mxu0 %v1109
        %v1224 = vpop.f32.mrf.mxu0
        %v1225 = vadd.f32 0.0, %v1224
        %1226 = vmatmul.f32.gmra.mxu0 %v1112
        %v1227 = vpop.f32.mrf.mxu0
        %v1228 = vadd.f32 0.0, %v1227
        %1229 = vmatmul.f32.gmra.mxu0 %v1115
        %v1230 = vpop.f32.mrf.mxu0
        %v1231 = vadd.f32 0.0, %v1230
        %1232 = vmatmul.f32.gmra.mxu0 %v1118
        %v1233 = vpop.f32.mrf.mxu0
        %v1234 = vadd.f32 0.0, %v1233
        %1235 = vmatmul.f32.gmra.mxu0 %v1121
        %v1236 = vpop.f32.mrf.mxu0
        %v1237 = vadd.f32 0.0, %v1236
        %1238 = vmatmul.f32.gmra.mxu0 %v1124
        %v1239 = vpop.f32.mrf.mxu0
        %v1240 = vadd.f32 0.0, %v1239
        %1241 = vmatmul.f32.gmra.mxu0 %v1127
        %v1242 = vpop.f32.mrf.mxu0
        %v1243 = vadd.f32 0.0, %v1242
        %1244 = vmatmul.f32.gmra.mxu0 %v1130
        %v1245 = vpop.f32.mrf.mxu0
        %v1246 = vadd.f32 0.0, %v1245
        %1247 = vmatmul.f32.gmra.mxu0 %v1133
        %v1248 = vpop.f32.mrf.mxu0
        %v1249 = vadd.f32 0.0, %v1248
        %1250 = vmatmul.f32.gmra.mxu0 %v1136
        %v1251 = vpop.f32.mrf.mxu0
        %v1252 = vadd.f32 0.0, %v1251
        %1253 = vmatmul.f32.gmra.mxu0 %v1139
        %v1254 = vpop.f32.mrf.mxu0
        %v1255 = vadd.f32 0.0, %v1254
        %1256 = vmatmul.f32.gmra.mxu0 %v1142
        %v1257 = vpop.f32.mrf.mxu0
        %v1258 = vadd.f32 0.0, %v1257
        %1259 = vmatmul.f32.gmra.mxu0 %v1145
        %v1260 = vpop.f32.mrf.mxu0
        %v1261 = vadd.f32 0.0, %v1260
        %1262 = vmatmul.f32.gmra.mxu0 %v1148
        %v1263 = vpop.f32.mrf.mxu0
        %v1264 = vadd.f32 0.0, %v1263
        %1265 = vmatmul.f32.gmra.mxu0 %v1151
        %v1266 = vpop.f32.mrf.mxu0
        %v1267 = vadd.f32 0.0, %v1266
        %1268 = vmatmul.f32.gmra.mxu0 %v1154
        %v1269 = vpop.f32.mrf.mxu0
        %v1270 = vadd.f32 0.0, %v1269
        %1271 = vmatmul.f32.gmra.mxu0 %v1157
        %v1272 = vpop.f32.mrf.mxu0
        %v1273 = vadd.f32 0.0, %v1272
        %1274 = vmatmul.f32.gmra.mxu0 %v1160
        %v1275 = vpop.f32.mrf.mxu0
        %v1276 = vadd.f32 0.0, %v1275
        %1277 = vmatmul.f32.gmra.mxu0 %v1163
        %v1278 = vpop.f32.mrf.mxu0
        %v1279 = vadd.f32 0.0, %v1278
        %1280 = vmatmul.f32.gmra.mxu0 %v1166
        %v1281 = vpop.f32.mrf.mxu0
        %v1282 = vadd.f32 0.0, %v1281
        %1283 = vmatmul.f32.gmra.mxu0 %v1169
        %v1284 = vpop.f32.mrf.mxu0
        %v1285 = vadd.f32 0.0, %v1284
        %1286 = vmatmul.f32.gmra.mxu0 %v1172
        %v1287 = vpop.f32.mrf.mxu0
        %v1288 = vadd.f32 0.0, %v1287
        %1289 = vmatmul.f32.gmra.mxu0 %v1175
        %v1290 = vpop.f32.mrf.mxu0
        %v1291 = vadd.f32 0.0, %v1290
        %1292 = vmatmul.f32.gmra.mxu0 %v1178
        %v1293 = vpop.f32.mrf.mxu0
        %v1294 = vadd.f32 0.0, %v1293
        %1295 = vmatmul.f32.gmra.mxu0 %v1181
        %v1296 = vpop.f32.mrf.mxu0
        %v1297 = vadd.f32 0.0, %v1296
        %1298 = vdwg.mxu0
        %v1300 = vsel %vm368, %v1020, 0
        %v1303 = vsel %vm368, %v1021, 0
        %v1306 = vsel %vm368, %v1022, 0
        %v1309 = vsel %vm368, %v1023, 0
        %v1312 = vsel %vm368, %v1024, 0
        %v1315 = vsel %vm368, %v1025, 0
        %v1318 = vsel %vm368, %v1026, 0
        %v1321 = vsel %vm368, %v1027, 0
        %v1324 = vsel %vm368, %v1028, 0
        %v1327 = vsel %vm368, %v1029, 0
        %v1330 = vsel %vm368, %v1030, 0
        %v1333 = vsel %vm368, %v1031, 0
        %v1336 = vsel %vm368, %v1032, 0
        %v1339 = vsel %vm368, %v1033, 0
        %v1342 = vsel %vm368, %v1034, 0
        %v1345 = vsel %vm368, %v1035, 0
        %v1348 = vsel %vm368, %v1036, 0
        %v1351 = vsel %vm368, %v1037, 0
        %v1354 = vsel %vm368, %v1038, 0
        %v1357 = vsel %vm368, %v1039, 0
        %v1360 = vsel %vm368, %v1040, 0
        %v1363 = vsel %vm368, %v1041, 0
        %v1366 = vsel %vm368, %v1042, 0
        %v1369 = vsel %vm368, %v1043, 0
        %v1372 = vsel %vm368, %v1044, 0
        %v1375 = vsel %vm368, %v1045, 0
        %v1378 = vsel %vm368, %v1046, 0
        %v1381 = vsel %vm368, %v1047, 0
        %v1384 = vsel %vm368, %v1048, 0
        %v1387 = vsel %vm368, %v1049, 0
        %v1390 = vsel %vm368, %v1050, 0
        %v1393 = vsel %vm368, %v1051, 0
        %v1396 = vsel %vm465, %v1052, 0
        %1398 = vmatpush.msra.mxu0 0.0
        %1399 = vmatpush.msra.mxu0 0.0
        %1400 = vmatpush.msra.mxu0 0.0
        %1401 = vmatpush.msra.mxu0 0.0
        %1402 = vmatpush.msra.mxu0 0.0
        %1403 = vmatpush.msra.mxu0 0.0
        %1404 = vmatpush.msra.mxu0 0.0
        %1405 = vmatpush.msra.mxu0 0.0
        %1406 = vmatpush.msra.mxu0 0.0
        %1407 = vmatpush.msra.mxu0 0.0
        %1408 = vmatpush.msra.mxu0 0.0
        %1409 = vmatpush.msra.mxu0 0.0
        %1410 = vmatpush.msra.mxu0 0.0
        %1411 = vmatpush.msra.mxu0 0.0
        %1412 = vmatpush.msra.mxu0 0.0
        %1413 = vmatpush.msra.mxu0 %v1396
        %1414 = vmatmul.f32.gmra.mxu0 %v1300
        %v1415 = vpop.f32.mrf.mxu0
        %v1416 = vadd.f32 %v1204, %v1415
        %1417 = vmatmul.f32.gmra.mxu0 %v1303
        %v1418 = vpop.f32.mrf.mxu0
        %v1419 = vadd.f32 %v1207, %v1418
        %1420 = vmatmul.f32.gmra.mxu0 %v1306
        %v1421 = vpop.f32.mrf.mxu0
        %v1422 = vadd.f32 %v1210, %v1421
        %1423 = vmatmul.f32.gmra.mxu0 %v1309
        %v1424 = vpop.f32.mrf.mxu0
        %v1425 = vadd.f32 %v1213, %v1424
        %1426 = vmatmul.f32.gmra.mxu0 %v1312
        %v1427 = vpop.f32.mrf.mxu0
        %v1428 = vadd.f32 %v1216, %v1427
        %1429 = vmatmul.f32.gmra.mxu0 %v1315
        %v1430 = vpop.f32.mrf.mxu0
        %v1431 = vadd.f32 %v1219, %v1430
        %1432 = vmatmul.f32.gmra.mxu0 %v1318
        %v1433 = vpop.f32.mrf.mxu0
        %v1434 = vadd.f32 %v1222, %v1433
        %1435 = vmatmul.f32.gmra.mxu0 %v1321
        %v1436 = vpop.f32.mrf.mxu0
        %v1437 = vadd.f32 %v1225, %v1436
        %1438 = vmatmul.f32.gmra.mxu0 %v1324
        %v1439 = vpop.f32.mrf.mxu0
        %v1440 = vadd.f32 %v1228, %v1439
        %1441 = vmatmul.f32.gmra.mxu0 %v1327
        %v1442 = vpop.f32.mrf.mxu0
        %v1443 = vadd.f32 %v1231, %v1442
        %1444 = vmatmul.f32.gmra.mxu0 %v1330
        %v1445 = vpop.f32.mrf.mxu0
        %v1446 = vadd.f32 %v1234, %v1445
        %1447 = vmatmul.f32.gmra.mxu0 %v1333
        %v1448 = vpop.f32.mrf.mxu0
        %v1449 = vadd.f32 %v1237, %v1448
        %1450 = vmatmul.f32.gmra.mxu0 %v1336
        %v1451 = vpop.f32.mrf.mxu0
        %v1452 = vadd.f32 %v1240, %v1451
        %1453 = vmatmul.f32.gmra.mxu0 %v1339
        %v1454 = vpop.f32.mrf.mxu0
        %v1455 = vadd.f32 %v1243, %v1454
        %1456 = vmatmul.f32.gmra.mxu0 %v1342
        %v1457 = vpop.f32.mrf.mxu0
        %v1458 = vadd.f32 %v1246, %v1457
        %1459 = vmatmul.f32.gmra.mxu0 %v1345
        %v1460 = vpop.f32.mrf.mxu0
        %v1461 = vadd.f32 %v1249, %v1460
        %1462 = vmatmul.f32.gmra.mxu0 %v1348
        %v1463 = vpop.f32.mrf.mxu0
        %v1464 = vadd.f32 %v1252, %v1463
        %1465 = vmatmul.f32.gmra.mxu0 %v1351
        %v1466 = vpop.f32.mrf.mxu0
        %v1467 = vadd.f32 %v1255, %v1466
        %1468 = vmatmul.f32.gmra.mxu0 %v1354
        %v1469 = vpop.f32.mrf.mxu0
        %v1470 = vadd.f32 %v1258, %v1469
        %1471 = vmatmul.f32.gmra.mxu0 %v1357
        %v1472 = vpop.f32.mrf.mxu0
        %v1473 = vadd.f32 %v1261, %v1472
        %1474 = vmatmul.f32.gmra.mxu0 %v1360
        %v1475 = vpop.f32.mrf.mxu0
        %v1476 = vadd.f32 %v1264, %v1475
        %1477 = vmatmul.f32.gmra.mxu0 %v1363
        %v1478 = vpop.f32.mrf.mxu0
        %v1479 = vadd.f32 %v1267, %v1478
        %1480 = vmatmul.f32.gmra.mxu0 %v1366
        %v1481 = vpop.f32.mrf.mxu0
        %v1482 = vadd.f32 %v1270, %v1481
        %1483 = vmatmul.f32.gmra.mxu0 %v1369
        %v1484 = vpop.f32.mrf.mxu0
        %v1485 = vadd.f32 %v1273, %v1484
        %1486 = vmatmul.f32.gmra.mxu0 %v1372
        %v1487 = vpop.f32.mrf.mxu0
        %v1488 = vadd.f32 %v1276, %v1487
        %1489 = vmatmul.f32.gmra.mxu0 %v1375
        %v1490 = vpop.f32.mrf.mxu0
        %v1491 = vadd.f32 %v1279, %v1490
        %1492 = vmatmul.f32.gmra.mxu0 %v1378
        %v1493 = vpop.f32.mrf.mxu0
        %v1494 = vadd.f32 %v1282, %v1493
        %1495 = vmatmul.f32.gmra.mxu0 %v1381
        %v1496 = vpop.f32.mrf.mxu0
        %v1497 = vadd.f32 %v1285, %v1496
        %1498 = vmatmul.f32.gmra.mxu0 %v1384
        %v1499 = vpop.f32.mrf.mxu0
        %v1500 = vadd.f32 %v1288, %v1499
        %1501 = vmatmul.f32.gmra.mxu0 %v1387
        %v1502 = vpop.f32.mrf.mxu0
        %v1503 = vadd.f32 %v1291, %v1502
        %1504 = vmatmul.f32.gmra.mxu0 %v1390
        %v1505 = vpop.f32.mrf.mxu0
        %v1506 = vadd.f32 %v1294, %v1505
        %1507 = vmatmul.f32.gmra.mxu0 %v1393
        %v1508 = vpop.f32.mrf.mxu0
        %v1509 = vadd.f32 %v1297, %v1508
        %1510 = vdwg.mxu0
        %v1511 = vld [vmem:[#allocation2 + $0x2] sm:$0xff]
        %v1512 = vld [vmem:[#allocation2 + $0xa] sm:$0xff]
        %v1513 = vld [vmem:[#allocation2 + $0x1a] sm:$0xff]
        %v1514 = vld [vmem:[#allocation2 + $0x22] sm:$0xff]
        %v1515 = vld [vmem:[#allocation2 + $0x32] sm:$0xff]
        %v1516 = vld [vmem:[#allocation2 + $0x3a] sm:$0xff]
        %v1517 = vld [vmem:[#allocation2 + $0x4a] sm:$0xff]
        %v1518 = vld [vmem:[#allocation2 + $0x52] sm:$0xff]
        %v1519 = vld [vmem:[#allocation2 + $0x62] sm:$0xff]
        %v1520 = vld [vmem:[#allocation2 + $0x6a] sm:$0xff]
        %v1521 = vld [vmem:[#allocation2 + $0x7a] sm:$0xff]
        %v1522 = vld [vmem:[#allocation2 + $0x82] sm:$0xff]
        %v1523 = vld [vmem:[#allocation2 + $0x92] sm:$0xff]
        %v1524 = vld [vmem:[#allocation2 + $0x9a] sm:$0xff]
        %v1525 = vld [vmem:[#allocation2 + $0xaa] sm:$0xff]
        %v1526 = vld [vmem:[#allocation2 + $0xb2] sm:$0xff]
        %v1527 = vld [vmem:[#allocation2 + $0xc2] sm:$0xff]
        %v1528 = vld [vmem:[#allocation2 + $0xca] sm:$0xff]
        %v1529 = vld [vmem:[#allocation2 + $0xda] sm:$0xff]
        %v1530 = vld [vmem:[#allocation2 + $0xe2] sm:$0xff]
        %v1531 = vld [vmem:[#allocation2 + $0xf2] sm:$0xff]
        %v1532 = vld [vmem:[#allocation2 + $0xfa] sm:$0xff]
        %v1533 = vld [vmem:[#allocation2 + $0x10a] sm:$0xff]
        %v1534 = vld [vmem:[#allocation2 + $0x112] sm:$0xff]
        %v1535 = vld [vmem:[#allocation2 + $0x122] sm:$0xff]
        %v1536 = vld [vmem:[#allocation2 + $0x12a] sm:$0xff]
        %v1537 = vld [vmem:[#allocation2 + $0x13a] sm:$0xff]
        %v1538 = vld [vmem:[#allocation2 + $0x142] sm:$0xff]
        %v1539 = vld [vmem:[#allocation2 + $0x152] sm:$0xff]
        %v1540 = vld [vmem:[#allocation2 + $0x15a] sm:$0xff]
        %v1541 = vld [vmem:[#allocation2 + $0x16a] sm:$0xff]
        %v1542 = vld [vmem:[#allocation2 + $0x172] sm:$0xff]
        %s1543 = scalar_lea.vmem %s3, 8
        %v1544 = vld [vmem:[%s1543] sm:$0xf]
        %v1546 = vsel %vm368, %v1511, 0
        %v1549 = vsel %vm368, %v1512, 0
        %v1552 = vsel %vm368, %v1513, 0
        %v1555 = vsel %vm368, %v1514, 0
        %v1558 = vsel %vm368, %v1515, 0
        %v1561 = vsel %vm368, %v1516, 0
        %v1564 = vsel %vm368, %v1517, 0
        %v1567 = vsel %vm368, %v1518, 0
        %v1570 = vsel %vm368, %v1519, 0
        %v1573 = vsel %vm368, %v1520, 0
        %v1576 = vsel %vm368, %v1521, 0
        %v1579 = vsel %vm368, %v1522, 0
        %v1582 = vsel %vm368, %v1523, 0
        %v1585 = vsel %vm368, %v1524, 0
        %v1588 = vsel %vm368, %v1525, 0
        %v1591 = vsel %vm368, %v1526, 0
        %v1594 = vsel %vm368, %v1527, 0
        %v1597 = vsel %vm368, %v1528, 0
        %v1600 = vsel %vm368, %v1529, 0
        %v1603 = vsel %vm368, %v1530, 0
        %v1606 = vsel %vm368, %v1531, 0
        %v1609 = vsel %vm368, %v1532, 0
        %v1612 = vsel %vm368, %v1533, 0
        %v1615 = vsel %vm368, %v1534, 0
        %v1618 = vsel %vm368, %v1535, 0
        %v1621 = vsel %vm368, %v1536, 0
        %v1624 = vsel %vm368, %v1537, 0
        %v1627 = vsel %vm368, %v1538, 0
        %v1630 = vsel %vm368, %v1539, 0
        %v1633 = vsel %vm368, %v1540, 0
        %v1636 = vsel %vm368, %v1541, 0
        %v1639 = vsel %vm368, %v1542, 0
        %v1642 = vsel %vm465, %v1544, 0
        %1644 = vmatpush.msra.mxu0 0.0
        %1645 = vmatpush.msra.mxu0 0.0
        %1646 = vmatpush.msra.mxu0 0.0
        %1647 = vmatpush.msra.mxu0 0.0
        %1648 = vmatpush.msra.mxu0 0.0
        %1649 = vmatpush.msra.mxu0 0.0
        %1650 = vmatpush.msra.mxu0 0.0
        %1651 = vmatpush.msra.mxu0 0.0
        %1652 = vmatpush.msra.mxu0 0.0
        %1653 = vmatpush.msra.mxu0 0.0
        %1654 = vmatpush.msra.mxu0 0.0
        %1655 = vmatpush.msra.mxu0 0.0
        %1656 = vmatpush.msra.mxu0 0.0
        %1657 = vmatpush.msra.mxu0 0.0
        %1658 = vmatpush.msra.mxu0 0.0
        %1659 = vmatpush.msra.mxu0 %v1642
        %1660 = vmatmul.f32.gmra.mxu0 %v1546
        %v1661 = vpop.f32.mrf.mxu0
        %v1662 = vadd.f32 0.0, %v1661
        %1663 = vmatmul.f32.gmra.mxu0 %v1549
        %v1664 = vpop.f32.mrf.mxu0
        %v1665 = vadd.f32 0.0, %v1664
        %1666 = vmatmul.f32.gmra.mxu0 %v1552
        %v1667 = vpop.f32.mrf.mxu0
        %v1668 = vadd.f32 0.0, %v1667
        %1669 = vmatmul.f32.gmra.mxu0 %v1555
        %v1670 = vpop.f32.mrf.mxu0
        %v1671 = vadd.f32 0.0, %v1670
        %1672 = vmatmul.f32.gmra.mxu0 %v1558
        %v1673 = vpop.f32.mrf.mxu0
        %v1674 = vadd.f32 0.0, %v1673
        %1675 = vmatmul.f32.gmra.mxu0 %v1561
        %v1676 = vpop.f32.mrf.mxu0
        %v1677 = vadd.f32 0.0, %v1676
        %1678 = vmatmul.f32.gmra.mxu0 %v1564
        %v1679 = vpop.f32.mrf.mxu0
        %v1680 = vadd.f32 0.0, %v1679
        %1681 = vmatmul.f32.gmra.mxu0 %v1567
        %v1682 = vpop.f32.mrf.mxu0
        %v1683 = vadd.f32 0.0, %v1682
        %1684 = vmatmul.f32.gmra.mxu0 %v1570
        %v1685 = vpop.f32.mrf.mxu0
        %v1686 = vadd.f32 0.0, %v1685
        %1687 = vmatmul.f32.gmra.mxu0 %v1573
        %v1688 = vpop.f32.mrf.mxu0
        %v1689 = vadd.f32 0.0, %v1688
        %1690 = vmatmul.f32.gmra.mxu0 %v1576
        %v1691 = vpop.f32.mrf.mxu0
        %v1692 = vadd.f32 0.0, %v1691
        %1693 = vmatmul.f32.gmra.mxu0 %v1579
        %v1694 = vpop.f32.mrf.mxu0
        %v1695 = vadd.f32 0.0, %v1694
        %1696 = vmatmul.f32.gmra.mxu0 %v1582
        %v1697 = vpop.f32.mrf.mxu0
        %v1698 = vadd.f32 0.0, %v1697
        %1699 = vmatmul.f32.gmra.mxu0 %v1585
        %v1700 = vpop.f32.mrf.mxu0
        %v1701 = vadd.f32 0.0, %v1700
        %1702 = vmatmul.f32.gmra.mxu0 %v1588
        %v1703 = vpop.f32.mrf.mxu0
        %v1704 = vadd.f32 0.0, %v1703
        %1705 = vmatmul.f32.gmra.mxu0 %v1591
        %v1706 = vpop.f32.mrf.mxu0
        %v1707 = vadd.f32 0.0, %v1706
        %1708 = vmatmul.f32.gmra.mxu0 %v1594
        %v1709 = vpop.f32.mrf.mxu0
        %v1710 = vadd.f32 0.0, %v1709
        %1711 = vmatmul.f32.gmra.mxu0 %v1597
        %v1712 = vpop.f32.mrf.mxu0
        %v1713 = vadd.f32 0.0, %v1712
        %1714 = vmatmul.f32.gmra.mxu0 %v1600
        %v1715 = vpop.f32.mrf.mxu0
        %v1716 = vadd.f32 0.0, %v1715
        %1717 = vmatmul.f32.gmra.mxu0 %v1603
        %v1718 = vpop.f32.mrf.mxu0
        %v1719 = vadd.f32 0.0, %v1718
        %1720 = vmatmul.f32.gmra.mxu0 %v1606
        %v1721 = vpop.f32.mrf.mxu0
        %v1722 = vadd.f32 0.0, %v1721
        %1723 = vmatmul.f32.gmra.mxu0 %v1609
        %v1724 = vpop.f32.mrf.mxu0
        %v1725 = vadd.f32 0.0, %v1724
        %1726 = vmatmul.f32.gmra.mxu0 %v1612
        %v1727 = vpop.f32.mrf.mxu0
        %v1728 = vadd.f32 0.0, %v1727
        %1729 = vmatmul.f32.gmra.mxu0 %v1615
        %v1730 = vpop.f32.mrf.mxu0
        %v1731 = vadd.f32 0.0, %v1730
        %1732 = vmatmul.f32.gmra.mxu0 %v1618
        %v1733 = vpop.f32.mrf.mxu0
        %v1734 = vadd.f32 0.0, %v1733
        %1735 = vmatmul.f32.gmra.mxu0 %v1621
        %v1736 = vpop.f32.mrf.mxu0
        %v1737 = vadd.f32 0.0, %v1736
        %1738 = vmatmul.f32.gmra.mxu0 %v1624
        %v1739 = vpop.f32.mrf.mxu0
        %v1740 = vadd.f32 0.0, %v1739
        %1741 = vmatmul.f32.gmra.mxu0 %v1627
        %v1742 = vpop.f32.mrf.mxu0
        %v1743 = vadd.f32 0.0, %v1742
        %1744 = vmatmul.f32.gmra.mxu0 %v1630
        %v1745 = vpop.f32.mrf.mxu0
        %v1746 = vadd.f32 0.0, %v1745
        %1747 = vmatmul.f32.gmra.mxu0 %v1633
        %v1748 = vpop.f32.mrf.mxu0
        %v1749 = vadd.f32 0.0, %v1748
        %1750 = vmatmul.f32.gmra.mxu0 %v1636
        %v1751 = vpop.f32.mrf.mxu0
        %v1752 = vadd.f32 0.0, %v1751
        %1753 = vmatmul.f32.gmra.mxu0 %v1639
        %v1754 = vpop.f32.mrf.mxu0
        %v1755 = vadd.f32 0.0, %v1754
        %1756 = vdwg.mxu0
        %v1757 = vadd.f32 %v1416, %v1662
        %v1758 = vadd.f32 %v1419, %v1665
        %v1759 = vadd.f32 %v1422, %v1668
        %v1760 = vadd.f32 %v1425, %v1671
        %v1761 = vadd.f32 %v1428, %v1674
        %v1762 = vadd.f32 %v1431, %v1677
        %v1763 = vadd.f32 %v1434, %v1680
        %v1764 = vadd.f32 %v1437, %v1683
        %v1765 = vadd.f32 %v1440, %v1686
        %v1766 = vadd.f32 %v1443, %v1689
        %v1767 = vadd.f32 %v1446, %v1692
        %v1768 = vadd.f32 %v1449, %v1695
        %v1769 = vadd.f32 %v1452, %v1698
        %v1770 = vadd.f32 %v1455, %v1701
        %v1771 = vadd.f32 %v1458, %v1704
        %v1772 = vadd.f32 %v1461, %v1707
        %v1773 = vadd.f32 %v1464, %v1710
        %v1774 = vadd.f32 %v1467, %v1713
        %v1775 = vadd.f32 %v1470, %v1716
        %v1776 = vadd.f32 %v1473, %v1719
        %v1777 = vadd.f32 %v1476, %v1722
        %v1778 = vadd.f32 %v1479, %v1725
        %v1779 = vadd.f32 %v1482, %v1728
        %v1780 = vadd.f32 %v1485, %v1731
        %v1781 = vadd.f32 %v1488, %v1734
        %v1782 = vadd.f32 %v1491, %v1737
        %v1783 = vadd.f32 %v1494, %v1740
        %v1784 = vadd.f32 %v1497, %v1743
        %v1785 = vadd.f32 %v1500, %v1746
        %v1786 = vadd.f32 %v1503, %v1749
        %v1787 = vadd.f32 %v1506, %v1752
        %v1788 = vadd.f32 %v1509, %v1755
        %v1789 = vld [vmem:[%s858] sm:$0xff]
        %v1790 = vld [vmem:[%s858 + $0x8] sm:$0xff]
        %v1791 = vld [vmem:[%s858 + $0x18] sm:$0xff]
        %v1792 = vld [vmem:[%s858 + $0x20] sm:$0xff]
        %v1793 = vld [vmem:[%s858 + $0x30] sm:$0xff]
        %v1794 = vld [vmem:[%s858 + $0x38] sm:$0xff]
        %v1795 = vld [vmem:[%s858 + $0x48] sm:$0xff]
        %v1796 = vld [vmem:[%s858 + $0x50] sm:$0xff]
        %v1797 = vld [vmem:[%s858 + $0x60] sm:$0xff]
        %v1798 = vld [vmem:[%s858 + $0x68] sm:$0xff]
        %v1799 = vld [vmem:[%s858 + $0x78] sm:$0xff]
        %v1800 = vld [vmem:[%s858 + $0x80] sm:$0xff]
        %v1801 = vld [vmem:[%s858 + $0x90] sm:$0xff]
        %v1802 = vld [vmem:[%s858 + $0x98] sm:$0xff]
        %v1803 = vld [vmem:[%s858 + $0xa8] sm:$0xff]
        %v1804 = vld [vmem:[%s858 + $0xb0] sm:$0xff]
        %v1805 = vld [vmem:[%s858 + $0xc0] sm:$0xff]
        %v1806 = vld [vmem:[%s858 + $0xc8] sm:$0xff]
        %v1807 = vld [vmem:[%s858 + $0xd8] sm:$0xff]
        %v1808 = vld [vmem:[%s858 + $0xe0] sm:$0xff]
        %v1809 = vld [vmem:[%s858 + $0xf0] sm:$0xff]
        %v1810 = vld [vmem:[%s858 + $0xf8] sm:$0xff]
        %v1811 = vld [vmem:[%s858 + $0x108] sm:$0xff]
        %v1812 = vld [vmem:[%s858 + $0x110] sm:$0xff]
        %v1813 = vld [vmem:[%s858 + $0x120] sm:$0xff]
        %v1814 = vld [vmem:[%s858 + $0x128] sm:$0xff]
        %v1815 = vld [vmem:[%s858 + $0x138] sm:$0xff]
        %v1816 = vld [vmem:[%s858 + $0x140] sm:$0xff]
        %v1817 = vld [vmem:[%s858 + $0x150] sm:$0xff]
        %v1818 = vld [vmem:[%s858 + $0x158] sm:$0xff]
        %v1819 = vld [vmem:[%s858 + $0x168] sm:$0xff]
        %v1820 = vld [vmem:[%s858 + $0x170] sm:$0xff]
        %s1821 = scalar_lea.vmem %s3, 12
        %v1822 = vld [vmem:[%s1821] sm:$0xf]
        %v1824 = vsel %vm368, %v1789, 0
        %v1827 = vsel %vm368, %v1790, 0
        %v1830 = vsel %vm368, %v1791, 0
        %v1833 = vsel %vm368, %v1792, 0
        %v1836 = vsel %vm368, %v1793, 0
        %v1839 = vsel %vm368, %v1794, 0
        %v1842 = vsel %vm368, %v1795, 0
        %v1845 = vsel %vm368, %v1796, 0
        %v1848 = vsel %vm368, %v1797, 0
        %v1851 = vsel %vm368, %v1798, 0
        %v1854 = vsel %vm368, %v1799, 0
        %v1857 = vsel %vm368, %v1800, 0
        %v1860 = vsel %vm368, %v1801, 0
        %v1863 = vsel %vm368, %v1802, 0
        %v1866 = vsel %vm368, %v1803, 0
        %v1869 = vsel %vm368, %v1804, 0
        %v1872 = vsel %vm368, %v1805, 0
        %v1875 = vsel %vm368, %v1806, 0
        %v1878 = vsel %vm368, %v1807, 0
        %v1881 = vsel %vm368, %v1808, 0
        %v1884 = vsel %vm368, %v1809, 0
        %v1887 = vsel %vm368, %v1810, 0
        %v1890 = vsel %vm368, %v1811, 0
        %v1893 = vsel %vm368, %v1812, 0
        %v1896 = vsel %vm368, %v1813, 0
        %v1899 = vsel %vm368, %v1814, 0
        %v1902 = vsel %vm368, %v1815, 0
        %v1905 = vsel %vm368, %v1816, 0
        %v1908 = vsel %vm368, %v1817, 0
        %v1911 = vsel %vm368, %v1818, 0
        %v1914 = vsel %vm368, %v1819, 0
        %v1917 = vsel %vm368, %v1820, 0
        %v1920 = vsel %vm465, %v1822, 0
        %1922 = vmatpush.msra.mxu0 0.0
        %1923 = vmatpush.msra.mxu0 0.0
        %1924 = vmatpush.msra.mxu0 0.0
        %1925 = vmatpush.msra.mxu0 0.0
        %1926 = vmatpush.msra.mxu0 0.0
        %1927 = vmatpush.msra.mxu0 0.0
        %1928 = vmatpush.msra.mxu0 0.0
        %1929 = vmatpush.msra.mxu0 0.0
        %1930 = vmatpush.msra.mxu0 0.0
        %1931 = vmatpush.msra.mxu0 0.0
        %1932 = vmatpush.msra.mxu0 0.0
        %1933 = vmatpush.msra.mxu0 0.0
        %1934 = vmatpush.msra.mxu0 0.0
        %1935 = vmatpush.msra.mxu0 0.0
        %1936 = vmatpush.msra.mxu0 0.0
        %1937 = vmatpush.msra.mxu0 %v1920
        %1938 = vmatmul.f32.gmra.mxu0 %v1824
        %v1939 = vpop.f32.mrf.mxu0
        %v1940 = vadd.f32 0.0, %v1939
        %1941 = vmatmul.f32.gmra.mxu0 %v1827
        %v1942 = vpop.f32.mrf.mxu0
        %v1943 = vadd.f32 0.0, %v1942
        %1944 = vmatmul.f32.gmra.mxu0 %v1830
        %v1945 = vpop.f32.mrf.mxu0
        %v1946 = vadd.f32 0.0, %v1945
        %1947 = vmatmul.f32.gmra.mxu0 %v1833
        %v1948 = vpop.f32.mrf.mxu0
        %v1949 = vadd.f32 0.0, %v1948
        %1950 = vmatmul.f32.gmra.mxu0 %v1836
        %v1951 = vpop.f32.mrf.mxu0
        %v1952 = vadd.f32 0.0, %v1951
        %1953 = vmatmul.f32.gmra.mxu0 %v1839
        %v1954 = vpop.f32.mrf.mxu0
        %v1955 = vadd.f32 0.0, %v1954
        %1956 = vmatmul.f32.gmra.mxu0 %v1842
        %v1957 = vpop.f32.mrf.mxu0
        %v1958 = vadd.f32 0.0, %v1957
        %1959 = vmatmul.f32.gmra.mxu0 %v1845
        %v1960 = vpop.f32.mrf.mxu0
        %v1961 = vadd.f32 0.0, %v1960
        %1962 = vmatmul.f32.gmra.mxu0 %v1848
        %v1963 = vpop.f32.mrf.mxu0
        %v1964 = vadd.f32 0.0, %v1963
        %1965 = vmatmul.f32.gmra.mxu0 %v1851
        %v1966 = vpop.f32.mrf.mxu0
        %v1967 = vadd.f32 0.0, %v1966
        %1968 = vmatmul.f32.gmra.mxu0 %v1854
        %v1969 = vpop.f32.mrf.mxu0
        %v1970 = vadd.f32 0.0, %v1969
        %1971 = vmatmul.f32.gmra.mxu0 %v1857
        %v1972 = vpop.f32.mrf.mxu0
        %v1973 = vadd.f32 0.0, %v1972
        %1974 = vmatmul.f32.gmra.mxu0 %v1860
        %v1975 = vpop.f32.mrf.mxu0
        %v1976 = vadd.f32 0.0, %v1975
        %1977 = vmatmul.f32.gmra.mxu0 %v1863
        %v1978 = vpop.f32.mrf.mxu0
        %v1979 = vadd.f32 0.0, %v1978
        %1980 = vmatmul.f32.gmra.mxu0 %v1866
        %v1981 = vpop.f32.mrf.mxu0
        %v1982 = vadd.f32 0.0, %v1981
        %1983 = vmatmul.f32.gmra.mxu0 %v1869
        %v1984 = vpop.f32.mrf.mxu0
        %v1985 = vadd.f32 0.0, %v1984
        %1986 = vmatmul.f32.gmra.mxu0 %v1872
        %v1987 = vpop.f32.mrf.mxu0
        %v1988 = vadd.f32 0.0, %v1987
        %1989 = vmatmul.f32.gmra.mxu0 %v1875
        %v1990 = vpop.f32.mrf.mxu0
        %v1991 = vadd.f32 0.0, %v1990
        %1992 = vmatmul.f32.gmra.mxu0 %v1878
        %v1993 = vpop.f32.mrf.mxu0
        %v1994 = vadd.f32 0.0, %v1993
        %1995 = vmatmul.f32.gmra.mxu0 %v1881
        %v1996 = vpop.f32.mrf.mxu0
        %v1997 = vadd.f32 0.0, %v1996
        %1998 = vmatmul.f32.gmra.mxu0 %v1884
        %v1999 = vpop.f32.mrf.mxu0
        %v2000 = vadd.f32 0.0, %v1999
        %2001 = vmatmul.f32.gmra.mxu0 %v1887
        %v2002 = vpop.f32.mrf.mxu0
        %v2003 = vadd.f32 0.0, %v2002
        %2004 = vmatmul.f32.gmra.mxu0 %v1890
        %v2005 = vpop.f32.mrf.mxu0
        %v2006 = vadd.f32 0.0, %v2005
        %2007 = vmatmul.f32.gmra.mxu0 %v1893
        %v2008 = vpop.f32.mrf.mxu0
        %v2009 = vadd.f32 0.0, %v2008
        %2010 = vmatmul.f32.gmra.mxu0 %v1896
        %v2011 = vpop.f32.mrf.mxu0
        %v2012 = vadd.f32 0.0, %v2011
        %2013 = vmatmul.f32.gmra.mxu0 %v1899
        %v2014 = vpop.f32.mrf.mxu0
        %v2015 = vadd.f32 0.0, %v2014
        %2016 = vmatmul.f32.gmra.mxu0 %v1902
        %v2017 = vpop.f32.mrf.mxu0
        %v2018 = vadd.f32 0.0, %v2017
        %2019 = vmatmul.f32.gmra.mxu0 %v1905
        %v2020 = vpop.f32.mrf.mxu0
        %v2021 = vadd.f32 0.0, %v2020
        %2022 = vmatmul.f32.gmra.mxu0 %v1908
        %v2023 = vpop.f32.mrf.mxu0
        %v2024 = vadd.f32 0.0, %v2023
        %2025 = vmatmul.f32.gmra.mxu0 %v1911
        %v2026 = vpop.f32.mrf.mxu0
        %v2027 = vadd.f32 0.0, %v2026
        %2028 = vmatmul.f32.gmra.mxu0 %v1914
        %v2029 = vpop.f32.mrf.mxu0
        %v2030 = vadd.f32 0.0, %v2029
        %2031 = vmatmul.f32.gmra.mxu0 %v1917
        %v2032 = vpop.f32.mrf.mxu0
        %v2033 = vadd.f32 0.0, %v2032
        %2034 = vdwg.mxu0
        %v2035 = vadd.f32 %v1757, %v1940
        %v2036 = vadd.f32 %v1758, %v1943
        %v2037 = vadd.f32 %v1759, %v1946
        %v2038 = vadd.f32 %v1760, %v1949
        %v2039 = vadd.f32 %v1761, %v1952
        %v2040 = vadd.f32 %v1762, %v1955
        %v2041 = vadd.f32 %v1763, %v1958
        %v2042 = vadd.f32 %v1764, %v1961
        %v2043 = vadd.f32 %v1765, %v1964
        %v2044 = vadd.f32 %v1766, %v1967
        %v2045 = vadd.f32 %v1767, %v1970
        %v2046 = vadd.f32 %v1768, %v1973
        %v2047 = vadd.f32 %v1769, %v1976
        %v2048 = vadd.f32 %v1770, %v1979
        %v2049 = vadd.f32 %v1771, %v1982
        %v2050 = vadd.f32 %v1772, %v1985
        %v2051 = vadd.f32 %v1773, %v1988
        %v2052 = vadd.f32 %v1774, %v1991
        %v2053 = vadd.f32 %v1775, %v1994
        %v2054 = vadd.f32 %v1776, %v1997
        %v2055 = vadd.f32 %v1777, %v2000
        %v2056 = vadd.f32 %v1778, %v2003
        %v2057 = vadd.f32 %v1779, %v2006
        %v2058 = vadd.f32 %v1780, %v2009
        %v2059 = vadd.f32 %v1781, %v2012
        %v2060 = vadd.f32 %v1782, %v2015
        %v2061 = vadd.f32 %v1783, %v2018
        %v2062 = vadd.f32 %v1784, %v2021
        %v2063 = vadd.f32 %v1785, %v2024
        %v2064 = vadd.f32 %v1786, %v2027
        %v2065 = vadd.f32 %v1787, %v2030
        %v2066 = vadd.f32 %v1788, %v2033
        %v2067 = vld [vmem:[%s858 + $0x1] sm:$0xff]
        %v2068 = vld [vmem:[%s858 + $0x9] sm:$0xff]
        %v2069 = vld [vmem:[%s858 + $0x19] sm:$0xff]
        %v2070 = vld [vmem:[%s858 + $0x21] sm:$0xff]
        %v2071 = vld [vmem:[%s858 + $0x31] sm:$0xff]
        %v2072 = vld [vmem:[%s858 + $0x39] sm:$0xff]
        %v2073 = vld [vmem:[%s858 + $0x49] sm:$0xff]
        %v2074 = vld [vmem:[%s858 + $0x51] sm:$0xff]
        %v2075 = vld [vmem:[%s858 + $0x61] sm:$0xff]
        %v2076 = vld [vmem:[%s858 + $0x69] sm:$0xff]
        %v2077 = vld [vmem:[%s858 + $0x79] sm:$0xff]
        %v2078 = vld [vmem:[%s858 + $0x81] sm:$0xff]
        %v2079 = vld [vmem:[%s858 + $0x91] sm:$0xff]
        %v2080 = vld [vmem:[%s858 + $0x99] sm:$0xff]
        %v2081 = vld [vmem:[%s858 + $0xa9] sm:$0xff]
        %v2082 = vld [vmem:[%s858 + $0xb1] sm:$0xff]
        %v2083 = vld [vmem:[%s858 + $0xc1] sm:$0xff]
        %v2084 = vld [vmem:[%s858 + $0xc9] sm:$0xff]
        %v2085 = vld [vmem:[%s858 + $0xd9] sm:$0xff]
        %v2086 = vld [vmem:[%s858 + $0xe1] sm:$0xff]
        %v2087 = vld [vmem:[%s858 + $0xf1] sm:$0xff]
        %v2088 = vld [vmem:[%s858 + $0xf9] sm:$0xff]
        %v2089 = vld [vmem:[%s858 + $0x109] sm:$0xff]
        %v2090 = vld [vmem:[%s858 + $0x111] sm:$0xff]
        %v2091 = vld [vmem:[%s858 + $0x121] sm:$0xff]
        %v2092 = vld [vmem:[%s858 + $0x129] sm:$0xff]
        %v2093 = vld [vmem:[%s858 + $0x139] sm:$0xff]
        %v2094 = vld [vmem:[%s858 + $0x141] sm:$0xff]
        %v2095 = vld [vmem:[%s858 + $0x151] sm:$0xff]
        %v2096 = vld [vmem:[%s858 + $0x159] sm:$0xff]
        %v2097 = vld [vmem:[%s858 + $0x169] sm:$0xff]
        %v2098 = vld [vmem:[%s858 + $0x171] sm:$0xff]
        %s2099 = scalar_lea.vmem %s3, 16
        %v2100 = vld [vmem:[%s2099] sm:$0xf]
        %v2102 = vsel %vm368, %v2067, 0
        %v2105 = vsel %vm368, %v2068, 0
        %v2108 = vsel %vm368, %v2069, 0
        %v2111 = vsel %vm368, %v2070, 0
        %v2114 = vsel %vm368, %v2071, 0
        %v2117 = vsel %vm368, %v2072, 0
        %v2120 = vsel %vm368, %v2073, 0
        %v2123 = vsel %vm368, %v2074, 0
        %v2126 = vsel %vm368, %v2075, 0
        %v2129 = vsel %vm368, %v2076, 0
        %v2132 = vsel %vm368, %v2077, 0
        %v2135 = vsel %vm368, %v2078, 0
        %v2138 = vsel %vm368, %v2079, 0
        %v2141 = vsel %vm368, %v2080, 0
        %v2144 = vsel %vm368, %v2081, 0
        %v2147 = vsel %vm368, %v2082, 0
        %v2150 = vsel %vm368, %v2083, 0
        %v2153 = vsel %vm368, %v2084, 0
        %v2156 = vsel %vm368, %v2085, 0
        %v2159 = vsel %vm368, %v2086, 0
        %v2162 = vsel %vm368, %v2087, 0
        %v2165 = vsel %vm368, %v2088, 0
        %v2168 = vsel %vm368, %v2089, 0
        %v2171 = vsel %vm368, %v2090, 0
        %v2174 = vsel %vm368, %v2091, 0
        %v2177 = vsel %vm368, %v2092, 0
        %v2180 = vsel %vm368, %v2093, 0
        %v2183 = vsel %vm368, %v2094, 0
        %v2186 = vsel %vm368, %v2095, 0
        %v2189 = vsel %vm368, %v2096, 0
        %v2192 = vsel %vm368, %v2097, 0
        %v2195 = vsel %vm368, %v2098, 0
        %v2198 = vsel %vm465, %v2100, 0
        %2200 = vmatpush.msra.mxu0 0.0
        %2201 = vmatpush.msra.mxu0 0.0
        %2202 = vmatpush.msra.mxu0 0.0
        %2203 = vmatpush.msra.mxu0 0.0
        %2204 = vmatpush.msra.mxu0 0.0
        %2205 = vmatpush.msra.mxu0 0.0
        %2206 = vmatpush.msra.mxu0 0.0
        %2207 = vmatpush.msra.mxu0 0.0
        %2208 = vmatpush.msra.mxu0 0.0
        %2209 = vmatpush.msra.mxu0 0.0
        %2210 = vmatpush.msra.mxu0 0.0
        %2211 = vmatpush.msra.mxu0 0.0
        %2212 = vmatpush.msra.mxu0 0.0
        %2213 = vmatpush.msra.mxu0 0.0
        %2214 = vmatpush.msra.mxu0 0.0
        %2215 = vmatpush.msra.mxu0 %v2198
        %2216 = vmatmul.f32.gmra.mxu0 %v2102
        %v2217 = vpop.f32.mrf.mxu0
        %v2218 = vadd.f32 0.0, %v2217
        %2219 = vmatmul.f32.gmra.mxu0 %v2105
        %v2220 = vpop.f32.mrf.mxu0
        %v2221 = vadd.f32 0.0, %v2220
        %2222 = vmatmul.f32.gmra.mxu0 %v2108
        %v2223 = vpop.f32.mrf.mxu0
        %v2224 = vadd.f32 0.0, %v2223
        %2225 = vmatmul.f32.gmra.mxu0 %v2111
        %v2226 = vpop.f32.mrf.mxu0
        %v2227 = vadd.f32 0.0, %v2226
        %2228 = vmatmul.f32.gmra.mxu0 %v2114
        %v2229 = vpop.f32.mrf.mxu0
        %v2230 = vadd.f32 0.0, %v2229
        %2231 = vmatmul.f32.gmra.mxu0 %v2117
        %v2232 = vpop.f32.mrf.mxu0
        %v2233 = vadd.f32 0.0, %v2232
        %2234 = vmatmul.f32.gmra.mxu0 %v2120
        %v2235 = vpop.f32.mrf.mxu0
        %v2236 = vadd.f32 0.0, %v2235
        %2237 = vmatmul.f32.gmra.mxu0 %v2123
        %v2238 = vpop.f32.mrf.mxu0
        %v2239 = vadd.f32 0.0, %v2238
        %2240 = vmatmul.f32.gmra.mxu0 %v2126
        %v2241 = vpop.f32.mrf.mxu0
        %v2242 = vadd.f32 0.0, %v2241
        %2243 = vmatmul.f32.gmra.mxu0 %v2129
        %v2244 = vpop.f32.mrf.mxu0
        %v2245 = vadd.f32 0.0, %v2244
        %2246 = vmatmul.f32.gmra.mxu0 %v2132
        %v2247 = vpop.f32.mrf.mxu0
        %v2248 = vadd.f32 0.0, %v2247
        %2249 = vmatmul.f32.gmra.mxu0 %v2135
        %v2250 = vpop.f32.mrf.mxu0
        %v2251 = vadd.f32 0.0, %v2250
        %2252 = vmatmul.f32.gmra.mxu0 %v2138
        %v2253 = vpop.f32.mrf.mxu0
        %v2254 = vadd.f32 0.0, %v2253
        %2255 = vmatmul.f32.gmra.mxu0 %v2141
        %v2256 = vpop.f32.mrf.mxu0
        %v2257 = vadd.f32 0.0, %v2256
        %2258 = vmatmul.f32.gmra.mxu0 %v2144
        %v2259 = vpop.f32.mrf.mxu0
        %v2260 = vadd.f32 0.0, %v2259
        %2261 = vmatmul.f32.gmra.mxu0 %v2147
        %v2262 = vpop.f32.mrf.mxu0
        %v2263 = vadd.f32 0.0, %v2262
        %2264 = vmatmul.f32.gmra.mxu0 %v2150
        %v2265 = vpop.f32.mrf.mxu0
        %v2266 = vadd.f32 0.0, %v2265
        %2267 = vmatmul.f32.gmra.mxu0 %v2153
        %v2268 = vpop.f32.mrf.mxu0
        %v2269 = vadd.f32 0.0, %v2268
        %2270 = vmatmul.f32.gmra.mxu0 %v2156
        %v2271 = vpop.f32.mrf.mxu0
        %v2272 = vadd.f32 0.0, %v2271
        %2273 = vmatmul.f32.gmra.mxu0 %v2159
        %v2274 = vpop.f32.mrf.mxu0
        %v2275 = vadd.f32 0.0, %v2274
        %2276 = vmatmul.f32.gmra.mxu0 %v2162
        %v2277 = vpop.f32.mrf.mxu0
        %v2278 = vadd.f32 0.0, %v2277
        %2279 = vmatmul.f32.gmra.mxu0 %v2165
        %v2280 = vpop.f32.mrf.mxu0
        %v2281 = vadd.f32 0.0, %v2280
        %2282 = vmatmul.f32.gmra.mxu0 %v2168
        %v2283 = vpop.f32.mrf.mxu0
        %v2284 = vadd.f32 0.0, %v2283
        %2285 = vmatmul.f32.gmra.mxu0 %v2171
        %v2286 = vpop.f32.mrf.mxu0
        %v2287 = vadd.f32 0.0, %v2286
        %2288 = vmatmul.f32.gmra.mxu0 %v2174
        %v2289 = vpop.f32.mrf.mxu0
        %v2290 = vadd.f32 0.0, %v2289
        %2291 = vmatmul.f32.gmra.mxu0 %v2177
        %v2292 = vpop.f32.mrf.mxu0
        %v2293 = vadd.f32 0.0, %v2292
        %2294 = vmatmul.f32.gmra.mxu0 %v2180
        %v2295 = vpop.f32.mrf.mxu0
        %v2296 = vadd.f32 0.0, %v2295
        %2297 = vmatmul.f32.gmra.mxu0 %v2183
        %v2298 = vpop.f32.mrf.mxu0
        %v2299 = vadd.f32 0.0, %v2298
        %2300 = vmatmul.f32.gmra.mxu0 %v2186
        %v2301 = vpop.f32.mrf.mxu0
        %v2302 = vadd.f32 0.0, %v2301
        %2303 = vmatmul.f32.gmra.mxu0 %v2189
        %v2304 = vpop.f32.mrf.mxu0
        %v2305 = vadd.f32 0.0, %v2304
        %2306 = vmatmul.f32.gmra.mxu0 %v2192
        %v2307 = vpop.f32.mrf.mxu0
        %v2308 = vadd.f32 0.0, %v2307
        %2309 = vmatmul.f32.gmra.mxu0 %v2195
        %v2310 = vpop.f32.mrf.mxu0
        %v2311 = vadd.f32 0.0, %v2310
        %2312 = vdwg.mxu0
        %v2313 = vadd.f32 %v2035, %v2218
        %v2314 = vadd.f32 %v2036, %v2221
        %v2315 = vadd.f32 %v2037, %v2224
        %v2316 = vadd.f32 %v2038, %v2227
        %v2317 = vadd.f32 %v2039, %v2230
        %v2318 = vadd.f32 %v2040, %v2233
        %v2319 = vadd.f32 %v2041, %v2236
        %v2320 = vadd.f32 %v2042, %v2239
        %v2321 = vadd.f32 %v2043, %v2242
        %v2322 = vadd.f32 %v2044, %v2245
        %v2323 = vadd.f32 %v2045, %v2248
        %v2324 = vadd.f32 %v2046, %v2251
        %v2325 = vadd.f32 %v2047, %v2254
        %v2326 = vadd.f32 %v2048, %v2257
        %v2327 = vadd.f32 %v2049, %v2260
        %v2328 = vadd.f32 %v2050, %v2263
        %v2329 = vadd.f32 %v2051, %v2266
        %v2330 = vadd.f32 %v2052, %v2269
        %v2331 = vadd.f32 %v2053, %v2272
        %v2332 = vadd.f32 %v2054, %v2275
        %v2333 = vadd.f32 %v2055, %v2278
        %v2334 = vadd.f32 %v2056, %v2281
        %v2335 = vadd.f32 %v2057, %v2284
        %v2336 = vadd.f32 %v2058, %v2287
        %v2337 = vadd.f32 %v2059, %v2290
        %v2338 = vadd.f32 %v2060, %v2293
        %v2339 = vadd.f32 %v2061, %v2296
        %v2340 = vadd.f32 %v2062, %v2299
        %v2341 = vadd.f32 %v2063, %v2302
        %v2342 = vadd.f32 %v2064, %v2305
        %v2343 = vadd.f32 %v2065, %v2308
        %v2344 = vadd.f32 %v2066, %v2311
        %v2345 = vld [vmem:[%s858 + $0x2] sm:$0xff]
        %v2346 = vld [vmem:[%s858 + $0xa] sm:$0xff]
        %v2347 = vld [vmem:[%s858 + $0x1a] sm:$0xff]
        %v2348 = vld [vmem:[%s858 + $0x22] sm:$0xff]
        %v2349 = vld [vmem:[%s858 + $0x32] sm:$0xff]
        %v2350 = vld [vmem:[%s858 + $0x3a] sm:$0xff]
        %v2351 = vld [vmem:[%s858 + $0x4a] sm:$0xff]
        %v2352 = vld [vmem:[%s858 + $0x52] sm:$0xff]
        %v2353 = vld [vmem:[%s858 + $0x62] sm:$0xff]
        %v2354 = vld [vmem:[%s858 + $0x6a] sm:$0xff]
        %v2355 = vld [vmem:[%s858 + $0x7a] sm:$0xff]
        %v2356 = vld [vmem:[%s858 + $0x82] sm:$0xff]
        %v2357 = vld [vmem:[%s858 + $0x92] sm:$0xff]
        %v2358 = vld [vmem:[%s858 + $0x9a] sm:$0xff]
        %v2359 = vld [vmem:[%s858 + $0xaa] sm:$0xff]
        %v2360 = vld [vmem:[%s858 + $0xb2] sm:$0xff]
        %v2361 = vld [vmem:[%s858 + $0xc2] sm:$0xff]
        %v2362 = vld [vmem:[%s858 + $0xca] sm:$0xff]
        %v2363 = vld [vmem:[%s858 + $0xda] sm:$0xff]
        %v2364 = vld [vmem:[%s858 + $0xe2] sm:$0xff]
        %v2365 = vld [vmem:[%s858 + $0xf2] sm:$0xff]
        %v2366 = vld [vmem:[%s858 + $0xfa] sm:$0xff]
        %v2367 = vld [vmem:[%s858 + $0x10a] sm:$0xff]
        %v2368 = vld [vmem:[%s858 + $0x112] sm:$0xff]
        %v2369 = vld [vmem:[%s858 + $0x122] sm:$0xff]
        %v2370 = vld [vmem:[%s858 + $0x12a] sm:$0xff]
        %v2371 = vld [vmem:[%s858 + $0x13a] sm:$0xff]
        %v2372 = vld [vmem:[%s858 + $0x142] sm:$0xff]
        %v2373 = vld [vmem:[%s858 + $0x152] sm:$0xff]
        %v2374 = vld [vmem:[%s858 + $0x15a] sm:$0xff]
        %v2375 = vld [vmem:[%s858 + $0x16a] sm:$0xff]
        %v2376 = vld [vmem:[%s858 + $0x172] sm:$0xff]
        %s2377 = scalar_lea.vmem %s3, 20
        %v2378 = vld [vmem:[%s2377] sm:$0xf]
        %v2380 = vsel %vm368, %v2345, 0
        %v2383 = vsel %vm368, %v2346, 0
        %v2386 = vsel %vm368, %v2347, 0
        %v2389 = vsel %vm368, %v2348, 0
        %v2392 = vsel %vm368, %v2349, 0
        %v2395 = vsel %vm368, %v2350, 0
        %v2398 = vsel %vm368, %v2351, 0
        %v2401 = vsel %vm368, %v2352, 0
        %v2404 = vsel %vm368, %v2353, 0
        %v2407 = vsel %vm368, %v2354, 0
        %v2410 = vsel %vm368, %v2355, 0
        %v2413 = vsel %vm368, %v2356, 0
        %v2416 = vsel %vm368, %v2357, 0
        %v2419 = vsel %vm368, %v2358, 0
        %v2422 = vsel %vm368, %v2359, 0
        %v2425 = vsel %vm368, %v2360, 0
        %v2428 = vsel %vm368, %v2361, 0
        %v2431 = vsel %vm368, %v2362, 0
        %v2434 = vsel %vm368, %v2363, 0
        %v2437 = vsel %vm368, %v2364, 0
        %v2440 = vsel %vm368, %v2365, 0
        %v2443 = vsel %vm368, %v2366, 0
        %v2446 = vsel %vm368, %v2367, 0
        %v2449 = vsel %vm368, %v2368, 0
        %v2452 = vsel %vm368, %v2369, 0
        %v2455 = vsel %vm368, %v2370, 0
        %v2458 = vsel %vm368, %v2371, 0
        %v2461 = vsel %vm368, %v2372, 0
        %v2464 = vsel %vm368, %v2373, 0
        %v2467 = vsel %vm368, %v2374, 0
        %v2470 = vsel %vm368, %v2375, 0
        %v2473 = vsel %vm368, %v2376, 0
        %v2476 = vsel %vm465, %v2378, 0
        %2478 = vmatpush.msra.mxu0 0.0
        %2479 = vmatpush.msra.mxu0 0.0
        %2480 = vmatpush.msra.mxu0 0.0
        %2481 = vmatpush.msra.mxu0 0.0
        %2482 = vmatpush.msra.mxu0 0.0
        %2483 = vmatpush.msra.mxu0 0.0
        %2484 = vmatpush.msra.mxu0 0.0
        %2485 = vmatpush.msra.mxu0 0.0
        %2486 = vmatpush.msra.mxu0 0.0
        %2487 = vmatpush.msra.mxu0 0.0
        %2488 = vmatpush.msra.mxu0 0.0
        %2489 = vmatpush.msra.mxu0 0.0
        %2490 = vmatpush.msra.mxu0 0.0
        %2491 = vmatpush.msra.mxu0 0.0
        %2492 = vmatpush.msra.mxu0 0.0
        %2493 = vmatpush.msra.mxu0 %v2476
        %2494 = vmatmul.f32.gmra.mxu0 %v2380
        %v2495 = vpop.f32.mrf.mxu0
        %v2496 = vadd.f32 0.0, %v2495
        %2497 = vmatmul.f32.gmra.mxu0 %v2383
        %v2498 = vpop.f32.mrf.mxu0
        %v2499 = vadd.f32 0.0, %v2498
        %2500 = vmatmul.f32.gmra.mxu0 %v2386
        %v2501 = vpop.f32.mrf.mxu0
        %v2502 = vadd.f32 0.0, %v2501
        %2503 = vmatmul.f32.gmra.mxu0 %v2389
        %v2504 = vpop.f32.mrf.mxu0
        %v2505 = vadd.f32 0.0, %v2504
        %2506 = vmatmul.f32.gmra.mxu0 %v2392
        %v2507 = vpop.f32.mrf.mxu0
        %v2508 = vadd.f32 0.0, %v2507
        %2509 = vmatmul.f32.gmra.mxu0 %v2395
        %v2510 = vpop.f32.mrf.mxu0
        %v2511 = vadd.f32 0.0, %v2510
        %2512 = vmatmul.f32.gmra.mxu0 %v2398
        %v2513 = vpop.f32.mrf.mxu0
        %v2514 = vadd.f32 0.0, %v2513
        %2515 = vmatmul.f32.gmra.mxu0 %v2401
        %v2516 = vpop.f32.mrf.mxu0
        %v2517 = vadd.f32 0.0, %v2516
        %2518 = vmatmul.f32.gmra.mxu0 %v2404
        %v2519 = vpop.f32.mrf.mxu0
        %v2520 = vadd.f32 0.0, %v2519
        %2521 = vmatmul.f32.gmra.mxu0 %v2407
        %v2522 = vpop.f32.mrf.mxu0
        %v2523 = vadd.f32 0.0, %v2522
        %2524 = vmatmul.f32.gmra.mxu0 %v2410
        %v2525 = vpop.f32.mrf.mxu0
        %v2526 = vadd.f32 0.0, %v2525
        %2527 = vmatmul.f32.gmra.mxu0 %v2413
        %v2528 = vpop.f32.mrf.mxu0
        %v2529 = vadd.f32 0.0, %v2528
        %2530 = vmatmul.f32.gmra.mxu0 %v2416
        %v2531 = vpop.f32.mrf.mxu0
        %v2532 = vadd.f32 0.0, %v2531
        %2533 = vmatmul.f32.gmra.mxu0 %v2419
        %v2534 = vpop.f32.mrf.mxu0
        %v2535 = vadd.f32 0.0, %v2534
        %2536 = vmatmul.f32.gmra.mxu0 %v2422
        %v2537 = vpop.f32.mrf.mxu0
        %v2538 = vadd.f32 0.0, %v2537
        %2539 = vmatmul.f32.gmra.mxu0 %v2425
        %v2540 = vpop.f32.mrf.mxu0
        %v2541 = vadd.f32 0.0, %v2540
        %2542 = vmatmul.f32.gmra.mxu0 %v2428
        %v2543 = vpop.f32.mrf.mxu0
        %v2544 = vadd.f32 0.0, %v2543
        %2545 = vmatmul.f32.gmra.mxu0 %v2431
        %v2546 = vpop.f32.mrf.mxu0
        %v2547 = vadd.f32 0.0, %v2546
        %2548 = vmatmul.f32.gmra.mxu0 %v2434
        %v2549 = vpop.f32.mrf.mxu0
        %v2550 = vadd.f32 0.0, %v2549
        %2551 = vmatmul.f32.gmra.mxu0 %v2437
        %v2552 = vpop.f32.mrf.mxu0
        %v2553 = vadd.f32 0.0, %v2552
        %2554 = vmatmul.f32.gmra.mxu0 %v2440
        %v2555 = vpop.f32.mrf.mxu0
        %v2556 = vadd.f32 0.0, %v2555
        %2557 = vmatmul.f32.gmra.mxu0 %v2443
        %v2558 = vpop.f32.mrf.mxu0
        %v2559 = vadd.f32 0.0, %v2558
        %2560 = vmatmul.f32.gmra.mxu0 %v2446
        %v2561 = vpop.f32.mrf.mxu0
        %v2562 = vadd.f32 0.0, %v2561
        %2563 = vmatmul.f32.gmra.mxu0 %v2449
        %v2564 = vpop.f32.mrf.mxu0
        %v2565 = vadd.f32 0.0, %v2564
        %2566 = vmatmul.f32.gmra.mxu0 %v2452
        %v2567 = vpop.f32.mrf.mxu0
        %v2568 = vadd.f32 0.0, %v2567
        %2569 = vmatmul.f32.gmra.mxu0 %v2455
        %v2570 = vpop.f32.mrf.mxu0
        %v2571 = vadd.f32 0.0, %v2570
        %2572 = vmatmul.f32.gmra.mxu0 %v2458
        %v2573 = vpop.f32.mrf.mxu0
        %v2574 = vadd.f32 0.0, %v2573
        %2575 = vmatmul.f32.gmra.mxu0 %v2461
        %v2576 = vpop.f32.mrf.mxu0
        %v2577 = vadd.f32 0.0, %v2576
        %2578 = vmatmul.f32.gmra.mxu0 %v2464
        %v2579 = vpop.f32.mrf.mxu0
        %v2580 = vadd.f32 0.0, %v2579
        %2581 = vmatmul.f32.gmra.mxu0 %v2467
        %v2582 = vpop.f32.mrf.mxu0
        %v2583 = vadd.f32 0.0, %v2582
        %2584 = vmatmul.f32.gmra.mxu0 %v2470
        %v2585 = vpop.f32.mrf.mxu0
        %v2586 = vadd.f32 0.0, %v2585
        %2587 = vmatmul.f32.gmra.mxu0 %v2473
        %v2588 = vpop.f32.mrf.mxu0
        %v2589 = vadd.f32 0.0, %v2588
        %2590 = vdwg.mxu0
        %v2591 = vadd.f32 %v2313, %v2496
        %v2592 = vadd.f32 %v2314, %v2499
        %v2593 = vadd.f32 %v2315, %v2502
        %v2594 = vadd.f32 %v2316, %v2505
        %v2595 = vadd.f32 %v2317, %v2508
        %v2596 = vadd.f32 %v2318, %v2511
        %v2597 = vadd.f32 %v2319, %v2514
        %v2598 = vadd.f32 %v2320, %v2517
        %v2599 = vadd.f32 %v2321, %v2520
        %v2600 = vadd.f32 %v2322, %v2523
        %v2601 = vadd.f32 %v2323, %v2526
        %v2602 = vadd.f32 %v2324, %v2529
        %v2603 = vadd.f32 %v2325, %v2532
        %v2604 = vadd.f32 %v2326, %v2535
        %v2605 = vadd.f32 %v2327, %v2538
        %v2606 = vadd.f32 %v2328, %v2541
        %v2607 = vadd.f32 %v2329, %v2544
        %v2608 = vadd.f32 %v2330, %v2547
        %v2609 = vadd.f32 %v2331, %v2550
        %v2610 = vadd.f32 %v2332, %v2553
        %v2611 = vadd.f32 %v2333, %v2556
        %v2612 = vadd.f32 %v2334, %v2559
        %v2613 = vadd.f32 %v2335, %v2562
        %v2614 = vadd.f32 %v2336, %v2565
        %v2615 = vadd.f32 %v2337, %v2568
        %v2616 = vadd.f32 %v2338, %v2571
        %v2617 = vadd.f32 %v2339, %v2574
        %v2618 = vadd.f32 %v2340, %v2577
        %v2619 = vadd.f32 %v2341, %v2580
        %v2620 = vadd.f32 %v2342, %v2583
        %v2621 = vadd.f32 %v2343, %v2586
        %v2622 = vadd.f32 %v2344, %v2589
        %s2623 = scalar_lea.vmem [#allocation2], 48
        %v2624 = vld [vmem:[%s2623] sm:$0xff]
        %v2625 = vld [vmem:[%s2623 + $0x8] sm:$0xff]
        %v2626 = vld [vmem:[%s2623 + $0x18] sm:$0xff]
        %v2627 = vld [vmem:[%s2623 + $0x20] sm:$0xff]
        %v2628 = vld [vmem:[%s2623 + $0x30] sm:$0xff]
        %v2629 = vld [vmem:[%s2623 + $0x38] sm:$0xff]
        %v2630 = vld [vmem:[%s2623 + $0x48] sm:$0xff]
        %v2631 = vld [vmem:[%s2623 + $0x50] sm:$0xff]
        %v2632 = vld [vmem:[%s2623 + $0x60] sm:$0xff]
        %v2633 = vld [vmem:[%s2623 + $0x68] sm:$0xff]
        %v2634 = vld [vmem:[%s2623 + $0x78] sm:$0xff]
        %v2635 = vld [vmem:[%s2623 + $0x80] sm:$0xff]
        %v2636 = vld [vmem:[%s2623 + $0x90] sm:$0xff]
        %v2637 = vld [vmem:[%s2623 + $0x98] sm:$0xff]
        %v2638 = vld [vmem:[%s2623 + $0xa8] sm:$0xff]
        %v2639 = vld [vmem:[%s2623 + $0xb0] sm:$0xff]
        %v2640 = vld [vmem:[%s2623 + $0xc0] sm:$0xff]
        %v2641 = vld [vmem:[%s2623 + $0xc8] sm:$0xff]
        %v2642 = vld [vmem:[%s2623 + $0xd8] sm:$0xff]
        %v2643 = vld [vmem:[%s2623 + $0xe0] sm:$0xff]
        %v2644 = vld [vmem:[%s2623 + $0xf0] sm:$0xff]
        %v2645 = vld [vmem:[%s2623 + $0xf8] sm:$0xff]
        %v2646 = vld [vmem:[%s2623 + $0x108] sm:$0xff]
        %v2647 = vld [vmem:[%s2623 + $0x110] sm:$0xff]
        %v2648 = vld [vmem:[%s2623 + $0x120] sm:$0xff]
        %v2649 = vld [vmem:[%s2623 + $0x128] sm:$0xff]
        %v2650 = vld [vmem:[%s2623 + $0x138] sm:$0xff]
        %v2651 = vld [vmem:[%s2623 + $0x140] sm:$0xff]
        %v2652 = vld [vmem:[%s2623 + $0x150] sm:$0xff]
        %v2653 = vld [vmem:[%s2623 + $0x158] sm:$0xff]
        %v2654 = vld [vmem:[%s2623 + $0x168] sm:$0xff]
        %v2655 = vld [vmem:[%s2623 + $0x170] sm:$0xff]
        %s2656 = scalar_lea.vmem %s3, 24
        %v2657 = vld [vmem:[%s2656] sm:$0xf]
        %v2659 = vsel %vm368, %v2624, 0
        %v2662 = vsel %vm368, %v2625, 0
        %v2665 = vsel %vm368, %v2626, 0
        %v2668 = vsel %vm368, %v2627, 0
        %v2671 = vsel %vm368, %v2628, 0
        %v2674 = vsel %vm368, %v2629, 0
        %v2677 = vsel %vm368, %v2630, 0
        %v2680 = vsel %vm368, %v2631, 0
        %v2683 = vsel %vm368, %v2632, 0
        %v2686 = vsel %vm368, %v2633, 0
        %v2689 = vsel %vm368, %v2634, 0
        %v2692 = vsel %vm368, %v2635, 0
        %v2695 = vsel %vm368, %v2636, 0
        %v2698 = vsel %vm368, %v2637, 0
        %v2701 = vsel %vm368, %v2638, 0
        %v2704 = vsel %vm368, %v2639, 0
        %v2707 = vsel %vm368, %v2640, 0
        %v2710 = vsel %vm368, %v2641, 0
        %v2713 = vsel %vm368, %v2642, 0
        %v2716 = vsel %vm368, %v2643, 0
        %v2719 = vsel %vm368, %v2644, 0
        %v2722 = vsel %vm368, %v2645, 0
        %v2725 = vsel %vm368, %v2646, 0
        %v2728 = vsel %vm368, %v2647, 0
        %v2731 = vsel %vm368, %v2648, 0
        %v2734 = vsel %vm368, %v2649, 0
        %v2737 = vsel %vm368, %v2650, 0
        %v2740 = vsel %vm368, %v2651, 0
        %v2743 = vsel %vm368, %v2652, 0
        %v2746 = vsel %vm368, %v2653, 0
        %v2749 = vsel %vm368, %v2654, 0
        %v2752 = vsel %vm368, %v2655, 0
        %v2755 = vsel %vm465, %v2657, 0
        %2757 = vmatpush.msra.mxu0 0.0
        %2758 = vmatpush.msra.mxu0 0.0
        %2759 = vmatpush.msra.mxu0 0.0
        %2760 = vmatpush.msra.mxu0 0.0
        %2761 = vmatpush.msra.mxu0 0.0
        %2762 = vmatpush.msra.mxu0 0.0
        %2763 = vmatpush.msra.mxu0 0.0
        %2764 = vmatpush.msra.mxu0 0.0
        %2765 = vmatpush.msra.mxu0 0.0
        %2766 = vmatpush.msra.mxu0 0.0
        %2767 = vmatpush.msra.mxu0 0.0
        %2768 = vmatpush.msra.mxu0 0.0
        %2769 = vmatpush.msra.mxu0 0.0
        %2770 = vmatpush.msra.mxu0 0.0
        %2771 = vmatpush.msra.mxu0 0.0
        %2772 = vmatpush.msra.mxu0 %v2755
        %2773 = vmatmul.f32.gmra.mxu0 %v2659
        %v2774 = vpop.f32.mrf.mxu0
        %v2775 = vadd.f32 0.0, %v2774
        %2776 = vmatmul.f32.gmra.mxu0 %v2662
        %v2777 = vpop.f32.mrf.mxu0
        %v2778 = vadd.f32 0.0, %v2777
        %2779 = vmatmul.f32.gmra.mxu0 %v2665
        %v2780 = vpop.f32.mrf.mxu0
        %v2781 = vadd.f32 0.0, %v2780
        %2782 = vmatmul.f32.gmra.mxu0 %v2668
        %v2783 = vpop.f32.mrf.mxu0
        %v2784 = vadd.f32 0.0, %v2783
        %2785 = vmatmul.f32.gmra.mxu0 %v2671
        %v2786 = vpop.f32.mrf.mxu0
        %v2787 = vadd.f32 0.0, %v2786
        %2788 = vmatmul.f32.gmra.mxu0 %v2674
        %v2789 = vpop.f32.mrf.mxu0
        %v2790 = vadd.f32 0.0, %v2789
        %2791 = vmatmul.f32.gmra.mxu0 %v2677
        %v2792 = vpop.f32.mrf.mxu0
        %v2793 = vadd.f32 0.0, %v2792
        %2794 = vmatmul.f32.gmra.mxu0 %v2680
        %v2795 = vpop.f32.mrf.mxu0
        %v2796 = vadd.f32 0.0, %v2795
        %2797 = vmatmul.f32.gmra.mxu0 %v2683
        %v2798 = vpop.f32.mrf.mxu0
        %v2799 = vadd.f32 0.0, %v2798
        %2800 = vmatmul.f32.gmra.mxu0 %v2686
        %v2801 = vpop.f32.mrf.mxu0
        %v2802 = vadd.f32 0.0, %v2801
        %2803 = vmatmul.f32.gmra.mxu0 %v2689
        %v2804 = vpop.f32.mrf.mxu0
        %v2805 = vadd.f32 0.0, %v2804
        %2806 = vmatmul.f32.gmra.mxu0 %v2692
        %v2807 = vpop.f32.mrf.mxu0
        %v2808 = vadd.f32 0.0, %v2807
        %2809 = vmatmul.f32.gmra.mxu0 %v2695
        %v2810 = vpop.f32.mrf.mxu0
        %v2811 = vadd.f32 0.0, %v2810
        %2812 = vmatmul.f32.gmra.mxu0 %v2698
        %v2813 = vpop.f32.mrf.mxu0
        %v2814 = vadd.f32 0.0, %v2813
        %2815 = vmatmul.f32.gmra.mxu0 %v2701
        %v2816 = vpop.f32.mrf.mxu0
        %v2817 = vadd.f32 0.0, %v2816
        %2818 = vmatmul.f32.gmra.mxu0 %v2704
        %v2819 = vpop.f32.mrf.mxu0
        %v2820 = vadd.f32 0.0, %v2819
        %2821 = vmatmul.f32.gmra.mxu0 %v2707
        %v2822 = vpop.f32.mrf.mxu0
        %v2823 = vadd.f32 0.0, %v2822
        %2824 = vmatmul.f32.gmra.mxu0 %v2710
        %v2825 = vpop.f32.mrf.mxu0
        %v2826 = vadd.f32 0.0, %v2825
        %2827 = vmatmul.f32.gmra.mxu0 %v2713
        %v2828 = vpop.f32.mrf.mxu0
        %v2829 = vadd.f32 0.0, %v2828
        %2830 = vmatmul.f32.gmra.mxu0 %v2716
        %v2831 = vpop.f32.mrf.mxu0
        %v2832 = vadd.f32 0.0, %v2831
        %2833 = vmatmul.f32.gmra.mxu0 %v2719
        %v2834 = vpop.f32.mrf.mxu0
        %v2835 = vadd.f32 0.0, %v2834
        %2836 = vmatmul.f32.gmra.mxu0 %v2722
        %v2837 = vpop.f32.mrf.mxu0
        %v2838 = vadd.f32 0.0, %v2837
        %2839 = vmatmul.f32.gmra.mxu0 %v2725
        %v2840 = vpop.f32.mrf.mxu0
        %v2841 = vadd.f32 0.0, %v2840
        %2842 = vmatmul.f32.gmra.mxu0 %v2728
        %v2843 = vpop.f32.mrf.mxu0
        %v2844 = vadd.f32 0.0, %v2843
        %2845 = vmatmul.f32.gmra.mxu0 %v2731
        %v2846 = vpop.f32.mrf.mxu0
        %v2847 = vadd.f32 0.0, %v2846
        %2848 = vmatmul.f32.gmra.mxu0 %v2734
        %v2849 = vpop.f32.mrf.mxu0
        %v2850 = vadd.f32 0.0, %v2849
        %2851 = vmatmul.f32.gmra.mxu0 %v2737
        %v2852 = vpop.f32.mrf.mxu0
        %v2853 = vadd.f32 0.0, %v2852
        %2854 = vmatmul.f32.gmra.mxu0 %v2740
        %v2855 = vpop.f32.mrf.mxu0
        %v2856 = vadd.f32 0.0, %v2855
        %2857 = vmatmul.f32.gmra.mxu0 %v2743
        %v2858 = vpop.f32.mrf.mxu0
        %v2859 = vadd.f32 0.0, %v2858
        %2860 = vmatmul.f32.gmra.mxu0 %v2746
        %v2861 = vpop.f32.mrf.mxu0
        %v2862 = vadd.f32 0.0, %v2861
        %2863 = vmatmul.f32.gmra.mxu0 %v2749
        %v2864 = vpop.f32.mrf.mxu0
        %v2865 = vadd.f32 0.0, %v2864
        %2866 = vmatmul.f32.gmra.mxu0 %v2752
        %v2867 = vpop.f32.mrf.mxu0
        %v2868 = vadd.f32 0.0, %v2867
        %2869 = vdwg.mxu0
        %v2870 = vadd.f32 %v2591, %v2775
        %v2871 = vadd.f32 %v2592, %v2778
        %v2872 = vadd.f32 %v2593, %v2781
        %v2873 = vadd.f32 %v2594, %v2784
        %v2874 = vadd.f32 %v2595, %v2787
        %v2875 = vadd.f32 %v2596, %v2790
        %v2876 = vadd.f32 %v2597, %v2793
        %v2877 = vadd.f32 %v2598, %v2796
        %v2878 = vadd.f32 %v2599, %v2799
        %v2879 = vadd.f32 %v2600, %v2802
        %v2880 = vadd.f32 %v2601, %v2805
        %v2881 = vadd.f32 %v2602, %v2808
        %v2882 = vadd.f32 %v2603, %v2811
        %v2883 = vadd.f32 %v2604, %v2814
        %v2884 = vadd.f32 %v2605, %v2817
        %v2885 = vadd.f32 %v2606, %v2820
        %v2886 = vadd.f32 %v2607, %v2823
        %v2887 = vadd.f32 %v2608, %v2826
        %v2888 = vadd.f32 %v2609, %v2829
        %v2889 = vadd.f32 %v2610, %v2832
        %v2890 = vadd.f32 %v2611, %v2835
        %v2891 = vadd.f32 %v2612, %v2838
        %v2892 = vadd.f32 %v2613, %v2841
        %v2893 = vadd.f32 %v2614, %v2844
        %v2894 = vadd.f32 %v2615, %v2847
        %v2895 = vadd.f32 %v2616, %v2850
        %v2896 = vadd.f32 %v2617, %v2853
        %v2897 = vadd.f32 %v2618, %v2856
        %v2898 = vadd.f32 %v2619, %v2859
        %v2899 = vadd.f32 %v2620, %v2862
        %v2900 = vadd.f32 %v2621, %v2865
        %v2901 = vadd.f32 %v2622, %v2868
        %v2902 = vld [vmem:[%s2623 + $0x1] sm:$0xff]
        %v2903 = vld [vmem:[%s2623 + $0x9] sm:$0xff]
        %v2904 = vld [vmem:[%s2623 + $0x19] sm:$0xff]
        %v2905 = vld [vmem:[%s2623 + $0x21] sm:$0xff]
        %v2906 = vld [vmem:[%s2623 + $0x31] sm:$0xff]
        %v2907 = vld [vmem:[%s2623 + $0x39] sm:$0xff]
        %v2908 = vld [vmem:[%s2623 + $0x49] sm:$0xff]
        %v2909 = vld [vmem:[%s2623 + $0x51] sm:$0xff]
        %v2910 = vld [vmem:[%s2623 + $0x61] sm:$0xff]
        %v2911 = vld [vmem:[%s2623 + $0x69] sm:$0xff]
        %v2912 = vld [vmem:[%s2623 + $0x79] sm:$0xff]
        %v2913 = vld [vmem:[%s2623 + $0x81] sm:$0xff]
        %v2914 = vld [vmem:[%s2623 + $0x91] sm:$0xff]
        %v2915 = vld [vmem:[%s2623 + $0x99] sm:$0xff]
        %v2916 = vld [vmem:[%s2623 + $0xa9] sm:$0xff]
        %v2917 = vld [vmem:[%s2623 + $0xb1] sm:$0xff]
        %v2918 = vld [vmem:[%s2623 + $0xc1] sm:$0xff]
        %v2919 = vld [vmem:[%s2623 + $0xc9] sm:$0xff]
        %v2920 = vld [vmem:[%s2623 + $0xd9] sm:$0xff]
        %v2921 = vld [vmem:[%s2623 + $0xe1] sm:$0xff]
        %v2922 = vld [vmem:[%s2623 + $0xf1] sm:$0xff]
        %v2923 = vld [vmem:[%s2623 + $0xf9] sm:$0xff]
        %v2924 = vld [vmem:[%s2623 + $0x109] sm:$0xff]
        %v2925 = vld [vmem:[%s2623 + $0x111] sm:$0xff]
        %v2926 = vld [vmem:[%s2623 + $0x121] sm:$0xff]
        %v2927 = vld [vmem:[%s2623 + $0x129] sm:$0xff]
        %v2928 = vld [vmem:[%s2623 + $0x139] sm:$0xff]
        %v2929 = vld [vmem:[%s2623 + $0x141] sm:$0xff]
        %v2930 = vld [vmem:[%s2623 + $0x151] sm:$0xff]
        %v2931 = vld [vmem:[%s2623 + $0x159] sm:$0xff]
        %v2932 = vld [vmem:[%s2623 + $0x169] sm:$0xff]
        %v2933 = vld [vmem:[%s2623 + $0x171] sm:$0xff]
        %s2934 = scalar_lea.vmem %s3, 28
        %v2935 = vld [vmem:[%s2934] sm:$0xf]
        %v2937 = vsel %vm368, %v2902, 0
        %v2940 = vsel %vm368, %v2903, 0
        %v2943 = vsel %vm368, %v2904, 0
        %v2946 = vsel %vm368, %v2905, 0
        %v2949 = vsel %vm368, %v2906, 0
        %v2952 = vsel %vm368, %v2907, 0
        %v2955 = vsel %vm368, %v2908, 0
        %v2958 = vsel %vm368, %v2909, 0
        %v2961 = vsel %vm368, %v2910, 0
        %v2964 = vsel %vm368, %v2911, 0
        %v2967 = vsel %vm368, %v2912, 0
        %v2970 = vsel %vm368, %v2913, 0
        %v2973 = vsel %vm368, %v2914, 0
        %v2976 = vsel %vm368, %v2915, 0
        %v2979 = vsel %vm368, %v2916, 0
        %v2982 = vsel %vm368, %v2917, 0
        %v2985 = vsel %vm368, %v2918, 0
        %v2988 = vsel %vm368, %v2919, 0
        %v2991 = vsel %vm368, %v2920, 0
        %v2994 = vsel %vm368, %v2921, 0
        %v2997 = vsel %vm368, %v2922, 0
        %v3000 = vsel %vm368, %v2923, 0
        %v3003 = vsel %vm368, %v2924, 0
        %v3006 = vsel %vm368, %v2925, 0
        %v3009 = vsel %vm368, %v2926, 0
        %v3012 = vsel %vm368, %v2927, 0
        %v3015 = vsel %vm368, %v2928, 0
        %v3018 = vsel %vm368, %v2929, 0
        %v3021 = vsel %vm368, %v2930, 0
        %v3024 = vsel %vm368, %v2931, 0
        %v3027 = vsel %vm368, %v2932, 0
        %v3030 = vsel %vm368, %v2933, 0
        %v3033 = vsel %vm465, %v2935, 0
        %3035 = vmatpush.msra.mxu0 0.0
        %3036 = vmatpush.msra.mxu0 0.0
        %3037 = vmatpush.msra.mxu0 0.0
        %3038 = vmatpush.msra.mxu0 0.0
        %3039 = vmatpush.msra.mxu0 0.0
        %3040 = vmatpush.msra.mxu0 0.0
        %3041 = vmatpush.msra.mxu0 0.0
        %3042 = vmatpush.msra.mxu0 0.0
        %3043 = vmatpush.msra.mxu0 0.0
        %3044 = vmatpush.msra.mxu0 0.0
        %3045 = vmatpush.msra.mxu0 0.0
        %3046 = vmatpush.msra.mxu0 0.0
        %3047 = vmatpush.msra.mxu0 0.0
        %3048 = vmatpush.msra.mxu0 0.0
        %3049 = vmatpush.msra.mxu0 0.0
        %3050 = vmatpush.msra.mxu0 %v3033
        %3051 = vmatmul.f32.gmra.mxu0 %v2937
        %v3052 = vpop.f32.mrf.mxu0
        %v3053 = vadd.f32 0.0, %v3052
        %3054 = vmatmul.f32.gmra.mxu0 %v2940
        %v3055 = vpop.f32.mrf.mxu0
        %v3056 = vadd.f32 0.0, %v3055
        %3057 = vmatmul.f32.gmra.mxu0 %v2943
        %v3058 = vpop.f32.mrf.mxu0
        %v3059 = vadd.f32 0.0, %v3058
        %3060 = vmatmul.f32.gmra.mxu0 %v2946
        %v3061 = vpop.f32.mrf.mxu0
        %v3062 = vadd.f32 0.0, %v3061
        %3063 = vmatmul.f32.gmra.mxu0 %v2949
        %v3064 = vpop.f32.mrf.mxu0
        %v3065 = vadd.f32 0.0, %v3064
        %3066 = vmatmul.f32.gmra.mxu0 %v2952
        %v3067 = vpop.f32.mrf.mxu0
        %v3068 = vadd.f32 0.0, %v3067
        %3069 = vmatmul.f32.gmra.mxu0 %v2955
        %v3070 = vpop.f32.mrf.mxu0
        %v3071 = vadd.f32 0.0, %v3070
        %3072 = vmatmul.f32.gmra.mxu0 %v2958
        %v3073 = vpop.f32.mrf.mxu0
        %v3074 = vadd.f32 0.0, %v3073
        %3075 = vmatmul.f32.gmra.mxu0 %v2961
        %v3076 = vpop.f32.mrf.mxu0
        %v3077 = vadd.f32 0.0, %v3076
        %3078 = vmatmul.f32.gmra.mxu0 %v2964
        %v3079 = vpop.f32.mrf.mxu0
        %v3080 = vadd.f32 0.0, %v3079
        %3081 = vmatmul.f32.gmra.mxu0 %v2967
        %v3082 = vpop.f32.mrf.mxu0
        %v3083 = vadd.f32 0.0, %v3082
        %3084 = vmatmul.f32.gmra.mxu0 %v2970
        %v3085 = vpop.f32.mrf.mxu0
        %v3086 = vadd.f32 0.0, %v3085
        %3087 = vmatmul.f32.gmra.mxu0 %v2973
        %v3088 = vpop.f32.mrf.mxu0
        %v3089 = vadd.f32 0.0, %v3088
        %3090 = vmatmul.f32.gmra.mxu0 %v2976
        %v3091 = vpop.f32.mrf.mxu0
        %v3092 = vadd.f32 0.0, %v3091
        %3093 = vmatmul.f32.gmra.mxu0 %v2979
        %v3094 = vpop.f32.mrf.mxu0
        %v3095 = vadd.f32 0.0, %v3094
        %3096 = vmatmul.f32.gmra.mxu0 %v2982
        %v3097 = vpop.f32.mrf.mxu0
        %v3098 = vadd.f32 0.0, %v3097
        %3099 = vmatmul.f32.gmra.mxu0 %v2985
        %v3100 = vpop.f32.mrf.mxu0
        %v3101 = vadd.f32 0.0, %v3100
        %3102 = vmatmul.f32.gmra.mxu0 %v2988
        %v3103 = vpop.f32.mrf.mxu0
        %v3104 = vadd.f32 0.0, %v3103
        %3105 = vmatmul.f32.gmra.mxu0 %v2991
        %v3106 = vpop.f32.mrf.mxu0
        %v3107 = vadd.f32 0.0, %v3106
        %3108 = vmatmul.f32.gmra.mxu0 %v2994
        %v3109 = vpop.f32.mrf.mxu0
        %v3110 = vadd.f32 0.0, %v3109
        %3111 = vmatmul.f32.gmra.mxu0 %v2997
        %v3112 = vpop.f32.mrf.mxu0
        %v3113 = vadd.f32 0.0, %v3112
        %3114 = vmatmul.f32.gmra.mxu0 %v3000
        %v3115 = vpop.f32.mrf.mxu0
        %v3116 = vadd.f32 0.0, %v3115
        %3117 = vmatmul.f32.gmra.mxu0 %v3003
        %v3118 = vpop.f32.mrf.mxu0
        %v3119 = vadd.f32 0.0, %v3118
        %3120 = vmatmul.f32.gmra.mxu0 %v3006
        %v3121 = vpop.f32.mrf.mxu0
        %v3122 = vadd.f32 0.0, %v3121
        %3123 = vmatmul.f32.gmra.mxu0 %v3009
        %v3124 = vpop.f32.mrf.mxu0
        %v3125 = vadd.f32 0.0, %v3124
        %3126 = vmatmul.f32.gmra.mxu0 %v3012
        %v3127 = vpop.f32.mrf.mxu0
        %v3128 = vadd.f32 0.0, %v3127
        %3129 = vmatmul.f32.gmra.mxu0 %v3015
        %v3130 = vpop.f32.mrf.mxu0
        %v3131 = vadd.f32 0.0, %v3130
        %3132 = vmatmul.f32.gmra.mxu0 %v3018
        %v3133 = vpop.f32.mrf.mxu0
        %v3134 = vadd.f32 0.0, %v3133
        %3135 = vmatmul.f32.gmra.mxu0 %v3021
        %v3136 = vpop.f32.mrf.mxu0
        %v3137 = vadd.f32 0.0, %v3136
        %3138 = vmatmul.f32.gmra.mxu0 %v3024
        %v3139 = vpop.f32.mrf.mxu0
        %v3140 = vadd.f32 0.0, %v3139
        %3141 = vmatmul.f32.gmra.mxu0 %v3027
        %v3142 = vpop.f32.mrf.mxu0
        %v3143 = vadd.f32 0.0, %v3142
        %3144 = vmatmul.f32.gmra.mxu0 %v3030
        %v3145 = vpop.f32.mrf.mxu0
        %v3146 = vadd.f32 0.0, %v3145
        %3147 = vdwg.mxu0
        %v3148 = vadd.f32 %v2870, %v3053
        %v3149 = vadd.f32 %v2871, %v3056
        %v3150 = vadd.f32 %v2872, %v3059
        %v3151 = vadd.f32 %v2873, %v3062
        %v3152 = vadd.f32 %v2874, %v3065
        %v3153 = vadd.f32 %v2875, %v3068
        %v3154 = vadd.f32 %v2876, %v3071
        %v3155 = vadd.f32 %v2877, %v3074
        %v3156 = vadd.f32 %v2878, %v3077
        %v3157 = vadd.f32 %v2879, %v3080
        %v3158 = vadd.f32 %v2880, %v3083
        %v3159 = vadd.f32 %v2881, %v3086
        %v3160 = vadd.f32 %v2882, %v3089
        %v3161 = vadd.f32 %v2883, %v3092
        %v3162 = vadd.f32 %v2884, %v3095
        %v3163 = vadd.f32 %v2885, %v3098
        %v3164 = vadd.f32 %v2886, %v3101
        %v3165 = vadd.f32 %v2887, %v3104
        %v3166 = vadd.f32 %v2888, %v3107
        %v3167 = vadd.f32 %v2889, %v3110
        %v3168 = vadd.f32 %v2890, %v3113
        %v3169 = vadd.f32 %v2891, %v3116
        %v3170 = vadd.f32 %v2892, %v3119
        %v3171 = vadd.f32 %v2893, %v3122
        %v3172 = vadd.f32 %v2894, %v3125
        %v3173 = vadd.f32 %v2895, %v3128
        %v3174 = vadd.f32 %v2896, %v3131
        %v3175 = vadd.f32 %v2897, %v3134
        %v3176 = vadd.f32 %v2898, %v3137
        %v3177 = vadd.f32 %v2899, %v3140
        %v3178 = vadd.f32 %v2900, %v3143
        %v3179 = vadd.f32 %v2901, %v3146
        %v3180 = vld [vmem:[%s2623 + $0x2] sm:$0xff]
        %v3181 = vld [vmem:[%s2623 + $0xa] sm:$0xff]
        %v3182 = vld [vmem:[%s2623 + $0x1a] sm:$0xff]
        %v3183 = vld [vmem:[%s2623 + $0x22] sm:$0xff]
        %v3184 = vld [vmem:[%s2623 + $0x32] sm:$0xff]
        %v3185 = vld [vmem:[%s2623 + $0x3a] sm:$0xff]
        %v3186 = vld [vmem:[%s2623 + $0x4a] sm:$0xff]
        %v3187 = vld [vmem:[%s2623 + $0x52] sm:$0xff]
        %v3188 = vld [vmem:[%s2623 + $0x62] sm:$0xff]
        %v3189 = vld [vmem:[%s2623 + $0x6a] sm:$0xff]
        %v3190 = vld [vmem:[%s2623 + $0x7a] sm:$0xff]
        %v3191 = vld [vmem:[%s2623 + $0x82] sm:$0xff]
        %v3192 = vld [vmem:[%s2623 + $0x92] sm:$0xff]
        %v3193 = vld [vmem:[%s2623 + $0x9a] sm:$0xff]
        %v3194 = vld [vmem:[%s2623 + $0xaa] sm:$0xff]
        %v3195 = vld [vmem:[%s2623 + $0xb2] sm:$0xff]
        %v3196 = vld [vmem:[%s2623 + $0xc2] sm:$0xff]
        %v3197 = vld [vmem:[%s2623 + $0xca] sm:$0xff]
        %v3198 = vld [vmem:[%s2623 + $0xda] sm:$0xff]
        %v3199 = vld [vmem:[%s2623 + $0xe2] sm:$0xff]
        %v3200 = vld [vmem:[%s2623 + $0xf2] sm:$0xff]
        %v3201 = vld [vmem:[%s2623 + $0xfa] sm:$0xff]
        %v3202 = vld [vmem:[%s2623 + $0x10a] sm:$0xff]
        %v3203 = vld [vmem:[%s2623 + $0x112] sm:$0xff]
        %v3204 = vld [vmem:[%s2623 + $0x122] sm:$0xff]
        %v3205 = vld [vmem:[%s2623 + $0x12a] sm:$0xff]
        %v3206 = vld [vmem:[%s2623 + $0x13a] sm:$0xff]
        %v3207 = vld [vmem:[%s2623 + $0x142] sm:$0xff]
        %v3208 = vld [vmem:[%s2623 + $0x152] sm:$0xff]
        %v3209 = vld [vmem:[%s2623 + $0x15a] sm:$0xff]
        %v3210 = vld [vmem:[%s2623 + $0x16a] sm:$0xff]
        %v3211 = vld [vmem:[%s2623 + $0x172] sm:$0xff]
        %s3212 = scalar_lea.vmem %s3, 32
        %v3213 = vld [vmem:[%s3212] sm:$0xf]
        %v3215 = vsel %vm368, %v3180, 0
        %v3218 = vsel %vm368, %v3181, 0
        %v3221 = vsel %vm368, %v3182, 0
        %v3224 = vsel %vm368, %v3183, 0
        %v3227 = vsel %vm368, %v3184, 0
        %v3230 = vsel %vm368, %v3185, 0
        %v3233 = vsel %vm368, %v3186, 0
        %v3236 = vsel %vm368, %v3187, 0
        %v3239 = vsel %vm368, %v3188, 0
        %v3242 = vsel %vm368, %v3189, 0
        %v3245 = vsel %vm368, %v3190, 0
        %v3248 = vsel %vm368, %v3191, 0
        %v3251 = vsel %vm368, %v3192, 0
        %v3254 = vsel %vm368, %v3193, 0
        %v3257 = vsel %vm368, %v3194, 0
        %v3260 = vsel %vm368, %v3195, 0
        %v3263 = vsel %vm368, %v3196, 0
        %v3266 = vsel %vm368, %v3197, 0
        %v3269 = vsel %vm368, %v3198, 0
        %v3272 = vsel %vm368, %v3199, 0
        %v3275 = vsel %vm368, %v3200, 0
        %v3278 = vsel %vm368, %v3201, 0
        %v3281 = vsel %vm368, %v3202, 0
        %v3284 = vsel %vm368, %v3203, 0
        %v3287 = vsel %vm368, %v3204, 0
        %v3290 = vsel %vm368, %v3205, 0
        %v3293 = vsel %vm368, %v3206, 0
        %v3296 = vsel %vm368, %v3207, 0
        %v3299 = vsel %vm368, %v3208, 0
        %v3302 = vsel %vm368, %v3209, 0
        %v3305 = vsel %vm368, %v3210, 0
        %v3308 = vsel %vm368, %v3211, 0
        %v3311 = vsel %vm465, %v3213, 0
        %3313 = vmatpush.msra.mxu0 0.0
        %3314 = vmatpush.msra.mxu0 0.0
        %3315 = vmatpush.msra.mxu0 0.0
        %3316 = vmatpush.msra.mxu0 0.0
        %3317 = vmatpush.msra.mxu0 0.0
        %3318 = vmatpush.msra.mxu0 0.0
        %3319 = vmatpush.msra.mxu0 0.0
        %3320 = vmatpush.msra.mxu0 0.0
        %3321 = vmatpush.msra.mxu0 0.0
        %3322 = vmatpush.msra.mxu0 0.0
        %3323 = vmatpush.msra.mxu0 0.0
        %3324 = vmatpush.msra.mxu0 0.0
        %3325 = vmatpush.msra.mxu0 0.0
        %3326 = vmatpush.msra.mxu0 0.0
        %3327 = vmatpush.msra.mxu0 0.0
        %3328 = vmatpush.msra.mxu0 %v3311
        %3329 = vmatmul.f32.gmra.mxu0 %v3215
        %v3330 = vpop.f32.mrf.mxu0
        %v3331 = vadd.f32 0.0, %v3330
        %3332 = vmatmul.f32.gmra.mxu0 %v3218
        %v3333 = vpop.f32.mrf.mxu0
        %v3334 = vadd.f32 0.0, %v3333
        %3335 = vmatmul.f32.gmra.mxu0 %v3221
        %v3336 = vpop.f32.mrf.mxu0
        %v3337 = vadd.f32 0.0, %v3336
        %3338 = vmatmul.f32.gmra.mxu0 %v3224
        %v3339 = vpop.f32.mrf.mxu0
        %v3340 = vadd.f32 0.0, %v3339
        %3341 = vmatmul.f32.gmra.mxu0 %v3227
        %v3342 = vpop.f32.mrf.mxu0
        %v3343 = vadd.f32 0.0, %v3342
        %3344 = vmatmul.f32.gmra.mxu0 %v3230
        %v3345 = vpop.f32.mrf.mxu0
        %v3346 = vadd.f32 0.0, %v3345
        %3347 = vmatmul.f32.gmra.mxu0 %v3233
        %v3348 = vpop.f32.mrf.mxu0
        %v3349 = vadd.f32 0.0, %v3348
        %3350 = vmatmul.f32.gmra.mxu0 %v3236
        %v3351 = vpop.f32.mrf.mxu0
        %v3352 = vadd.f32 0.0, %v3351
        %3353 = vmatmul.f32.gmra.mxu0 %v3239
        %v3354 = vpop.f32.mrf.mxu0
        %v3355 = vadd.f32 0.0, %v3354
        %3356 = vmatmul.f32.gmra.mxu0 %v3242
        %v3357 = vpop.f32.mrf.mxu0
        %v3358 = vadd.f32 0.0, %v3357
        %3359 = vmatmul.f32.gmra.mxu0 %v3245
        %v3360 = vpop.f32.mrf.mxu0
        %v3361 = vadd.f32 0.0, %v3360
        %3362 = vmatmul.f32.gmra.mxu0 %v3248
        %v3363 = vpop.f32.mrf.mxu0
        %v3364 = vadd.f32 0.0, %v3363
        %3365 = vmatmul.f32.gmra.mxu0 %v3251
        %v3366 = vpop.f32.mrf.mxu0
        %v3367 = vadd.f32 0.0, %v3366
        %3368 = vmatmul.f32.gmra.mxu0 %v3254
        %v3369 = vpop.f32.mrf.mxu0
        %v3370 = vadd.f32 0.0, %v3369
        %3371 = vmatmul.f32.gmra.mxu0 %v3257
        %v3372 = vpop.f32.mrf.mxu0
        %v3373 = vadd.f32 0.0, %v3372
        %3374 = vmatmul.f32.gmra.mxu0 %v3260
        %v3375 = vpop.f32.mrf.mxu0
        %v3376 = vadd.f32 0.0, %v3375
        %3377 = vmatmul.f32.gmra.mxu0 %v3263
        %v3378 = vpop.f32.mrf.mxu0
        %v3379 = vadd.f32 0.0, %v3378
        %3380 = vmatmul.f32.gmra.mxu0 %v3266
        %v3381 = vpop.f32.mrf.mxu0
        %v3382 = vadd.f32 0.0, %v3381
        %3383 = vmatmul.f32.gmra.mxu0 %v3269
        %v3384 = vpop.f32.mrf.mxu0
        %v3385 = vadd.f32 0.0, %v3384
        %3386 = vmatmul.f32.gmra.mxu0 %v3272
        %v3387 = vpop.f32.mrf.mxu0
        %v3388 = vadd.f32 0.0, %v3387
        %3389 = vmatmul.f32.gmra.mxu0 %v3275
        %v3390 = vpop.f32.mrf.mxu0
        %v3391 = vadd.f32 0.0, %v3390
        %3392 = vmatmul.f32.gmra.mxu0 %v3278
        %v3393 = vpop.f32.mrf.mxu0
        %v3394 = vadd.f32 0.0, %v3393
        %3395 = vmatmul.f32.gmra.mxu0 %v3281
        %v3396 = vpop.f32.mrf.mxu0
        %v3397 = vadd.f32 0.0, %v3396
        %3398 = vmatmul.f32.gmra.mxu0 %v3284
        %v3399 = vpop.f32.mrf.mxu0
        %v3400 = vadd.f32 0.0, %v3399
        %3401 = vmatmul.f32.gmra.mxu0 %v3287
        %v3402 = vpop.f32.mrf.mxu0
        %v3403 = vadd.f32 0.0, %v3402
        %3404 = vmatmul.f32.gmra.mxu0 %v3290
        %v3405 = vpop.f32.mrf.mxu0
        %v3406 = vadd.f32 0.0, %v3405
        %3407 = vmatmul.f32.gmra.mxu0 %v3293
        %v3408 = vpop.f32.mrf.mxu0
        %v3409 = vadd.f32 0.0, %v3408
        %3410 = vmatmul.f32.gmra.mxu0 %v3296
        %v3411 = vpop.f32.mrf.mxu0
        %v3412 = vadd.f32 0.0, %v3411
        %3413 = vmatmul.f32.gmra.mxu0 %v3299
        %v3414 = vpop.f32.mrf.mxu0
        %v3415 = vadd.f32 0.0, %v3414
        %3416 = vmatmul.f32.gmra.mxu0 %v3302
        %v3417 = vpop.f32.mrf.mxu0
        %v3418 = vadd.f32 0.0, %v3417
        %3419 = vmatmul.f32.gmra.mxu0 %v3305
        %v3420 = vpop.f32.mrf.mxu0
        %v3421 = vadd.f32 0.0, %v3420
        %3422 = vmatmul.f32.gmra.mxu0 %v3308
        %v3423 = vpop.f32.mrf.mxu0
        %v3424 = vadd.f32 0.0, %v3423
        %3425 = vdwg.mxu0
        %v3426 = vadd.f32 %v3148, %v3331
        %v3427 = vadd.f32 %v3149, %v3334
        %v3428 = vadd.f32 %v3150, %v3337
        %v3429 = vadd.f32 %v3151, %v3340
        %v3430 = vadd.f32 %v3152, %v3343
        %v3431 = vadd.f32 %v3153, %v3346
        %v3432 = vadd.f32 %v3154, %v3349
        %v3433 = vadd.f32 %v3155, %v3352
        %v3434 = vadd.f32 %v3156, %v3355
        %v3435 = vadd.f32 %v3157, %v3358
        %v3436 = vadd.f32 %v3158, %v3361
        %v3437 = vadd.f32 %v3159, %v3364
        %v3438 = vadd.f32 %v3160, %v3367
        %v3439 = vadd.f32 %v3161, %v3370
        %v3440 = vadd.f32 %v3162, %v3373
        %v3441 = vadd.f32 %v3163, %v3376
        %v3442 = vadd.f32 %v3164, %v3379
        %v3443 = vadd.f32 %v3165, %v3382
        %v3444 = vadd.f32 %v3166, %v3385
        %v3445 = vadd.f32 %v3167, %v3388
        %v3446 = vadd.f32 %v3168, %v3391
        %v3447 = vadd.f32 %v3169, %v3394
        %v3448 = vadd.f32 %v3170, %v3397
        %v3449 = vadd.f32 %v3171, %v3400
        %v3450 = vadd.f32 %v3172, %v3403
        %v3451 = vadd.f32 %v3173, %v3406
        %v3452 = vadd.f32 %v3174, %v3409
        %v3453 = vadd.f32 %v3175, %v3412
        %v3454 = vadd.f32 %v3176, %v3415
        %v3455 = vadd.f32 %v3177, %v3418
        %v3456 = vadd.f32 %v3178, %v3421
        %v3457 = vadd.f32 %v3179, %v3424
        %v3458 = vld [vmem:[%s4] sm:$0x1]
        %v3460 = vperm.slane %v3458, 0
        %v3462 = vadd.f32 %v3426, %v3460
        %v3463 = vadd.f32 %v3427, %v3460
        %v3464 = vadd.f32 %v3428, %v3460
        %v3465 = vadd.f32 %v3429, %v3460
        %v3466 = vadd.f32 %v3430, %v3460
        %v3467 = vadd.f32 %v3431, %v3460
        %v3468 = vadd.f32 %v3432, %v3460
        %v3469 = vadd.f32 %v3433, %v3460
        %v3470 = vadd.f32 %v3434, %v3460
        %v3471 = vadd.f32 %v3435, %v3460
        %v3472 = vadd.f32 %v3436, %v3460
        %v3473 = vadd.f32 %v3437, %v3460
        %v3474 = vadd.f32 %v3438, %v3460
        %v3475 = vadd.f32 %v3439, %v3460
        %v3476 = vadd.f32 %v3440, %v3460
        %v3477 = vadd.f32 %v3441, %v3460
        %v3478 = vadd.f32 %v3442, %v3460
        %v3479 = vadd.f32 %v3443, %v3460
        %v3480 = vadd.f32 %v3444, %v3460
        %v3481 = vadd.f32 %v3445, %v3460
        %v3482 = vadd.f32 %v3446, %v3460
        %v3483 = vadd.f32 %v3447, %v3460
        %v3484 = vadd.f32 %v3448, %v3460
        %v3485 = vadd.f32 %v3449, %v3460
        %v3486 = vadd.f32 %v3450, %v3460
        %v3487 = vadd.f32 %v3451, %v3460
        %v3488 = vadd.f32 %v3452, %v3460
        %v3489 = vadd.f32 %v3453, %v3460
        %v3490 = vadd.f32 %v3454, %v3460
        %v3491 = vadd.f32 %v3455, %v3460
        %v3492 = vadd.f32 %v3456, %v3460
        %v3493 = vadd.f32 %v3457, %v3460
        %v3494 = vmax.f32 %v3462, 0.0
        %v3495 = vmax.f32 %v3463, 0.0
        %v3496 = vmax.f32 %v3464, 0.0
        %v3497 = vmax.f32 %v3465, 0.0
        %v3498 = vmax.f32 %v3466, 0.0
        %v3499 = vmax.f32 %v3467, 0.0
        %v3500 = vmax.f32 %v3468, 0.0
        %v3501 = vmax.f32 %v3469, 0.0
        %v3502 = vmax.f32 %v3470, 0.0
        %v3503 = vmax.f32 %v3471, 0.0
        %v3504 = vmax.f32 %v3472, 0.0
        %v3505 = vmax.f32 %v3473, 0.0
        %v3506 = vmax.f32 %v3474, 0.0
        %v3507 = vmax.f32 %v3475, 0.0
        %v3508 = vmax.f32 %v3476, 0.0
        %v3509 = vmax.f32 %v3477, 0.0
        %v3510 = vmax.f32 %v3478, 0.0
        %v3511 = vmax.f32 %v3479, 0.0
        %v3512 = vmax.f32 %v3480, 0.0
        %v3513 = vmax.f32 %v3481, 0.0
        %v3514 = vmax.f32 %v3482, 0.0
        %v3515 = vmax.f32 %v3483, 0.0
        %v3516 = vmax.f32 %v3484, 0.0
        %v3517 = vmax.f32 %v3485, 0.0
        %v3518 = vmax.f32 %v3486, 0.0
        %v3519 = vmax.f32 %v3487, 0.0
        %v3520 = vmax.f32 %v3488, 0.0
        %v3521 = vmax.f32 %v3489, 0.0
        %v3522 = vmax.f32 %v3490, 0.0
        %v3523 = vmax.f32 %v3491, 0.0
        %v3524 = vmax.f32 %v3492, 0.0
        %v3525 = vmax.f32 %v3493, 0.0
        %v3526 = vld [vmem:[#allocation3] sm:$0xff]
        %v3527 = vld [vmem:[#allocation3 + $0x8] sm:$0xff]
        %v3528 = vld [vmem:[#allocation3 + $0x18] sm:$0xff]
        %v3529 = vld [vmem:[#allocation3 + $0x20] sm:$0xff]
        %v3530 = vld [vmem:[#allocation3 + $0x30] sm:$0xff]
        %v3531 = vld [vmem:[#allocation3 + $0x38] sm:$0xff]
        %v3532 = vld [vmem:[#allocation3 + $0x48] sm:$0xff]
        %v3533 = vld [vmem:[#allocation3 + $0x50] sm:$0xff]
        %v3534 = vld [vmem:[#allocation3 + $0x60] sm:$0xff]
        %v3535 = vld [vmem:[#allocation3 + $0x68] sm:$0xff]
        %v3536 = vld [vmem:[#allocation3 + $0x78] sm:$0xff]
        %v3537 = vld [vmem:[#allocation3 + $0x80] sm:$0xff]
        %v3538 = vld [vmem:[#allocation3 + $0x90] sm:$0xff]
        %v3539 = vld [vmem:[#allocation3 + $0x98] sm:$0xff]
        %v3540 = vld [vmem:[#allocation3 + $0xa8] sm:$0xff]
        %v3541 = vld [vmem:[#allocation3 + $0xb0] sm:$0xff]
        %v3542 = vld [vmem:[#allocation3 + $0xc0] sm:$0xff]
        %v3543 = vld [vmem:[#allocation3 + $0xc8] sm:$0xff]
        %v3544 = vld [vmem:[#allocation3 + $0xd8] sm:$0xff]
        %v3545 = vld [vmem:[#allocation3 + $0xe0] sm:$0xff]
        %v3546 = vld [vmem:[#allocation3 + $0xf0] sm:$0xff]
        %v3547 = vld [vmem:[#allocation3 + $0xf8] sm:$0xff]
        %v3548 = vld [vmem:[#allocation3 + $0x108] sm:$0xff]
        %v3549 = vld [vmem:[#allocation3 + $0x110] sm:$0xff]
        %v3550 = vld [vmem:[#allocation3 + $0x120] sm:$0xff]
        %v3551 = vld [vmem:[#allocation3 + $0x128] sm:$0xff]
        %v3552 = vld [vmem:[#allocation3 + $0x138] sm:$0xff]
        %v3553 = vld [vmem:[#allocation3 + $0x140] sm:$0xff]
        %v3554 = vld [vmem:[#allocation3 + $0x150] sm:$0xff]
        %v3555 = vld [vmem:[#allocation3 + $0x158] sm:$0xff]
        %v3556 = vld [vmem:[#allocation3 + $0x168] sm:$0xff]
        %v3557 = vld [vmem:[#allocation3 + $0x170] sm:$0xff]
        %v3558 = vld [vmem:[%s5] sm:$0xf]
        %v3559 = vld [vmem:[#allocation3 + $0x1] sm:$0xff]
        %v3560 = vld [vmem:[#allocation3 + $0x9] sm:$0xff]
        %v3561 = vld [vmem:[#allocation3 + $0x19] sm:$0xff]
        %v3562 = vld [vmem:[#allocation3 + $0x21] sm:$0xff]
        %v3563 = vld [vmem:[#allocation3 + $0x31] sm:$0xff]
        %v3564 = vld [vmem:[#allocation3 + $0x39] sm:$0xff]
        %v3565 = vld [vmem:[#allocation3 + $0x49] sm:$0xff]
        %v3566 = vld [vmem:[#allocation3 + $0x51] sm:$0xff]
        %v3567 = vld [vmem:[#allocation3 + $0x61] sm:$0xff]
        %v3568 = vld [vmem:[#allocation3 + $0x69] sm:$0xff]
        %v3569 = vld [vmem:[#allocation3 + $0x79] sm:$0xff]
        %v3570 = vld [vmem:[#allocation3 + $0x81] sm:$0xff]
        %v3571 = vld [vmem:[#allocation3 + $0x91] sm:$0xff]
        %v3572 = vld [vmem:[#allocation3 + $0x99] sm:$0xff]
        %v3573 = vld [vmem:[#allocation3 + $0xa9] sm:$0xff]
        %v3574 = vld [vmem:[#allocation3 + $0xb1] sm:$0xff]
        %v3575 = vld [vmem:[#allocation3 + $0xc1] sm:$0xff]
        %v3576 = vld [vmem:[#allocation3 + $0xc9] sm:$0xff]
        %v3577 = vld [vmem:[#allocation3 + $0xd9] sm:$0xff]
        %v3578 = vld [vmem:[#allocation3 + $0xe1] sm:$0xff]
        %v3579 = vld [vmem:[#allocation3 + $0xf1] sm:$0xff]
        %v3580 = vld [vmem:[#allocation3 + $0xf9] sm:$0xff]
        %v3581 = vld [vmem:[#allocation3 + $0x109] sm:$0xff]
        %v3582 = vld [vmem:[#allocation3 + $0x111] sm:$0xff]
        %v3583 = vld [vmem:[#allocation3 + $0x121] sm:$0xff]
        %v3584 = vld [vmem:[#allocation3 + $0x129] sm:$0xff]
        %v3585 = vld [vmem:[#allocation3 + $0x139] sm:$0xff]
        %v3586 = vld [vmem:[#allocation3 + $0x141] sm:$0xff]
        %v3587 = vld [vmem:[#allocation3 + $0x151] sm:$0xff]
        %v3588 = vld [vmem:[#allocation3 + $0x159] sm:$0xff]
        %v3589 = vld [vmem:[#allocation3 + $0x169] sm:$0xff]
        %v3590 = vld [vmem:[#allocation3 + $0x171] sm:$0xff]
        %s3591 = scalar_lea.vmem %s5, 4
        %v3592 = vld [vmem:[%s3591] sm:$0xf]
        %v3594 = vsel %vm368, %v3559, 0
        %v3597 = vsel %vm368, %v3560, 0
        %v3600 = vsel %vm368, %v3561, 0
        %v3603 = vsel %vm368, %v3562, 0
        %v3606 = vsel %vm368, %v3563, 0
        %v3609 = vsel %vm368, %v3564, 0
        %v3612 = vsel %vm368, %v3565, 0
        %v3615 = vsel %vm368, %v3566, 0
        %v3618 = vsel %vm368, %v3567, 0
        %v3621 = vsel %vm368, %v3568, 0
        %v3624 = vsel %vm368, %v3569, 0
        %v3627 = vsel %vm368, %v3570, 0
        %v3630 = vsel %vm368, %v3571, 0
        %v3633 = vsel %vm368, %v3572, 0
        %v3636 = vsel %vm368, %v3573, 0
        %v3639 = vsel %vm368, %v3574, 0
        %v3642 = vsel %vm368, %v3575, 0
        %v3645 = vsel %vm368, %v3576, 0
        %v3648 = vsel %vm368, %v3577, 0
        %v3651 = vsel %vm368, %v3578, 0
        %v3654 = vsel %vm368, %v3579, 0
        %v3657 = vsel %vm368, %v3580, 0
        %v3660 = vsel %vm368, %v3581, 0
        %v3663 = vsel %vm368, %v3582, 0
        %v3666 = vsel %vm368, %v3583, 0
        %v3669 = vsel %vm368, %v3584, 0
        %v3672 = vsel %vm368, %v3585, 0
        %v3675 = vsel %vm368, %v3586, 0
        %v3678 = vsel %vm368, %v3587, 0
        %v3681 = vsel %vm368, %v3588, 0
        %v3684 = vsel %vm368, %v3589, 0
        %v3687 = vsel %vm368, %v3590, 0
        %v3690 = vsel %vm465, %v3592, 0
        %3692 = vmatpush.msra.mxu0 0.0
        %3693 = vmatpush.msra.mxu0 0.0
        %3694 = vmatpush.msra.mxu0 0.0
        %3695 = vmatpush.msra.mxu0 0.0
        %3696 = vmatpush.msra.mxu0 0.0
        %3697 = vmatpush.msra.mxu0 0.0
        %3698 = vmatpush.msra.mxu0 0.0
        %3699 = vmatpush.msra.mxu0 0.0
        %3700 = vmatpush.msra.mxu0 0.0
        %3701 = vmatpush.msra.mxu0 0.0
        %3702 = vmatpush.msra.mxu0 0.0
        %3703 = vmatpush.msra.mxu0 0.0
        %3704 = vmatpush.msra.mxu0 0.0
        %3705 = vmatpush.msra.mxu0 0.0
        %3706 = vmatpush.msra.mxu0 0.0
        %3707 = vmatpush.msra.mxu0 %v3690
        %3708 = vmatmul.f32.gmra.mxu0 %v3594
        %v3709 = vpop.f32.mrf.mxu0
        %v3710 = vadd.f32 0.0, %v3709
        %3711 = vmatmul.f32.gmra.mxu0 %v3597
        %v3712 = vpop.f32.mrf.mxu0
        %v3713 = vadd.f32 0.0, %v3712
        %3714 = vmatmul.f32.gmra.mxu0 %v3600
        %v3715 = vpop.f32.mrf.mxu0
        %v3716 = vadd.f32 0.0, %v3715
        %3717 = vmatmul.f32.gmra.mxu0 %v3603
        %v3718 = vpop.f32.mrf.mxu0
        %v3719 = vadd.f32 0.0, %v3718
        %3720 = vmatmul.f32.gmra.mxu0 %v3606
        %v3721 = vpop.f32.mrf.mxu0
        %v3722 = vadd.f32 0.0, %v3721
        %3723 = vmatmul.f32.gmra.mxu0 %v3609
        %v3724 = vpop.f32.mrf.mxu0
        %v3725 = vadd.f32 0.0, %v3724
        %3726 = vmatmul.f32.gmra.mxu0 %v3612
        %v3727 = vpop.f32.mrf.mxu0
        %v3728 = vadd.f32 0.0, %v3727
        %3729 = vmatmul.f32.gmra.mxu0 %v3615
        %v3730 = vpop.f32.mrf.mxu0
        %v3731 = vadd.f32 0.0, %v3730
        %3732 = vmatmul.f32.gmra.mxu0 %v3618
        %v3733 = vpop.f32.mrf.mxu0
        %v3734 = vadd.f32 0.0, %v3733
        %3735 = vmatmul.f32.gmra.mxu0 %v3621
        %v3736 = vpop.f32.mrf.mxu0
        %v3737 = vadd.f32 0.0, %v3736
        %3738 = vmatmul.f32.gmra.mxu0 %v3624
        %v3739 = vpop.f32.mrf.mxu0
        %v3740 = vadd.f32 0.0, %v3739
        %3741 = vmatmul.f32.gmra.mxu0 %v3627
        %v3742 = vpop.f32.mrf.mxu0
        %v3743 = vadd.f32 0.0, %v3742
        %3744 = vmatmul.f32.gmra.mxu0 %v3630
        %v3745 = vpop.f32.mrf.mxu0
        %v3746 = vadd.f32 0.0, %v3745
        %3747 = vmatmul.f32.gmra.mxu0 %v3633
        %v3748 = vpop.f32.mrf.mxu0
        %v3749 = vadd.f32 0.0, %v3748
        %3750 = vmatmul.f32.gmra.mxu0 %v3636
        %v3751 = vpop.f32.mrf.mxu0
        %v3752 = vadd.f32 0.0, %v3751
        %3753 = vmatmul.f32.gmra.mxu0 %v3639
        %v3754 = vpop.f32.mrf.mxu0
        %v3755 = vadd.f32 0.0, %v3754
        %3756 = vmatmul.f32.gmra.mxu0 %v3642
        %v3757 = vpop.f32.mrf.mxu0
        %v3758 = vadd.f32 0.0, %v3757
        %3759 = vmatmul.f32.gmra.mxu0 %v3645
        %v3760 = vpop.f32.mrf.mxu0
        %v3761 = vadd.f32 0.0, %v3760
        %3762 = vmatmul.f32.gmra.mxu0 %v3648
        %v3763 = vpop.f32.mrf.mxu0
        %v3764 = vadd.f32 0.0, %v3763
        %3765 = vmatmul.f32.gmra.mxu0 %v3651
        %v3766 = vpop.f32.mrf.mxu0
        %v3767 = vadd.f32 0.0, %v3766
        %3768 = vmatmul.f32.gmra.mxu0 %v3654
        %v3769 = vpop.f32.mrf.mxu0
        %v3770 = vadd.f32 0.0, %v3769
        %3771 = vmatmul.f32.gmra.mxu0 %v3657
        %v3772 = vpop.f32.mrf.mxu0
        %v3773 = vadd.f32 0.0, %v3772
        %3774 = vmatmul.f32.gmra.mxu0 %v3660
        %v3775 = vpop.f32.mrf.mxu0
        %v3776 = vadd.f32 0.0, %v3775
        %3777 = vmatmul.f32.gmra.mxu0 %v3663
        %v3778 = vpop.f32.mrf.mxu0
        %v3779 = vadd.f32 0.0, %v3778
        %3780 = vmatmul.f32.gmra.mxu0 %v3666
        %v3781 = vpop.f32.mrf.mxu0
        %v3782 = vadd.f32 0.0, %v3781
        %3783 = vmatmul.f32.gmra.mxu0 %v3669
        %v3784 = vpop.f32.mrf.mxu0
        %v3785 = vadd.f32 0.0, %v3784
        %3786 = vmatmul.f32.gmra.mxu0 %v3672
        %v3787 = vpop.f32.mrf.mxu0
        %v3788 = vadd.f32 0.0, %v3787
        %3789 = vmatmul.f32.gmra.mxu0 %v3675
        %v3790 = vpop.f32.mrf.mxu0
        %v3791 = vadd.f32 0.0, %v3790
        %3792 = vmatmul.f32.gmra.mxu0 %v3678
        %v3793 = vpop.f32.mrf.mxu0
        %v3794 = vadd.f32 0.0, %v3793
        %3795 = vmatmul.f32.gmra.mxu0 %v3681
        %v3796 = vpop.f32.mrf.mxu0
        %v3797 = vadd.f32 0.0, %v3796
        %3798 = vmatmul.f32.gmra.mxu0 %v3684
        %v3799 = vpop.f32.mrf.mxu0
        %v3800 = vadd.f32 0.0, %v3799
        %3801 = vmatmul.f32.gmra.mxu0 %v3687
        %v3802 = vpop.f32.mrf.mxu0
        %v3803 = vadd.f32 0.0, %v3802
        %3804 = vdwg.mxu0
        %v3806 = vsel %vm368, %v3526, 0
        %v3809 = vsel %vm368, %v3527, 0
        %v3812 = vsel %vm368, %v3528, 0
        %v3815 = vsel %vm368, %v3529, 0
        %v3818 = vsel %vm368, %v3530, 0
        %v3821 = vsel %vm368, %v3531, 0
        %v3824 = vsel %vm368, %v3532, 0
        %v3827 = vsel %vm368, %v3533, 0
        %v3830 = vsel %vm368, %v3534, 0
        %v3833 = vsel %vm368, %v3535, 0
        %v3836 = vsel %vm368, %v3536, 0
        %v3839 = vsel %vm368, %v3537, 0
        %v3842 = vsel %vm368, %v3538, 0
        %v3845 = vsel %vm368, %v3539, 0
        %v3848 = vsel %vm368, %v3540, 0
        %v3851 = vsel %vm368, %v3541, 0
        %v3854 = vsel %vm368, %v3542, 0
        %v3857 = vsel %vm368, %v3543, 0
        %v3860 = vsel %vm368, %v3544, 0
        %v3863 = vsel %vm368, %v3545, 0
        %v3866 = vsel %vm368, %v3546, 0
        %v3869 = vsel %vm368, %v3547, 0
        %v3872 = vsel %vm368, %v3548, 0
        %v3875 = vsel %vm368, %v3549, 0
        %v3878 = vsel %vm368, %v3550, 0
        %v3881 = vsel %vm368, %v3551, 0
        %v3884 = vsel %vm368, %v3552, 0
        %v3887 = vsel %vm368, %v3553, 0
        %v3890 = vsel %vm368, %v3554, 0
        %v3893 = vsel %vm368, %v3555, 0
        %v3896 = vsel %vm368, %v3556, 0
        %v3899 = vsel %vm368, %v3557, 0
        %v3902 = vsel %vm465, %v3558, 0
        %3904 = vmatpush.msra.mxu0 0.0
        %3905 = vmatpush.msra.mxu0 0.0
        %3906 = vmatpush.msra.mxu0 0.0
        %3907 = vmatpush.msra.mxu0 0.0
        %3908 = vmatpush.msra.mxu0 0.0
        %3909 = vmatpush.msra.mxu0 0.0
        %3910 = vmatpush.msra.mxu0 0.0
        %3911 = vmatpush.msra.mxu0 0.0
        %3912 = vmatpush.msra.mxu0 0.0
        %3913 = vmatpush.msra.mxu0 0.0
        %3914 = vmatpush.msra.mxu0 0.0
        %3915 = vmatpush.msra.mxu0 0.0
        %3916 = vmatpush.msra.mxu0 0.0
        %3917 = vmatpush.msra.mxu0 0.0
        %3918 = vmatpush.msra.mxu0 0.0
        %3919 = vmatpush.msra.mxu0 %v3902
        %3920 = vmatmul.f32.gmra.mxu0 %v3806
        %v3921 = vpop.f32.mrf.mxu0
        %v3922 = vadd.f32 %v3710, %v3921
        %3923 = vmatmul.f32.gmra.mxu0 %v3809
        %v3924 = vpop.f32.mrf.mxu0
        %v3925 = vadd.f32 %v3713, %v3924
        %3926 = vmatmul.f32.gmra.mxu0 %v3812
        %v3927 = vpop.f32.mrf.mxu0
        %v3928 = vadd.f32 %v3716, %v3927
        %3929 = vmatmul.f32.gmra.mxu0 %v3815
        %v3930 = vpop.f32.mrf.mxu0
        %v3931 = vadd.f32 %v3719, %v3930
        %3932 = vmatmul.f32.gmra.mxu0 %v3818
        %v3933 = vpop.f32.mrf.mxu0
        %v3934 = vadd.f32 %v3722, %v3933
        %3935 = vmatmul.f32.gmra.mxu0 %v3821
        %v3936 = vpop.f32.mrf.mxu0
        %v3937 = vadd.f32 %v3725, %v3936
        %3938 = vmatmul.f32.gmra.mxu0 %v3824
        %v3939 = vpop.f32.mrf.mxu0
        %v3940 = vadd.f32 %v3728, %v3939
        %3941 = vmatmul.f32.gmra.mxu0 %v3827
        %v3942 = vpop.f32.mrf.mxu0
        %v3943 = vadd.f32 %v3731, %v3942
        %3944 = vmatmul.f32.gmra.mxu0 %v3830
        %v3945 = vpop.f32.mrf.mxu0
        %v3946 = vadd.f32 %v3734, %v3945
        %3947 = vmatmul.f32.gmra.mxu0 %v3833
        %v3948 = vpop.f32.mrf.mxu0
        %v3949 = vadd.f32 %v3737, %v3948
        %3950 = vmatmul.f32.gmra.mxu0 %v3836
        %v3951 = vpop.f32.mrf.mxu0
        %v3952 = vadd.f32 %v3740, %v3951
        %3953 = vmatmul.f32.gmra.mxu0 %v3839
        %v3954 = vpop.f32.mrf.mxu0
        %v3955 = vadd.f32 %v3743, %v3954
        %3956 = vmatmul.f32.gmra.mxu0 %v3842
        %v3957 = vpop.f32.mrf.mxu0
        %v3958 = vadd.f32 %v3746, %v3957
        %3959 = vmatmul.f32.gmra.mxu0 %v3845
        %v3960 = vpop.f32.mrf.mxu0
        %v3961 = vadd.f32 %v3749, %v3960
        %3962 = vmatmul.f32.gmra.mxu0 %v3848
        %v3963 = vpop.f32.mrf.mxu0
        %v3964 = vadd.f32 %v3752, %v3963
        %3965 = vmatmul.f32.gmra.mxu0 %v3851
        %v3966 = vpop.f32.mrf.mxu0
        %v3967 = vadd.f32 %v3755, %v3966
        %3968 = vmatmul.f32.gmra.mxu0 %v3854
        %v3969 = vpop.f32.mrf.mxu0
        %v3970 = vadd.f32 %v3758, %v3969
        %3971 = vmatmul.f32.gmra.mxu0 %v3857
        %v3972 = vpop.f32.mrf.mxu0
        %v3973 = vadd.f32 %v3761, %v3972
        %3974 = vmatmul.f32.gmra.mxu0 %v3860
        %v3975 = vpop.f32.mrf.mxu0
        %v3976 = vadd.f32 %v3764, %v3975
        %3977 = vmatmul.f32.gmra.mxu0 %v3863
        %v3978 = vpop.f32.mrf.mxu0
        %v3979 = vadd.f32 %v3767, %v3978
        %3980 = vmatmul.f32.gmra.mxu0 %v3866
        %v3981 = vpop.f32.mrf.mxu0
        %v3982 = vadd.f32 %v3770, %v3981
        %3983 = vmatmul.f32.gmra.mxu0 %v3869
        %v3984 = vpop.f32.mrf.mxu0
        %v3985 = vadd.f32 %v3773, %v3984
        %3986 = vmatmul.f32.gmra.mxu0 %v3872
        %v3987 = vpop.f32.mrf.mxu0
        %v3988 = vadd.f32 %v3776, %v3987
        %3989 = vmatmul.f32.gmra.mxu0 %v3875
        %v3990 = vpop.f32.mrf.mxu0
        %v3991 = vadd.f32 %v3779, %v3990
        %3992 = vmatmul.f32.gmra.mxu0 %v3878
        %v3993 = vpop.f32.mrf.mxu0
        %v3994 = vadd.f32 %v3782, %v3993
        %3995 = vmatmul.f32.gmra.mxu0 %v3881
        %v3996 = vpop.f32.mrf.mxu0
        %v3997 = vadd.f32 %v3785, %v3996
        %3998 = vmatmul.f32.gmra.mxu0 %v3884
        %v3999 = vpop.f32.mrf.mxu0
        %v4000 = vadd.f32 %v3788, %v3999
        %4001 = vmatmul.f32.gmra.mxu0 %v3887
        %v4002 = vpop.f32.mrf.mxu0
        %v4003 = vadd.f32 %v3791, %v4002
        %4004 = vmatmul.f32.gmra.mxu0 %v3890
        %v4005 = vpop.f32.mrf.mxu0
        %v4006 = vadd.f32 %v3794, %v4005
        %4007 = vmatmul.f32.gmra.mxu0 %v3893
        %v4008 = vpop.f32.mrf.mxu0
        %v4009 = vadd.f32 %v3797, %v4008
        %4010 = vmatmul.f32.gmra.mxu0 %v3896
        %v4011 = vpop.f32.mrf.mxu0
        %v4012 = vadd.f32 %v3800, %v4011
        %4013 = vmatmul.f32.gmra.mxu0 %v3899
        %v4014 = vpop.f32.mrf.mxu0
        %v4015 = vadd.f32 %v3803, %v4014
        %4016 = vdwg.mxu0
        %v4017 = vld [vmem:[#allocation3 + $0x2] sm:$0xff]
        %v4018 = vld [vmem:[#allocation3 + $0xa] sm:$0xff]
        %v4019 = vld [vmem:[#allocation3 + $0x1a] sm:$0xff]
        %v4020 = vld [vmem:[#allocation3 + $0x22] sm:$0xff]
        %v4021 = vld [vmem:[#allocation3 + $0x32] sm:$0xff]
        %v4022 = vld [vmem:[#allocation3 + $0x3a] sm:$0xff]
        %v4023 = vld [vmem:[#allocation3 + $0x4a] sm:$0xff]
        %v4024 = vld [vmem:[#allocation3 + $0x52] sm:$0xff]
        %v4025 = vld [vmem:[#allocation3 + $0x62] sm:$0xff]
        %v4026 = vld [vmem:[#allocation3 + $0x6a] sm:$0xff]
        %v4027 = vld [vmem:[#allocation3 + $0x7a] sm:$0xff]
        %v4028 = vld [vmem:[#allocation3 + $0x82] sm:$0xff]
        %v4029 = vld [vmem:[#allocation3 + $0x92] sm:$0xff]
        %v4030 = vld [vmem:[#allocation3 + $0x9a] sm:$0xff]
        %v4031 = vld [vmem:[#allocation3 + $0xaa] sm:$0xff]
        %v4032 = vld [vmem:[#allocation3 + $0xb2] sm:$0xff]
        %v4033 = vld [vmem:[#allocation3 + $0xc2] sm:$0xff]
        %v4034 = vld [vmem:[#allocation3 + $0xca] sm:$0xff]
        %v4035 = vld [vmem:[#allocation3 + $0xda] sm:$0xff]
        %v4036 = vld [vmem:[#allocation3 + $0xe2] sm:$0xff]
        %v4037 = vld [vmem:[#allocation3 + $0xf2] sm:$0xff]
        %v4038 = vld [vmem:[#allocation3 + $0xfa] sm:$0xff]
        %v4039 = vld [vmem:[#allocation3 + $0x10a] sm:$0xff]
        %v4040 = vld [vmem:[#allocation3 + $0x112] sm:$0xff]
        %v4041 = vld [vmem:[#allocation3 + $0x122] sm:$0xff]
        %v4042 = vld [vmem:[#allocation3 + $0x12a] sm:$0xff]
        %v4043 = vld [vmem:[#allocation3 + $0x13a] sm:$0xff]
        %v4044 = vld [vmem:[#allocation3 + $0x142] sm:$0xff]
        %v4045 = vld [vmem:[#allocation3 + $0x152] sm:$0xff]
        %v4046 = vld [vmem:[#allocation3 + $0x15a] sm:$0xff]
        %v4047 = vld [vmem:[#allocation3 + $0x16a] sm:$0xff]
        %v4048 = vld [vmem:[#allocation3 + $0x172] sm:$0xff]
        %s4049 = scalar_lea.vmem %s5, 8
        %v4050 = vld [vmem:[%s4049] sm:$0xf]
        %v4052 = vsel %vm368, %v4017, 0
        %v4055 = vsel %vm368, %v4018, 0
        %v4058 = vsel %vm368, %v4019, 0
        %v4061 = vsel %vm368, %v4020, 0
        %v4064 = vsel %vm368, %v4021, 0
        %v4067 = vsel %vm368, %v4022, 0
        %v4070 = vsel %vm368, %v4023, 0
        %v4073 = vsel %vm368, %v4024, 0
        %v4076 = vsel %vm368, %v4025, 0
        %v4079 = vsel %vm368, %v4026, 0
        %v4082 = vsel %vm368, %v4027, 0
        %v4085 = vsel %vm368, %v4028, 0
        %v4088 = vsel %vm368, %v4029, 0
        %v4091 = vsel %vm368, %v4030, 0
        %v4094 = vsel %vm368, %v4031, 0
        %v4097 = vsel %vm368, %v4032, 0
        %v4100 = vsel %vm368, %v4033, 0
        %v4103 = vsel %vm368, %v4034, 0
        %v4106 = vsel %vm368, %v4035, 0
        %v4109 = vsel %vm368, %v4036, 0
        %v4112 = vsel %vm368, %v4037, 0
        %v4115 = vsel %vm368, %v4038, 0
        %v4118 = vsel %vm368, %v4039, 0
        %v4121 = vsel %vm368, %v4040, 0
        %v4124 = vsel %vm368, %v4041, 0
        %v4127 = vsel %vm368, %v4042, 0
        %v4130 = vsel %vm368, %v4043, 0
        %v4133 = vsel %vm368, %v4044, 0
        %v4136 = vsel %vm368, %v4045, 0
        %v4139 = vsel %vm368, %v4046, 0
        %v4142 = vsel %vm368, %v4047, 0
        %v4145 = vsel %vm368, %v4048, 0
        %v4148 = vsel %vm465, %v4050, 0
        %4150 = vmatpush.msra.mxu0 0.0
        %4151 = vmatpush.msra.mxu0 0.0
        %4152 = vmatpush.msra.mxu0 0.0
        %4153 = vmatpush.msra.mxu0 0.0
        %4154 = vmatpush.msra.mxu0 0.0
        %4155 = vmatpush.msra.mxu0 0.0
        %4156 = vmatpush.msra.mxu0 0.0
        %4157 = vmatpush.msra.mxu0 0.0
        %4158 = vmatpush.msra.mxu0 0.0
        %4159 = vmatpush.msra.mxu0 0.0
        %4160 = vmatpush.msra.mxu0 0.0
        %4161 = vmatpush.msra.mxu0 0.0
        %4162 = vmatpush.msra.mxu0 0.0
        %4163 = vmatpush.msra.mxu0 0.0
        %4164 = vmatpush.msra.mxu0 0.0
        %4165 = vmatpush.msra.mxu0 %v4148
        %4166 = vmatmul.f32.gmra.mxu0 %v4052
        %v4167 = vpop.f32.mrf.mxu0
        %v4168 = vadd.f32 0.0, %v4167
        %4169 = vmatmul.f32.gmra.mxu0 %v4055
        %v4170 = vpop.f32.mrf.mxu0
        %v4171 = vadd.f32 0.0, %v4170
        %4172 = vmatmul.f32.gmra.mxu0 %v4058
        %v4173 = vpop.f32.mrf.mxu0
        %v4174 = vadd.f32 0.0, %v4173
        %4175 = vmatmul.f32.gmra.mxu0 %v4061
        %v4176 = vpop.f32.mrf.mxu0
        %v4177 = vadd.f32 0.0, %v4176
        %4178 = vmatmul.f32.gmra.mxu0 %v4064
        %v4179 = vpop.f32.mrf.mxu0
        %v4180 = vadd.f32 0.0, %v4179
        %4181 = vmatmul.f32.gmra.mxu0 %v4067
        %v4182 = vpop.f32.mrf.mxu0
        %v4183 = vadd.f32 0.0, %v4182
        %4184 = vmatmul.f32.gmra.mxu0 %v4070
        %v4185 = vpop.f32.mrf.mxu0
        %v4186 = vadd.f32 0.0, %v4185
        %4187 = vmatmul.f32.gmra.mxu0 %v4073
        %v4188 = vpop.f32.mrf.mxu0
        %v4189 = vadd.f32 0.0, %v4188
        %4190 = vmatmul.f32.gmra.mxu0 %v4076
        %v4191 = vpop.f32.mrf.mxu0
        %v4192 = vadd.f32 0.0, %v4191
        %4193 = vmatmul.f32.gmra.mxu0 %v4079
        %v4194 = vpop.f32.mrf.mxu0
        %v4195 = vadd.f32 0.0, %v4194
        %4196 = vmatmul.f32.gmra.mxu0 %v4082
        %v4197 = vpop.f32.mrf.mxu0
        %v4198 = vadd.f32 0.0, %v4197
        %4199 = vmatmul.f32.gmra.mxu0 %v4085
        %v4200 = vpop.f32.mrf.mxu0
        %v4201 = vadd.f32 0.0, %v4200
        %4202 = vmatmul.f32.gmra.mxu0 %v4088
        %v4203 = vpop.f32.mrf.mxu0
        %v4204 = vadd.f32 0.0, %v4203
        %4205 = vmatmul.f32.gmra.mxu0 %v4091
        %v4206 = vpop.f32.mrf.mxu0
        %v4207 = vadd.f32 0.0, %v4206
        %4208 = vmatmul.f32.gmra.mxu0 %v4094
        %v4209 = vpop.f32.mrf.mxu0
        %v4210 = vadd.f32 0.0, %v4209
        %4211 = vmatmul.f32.gmra.mxu0 %v4097
        %v4212 = vpop.f32.mrf.mxu0
        %v4213 = vadd.f32 0.0, %v4212
        %4214 = vmatmul.f32.gmra.mxu0 %v4100
        %v4215 = vpop.f32.mrf.mxu0
        %v4216 = vadd.f32 0.0, %v4215
        %4217 = vmatmul.f32.gmra.mxu0 %v4103
        %v4218 = vpop.f32.mrf.mxu0
        %v4219 = vadd.f32 0.0, %v4218
        %4220 = vmatmul.f32.gmra.mxu0 %v4106
        %v4221 = vpop.f32.mrf.mxu0
        %v4222 = vadd.f32 0.0, %v4221
        %4223 = vmatmul.f32.gmra.mxu0 %v4109
        %v4224 = vpop.f32.mrf.mxu0
        %v4225 = vadd.f32 0.0, %v4224
        %4226 = vmatmul.f32.gmra.mxu0 %v4112
        %v4227 = vpop.f32.mrf.mxu0
        %v4228 = vadd.f32 0.0, %v4227
        %4229 = vmatmul.f32.gmra.mxu0 %v4115
        %v4230 = vpop.f32.mrf.mxu0
        %v4231 = vadd.f32 0.0, %v4230
        %4232 = vmatmul.f32.gmra.mxu0 %v4118
        %v4233 = vpop.f32.mrf.mxu0
        %v4234 = vadd.f32 0.0, %v4233
        %4235 = vmatmul.f32.gmra.mxu0 %v4121
        %v4236 = vpop.f32.mrf.mxu0
        %v4237 = vadd.f32 0.0, %v4236
        %4238 = vmatmul.f32.gmra.mxu0 %v4124
        %v4239 = vpop.f32.mrf.mxu0
        %v4240 = vadd.f32 0.0, %v4239
        %4241 = vmatmul.f32.gmra.mxu0 %v4127
        %v4242 = vpop.f32.mrf.mxu0
        %v4243 = vadd.f32 0.0, %v4242
        %4244 = vmatmul.f32.gmra.mxu0 %v4130
        %v4245 = vpop.f32.mrf.mxu0
        %v4246 = vadd.f32 0.0, %v4245
        %4247 = vmatmul.f32.gmra.mxu0 %v4133
        %v4248 = vpop.f32.mrf.mxu0
        %v4249 = vadd.f32 0.0, %v4248
        %4250 = vmatmul.f32.gmra.mxu0 %v4136
        %v4251 = vpop.f32.mrf.mxu0
        %v4252 = vadd.f32 0.0, %v4251
        %4253 = vmatmul.f32.gmra.mxu0 %v4139
        %v4254 = vpop.f32.mrf.mxu0
        %v4255 = vadd.f32 0.0, %v4254
        %4256 = vmatmul.f32.gmra.mxu0 %v4142
        %v4257 = vpop.f32.mrf.mxu0
        %v4258 = vadd.f32 0.0, %v4257
        %4259 = vmatmul.f32.gmra.mxu0 %v4145
        %v4260 = vpop.f32.mrf.mxu0
        %v4261 = vadd.f32 0.0, %v4260
        %4262 = vdwg.mxu0
        %v4263 = vadd.f32 %v3922, %v4168
        %v4264 = vadd.f32 %v3925, %v4171
        %v4265 = vadd.f32 %v3928, %v4174
        %v4266 = vadd.f32 %v3931, %v4177
        %v4267 = vadd.f32 %v3934, %v4180
        %v4268 = vadd.f32 %v3937, %v4183
        %v4269 = vadd.f32 %v3940, %v4186
        %v4270 = vadd.f32 %v3943, %v4189
        %v4271 = vadd.f32 %v3946, %v4192
        %v4272 = vadd.f32 %v3949, %v4195
        %v4273 = vadd.f32 %v3952, %v4198
        %v4274 = vadd.f32 %v3955, %v4201
        %v4275 = vadd.f32 %v3958, %v4204
        %v4276 = vadd.f32 %v3961, %v4207
        %v4277 = vadd.f32 %v3964, %v4210
        %v4278 = vadd.f32 %v3967, %v4213
        %v4279 = vadd.f32 %v3970, %v4216
        %v4280 = vadd.f32 %v3973, %v4219
        %v4281 = vadd.f32 %v3976, %v4222
        %v4282 = vadd.f32 %v3979, %v4225
        %v4283 = vadd.f32 %v3982, %v4228
        %v4284 = vadd.f32 %v3985, %v4231
        %v4285 = vadd.f32 %v3988, %v4234
        %v4286 = vadd.f32 %v3991, %v4237
        %v4287 = vadd.f32 %v3994, %v4240
        %v4288 = vadd.f32 %v3997, %v4243
        %v4289 = vadd.f32 %v4000, %v4246
        %v4290 = vadd.f32 %v4003, %v4249
        %v4291 = vadd.f32 %v4006, %v4252
        %v4292 = vadd.f32 %v4009, %v4255
        %v4293 = vadd.f32 %v4012, %v4258
        %v4294 = vadd.f32 %v4015, %v4261
        %v4295 = vld [vmem:[#allocation3 + $0x3] sm:$0xff]
        %v4296 = vld [vmem:[#allocation3 + $0xb] sm:$0xff]
        %v4297 = vld [vmem:[#allocation3 + $0x1b] sm:$0xff]
        %v4298 = vld [vmem:[#allocation3 + $0x23] sm:$0xff]
        %v4299 = vld [vmem:[#allocation3 + $0x33] sm:$0xff]
        %v4300 = vld [vmem:[#allocation3 + $0x3b] sm:$0xff]
        %v4301 = vld [vmem:[#allocation3 + $0x4b] sm:$0xff]
        %v4302 = vld [vmem:[#allocation3 + $0x53] sm:$0xff]
        %v4303 = vld [vmem:[#allocation3 + $0x63] sm:$0xff]
        %v4304 = vld [vmem:[#allocation3 + $0x6b] sm:$0xff]
        %v4305 = vld [vmem:[#allocation3 + $0x7b] sm:$0xff]
        %v4306 = vld [vmem:[#allocation3 + $0x83] sm:$0xff]
        %v4307 = vld [vmem:[#allocation3 + $0x93] sm:$0xff]
        %v4308 = vld [vmem:[#allocation3 + $0x9b] sm:$0xff]
        %v4309 = vld [vmem:[#allocation3 + $0xab] sm:$0xff]
        %v4310 = vld [vmem:[#allocation3 + $0xb3] sm:$0xff]
        %v4311 = vld [vmem:[#allocation3 + $0xc3] sm:$0xff]
        %v4312 = vld [vmem:[#allocation3 + $0xcb] sm:$0xff]
        %v4313 = vld [vmem:[#allocation3 + $0xdb] sm:$0xff]
        %v4314 = vld [vmem:[#allocation3 + $0xe3] sm:$0xff]
        %v4315 = vld [vmem:[#allocation3 + $0xf3] sm:$0xff]
        %v4316 = vld [vmem:[#allocation3 + $0xfb] sm:$0xff]
        %v4317 = vld [vmem:[#allocation3 + $0x10b] sm:$0xff]
        %v4318 = vld [vmem:[#allocation3 + $0x113] sm:$0xff]
        %v4319 = vld [vmem:[#allocation3 + $0x123] sm:$0xff]
        %v4320 = vld [vmem:[#allocation3 + $0x12b] sm:$0xff]
        %v4321 = vld [vmem:[#allocation3 + $0x13b] sm:$0xff]
        %v4322 = vld [vmem:[#allocation3 + $0x143] sm:$0xff]
        %v4323 = vld [vmem:[#allocation3 + $0x153] sm:$0xff]
        %v4324 = vld [vmem:[#allocation3 + $0x15b] sm:$0xff]
        %v4325 = vld [vmem:[#allocation3 + $0x16b] sm:$0xff]
        %v4326 = vld [vmem:[#allocation3 + $0x173] sm:$0xff]
        %s4327 = scalar_lea.vmem %s5, 12
        %v4328 = vld [vmem:[%s4327] sm:$0xf]
        %v4330 = vsel %vm368, %v4295, 0
        %v4333 = vsel %vm368, %v4296, 0
        %v4336 = vsel %vm368, %v4297, 0
        %v4339 = vsel %vm368, %v4298, 0
        %v4342 = vsel %vm368, %v4299, 0
        %v4345 = vsel %vm368, %v4300, 0
        %v4348 = vsel %vm368, %v4301, 0
        %v4351 = vsel %vm368, %v4302, 0
        %v4354 = vsel %vm368, %v4303, 0
        %v4357 = vsel %vm368, %v4304, 0
        %v4360 = vsel %vm368, %v4305, 0
        %v4363 = vsel %vm368, %v4306, 0
        %v4366 = vsel %vm368, %v4307, 0
        %v4369 = vsel %vm368, %v4308, 0
        %v4372 = vsel %vm368, %v4309, 0
        %v4375 = vsel %vm368, %v4310, 0
        %v4378 = vsel %vm368, %v4311, 0
        %v4381 = vsel %vm368, %v4312, 0
        %v4384 = vsel %vm368, %v4313, 0
        %v4387 = vsel %vm368, %v4314, 0
        %v4390 = vsel %vm368, %v4315, 0
        %v4393 = vsel %vm368, %v4316, 0
        %v4396 = vsel %vm368, %v4317, 0
        %v4399 = vsel %vm368, %v4318, 0
        %v4402 = vsel %vm368, %v4319, 0
        %v4405 = vsel %vm368, %v4320, 0
        %v4408 = vsel %vm368, %v4321, 0
        %v4411 = vsel %vm368, %v4322, 0
        %v4414 = vsel %vm368, %v4323, 0
        %v4417 = vsel %vm368, %v4324, 0
        %v4420 = vsel %vm368, %v4325, 0
        %v4423 = vsel %vm368, %v4326, 0
        %v4426 = vsel %vm465, %v4328, 0
        %4428 = vmatpush.msra.mxu0 0.0
        %4429 = vmatpush.msra.mxu0 0.0
        %4430 = vmatpush.msra.mxu0 0.0
        %4431 = vmatpush.msra.mxu0 0.0
        %4432 = vmatpush.msra.mxu0 0.0
        %4433 = vmatpush.msra.mxu0 0.0
        %4434 = vmatpush.msra.mxu0 0.0
        %4435 = vmatpush.msra.mxu0 0.0
        %4436 = vmatpush.msra.mxu0 0.0
        %4437 = vmatpush.msra.mxu0 0.0
        %4438 = vmatpush.msra.mxu0 0.0
        %4439 = vmatpush.msra.mxu0 0.0
        %4440 = vmatpush.msra.mxu0 0.0
        %4441 = vmatpush.msra.mxu0 0.0
        %4442 = vmatpush.msra.mxu0 0.0
        %4443 = vmatpush.msra.mxu0 %v4426
        %4444 = vmatmul.f32.gmra.mxu0 %v4330
        %v4445 = vpop.f32.mrf.mxu0
        %v4446 = vadd.f32 0.0, %v4445
        %4447 = vmatmul.f32.gmra.mxu0 %v4333
        %v4448 = vpop.f32.mrf.mxu0
        %v4449 = vadd.f32 0.0, %v4448
        %4450 = vmatmul.f32.gmra.mxu0 %v4336
        %v4451 = vpop.f32.mrf.mxu0
        %v4452 = vadd.f32 0.0, %v4451
        %4453 = vmatmul.f32.gmra.mxu0 %v4339
        %v4454 = vpop.f32.mrf.mxu0
        %v4455 = vadd.f32 0.0, %v4454
        %4456 = vmatmul.f32.gmra.mxu0 %v4342
        %v4457 = vpop.f32.mrf.mxu0
        %v4458 = vadd.f32 0.0, %v4457
        %4459 = vmatmul.f32.gmra.mxu0 %v4345
        %v4460 = vpop.f32.mrf.mxu0
        %v4461 = vadd.f32 0.0, %v4460
        %4462 = vmatmul.f32.gmra.mxu0 %v4348
        %v4463 = vpop.f32.mrf.mxu0
        %v4464 = vadd.f32 0.0, %v4463
        %4465 = vmatmul.f32.gmra.mxu0 %v4351
        %v4466 = vpop.f32.mrf.mxu0
        %v4467 = vadd.f32 0.0, %v4466
        %4468 = vmatmul.f32.gmra.mxu0 %v4354
        %v4469 = vpop.f32.mrf.mxu0
        %v4470 = vadd.f32 0.0, %v4469
        %4471 = vmatmul.f32.gmra.mxu0 %v4357
        %v4472 = vpop.f32.mrf.mxu0
        %v4473 = vadd.f32 0.0, %v4472
        %4474 = vmatmul.f32.gmra.mxu0 %v4360
        %v4475 = vpop.f32.mrf.mxu0
        %v4476 = vadd.f32 0.0, %v4475
        %4477 = vmatmul.f32.gmra.mxu0 %v4363
        %v4478 = vpop.f32.mrf.mxu0
        %v4479 = vadd.f32 0.0, %v4478
        %4480 = vmatmul.f32.gmra.mxu0 %v4366
        %v4481 = vpop.f32.mrf.mxu0
        %v4482 = vadd.f32 0.0, %v4481
        %4483 = vmatmul.f32.gmra.mxu0 %v4369
        %v4484 = vpop.f32.mrf.mxu0
        %v4485 = vadd.f32 0.0, %v4484
        %4486 = vmatmul.f32.gmra.mxu0 %v4372
        %v4487 = vpop.f32.mrf.mxu0
        %v4488 = vadd.f32 0.0, %v4487
        %4489 = vmatmul.f32.gmra.mxu0 %v4375
        %v4490 = vpop.f32.mrf.mxu0
        %v4491 = vadd.f32 0.0, %v4490
        %4492 = vmatmul.f32.gmra.mxu0 %v4378
        %v4493 = vpop.f32.mrf.mxu0
        %v4494 = vadd.f32 0.0, %v4493
        %4495 = vmatmul.f32.gmra.mxu0 %v4381
        %v4496 = vpop.f32.mrf.mxu0
        %v4497 = vadd.f32 0.0, %v4496
        %4498 = vmatmul.f32.gmra.mxu0 %v4384
        %v4499 = vpop.f32.mrf.mxu0
        %v4500 = vadd.f32 0.0, %v4499
        %4501 = vmatmul.f32.gmra.mxu0 %v4387
        %v4502 = vpop.f32.mrf.mxu0
        %v4503 = vadd.f32 0.0, %v4502
        %4504 = vmatmul.f32.gmra.mxu0 %v4390
        %v4505 = vpop.f32.mrf.mxu0
        %v4506 = vadd.f32 0.0, %v4505
        %4507 = vmatmul.f32.gmra.mxu0 %v4393
        %v4508 = vpop.f32.mrf.mxu0
        %v4509 = vadd.f32 0.0, %v4508
        %4510 = vmatmul.f32.gmra.mxu0 %v4396
        %v4511 = vpop.f32.mrf.mxu0
        %v4512 = vadd.f32 0.0, %v4511
        %4513 = vmatmul.f32.gmra.mxu0 %v4399
        %v4514 = vpop.f32.mrf.mxu0
        %v4515 = vadd.f32 0.0, %v4514
        %4516 = vmatmul.f32.gmra.mxu0 %v4402
        %v4517 = vpop.f32.mrf.mxu0
        %v4518 = vadd.f32 0.0, %v4517
        %4519 = vmatmul.f32.gmra.mxu0 %v4405
        %v4520 = vpop.f32.mrf.mxu0
        %v4521 = vadd.f32 0.0, %v4520
        %4522 = vmatmul.f32.gmra.mxu0 %v4408
        %v4523 = vpop.f32.mrf.mxu0
        %v4524 = vadd.f32 0.0, %v4523
        %4525 = vmatmul.f32.gmra.mxu0 %v4411
        %v4526 = vpop.f32.mrf.mxu0
        %v4527 = vadd.f32 0.0, %v4526
        %4528 = vmatmul.f32.gmra.mxu0 %v4414
        %v4529 = vpop.f32.mrf.mxu0
        %v4530 = vadd.f32 0.0, %v4529
        %4531 = vmatmul.f32.gmra.mxu0 %v4417
        %v4532 = vpop.f32.mrf.mxu0
        %v4533 = vadd.f32 0.0, %v4532
        %4534 = vmatmul.f32.gmra.mxu0 %v4420
        %v4535 = vpop.f32.mrf.mxu0
        %v4536 = vadd.f32 0.0, %v4535
        %4537 = vmatmul.f32.gmra.mxu0 %v4423
        %v4538 = vpop.f32.mrf.mxu0
        %v4539 = vadd.f32 0.0, %v4538
        %4540 = vdwg.mxu0
        %v4541 = vadd.f32 %v4263, %v4446
        %v4542 = vadd.f32 %v4264, %v4449
        %v4543 = vadd.f32 %v4265, %v4452
        %v4544 = vadd.f32 %v4266, %v4455
        %v4545 = vadd.f32 %v4267, %v4458
        %v4546 = vadd.f32 %v4268, %v4461
        %v4547 = vadd.f32 %v4269, %v4464
        %v4548 = vadd.f32 %v4270, %v4467
        %v4549 = vadd.f32 %v4271, %v4470
        %v4550 = vadd.f32 %v4272, %v4473
        %v4551 = vadd.f32 %v4273, %v4476
        %v4552 = vadd.f32 %v4274, %v4479
        %v4553 = vadd.f32 %v4275, %v4482
        %v4554 = vadd.f32 %v4276, %v4485
        %v4555 = vadd.f32 %v4277, %v4488
        %v4556 = vadd.f32 %v4278, %v4491
        %v4557 = vadd.f32 %v4279, %v4494
        %v4558 = vadd.f32 %v4280, %v4497
        %v4559 = vadd.f32 %v4281, %v4500
        %v4560 = vadd.f32 %v4282, %v4503
        %v4561 = vadd.f32 %v4283, %v4506
        %v4562 = vadd.f32 %v4284, %v4509
        %v4563 = vadd.f32 %v4285, %v4512
        %v4564 = vadd.f32 %v4286, %v4515
        %v4565 = vadd.f32 %v4287, %v4518
        %v4566 = vadd.f32 %v4288, %v4521
        %v4567 = vadd.f32 %v4289, %v4524
        %v4568 = vadd.f32 %v4290, %v4527
        %v4569 = vadd.f32 %v4291, %v4530
        %v4570 = vadd.f32 %v4292, %v4533
        %v4571 = vadd.f32 %v4293, %v4536
        %v4572 = vadd.f32 %v4294, %v4539
        %v4573 = vld [vmem:[#allocation3 + $0x4] sm:$0xff]
        %v4574 = vld [vmem:[#allocation3 + $0xc] sm:$0xff]
        %v4575 = vld [vmem:[#allocation3 + $0x1c] sm:$0xff]
        %v4576 = vld [vmem:[#allocation3 + $0x24] sm:$0xff]
        %v4577 = vld [vmem:[#allocation3 + $0x34] sm:$0xff]
        %v4578 = vld [vmem:[#allocation3 + $0x3c] sm:$0xff]
        %v4579 = vld [vmem:[#allocation3 + $0x4c] sm:$0xff]
        %v4580 = vld [vmem:[#allocation3 + $0x54] sm:$0xff]
        %v4581 = vld [vmem:[#allocation3 + $0x64] sm:$0xff]
        %v4582 = vld [vmem:[#allocation3 + $0x6c] sm:$0xff]
        %v4583 = vld [vmem:[#allocation3 + $0x7c] sm:$0xff]
        %v4584 = vld [vmem:[#allocation3 + $0x84] sm:$0xff]
        %v4585 = vld [vmem:[#allocation3 + $0x94] sm:$0xff]
        %v4586 = vld [vmem:[#allocation3 + $0x9c] sm:$0xff]
        %v4587 = vld [vmem:[#allocation3 + $0xac] sm:$0xff]
        %v4588 = vld [vmem:[#allocation3 + $0xb4] sm:$0xff]
        %v4589 = vld [vmem:[#allocation3 + $0xc4] sm:$0xff]
        %v4590 = vld [vmem:[#allocation3 + $0xcc] sm:$0xff]
        %v4591 = vld [vmem:[#allocation3 + $0xdc] sm:$0xff]
        %v4592 = vld [vmem:[#allocation3 + $0xe4] sm:$0xff]
        %v4593 = vld [vmem:[#allocation3 + $0xf4] sm:$0xff]
        %v4594 = vld [vmem:[#allocation3 + $0xfc] sm:$0xff]
        %v4595 = vld [vmem:[#allocation3 + $0x10c] sm:$0xff]
        %v4596 = vld [vmem:[#allocation3 + $0x114] sm:$0xff]
        %v4597 = vld [vmem:[#allocation3 + $0x124] sm:$0xff]
        %v4598 = vld [vmem:[#allocation3 + $0x12c] sm:$0xff]
        %v4599 = vld [vmem:[#allocation3 + $0x13c] sm:$0xff]
        %v4600 = vld [vmem:[#allocation3 + $0x144] sm:$0xff]
        %v4601 = vld [vmem:[#allocation3 + $0x154] sm:$0xff]
        %v4602 = vld [vmem:[#allocation3 + $0x15c] sm:$0xff]
        %v4603 = vld [vmem:[#allocation3 + $0x16c] sm:$0xff]
        %v4604 = vld [vmem:[#allocation3 + $0x174] sm:$0xff]
        %s4605 = scalar_lea.vmem %s5, 16
        %v4606 = vld [vmem:[%s4605] sm:$0xf]
        %v4608 = vsel %vm368, %v4573, 0
        %v4611 = vsel %vm368, %v4574, 0
        %v4614 = vsel %vm368, %v4575, 0
        %v4617 = vsel %vm368, %v4576, 0
        %v4620 = vsel %vm368, %v4577, 0
        %v4623 = vsel %vm368, %v4578, 0
        %v4626 = vsel %vm368, %v4579, 0
        %v4629 = vsel %vm368, %v4580, 0
        %v4632 = vsel %vm368, %v4581, 0
        %v4635 = vsel %vm368, %v4582, 0
        %v4638 = vsel %vm368, %v4583, 0
        %v4641 = vsel %vm368, %v4584, 0
        %v4644 = vsel %vm368, %v4585, 0
        %v4647 = vsel %vm368, %v4586, 0
        %v4650 = vsel %vm368, %v4587, 0
        %v4653 = vsel %vm368, %v4588, 0
        %v4656 = vsel %vm368, %v4589, 0
        %v4659 = vsel %vm368, %v4590, 0
        %v4662 = vsel %vm368, %v4591, 0
        %v4665 = vsel %vm368, %v4592, 0
        %v4668 = vsel %vm368, %v4593, 0
        %v4671 = vsel %vm368, %v4594, 0
        %v4674 = vsel %vm368, %v4595, 0
        %v4677 = vsel %vm368, %v4596, 0
        %v4680 = vsel %vm368, %v4597, 0
        %v4683 = vsel %vm368, %v4598, 0
        %v4686 = vsel %vm368, %v4599, 0
        %v4689 = vsel %vm368, %v4600, 0
        %v4692 = vsel %vm368, %v4601, 0
        %v4695 = vsel %vm368, %v4602, 0
        %v4698 = vsel %vm368, %v4603, 0
        %v4701 = vsel %vm368, %v4604, 0
        %v4704 = vsel %vm465, %v4606, 0
        %4706 = vmatpush.msra.mxu0 0.0
        %4707 = vmatpush.msra.mxu0 0.0
        %4708 = vmatpush.msra.mxu0 0.0
        %4709 = vmatpush.msra.mxu0 0.0
        %4710 = vmatpush.msra.mxu0 0.0
        %4711 = vmatpush.msra.mxu0 0.0
        %4712 = vmatpush.msra.mxu0 0.0
        %4713 = vmatpush.msra.mxu0 0.0
        %4714 = vmatpush.msra.mxu0 0.0
        %4715 = vmatpush.msra.mxu0 0.0
        %4716 = vmatpush.msra.mxu0 0.0
        %4717 = vmatpush.msra.mxu0 0.0
        %4718 = vmatpush.msra.mxu0 0.0
        %4719 = vmatpush.msra.mxu0 0.0
        %4720 = vmatpush.msra.mxu0 0.0
        %4721 = vmatpush.msra.mxu0 %v4704
        %4722 = vmatmul.f32.gmra.mxu0 %v4608
        %v4723 = vpop.f32.mrf.mxu0
        %v4724 = vadd.f32 0.0, %v4723
        %4725 = vmatmul.f32.gmra.mxu0 %v4611
        %v4726 = vpop.f32.mrf.mxu0
        %v4727 = vadd.f32 0.0, %v4726
        %4728 = vmatmul.f32.gmra.mxu0 %v4614
        %v4729 = vpop.f32.mrf.mxu0
        %v4730 = vadd.f32 0.0, %v4729
        %4731 = vmatmul.f32.gmra.mxu0 %v4617
        %v4732 = vpop.f32.mrf.mxu0
        %v4733 = vadd.f32 0.0, %v4732
        %4734 = vmatmul.f32.gmra.mxu0 %v4620
        %v4735 = vpop.f32.mrf.mxu0
        %v4736 = vadd.f32 0.0, %v4735
        %4737 = vmatmul.f32.gmra.mxu0 %v4623
        %v4738 = vpop.f32.mrf.mxu0
        %v4739 = vadd.f32 0.0, %v4738
        %4740 = vmatmul.f32.gmra.mxu0 %v4626
        %v4741 = vpop.f32.mrf.mxu0
        %v4742 = vadd.f32 0.0, %v4741
        %4743 = vmatmul.f32.gmra.mxu0 %v4629
        %v4744 = vpop.f32.mrf.mxu0
        %v4745 = vadd.f32 0.0, %v4744
        %4746 = vmatmul.f32.gmra.mxu0 %v4632
        %v4747 = vpop.f32.mrf.mxu0
        %v4748 = vadd.f32 0.0, %v4747
        %4749 = vmatmul.f32.gmra.mxu0 %v4635
        %v4750 = vpop.f32.mrf.mxu0
        %v4751 = vadd.f32 0.0, %v4750
        %4752 = vmatmul.f32.gmra.mxu0 %v4638
        %v4753 = vpop.f32.mrf.mxu0
        %v4754 = vadd.f32 0.0, %v4753
        %4755 = vmatmul.f32.gmra.mxu0 %v4641
        %v4756 = vpop.f32.mrf.mxu0
        %v4757 = vadd.f32 0.0, %v4756
        %4758 = vmatmul.f32.gmra.mxu0 %v4644
        %v4759 = vpop.f32.mrf.mxu0
        %v4760 = vadd.f32 0.0, %v4759
        %4761 = vmatmul.f32.gmra.mxu0 %v4647
        %v4762 = vpop.f32.mrf.mxu0
        %v4763 = vadd.f32 0.0, %v4762
        %4764 = vmatmul.f32.gmra.mxu0 %v4650
        %v4765 = vpop.f32.mrf.mxu0
        %v4766 = vadd.f32 0.0, %v4765
        %4767 = vmatmul.f32.gmra.mxu0 %v4653
        %v4768 = vpop.f32.mrf.mxu0
        %v4769 = vadd.f32 0.0, %v4768
        %4770 = vmatmul.f32.gmra.mxu0 %v4656
        %v4771 = vpop.f32.mrf.mxu0
        %v4772 = vadd.f32 0.0, %v4771
        %4773 = vmatmul.f32.gmra.mxu0 %v4659
        %v4774 = vpop.f32.mrf.mxu0
        %v4775 = vadd.f32 0.0, %v4774
        %4776 = vmatmul.f32.gmra.mxu0 %v4662
        %v4777 = vpop.f32.mrf.mxu0
        %v4778 = vadd.f32 0.0, %v4777
        %4779 = vmatmul.f32.gmra.mxu0 %v4665
        %v4780 = vpop.f32.mrf.mxu0
        %v4781 = vadd.f32 0.0, %v4780
        %4782 = vmatmul.f32.gmra.mxu0 %v4668
        %v4783 = vpop.f32.mrf.mxu0
        %v4784 = vadd.f32 0.0, %v4783
        %4785 = vmatmul.f32.gmra.mxu0 %v4671
        %v4786 = vpop.f32.mrf.mxu0
        %v4787 = vadd.f32 0.0, %v4786
        %4788 = vmatmul.f32.gmra.mxu0 %v4674
        %v4789 = vpop.f32.mrf.mxu0
        %v4790 = vadd.f32 0.0, %v4789
        %4791 = vmatmul.f32.gmra.mxu0 %v4677
        %v4792 = vpop.f32.mrf.mxu0
        %v4793 = vadd.f32 0.0, %v4792
        %4794 = vmatmul.f32.gmra.mxu0 %v4680
        %v4795 = vpop.f32.mrf.mxu0
        %v4796 = vadd.f32 0.0, %v4795
        %4797 = vmatmul.f32.gmra.mxu0 %v4683
        %v4798 = vpop.f32.mrf.mxu0
        %v4799 = vadd.f32 0.0, %v4798
        %4800 = vmatmul.f32.gmra.mxu0 %v4686
        %v4801 = vpop.f32.mrf.mxu0
        %v4802 = vadd.f32 0.0, %v4801
        %4803 = vmatmul.f32.gmra.mxu0 %v4689
        %v4804 = vpop.f32.mrf.mxu0
        %v4805 = vadd.f32 0.0, %v4804
        %4806 = vmatmul.f32.gmra.mxu0 %v4692
        %v4807 = vpop.f32.mrf.mxu0
        %v4808 = vadd.f32 0.0, %v4807
        %4809 = vmatmul.f32.gmra.mxu0 %v4695
        %v4810 = vpop.f32.mrf.mxu0
        %v4811 = vadd.f32 0.0, %v4810
        %4812 = vmatmul.f32.gmra.mxu0 %v4698
        %v4813 = vpop.f32.mrf.mxu0
        %v4814 = vadd.f32 0.0, %v4813
        %4815 = vmatmul.f32.gmra.mxu0 %v4701
        %v4816 = vpop.f32.mrf.mxu0
        %v4817 = vadd.f32 0.0, %v4816
        %4818 = vdwg.mxu0
        %v4819 = vadd.f32 %v4541, %v4724
        %v4820 = vadd.f32 %v4542, %v4727
        %v4821 = vadd.f32 %v4543, %v4730
        %v4822 = vadd.f32 %v4544, %v4733
        %v4823 = vadd.f32 %v4545, %v4736
        %v4824 = vadd.f32 %v4546, %v4739
        %v4825 = vadd.f32 %v4547, %v4742
        %v4826 = vadd.f32 %v4548, %v4745
        %v4827 = vadd.f32 %v4549, %v4748
        %v4828 = vadd.f32 %v4550, %v4751
        %v4829 = vadd.f32 %v4551, %v4754
        %v4830 = vadd.f32 %v4552, %v4757
        %v4831 = vadd.f32 %v4553, %v4760
        %v4832 = vadd.f32 %v4554, %v4763
        %v4833 = vadd.f32 %v4555, %v4766
        %v4834 = vadd.f32 %v4556, %v4769
        %v4835 = vadd.f32 %v4557, %v4772
        %v4836 = vadd.f32 %v4558, %v4775
        %v4837 = vadd.f32 %v4559, %v4778
        %v4838 = vadd.f32 %v4560, %v4781
        %v4839 = vadd.f32 %v4561, %v4784
        %v4840 = vadd.f32 %v4562, %v4787
        %v4841 = vadd.f32 %v4563, %v4790
        %v4842 = vadd.f32 %v4564, %v4793
        %v4843 = vadd.f32 %v4565, %v4796
        %v4844 = vadd.f32 %v4566, %v4799
        %v4845 = vadd.f32 %v4567, %v4802
        %v4846 = vadd.f32 %v4568, %v4805
        %v4847 = vadd.f32 %v4569, %v4808
        %v4848 = vadd.f32 %v4570, %v4811
        %v4849 = vadd.f32 %v4571, %v4814
        %v4850 = vadd.f32 %v4572, %v4817
        %s4851 = scalar_lea.vmem [#allocation3], 24
        %v4852 = vld [vmem:[%s4851] sm:$0xff]
        %v4853 = vld [vmem:[%s4851 + $0x8] sm:$0xff]
        %v4854 = vld [vmem:[%s4851 + $0x18] sm:$0xff]
        %v4855 = vld [vmem:[%s4851 + $0x20] sm:$0xff]
        %v4856 = vld [vmem:[%s4851 + $0x30] sm:$0xff]
        %v4857 = vld [vmem:[%s4851 + $0x38] sm:$0xff]
        %v4858 = vld [vmem:[%s4851 + $0x48] sm:$0xff]
        %v4859 = vld [vmem:[%s4851 + $0x50] sm:$0xff]
        %v4860 = vld [vmem:[%s4851 + $0x60] sm:$0xff]
        %v4861 = vld [vmem:[%s4851 + $0x68] sm:$0xff]
        %v4862 = vld [vmem:[%s4851 + $0x78] sm:$0xff]
        %v4863 = vld [vmem:[%s4851 + $0x80] sm:$0xff]
        %v4864 = vld [vmem:[%s4851 + $0x90] sm:$0xff]
        %v4865 = vld [vmem:[%s4851 + $0x98] sm:$0xff]
        %v4866 = vld [vmem:[%s4851 + $0xa8] sm:$0xff]
        %v4867 = vld [vmem:[%s4851 + $0xb0] sm:$0xff]
        %v4868 = vld [vmem:[%s4851 + $0xc0] sm:$0xff]
        %v4869 = vld [vmem:[%s4851 + $0xc8] sm:$0xff]
        %v4870 = vld [vmem:[%s4851 + $0xd8] sm:$0xff]
        %v4871 = vld [vmem:[%s4851 + $0xe0] sm:$0xff]
        %v4872 = vld [vmem:[%s4851 + $0xf0] sm:$0xff]
        %v4873 = vld [vmem:[%s4851 + $0xf8] sm:$0xff]
        %v4874 = vld [vmem:[%s4851 + $0x108] sm:$0xff]
        %v4875 = vld [vmem:[%s4851 + $0x110] sm:$0xff]
        %v4876 = vld [vmem:[%s4851 + $0x120] sm:$0xff]
        %v4877 = vld [vmem:[%s4851 + $0x128] sm:$0xff]
        %v4878 = vld [vmem:[%s4851 + $0x138] sm:$0xff]
        %v4879 = vld [vmem:[%s4851 + $0x140] sm:$0xff]
        %v4880 = vld [vmem:[%s4851 + $0x150] sm:$0xff]
        %v4881 = vld [vmem:[%s4851 + $0x158] sm:$0xff]
        %v4882 = vld [vmem:[%s4851 + $0x168] sm:$0xff]
        %v4883 = vld [vmem:[%s4851 + $0x170] sm:$0xff]
        %s4884 = scalar_lea.vmem %s5, 20
        %v4885 = vld [vmem:[%s4884] sm:$0xf]
        %v4887 = vsel %vm368, %v4852, 0
        %v4890 = vsel %vm368, %v4853, 0
        %v4893 = vsel %vm368, %v4854, 0
        %v4896 = vsel %vm368, %v4855, 0
        %v4899 = vsel %vm368, %v4856, 0
        %v4902 = vsel %vm368, %v4857, 0
        %v4905 = vsel %vm368, %v4858, 0
        %v4908 = vsel %vm368, %v4859, 0
        %v4911 = vsel %vm368, %v4860, 0
        %v4914 = vsel %vm368, %v4861, 0
        %v4917 = vsel %vm368, %v4862, 0
        %v4920 = vsel %vm368, %v4863, 0
        %v4923 = vsel %vm368, %v4864, 0
        %v4926 = vsel %vm368, %v4865, 0
        %v4929 = vsel %vm368, %v4866, 0
        %v4932 = vsel %vm368, %v4867, 0
        %v4935 = vsel %vm368, %v4868, 0
        %v4938 = vsel %vm368, %v4869, 0
        %v4941 = vsel %vm368, %v4870, 0
        %v4944 = vsel %vm368, %v4871, 0
        %v4947 = vsel %vm368, %v4872, 0
        %v4950 = vsel %vm368, %v4873, 0
        %v4953 = vsel %vm368, %v4874, 0
        %v4956 = vsel %vm368, %v4875, 0
        %v4959 = vsel %vm368, %v4876, 0
        %v4962 = vsel %vm368, %v4877, 0
        %v4965 = vsel %vm368, %v4878, 0
        %v4968 = vsel %vm368, %v4879, 0
        %v4971 = vsel %vm368, %v4880, 0
        %v4974 = vsel %vm368, %v4881, 0
        %v4977 = vsel %vm368, %v4882, 0
        %v4980 = vsel %vm368, %v4883, 0
        %v4983 = vsel %vm465, %v4885, 0
        %4985 = vmatpush.msra.mxu0 0.0
        %4986 = vmatpush.msra.mxu0 0.0
        %4987 = vmatpush.msra.mxu0 0.0
        %4988 = vmatpush.msra.mxu0 0.0
        %4989 = vmatpush.msra.mxu0 0.0
        %4990 = vmatpush.msra.mxu0 0.0
        %4991 = vmatpush.msra.mxu0 0.0
        %4992 = vmatpush.msra.mxu0 0.0
        %4993 = vmatpush.msra.mxu0 0.0
        %4994 = vmatpush.msra.mxu0 0.0
        %4995 = vmatpush.msra.mxu0 0.0
        %4996 = vmatpush.msra.mxu0 0.0
        %4997 = vmatpush.msra.mxu0 0.0
        %4998 = vmatpush.msra.mxu0 0.0
        %4999 = vmatpush.msra.mxu0 0.0
        %5000 = vmatpush.msra.mxu0 %v4983
        %5001 = vmatmul.f32.gmra.mxu0 %v4887
        %v5002 = vpop.f32.mrf.mxu0
        %v5003 = vadd.f32 0.0, %v5002
        %5004 = vmatmul.f32.gmra.mxu0 %v4890
        %v5005 = vpop.f32.mrf.mxu0
        %v5006 = vadd.f32 0.0, %v5005
        %5007 = vmatmul.f32.gmra.mxu0 %v4893
        %v5008 = vpop.f32.mrf.mxu0
        %v5009 = vadd.f32 0.0, %v5008
        %5010 = vmatmul.f32.gmra.mxu0 %v4896
        %v5011 = vpop.f32.mrf.mxu0
        %v5012 = vadd.f32 0.0, %v5011
        %5013 = vmatmul.f32.gmra.mxu0 %v4899
        %v5014 = vpop.f32.mrf.mxu0
        %v5015 = vadd.f32 0.0, %v5014
        %5016 = vmatmul.f32.gmra.mxu0 %v4902
        %v5017 = vpop.f32.mrf.mxu0
        %v5018 = vadd.f32 0.0, %v5017
        %5019 = vmatmul.f32.gmra.mxu0 %v4905
        %v5020 = vpop.f32.mrf.mxu0
        %v5021 = vadd.f32 0.0, %v5020
        %5022 = vmatmul.f32.gmra.mxu0 %v4908
        %v5023 = vpop.f32.mrf.mxu0
        %v5024 = vadd.f32 0.0, %v5023
        %5025 = vmatmul.f32.gmra.mxu0 %v4911
        %v5026 = vpop.f32.mrf.mxu0
        %v5027 = vadd.f32 0.0, %v5026
        %5028 = vmatmul.f32.gmra.mxu0 %v4914
        %v5029 = vpop.f32.mrf.mxu0
        %v5030 = vadd.f32 0.0, %v5029
        %5031 = vmatmul.f32.gmra.mxu0 %v4917
        %v5032 = vpop.f32.mrf.mxu0
        %v5033 = vadd.f32 0.0, %v5032
        %5034 = vmatmul.f32.gmra.mxu0 %v4920
        %v5035 = vpop.f32.mrf.mxu0
        %v5036 = vadd.f32 0.0, %v5035
        %5037 = vmatmul.f32.gmra.mxu0 %v4923
        %v5038 = vpop.f32.mrf.mxu0
        %v5039 = vadd.f32 0.0, %v5038
        %5040 = vmatmul.f32.gmra.mxu0 %v4926
        %v5041 = vpop.f32.mrf.mxu0
        %v5042 = vadd.f32 0.0, %v5041
        %5043 = vmatmul.f32.gmra.mxu0 %v4929
        %v5044 = vpop.f32.mrf.mxu0
        %v5045 = vadd.f32 0.0, %v5044
        %5046 = vmatmul.f32.gmra.mxu0 %v4932
        %v5047 = vpop.f32.mrf.mxu0
        %v5048 = vadd.f32 0.0, %v5047
        %5049 = vmatmul.f32.gmra.mxu0 %v4935
        %v5050 = vpop.f32.mrf.mxu0
        %v5051 = vadd.f32 0.0, %v5050
        %5052 = vmatmul.f32.gmra.mxu0 %v4938
        %v5053 = vpop.f32.mrf.mxu0
        %v5054 = vadd.f32 0.0, %v5053
        %5055 = vmatmul.f32.gmra.mxu0 %v4941
        %v5056 = vpop.f32.mrf.mxu0
        %v5057 = vadd.f32 0.0, %v5056
        %5058 = vmatmul.f32.gmra.mxu0 %v4944
        %v5059 = vpop.f32.mrf.mxu0
        %v5060 = vadd.f32 0.0, %v5059
        %5061 = vmatmul.f32.gmra.mxu0 %v4947
        %v5062 = vpop.f32.mrf.mxu0
        %v5063 = vadd.f32 0.0, %v5062
        %5064 = vmatmul.f32.gmra.mxu0 %v4950
        %v5065 = vpop.f32.mrf.mxu0
        %v5066 = vadd.f32 0.0, %v5065
        %5067 = vmatmul.f32.gmra.mxu0 %v4953
        %v5068 = vpop.f32.mrf.mxu0
        %v5069 = vadd.f32 0.0, %v5068
        %5070 = vmatmul.f32.gmra.mxu0 %v4956
        %v5071 = vpop.f32.mrf.mxu0
        %v5072 = vadd.f32 0.0, %v5071
        %5073 = vmatmul.f32.gmra.mxu0 %v4959
        %v5074 = vpop.f32.mrf.mxu0
        %v5075 = vadd.f32 0.0, %v5074
        %5076 = vmatmul.f32.gmra.mxu0 %v4962
        %v5077 = vpop.f32.mrf.mxu0
        %v5078 = vadd.f32 0.0, %v5077
        %5079 = vmatmul.f32.gmra.mxu0 %v4965
        %v5080 = vpop.f32.mrf.mxu0
        %v5081 = vadd.f32 0.0, %v5080
        %5082 = vmatmul.f32.gmra.mxu0 %v4968
        %v5083 = vpop.f32.mrf.mxu0
        %v5084 = vadd.f32 0.0, %v5083
        %5085 = vmatmul.f32.gmra.mxu0 %v4971
        %v5086 = vpop.f32.mrf.mxu0
        %v5087 = vadd.f32 0.0, %v5086
        %5088 = vmatmul.f32.gmra.mxu0 %v4974
        %v5089 = vpop.f32.mrf.mxu0
        %v5090 = vadd.f32 0.0, %v5089
        %5091 = vmatmul.f32.gmra.mxu0 %v4977
        %v5092 = vpop.f32.mrf.mxu0
        %v5093 = vadd.f32 0.0, %v5092
        %5094 = vmatmul.f32.gmra.mxu0 %v4980
        %v5095 = vpop.f32.mrf.mxu0
        %v5096 = vadd.f32 0.0, %v5095
        %5097 = vdwg.mxu0
        %v5098 = vadd.f32 %v4819, %v5003
        %v5099 = vadd.f32 %v4820, %v5006
        %v5100 = vadd.f32 %v4821, %v5009
        %v5101 = vadd.f32 %v4822, %v5012
        %v5102 = vadd.f32 %v4823, %v5015
        %v5103 = vadd.f32 %v4824, %v5018
        %v5104 = vadd.f32 %v4825, %v5021
        %v5105 = vadd.f32 %v4826, %v5024
        %v5106 = vadd.f32 %v4827, %v5027
        %v5107 = vadd.f32 %v4828, %v5030
        %v5108 = vadd.f32 %v4829, %v5033
        %v5109 = vadd.f32 %v4830, %v5036
        %v5110 = vadd.f32 %v4831, %v5039
        %v5111 = vadd.f32 %v4832, %v5042
        %v5112 = vadd.f32 %v4833, %v5045
        %v5113 = vadd.f32 %v4834, %v5048
        %v5114 = vadd.f32 %v4835, %v5051
        %v5115 = vadd.f32 %v4836, %v5054
        %v5116 = vadd.f32 %v4837, %v5057
        %v5117 = vadd.f32 %v4838, %v5060
        %v5118 = vadd.f32 %v4839, %v5063
        %v5119 = vadd.f32 %v4840, %v5066
        %v5120 = vadd.f32 %v4841, %v5069
        %v5121 = vadd.f32 %v4842, %v5072
        %v5122 = vadd.f32 %v4843, %v5075
        %v5123 = vadd.f32 %v4844, %v5078
        %v5124 = vadd.f32 %v4845, %v5081
        %v5125 = vadd.f32 %v4846, %v5084
        %v5126 = vadd.f32 %v4847, %v5087
        %v5127 = vadd.f32 %v4848, %v5090
        %v5128 = vadd.f32 %v4849, %v5093
        %v5129 = vadd.f32 %v4850, %v5096
        %v5130 = vld [vmem:[%s4851 + $0x1] sm:$0xff]
        %v5131 = vld [vmem:[%s4851 + $0x9] sm:$0xff]
        %v5132 = vld [vmem:[%s4851 + $0x19] sm:$0xff]
        %v5133 = vld [vmem:[%s4851 + $0x21] sm:$0xff]
        %v5134 = vld [vmem:[%s4851 + $0x31] sm:$0xff]
        %v5135 = vld [vmem:[%s4851 + $0x39] sm:$0xff]
        %v5136 = vld [vmem:[%s4851 + $0x49] sm:$0xff]
        %v5137 = vld [vmem:[%s4851 + $0x51] sm:$0xff]
        %v5138 = vld [vmem:[%s4851 + $0x61] sm:$0xff]
        %v5139 = vld [vmem:[%s4851 + $0x69] sm:$0xff]
        %v5140 = vld [vmem:[%s4851 + $0x79] sm:$0xff]
        %v5141 = vld [vmem:[%s4851 + $0x81] sm:$0xff]
        %v5142 = vld [vmem:[%s4851 + $0x91] sm:$0xff]
        %v5143 = vld [vmem:[%s4851 + $0x99] sm:$0xff]
        %v5144 = vld [vmem:[%s4851 + $0xa9] sm:$0xff]
        %v5145 = vld [vmem:[%s4851 + $0xb1] sm:$0xff]
        %v5146 = vld [vmem:[%s4851 + $0xc1] sm:$0xff]
        %v5147 = vld [vmem:[%s4851 + $0xc9] sm:$0xff]
        %v5148 = vld [vmem:[%s4851 + $0xd9] sm:$0xff]
        %v5149 = vld [vmem:[%s4851 + $0xe1] sm:$0xff]
        %v5150 = vld [vmem:[%s4851 + $0xf1] sm:$0xff]
        %v5151 = vld [vmem:[%s4851 + $0xf9] sm:$0xff]
        %v5152 = vld [vmem:[%s4851 + $0x109] sm:$0xff]
        %v5153 = vld [vmem:[%s4851 + $0x111] sm:$0xff]
        %v5154 = vld [vmem:[%s4851 + $0x121] sm:$0xff]
        %v5155 = vld [vmem:[%s4851 + $0x129] sm:$0xff]
        %v5156 = vld [vmem:[%s4851 + $0x139] sm:$0xff]
        %v5157 = vld [vmem:[%s4851 + $0x141] sm:$0xff]
        %v5158 = vld [vmem:[%s4851 + $0x151] sm:$0xff]
        %v5159 = vld [vmem:[%s4851 + $0x159] sm:$0xff]
        %v5160 = vld [vmem:[%s4851 + $0x169] sm:$0xff]
        %v5161 = vld [vmem:[%s4851 + $0x171] sm:$0xff]
        %s5162 = scalar_lea.vmem %s5, 24
        %v5163 = vld [vmem:[%s5162] sm:$0xf]
        %v5165 = vsel %vm368, %v5130, 0
        %v5168 = vsel %vm368, %v5131, 0
        %v5171 = vsel %vm368, %v5132, 0
        %v5174 = vsel %vm368, %v5133, 0
        %v5177 = vsel %vm368, %v5134, 0
        %v5180 = vsel %vm368, %v5135, 0
        %v5183 = vsel %vm368, %v5136, 0
        %v5186 = vsel %vm368, %v5137, 0
        %v5189 = vsel %vm368, %v5138, 0
        %v5192 = vsel %vm368, %v5139, 0
        %v5195 = vsel %vm368, %v5140, 0
        %v5198 = vsel %vm368, %v5141, 0
        %v5201 = vsel %vm368, %v5142, 0
        %v5204 = vsel %vm368, %v5143, 0
        %v5207 = vsel %vm368, %v5144, 0
        %v5210 = vsel %vm368, %v5145, 0
        %v5213 = vsel %vm368, %v5146, 0
        %v5216 = vsel %vm368, %v5147, 0
        %v5219 = vsel %vm368, %v5148, 0
        %v5222 = vsel %vm368, %v5149, 0
        %v5225 = vsel %vm368, %v5150, 0
        %v5228 = vsel %vm368, %v5151, 0
        %v5231 = vsel %vm368, %v5152, 0
        %v5234 = vsel %vm368, %v5153, 0
        %v5237 = vsel %vm368, %v5154, 0
        %v5240 = vsel %vm368, %v5155, 0
        %v5243 = vsel %vm368, %v5156, 0
        %v5246 = vsel %vm368, %v5157, 0
        %v5249 = vsel %vm368, %v5158, 0
        %v5252 = vsel %vm368, %v5159, 0
        %v5255 = vsel %vm368, %v5160, 0
        %v5258 = vsel %vm368, %v5161, 0
        %v5261 = vsel %vm465, %v5163, 0
        %5263 = vmatpush.msra.mxu0 0.0
        %5264 = vmatpush.msra.mxu0 0.0
        %5265 = vmatpush.msra.mxu0 0.0
        %5266 = vmatpush.msra.mxu0 0.0
        %5267 = vmatpush.msra.mxu0 0.0
        %5268 = vmatpush.msra.mxu0 0.0
        %5269 = vmatpush.msra.mxu0 0.0
        %5270 = vmatpush.msra.mxu0 0.0
        %5271 = vmatpush.msra.mxu0 0.0
        %5272 = vmatpush.msra.mxu0 0.0
        %5273 = vmatpush.msra.mxu0 0.0
        %5274 = vmatpush.msra.mxu0 0.0
        %5275 = vmatpush.msra.mxu0 0.0
        %5276 = vmatpush.msra.mxu0 0.0
        %5277 = vmatpush.msra.mxu0 0.0
        %5278 = vmatpush.msra.mxu0 %v5261
        %5279 = vmatmul.f32.gmra.mxu0 %v5165
        %v5280 = vpop.f32.mrf.mxu0
        %v5281 = vadd.f32 0.0, %v5280
        %5282 = vmatmul.f32.gmra.mxu0 %v5168
        %v5283 = vpop.f32.mrf.mxu0
        %v5284 = vadd.f32 0.0, %v5283
        %5285 = vmatmul.f32.gmra.mxu0 %v5171
        %v5286 = vpop.f32.mrf.mxu0
        %v5287 = vadd.f32 0.0, %v5286
        %5288 = vmatmul.f32.gmra.mxu0 %v5174
        %v5289 = vpop.f32.mrf.mxu0
        %v5290 = vadd.f32 0.0, %v5289
        %5291 = vmatmul.f32.gmra.mxu0 %v5177
        %v5292 = vpop.f32.mrf.mxu0
        %v5293 = vadd.f32 0.0, %v5292
        %5294 = vmatmul.f32.gmra.mxu0 %v5180
        %v5295 = vpop.f32.mrf.mxu0
        %v5296 = vadd.f32 0.0, %v5295
        %5297 = vmatmul.f32.gmra.mxu0 %v5183
        %v5298 = vpop.f32.mrf.mxu0
        %v5299 = vadd.f32 0.0, %v5298
        %5300 = vmatmul.f32.gmra.mxu0 %v5186
        %v5301 = vpop.f32.mrf.mxu0
        %v5302 = vadd.f32 0.0, %v5301
        %5303 = vmatmul.f32.gmra.mxu0 %v5189
        %v5304 = vpop.f32.mrf.mxu0
        %v5305 = vadd.f32 0.0, %v5304
        %5306 = vmatmul.f32.gmra.mxu0 %v5192
        %v5307 = vpop.f32.mrf.mxu0
        %v5308 = vadd.f32 0.0, %v5307
        %5309 = vmatmul.f32.gmra.mxu0 %v5195
        %v5310 = vpop.f32.mrf.mxu0
        %v5311 = vadd.f32 0.0, %v5310
        %5312 = vmatmul.f32.gmra.mxu0 %v5198
        %v5313 = vpop.f32.mrf.mxu0
        %v5314 = vadd.f32 0.0, %v5313
        %5315 = vmatmul.f32.gmra.mxu0 %v5201
        %v5316 = vpop.f32.mrf.mxu0
        %v5317 = vadd.f32 0.0, %v5316
        %5318 = vmatmul.f32.gmra.mxu0 %v5204
        %v5319 = vpop.f32.mrf.mxu0
        %v5320 = vadd.f32 0.0, %v5319
        %5321 = vmatmul.f32.gmra.mxu0 %v5207
        %v5322 = vpop.f32.mrf.mxu0
        %v5323 = vadd.f32 0.0, %v5322
        %5324 = vmatmul.f32.gmra.mxu0 %v5210
        %v5325 = vpop.f32.mrf.mxu0
        %v5326 = vadd.f32 0.0, %v5325
        %5327 = vmatmul.f32.gmra.mxu0 %v5213
        %v5328 = vpop.f32.mrf.mxu0
        %v5329 = vadd.f32 0.0, %v5328
        %5330 = vmatmul.f32.gmra.mxu0 %v5216
        %v5331 = vpop.f32.mrf.mxu0
        %v5332 = vadd.f32 0.0, %v5331
        %5333 = vmatmul.f32.gmra.mxu0 %v5219
        %v5334 = vpop.f32.mrf.mxu0
        %v5335 = vadd.f32 0.0, %v5334
        %5336 = vmatmul.f32.gmra.mxu0 %v5222
        %v5337 = vpop.f32.mrf.mxu0
        %v5338 = vadd.f32 0.0, %v5337
        %5339 = vmatmul.f32.gmra.mxu0 %v5225
        %v5340 = vpop.f32.mrf.mxu0
        %v5341 = vadd.f32 0.0, %v5340
        %5342 = vmatmul.f32.gmra.mxu0 %v5228
        %v5343 = vpop.f32.mrf.mxu0
        %v5344 = vadd.f32 0.0, %v5343
        %5345 = vmatmul.f32.gmra.mxu0 %v5231
        %v5346 = vpop.f32.mrf.mxu0
        %v5347 = vadd.f32 0.0, %v5346
        %5348 = vmatmul.f32.gmra.mxu0 %v5234
        %v5349 = vpop.f32.mrf.mxu0
        %v5350 = vadd.f32 0.0, %v5349
        %5351 = vmatmul.f32.gmra.mxu0 %v5237
        %v5352 = vpop.f32.mrf.mxu0
        %v5353 = vadd.f32 0.0, %v5352
        %5354 = vmatmul.f32.gmra.mxu0 %v5240
        %v5355 = vpop.f32.mrf.mxu0
        %v5356 = vadd.f32 0.0, %v5355
        %5357 = vmatmul.f32.gmra.mxu0 %v5243
        %v5358 = vpop.f32.mrf.mxu0
        %v5359 = vadd.f32 0.0, %v5358
        %5360 = vmatmul.f32.gmra.mxu0 %v5246
        %v5361 = vpop.f32.mrf.mxu0
        %v5362 = vadd.f32 0.0, %v5361
        %5363 = vmatmul.f32.gmra.mxu0 %v5249
        %v5364 = vpop.f32.mrf.mxu0
        %v5365 = vadd.f32 0.0, %v5364
        %5366 = vmatmul.f32.gmra.mxu0 %v5252
        %v5367 = vpop.f32.mrf.mxu0
        %v5368 = vadd.f32 0.0, %v5367
        %5369 = vmatmul.f32.gmra.mxu0 %v5255
        %v5370 = vpop.f32.mrf.mxu0
        %v5371 = vadd.f32 0.0, %v5370
        %5372 = vmatmul.f32.gmra.mxu0 %v5258
        %v5373 = vpop.f32.mrf.mxu0
        %v5374 = vadd.f32 0.0, %v5373
        %5375 = vdwg.mxu0
        %v5376 = vadd.f32 %v5098, %v5281
        %v5377 = vadd.f32 %v5099, %v5284
        %v5378 = vadd.f32 %v5100, %v5287
        %v5379 = vadd.f32 %v5101, %v5290
        %v5380 = vadd.f32 %v5102, %v5293
        %v5381 = vadd.f32 %v5103, %v5296
        %v5382 = vadd.f32 %v5104, %v5299
        %v5383 = vadd.f32 %v5105, %v5302
        %v5384 = vadd.f32 %v5106, %v5305
        %v5385 = vadd.f32 %v5107, %v5308
        %v5386 = vadd.f32 %v5108, %v5311
        %v5387 = vadd.f32 %v5109, %v5314
        %v5388 = vadd.f32 %v5110, %v5317
        %v5389 = vadd.f32 %v5111, %v5320
        %v5390 = vadd.f32 %v5112, %v5323
        %v5391 = vadd.f32 %v5113, %v5326
        %v5392 = vadd.f32 %v5114, %v5329
        %v5393 = vadd.f32 %v5115, %v5332
        %v5394 = vadd.f32 %v5116, %v5335
        %v5395 = vadd.f32 %v5117, %v5338
        %v5396 = vadd.f32 %v5118, %v5341
        %v5397 = vadd.f32 %v5119, %v5344
        %v5398 = vadd.f32 %v5120, %v5347
        %v5399 = vadd.f32 %v5121, %v5350
        %v5400 = vadd.f32 %v5122, %v5353
        %v5401 = vadd.f32 %v5123, %v5356
        %v5402 = vadd.f32 %v5124, %v5359
        %v5403 = vadd.f32 %v5125, %v5362
        %v5404 = vadd.f32 %v5126, %v5365
        %v5405 = vadd.f32 %v5127, %v5368
        %v5406 = vadd.f32 %v5128, %v5371
        %v5407 = vadd.f32 %v5129, %v5374
        %v5408 = vld [vmem:[%s4851 + $0x2] sm:$0xff]
        %v5409 = vld [vmem:[%s4851 + $0xa] sm:$0xff]
        %v5410 = vld [vmem:[%s4851 + $0x1a] sm:$0xff]
        %v5411 = vld [vmem:[%s4851 + $0x22] sm:$0xff]
        %v5412 = vld [vmem:[%s4851 + $0x32] sm:$0xff]
        %v5413 = vld [vmem:[%s4851 + $0x3a] sm:$0xff]
        %v5414 = vld [vmem:[%s4851 + $0x4a] sm:$0xff]
        %v5415 = vld [vmem:[%s4851 + $0x52] sm:$0xff]
        %v5416 = vld [vmem:[%s4851 + $0x62] sm:$0xff]
        %v5417 = vld [vmem:[%s4851 + $0x6a] sm:$0xff]
        %v5418 = vld [vmem:[%s4851 + $0x7a] sm:$0xff]
        %v5419 = vld [vmem:[%s4851 + $0x82] sm:$0xff]
        %v5420 = vld [vmem:[%s4851 + $0x92] sm:$0xff]
        %v5421 = vld [vmem:[%s4851 + $0x9a] sm:$0xff]
        %v5422 = vld [vmem:[%s4851 + $0xaa] sm:$0xff]
        %v5423 = vld [vmem:[%s4851 + $0xb2] sm:$0xff]
        %v5424 = vld [vmem:[%s4851 + $0xc2] sm:$0xff]
        %v5425 = vld [vmem:[%s4851 + $0xca] sm:$0xff]
        %v5426 = vld [vmem:[%s4851 + $0xda] sm:$0xff]
        %v5427 = vld [vmem:[%s4851 + $0xe2] sm:$0xff]
        %v5428 = vld [vmem:[%s4851 + $0xf2] sm:$0xff]
        %v5429 = vld [vmem:[%s4851 + $0xfa] sm:$0xff]
        %v5430 = vld [vmem:[%s4851 + $0x10a] sm:$0xff]
        %v5431 = vld [vmem:[%s4851 + $0x112] sm:$0xff]
        %v5432 = vld [vmem:[%s4851 + $0x122] sm:$0xff]
        %v5433 = vld [vmem:[%s4851 + $0x12a] sm:$0xff]
        %v5434 = vld [vmem:[%s4851 + $0x13a] sm:$0xff]
        %v5435 = vld [vmem:[%s4851 + $0x142] sm:$0xff]
        %v5436 = vld [vmem:[%s4851 + $0x152] sm:$0xff]
        %v5437 = vld [vmem:[%s4851 + $0x15a] sm:$0xff]
        %v5438 = vld [vmem:[%s4851 + $0x16a] sm:$0xff]
        %v5439 = vld [vmem:[%s4851 + $0x172] sm:$0xff]
        %s5440 = scalar_lea.vmem %s5, 28
        %v5441 = vld [vmem:[%s5440] sm:$0xf]
        %v5443 = vsel %vm368, %v5408, 0
        %v5446 = vsel %vm368, %v5409, 0
        %v5449 = vsel %vm368, %v5410, 0
        %v5452 = vsel %vm368, %v5411, 0
        %v5455 = vsel %vm368, %v5412, 0
        %v5458 = vsel %vm368, %v5413, 0
        %v5461 = vsel %vm368, %v5414, 0
        %v5464 = vsel %vm368, %v5415, 0
        %v5467 = vsel %vm368, %v5416, 0
        %v5470 = vsel %vm368, %v5417, 0
        %v5473 = vsel %vm368, %v5418, 0
        %v5476 = vsel %vm368, %v5419, 0
        %v5479 = vsel %vm368, %v5420, 0
        %v5482 = vsel %vm368, %v5421, 0
        %v5485 = vsel %vm368, %v5422, 0
        %v5488 = vsel %vm368, %v5423, 0
        %v5491 = vsel %vm368, %v5424, 0
        %v5494 = vsel %vm368, %v5425, 0
        %v5497 = vsel %vm368, %v5426, 0
        %v5500 = vsel %vm368, %v5427, 0
        %v5503 = vsel %vm368, %v5428, 0
        %v5506 = vsel %vm368, %v5429, 0
        %v5509 = vsel %vm368, %v5430, 0
        %v5512 = vsel %vm368, %v5431, 0
        %v5515 = vsel %vm368, %v5432, 0
        %v5518 = vsel %vm368, %v5433, 0
        %v5521 = vsel %vm368, %v5434, 0
        %v5524 = vsel %vm368, %v5435, 0
        %v5527 = vsel %vm368, %v5436, 0
        %v5530 = vsel %vm368, %v5437, 0
        %v5533 = vsel %vm368, %v5438, 0
        %v5536 = vsel %vm368, %v5439, 0
        %v5539 = vsel %vm465, %v5441, 0
        %5541 = vmatpush.msra.mxu0 0.0
        %5542 = vmatpush.msra.mxu0 0.0
        %5543 = vmatpush.msra.mxu0 0.0
        %5544 = vmatpush.msra.mxu0 0.0
        %5545 = vmatpush.msra.mxu0 0.0
        %5546 = vmatpush.msra.mxu0 0.0
        %5547 = vmatpush.msra.mxu0 0.0
        %5548 = vmatpush.msra.mxu0 0.0
        %5549 = vmatpush.msra.mxu0 0.0
        %5550 = vmatpush.msra.mxu0 0.0
        %5551 = vmatpush.msra.mxu0 0.0
        %5552 = vmatpush.msra.mxu0 0.0
        %5553 = vmatpush.msra.mxu0 0.0
        %5554 = vmatpush.msra.mxu0 0.0
        %5555 = vmatpush.msra.mxu0 0.0
        %5556 = vmatpush.msra.mxu0 %v5539
        %5557 = vmatmul.f32.gmra.mxu0 %v5443
        %v5558 = vpop.f32.mrf.mxu0
        %v5559 = vadd.f32 0.0, %v5558
        %5560 = vmatmul.f32.gmra.mxu0 %v5446
        %v5561 = vpop.f32.mrf.mxu0
        %v5562 = vadd.f32 0.0, %v5561
        %5563 = vmatmul.f32.gmra.mxu0 %v5449
        %v5564 = vpop.f32.mrf.mxu0
        %v5565 = vadd.f32 0.0, %v5564
        %5566 = vmatmul.f32.gmra.mxu0 %v5452
        %v5567 = vpop.f32.mrf.mxu0
        %v5568 = vadd.f32 0.0, %v5567
        %5569 = vmatmul.f32.gmra.mxu0 %v5455
        %v5570 = vpop.f32.mrf.mxu0
        %v5571 = vadd.f32 0.0, %v5570
        %5572 = vmatmul.f32.gmra.mxu0 %v5458
        %v5573 = vpop.f32.mrf.mxu0
        %v5574 = vadd.f32 0.0, %v5573
        %5575 = vmatmul.f32.gmra.mxu0 %v5461
        %v5576 = vpop.f32.mrf.mxu0
        %v5577 = vadd.f32 0.0, %v5576
        %5578 = vmatmul.f32.gmra.mxu0 %v5464
        %v5579 = vpop.f32.mrf.mxu0
        %v5580 = vadd.f32 0.0, %v5579
        %5581 = vmatmul.f32.gmra.mxu0 %v5467
        %v5582 = vpop.f32.mrf.mxu0
        %v5583 = vadd.f32 0.0, %v5582
        %5584 = vmatmul.f32.gmra.mxu0 %v5470
        %v5585 = vpop.f32.mrf.mxu0
        %v5586 = vadd.f32 0.0, %v5585
        %5587 = vmatmul.f32.gmra.mxu0 %v5473
        %v5588 = vpop.f32.mrf.mxu0
        %v5589 = vadd.f32 0.0, %v5588
        %5590 = vmatmul.f32.gmra.mxu0 %v5476
        %v5591 = vpop.f32.mrf.mxu0
        %v5592 = vadd.f32 0.0, %v5591
        %5593 = vmatmul.f32.gmra.mxu0 %v5479
        %v5594 = vpop.f32.mrf.mxu0
        %v5595 = vadd.f32 0.0, %v5594
        %5596 = vmatmul.f32.gmra.mxu0 %v5482
        %v5597 = vpop.f32.mrf.mxu0
        %v5598 = vadd.f32 0.0, %v5597
        %5599 = vmatmul.f32.gmra.mxu0 %v5485
        %v5600 = vpop.f32.mrf.mxu0
        %v5601 = vadd.f32 0.0, %v5600
        %5602 = vmatmul.f32.gmra.mxu0 %v5488
        %v5603 = vpop.f32.mrf.mxu0
        %v5604 = vadd.f32 0.0, %v5603
        %5605 = vmatmul.f32.gmra.mxu0 %v5491
        %v5606 = vpop.f32.mrf.mxu0
        %v5607 = vadd.f32 0.0, %v5606
        %5608 = vmatmul.f32.gmra.mxu0 %v5494
        %v5609 = vpop.f32.mrf.mxu0
        %v5610 = vadd.f32 0.0, %v5609
        %5611 = vmatmul.f32.gmra.mxu0 %v5497
        %v5612 = vpop.f32.mrf.mxu0
        %v5613 = vadd.f32 0.0, %v5612
        %5614 = vmatmul.f32.gmra.mxu0 %v5500
        %v5615 = vpop.f32.mrf.mxu0
        %v5616 = vadd.f32 0.0, %v5615
        %5617 = vmatmul.f32.gmra.mxu0 %v5503
        %v5618 = vpop.f32.mrf.mxu0
        %v5619 = vadd.f32 0.0, %v5618
        %5620 = vmatmul.f32.gmra.mxu0 %v5506
        %v5621 = vpop.f32.mrf.mxu0
        %v5622 = vadd.f32 0.0, %v5621
        %5623 = vmatmul.f32.gmra.mxu0 %v5509
        %v5624 = vpop.f32.mrf.mxu0
        %v5625 = vadd.f32 0.0, %v5624
        %5626 = vmatmul.f32.gmra.mxu0 %v5512
        %v5627 = vpop.f32.mrf.mxu0
        %v5628 = vadd.f32 0.0, %v5627
        %5629 = vmatmul.f32.gmra.mxu0 %v5515
        %v5630 = vpop.f32.mrf.mxu0
        %v5631 = vadd.f32 0.0, %v5630
        %5632 = vmatmul.f32.gmra.mxu0 %v5518
        %v5633 = vpop.f32.mrf.mxu0
        %v5634 = vadd.f32 0.0, %v5633
        %5635 = vmatmul.f32.gmra.mxu0 %v5521
        %v5636 = vpop.f32.mrf.mxu0
        %v5637 = vadd.f32 0.0, %v5636
        %5638 = vmatmul.f32.gmra.mxu0 %v5524
        %v5639 = vpop.f32.mrf.mxu0
        %v5640 = vadd.f32 0.0, %v5639
        %5641 = vmatmul.f32.gmra.mxu0 %v5527
        %v5642 = vpop.f32.mrf.mxu0
        %v5643 = vadd.f32 0.0, %v5642
        %5644 = vmatmul.f32.gmra.mxu0 %v5530
        %v5645 = vpop.f32.mrf.mxu0
        %v5646 = vadd.f32 0.0, %v5645
        %5647 = vmatmul.f32.gmra.mxu0 %v5533
        %v5648 = vpop.f32.mrf.mxu0
        %v5649 = vadd.f32 0.0, %v5648
        %5650 = vmatmul.f32.gmra.mxu0 %v5536
        %v5651 = vpop.f32.mrf.mxu0
        %v5652 = vadd.f32 0.0, %v5651
        %5653 = vdwg.mxu0
        %v5654 = vadd.f32 %v5376, %v5559
        %v5655 = vadd.f32 %v5377, %v5562
        %v5656 = vadd.f32 %v5378, %v5565
        %v5657 = vadd.f32 %v5379, %v5568
        %v5658 = vadd.f32 %v5380, %v5571
        %v5659 = vadd.f32 %v5381, %v5574
        %v5660 = vadd.f32 %v5382, %v5577
        %v5661 = vadd.f32 %v5383, %v5580
        %v5662 = vadd.f32 %v5384, %v5583
        %v5663 = vadd.f32 %v5385, %v5586
        %v5664 = vadd.f32 %v5386, %v5589
        %v5665 = vadd.f32 %v5387, %v5592
        %v5666 = vadd.f32 %v5388, %v5595
        %v5667 = vadd.f32 %v5389, %v5598
        %v5668 = vadd.f32 %v5390, %v5601
        %v5669 = vadd.f32 %v5391, %v5604
        %v5670 = vadd.f32 %v5392, %v5607
        %v5671 = vadd.f32 %v5393, %v5610
        %v5672 = vadd.f32 %v5394, %v5613
        %v5673 = vadd.f32 %v5395, %v5616
        %v5674 = vadd.f32 %v5396, %v5619
        %v5675 = vadd.f32 %v5397, %v5622
        %v5676 = vadd.f32 %v5398, %v5625
        %v5677 = vadd.f32 %v5399, %v5628
        %v5678 = vadd.f32 %v5400, %v5631
        %v5679 = vadd.f32 %v5401, %v5634
        %v5680 = vadd.f32 %v5402, %v5637
        %v5681 = vadd.f32 %v5403, %v5640
        %v5682 = vadd.f32 %v5404, %v5643
        %v5683 = vadd.f32 %v5405, %v5646
        %v5684 = vadd.f32 %v5406, %v5649
        %v5685 = vadd.f32 %v5407, %v5652
        %v5686 = vld [vmem:[%s4851 + $0x3] sm:$0xff]
        %v5687 = vld [vmem:[%s4851 + $0xb] sm:$0xff]
        %v5688 = vld [vmem:[%s4851 + $0x1b] sm:$0xff]
        %v5689 = vld [vmem:[%s4851 + $0x23] sm:$0xff]
        %v5690 = vld [vmem:[%s4851 + $0x33] sm:$0xff]
        %v5691 = vld [vmem:[%s4851 + $0x3b] sm:$0xff]
        %v5692 = vld [vmem:[%s4851 + $0x4b] sm:$0xff]
        %v5693 = vld [vmem:[%s4851 + $0x53] sm:$0xff]
        %v5694 = vld [vmem:[%s4851 + $0x63] sm:$0xff]
        %v5695 = vld [vmem:[%s4851 + $0x6b] sm:$0xff]
        %v5696 = vld [vmem:[%s4851 + $0x7b] sm:$0xff]
        %v5697 = vld [vmem:[%s4851 + $0x83] sm:$0xff]
        %v5698 = vld [vmem:[%s4851 + $0x93] sm:$0xff]
        %v5699 = vld [vmem:[%s4851 + $0x9b] sm:$0xff]
        %v5700 = vld [vmem:[%s4851 + $0xab] sm:$0xff]
        %v5701 = vld [vmem:[%s4851 + $0xb3] sm:$0xff]
        %v5702 = vld [vmem:[%s4851 + $0xc3] sm:$0xff]
        %v5703 = vld [vmem:[%s4851 + $0xcb] sm:$0xff]
        %v5704 = vld [vmem:[%s4851 + $0xdb] sm:$0xff]
        %v5705 = vld [vmem:[%s4851 + $0xe3] sm:$0xff]
        %v5706 = vld [vmem:[%s4851 + $0xf3] sm:$0xff]
        %v5707 = vld [vmem:[%s4851 + $0xfb] sm:$0xff]
        %v5708 = vld [vmem:[%s4851 + $0x10b] sm:$0xff]
        %v5709 = vld [vmem:[%s4851 + $0x113] sm:$0xff]
        %v5710 = vld [vmem:[%s4851 + $0x123] sm:$0xff]
        %v5711 = vld [vmem:[%s4851 + $0x12b] sm:$0xff]
        %v5712 = vld [vmem:[%s4851 + $0x13b] sm:$0xff]
        %v5713 = vld [vmem:[%s4851 + $0x143] sm:$0xff]
        %v5714 = vld [vmem:[%s4851 + $0x153] sm:$0xff]
        %v5715 = vld [vmem:[%s4851 + $0x15b] sm:$0xff]
        %v5716 = vld [vmem:[%s4851 + $0x16b] sm:$0xff]
        %v5717 = vld [vmem:[%s4851 + $0x173] sm:$0xff]
        %s5718 = scalar_lea.vmem %s5, 32
        %v5719 = vld [vmem:[%s5718] sm:$0xf]
        %v5721 = vsel %vm368, %v5686, 0
        %v5724 = vsel %vm368, %v5687, 0
        %v5727 = vsel %vm368, %v5688, 0
        %v5730 = vsel %vm368, %v5689, 0
        %v5733 = vsel %vm368, %v5690, 0
        %v5736 = vsel %vm368, %v5691, 0
        %v5739 = vsel %vm368, %v5692, 0
        %v5742 = vsel %vm368, %v5693, 0
        %v5745 = vsel %vm368, %v5694, 0
        %v5748 = vsel %vm368, %v5695, 0
        %v5751 = vsel %vm368, %v5696, 0
        %v5754 = vsel %vm368, %v5697, 0
        %v5757 = vsel %vm368, %v5698, 0
        %v5760 = vsel %vm368, %v5699, 0
        %v5763 = vsel %vm368, %v5700, 0
        %v5766 = vsel %vm368, %v5701, 0
        %v5769 = vsel %vm368, %v5702, 0
        %v5772 = vsel %vm368, %v5703, 0
        %v5775 = vsel %vm368, %v5704, 0
        %v5778 = vsel %vm368, %v5705, 0
        %v5781 = vsel %vm368, %v5706, 0
        %v5784 = vsel %vm368, %v5707, 0
        %v5787 = vsel %vm368, %v5708, 0
        %v5790 = vsel %vm368, %v5709, 0
        %v5793 = vsel %vm368, %v5710, 0
        %v5796 = vsel %vm368, %v5711, 0
        %v5799 = vsel %vm368, %v5712, 0
        %v5802 = vsel %vm368, %v5713, 0
        %v5805 = vsel %vm368, %v5714, 0
        %v5808 = vsel %vm368, %v5715, 0
        %v5811 = vsel %vm368, %v5716, 0
        %v5814 = vsel %vm368, %v5717, 0
        %v5817 = vsel %vm465, %v5719, 0
        %5819 = vmatpush.msra.mxu0 0.0
        %5820 = vmatpush.msra.mxu0 0.0
        %5821 = vmatpush.msra.mxu0 0.0
        %5822 = vmatpush.msra.mxu0 0.0
        %5823 = vmatpush.msra.mxu0 0.0
        %5824 = vmatpush.msra.mxu0 0.0
        %5825 = vmatpush.msra.mxu0 0.0
        %5826 = vmatpush.msra.mxu0 0.0
        %5827 = vmatpush.msra.mxu0 0.0
        %5828 = vmatpush.msra.mxu0 0.0
        %5829 = vmatpush.msra.mxu0 0.0
        %5830 = vmatpush.msra.mxu0 0.0
        %5831 = vmatpush.msra.mxu0 0.0
        %5832 = vmatpush.msra.mxu0 0.0
        %5833 = vmatpush.msra.mxu0 0.0
        %5834 = vmatpush.msra.mxu0 %v5817
        %5835 = vmatmul.f32.gmra.mxu0 %v5721
        %v5836 = vpop.f32.mrf.mxu0
        %v5837 = vadd.f32 0.0, %v5836
        %5838 = vmatmul.f32.gmra.mxu0 %v5724
        %v5839 = vpop.f32.mrf.mxu0
        %v5840 = vadd.f32 0.0, %v5839
        %5841 = vmatmul.f32.gmra.mxu0 %v5727
        %v5842 = vpop.f32.mrf.mxu0
        %v5843 = vadd.f32 0.0, %v5842
        %5844 = vmatmul.f32.gmra.mxu0 %v5730
        %v5845 = vpop.f32.mrf.mxu0
        %v5846 = vadd.f32 0.0, %v5845
        %5847 = vmatmul.f32.gmra.mxu0 %v5733
        %v5848 = vpop.f32.mrf.mxu0
        %v5849 = vadd.f32 0.0, %v5848
        %5850 = vmatmul.f32.gmra.mxu0 %v5736
        %v5851 = vpop.f32.mrf.mxu0
        %v5852 = vadd.f32 0.0, %v5851
        %5853 = vmatmul.f32.gmra.mxu0 %v5739
        %v5854 = vpop.f32.mrf.mxu0
        %v5855 = vadd.f32 0.0, %v5854
        %5856 = vmatmul.f32.gmra.mxu0 %v5742
        %v5857 = vpop.f32.mrf.mxu0
        %v5858 = vadd.f32 0.0, %v5857
        %5859 = vmatmul.f32.gmra.mxu0 %v5745
        %v5860 = vpop.f32.mrf.mxu0
        %v5861 = vadd.f32 0.0, %v5860
        %5862 = vmatmul.f32.gmra.mxu0 %v5748
        %v5863 = vpop.f32.mrf.mxu0
        %v5864 = vadd.f32 0.0, %v5863
        %5865 = vmatmul.f32.gmra.mxu0 %v5751
        %v5866 = vpop.f32.mrf.mxu0
        %v5867 = vadd.f32 0.0, %v5866
        %5868 = vmatmul.f32.gmra.mxu0 %v5754
        %v5869 = vpop.f32.mrf.mxu0
        %v5870 = vadd.f32 0.0, %v5869
        %5871 = vmatmul.f32.gmra.mxu0 %v5757
        %v5872 = vpop.f32.mrf.mxu0
        %v5873 = vadd.f32 0.0, %v5872
        %5874 = vmatmul.f32.gmra.mxu0 %v5760
        %v5875 = vpop.f32.mrf.mxu0
        %v5876 = vadd.f32 0.0, %v5875
        %5877 = vmatmul.f32.gmra.mxu0 %v5763
        %v5878 = vpop.f32.mrf.mxu0
        %v5879 = vadd.f32 0.0, %v5878
        %5880 = vmatmul.f32.gmra.mxu0 %v5766
        %v5881 = vpop.f32.mrf.mxu0
        %v5882 = vadd.f32 0.0, %v5881
        %5883 = vmatmul.f32.gmra.mxu0 %v5769
        %v5884 = vpop.f32.mrf.mxu0
        %v5885 = vadd.f32 0.0, %v5884
        %5886 = vmatmul.f32.gmra.mxu0 %v5772
        %v5887 = vpop.f32.mrf.mxu0
        %v5888 = vadd.f32 0.0, %v5887
        %5889 = vmatmul.f32.gmra.mxu0 %v5775
        %v5890 = vpop.f32.mrf.mxu0
        %v5891 = vadd.f32 0.0, %v5890
        %5892 = vmatmul.f32.gmra.mxu0 %v5778
        %v5893 = vpop.f32.mrf.mxu0
        %v5894 = vadd.f32 0.0, %v5893
        %5895 = vmatmul.f32.gmra.mxu0 %v5781
        %v5896 = vpop.f32.mrf.mxu0
        %v5897 = vadd.f32 0.0, %v5896
        %5898 = vmatmul.f32.gmra.mxu0 %v5784
        %v5899 = vpop.f32.mrf.mxu0
        %v5900 = vadd.f32 0.0, %v5899
        %5901 = vmatmul.f32.gmra.mxu0 %v5787
        %v5902 = vpop.f32.mrf.mxu0
        %v5903 = vadd.f32 0.0, %v5902
        %5904 = vmatmul.f32.gmra.mxu0 %v5790
        %v5905 = vpop.f32.mrf.mxu0
        %v5906 = vadd.f32 0.0, %v5905
        %5907 = vmatmul.f32.gmra.mxu0 %v5793
        %v5908 = vpop.f32.mrf.mxu0
        %v5909 = vadd.f32 0.0, %v5908
        %5910 = vmatmul.f32.gmra.mxu0 %v5796
        %v5911 = vpop.f32.mrf.mxu0
        %v5912 = vadd.f32 0.0, %v5911
        %5913 = vmatmul.f32.gmra.mxu0 %v5799
        %v5914 = vpop.f32.mrf.mxu0
        %v5915 = vadd.f32 0.0, %v5914
        %5916 = vmatmul.f32.gmra.mxu0 %v5802
        %v5917 = vpop.f32.mrf.mxu0
        %v5918 = vadd.f32 0.0, %v5917
        %5919 = vmatmul.f32.gmra.mxu0 %v5805
        %v5920 = vpop.f32.mrf.mxu0
        %v5921 = vadd.f32 0.0, %v5920
        %5922 = vmatmul.f32.gmra.mxu0 %v5808
        %v5923 = vpop.f32.mrf.mxu0
        %v5924 = vadd.f32 0.0, %v5923
        %5925 = vmatmul.f32.gmra.mxu0 %v5811
        %v5926 = vpop.f32.mrf.mxu0
        %v5927 = vadd.f32 0.0, %v5926
        %5928 = vmatmul.f32.gmra.mxu0 %v5814
        %v5929 = vpop.f32.mrf.mxu0
        %v5930 = vadd.f32 0.0, %v5929
        %5931 = vdwg.mxu0
        %v5932 = vadd.f32 %v5654, %v5837
        %v5933 = vadd.f32 %v5655, %v5840
        %v5934 = vadd.f32 %v5656, %v5843
        %v5935 = vadd.f32 %v5657, %v5846
        %v5936 = vadd.f32 %v5658, %v5849
        %v5937 = vadd.f32 %v5659, %v5852
        %v5938 = vadd.f32 %v5660, %v5855
        %v5939 = vadd.f32 %v5661, %v5858
        %v5940 = vadd.f32 %v5662, %v5861
        %v5941 = vadd.f32 %v5663, %v5864
        %v5942 = vadd.f32 %v5664, %v5867
        %v5943 = vadd.f32 %v5665, %v5870
        %v5944 = vadd.f32 %v5666, %v5873
        %v5945 = vadd.f32 %v5667, %v5876
        %v5946 = vadd.f32 %v5668, %v5879
        %v5947 = vadd.f32 %v5669, %v5882
        %v5948 = vadd.f32 %v5670, %v5885
        %v5949 = vadd.f32 %v5671, %v5888
        %v5950 = vadd.f32 %v5672, %v5891
        %v5951 = vadd.f32 %v5673, %v5894
        %v5952 = vadd.f32 %v5674, %v5897
        %v5953 = vadd.f32 %v5675, %v5900
        %v5954 = vadd.f32 %v5676, %v5903
        %v5955 = vadd.f32 %v5677, %v5906
        %v5956 = vadd.f32 %v5678, %v5909
        %v5957 = vadd.f32 %v5679, %v5912
        %v5958 = vadd.f32 %v5680, %v5915
        %v5959 = vadd.f32 %v5681, %v5918
        %v5960 = vadd.f32 %v5682, %v5921
        %v5961 = vadd.f32 %v5683, %v5924
        %v5962 = vadd.f32 %v5684, %v5927
        %v5963 = vadd.f32 %v5685, %v5930
        %v5964 = vld [vmem:[%s4851 + $0x4] sm:$0xff]
        %v5965 = vld [vmem:[%s4851 + $0xc] sm:$0xff]
        %v5966 = vld [vmem:[%s4851 + $0x1c] sm:$0xff]
        %v5967 = vld [vmem:[%s4851 + $0x24] sm:$0xff]
        %v5968 = vld [vmem:[%s4851 + $0x34] sm:$0xff]
        %v5969 = vld [vmem:[%s4851 + $0x3c] sm:$0xff]
        %v5970 = vld [vmem:[%s4851 + $0x4c] sm:$0xff]
        %v5971 = vld [vmem:[%s4851 + $0x54] sm:$0xff]
        %v5972 = vld [vmem:[%s4851 + $0x64] sm:$0xff]
        %v5973 = vld [vmem:[%s4851 + $0x6c] sm:$0xff]
        %v5974 = vld [vmem:[%s4851 + $0x7c] sm:$0xff]
        %v5975 = vld [vmem:[%s4851 + $0x84] sm:$0xff]
        %v5976 = vld [vmem:[%s4851 + $0x94] sm:$0xff]
        %v5977 = vld [vmem:[%s4851 + $0x9c] sm:$0xff]
        %v5978 = vld [vmem:[%s4851 + $0xac] sm:$0xff]
        %v5979 = vld [vmem:[%s4851 + $0xb4] sm:$0xff]
        %v5980 = vld [vmem:[%s4851 + $0xc4] sm:$0xff]
        %v5981 = vld [vmem:[%s4851 + $0xcc] sm:$0xff]
        %v5982 = vld [vmem:[%s4851 + $0xdc] sm:$0xff]
        %v5983 = vld [vmem:[%s4851 + $0xe4] sm:$0xff]
        %v5984 = vld [vmem:[%s4851 + $0xf4] sm:$0xff]
        %v5985 = vld [vmem:[%s4851 + $0xfc] sm:$0xff]
        %v5986 = vld [vmem:[%s4851 + $0x10c] sm:$0xff]
        %v5987 = vld [vmem:[%s4851 + $0x114] sm:$0xff]
        %v5988 = vld [vmem:[%s4851 + $0x124] sm:$0xff]
        %v5989 = vld [vmem:[%s4851 + $0x12c] sm:$0xff]
        %v5990 = vld [vmem:[%s4851 + $0x13c] sm:$0xff]
        %v5991 = vld [vmem:[%s4851 + $0x144] sm:$0xff]
        %v5992 = vld [vmem:[%s4851 + $0x154] sm:$0xff]
        %v5993 = vld [vmem:[%s4851 + $0x15c] sm:$0xff]
        %v5994 = vld [vmem:[%s4851 + $0x16c] sm:$0xff]
        %v5995 = vld [vmem:[%s4851 + $0x174] sm:$0xff]
        %s5996 = scalar_lea.vmem %s5, 36
        %v5997 = vld [vmem:[%s5996] sm:$0xf]
        %v5999 = vsel %vm368, %v5964, 0
        %v6002 = vsel %vm368, %v5965, 0
        %v6005 = vsel %vm368, %v5966, 0
        %v6008 = vsel %vm368, %v5967, 0
        %v6011 = vsel %vm368, %v5968, 0
        %v6014 = vsel %vm368, %v5969, 0
        %v6017 = vsel %vm368, %v5970, 0
        %v6020 = vsel %vm368, %v5971, 0
        %v6023 = vsel %vm368, %v5972, 0
        %v6026 = vsel %vm368, %v5973, 0
        %v6029 = vsel %vm368, %v5974, 0
        %v6032 = vsel %vm368, %v5975, 0
        %v6035 = vsel %vm368, %v5976, 0
        %v6038 = vsel %vm368, %v5977, 0
        %v6041 = vsel %vm368, %v5978, 0
        %v6044 = vsel %vm368, %v5979, 0
        %v6047 = vsel %vm368, %v5980, 0
        %v6050 = vsel %vm368, %v5981, 0
        %v6053 = vsel %vm368, %v5982, 0
        %v6056 = vsel %vm368, %v5983, 0
        %v6059 = vsel %vm368, %v5984, 0
        %v6062 = vsel %vm368, %v5985, 0
        %v6065 = vsel %vm368, %v5986, 0
        %v6068 = vsel %vm368, %v5987, 0
        %v6071 = vsel %vm368, %v5988, 0
        %v6074 = vsel %vm368, %v5989, 0
        %v6077 = vsel %vm368, %v5990, 0
        %v6080 = vsel %vm368, %v5991, 0
        %v6083 = vsel %vm368, %v5992, 0
        %v6086 = vsel %vm368, %v5993, 0
        %v6089 = vsel %vm368, %v5994, 0
        %v6092 = vsel %vm368, %v5995, 0
        %v6095 = vsel %vm465, %v5997, 0
        %6097 = vmatpush.msra.mxu0 0.0
        %6098 = vmatpush.msra.mxu0 0.0
        %6099 = vmatpush.msra.mxu0 0.0
        %6100 = vmatpush.msra.mxu0 0.0
        %6101 = vmatpush.msra.mxu0 0.0
        %6102 = vmatpush.msra.mxu0 0.0
        %6103 = vmatpush.msra.mxu0 0.0
        %6104 = vmatpush.msra.mxu0 0.0
        %6105 = vmatpush.msra.mxu0 0.0
        %6106 = vmatpush.msra.mxu0 0.0
        %6107 = vmatpush.msra.mxu0 0.0
        %6108 = vmatpush.msra.mxu0 0.0
        %6109 = vmatpush.msra.mxu0 0.0
        %6110 = vmatpush.msra.mxu0 0.0
        %6111 = vmatpush.msra.mxu0 0.0
        %6112 = vmatpush.msra.mxu0 %v6095
        %6113 = vmatmul.f32.gmra.mxu0 %v5999
        %v6114 = vpop.f32.mrf.mxu0
        %v6115 = vadd.f32 0.0, %v6114
        %6116 = vmatmul.f32.gmra.mxu0 %v6002
        %v6117 = vpop.f32.mrf.mxu0
        %v6118 = vadd.f32 0.0, %v6117
        %6119 = vmatmul.f32.gmra.mxu0 %v6005
        %v6120 = vpop.f32.mrf.mxu0
        %v6121 = vadd.f32 0.0, %v6120
        %6122 = vmatmul.f32.gmra.mxu0 %v6008
        %v6123 = vpop.f32.mrf.mxu0
        %v6124 = vadd.f32 0.0, %v6123
        %6125 = vmatmul.f32.gmra.mxu0 %v6011
        %v6126 = vpop.f32.mrf.mxu0
        %v6127 = vadd.f32 0.0, %v6126
        %6128 = vmatmul.f32.gmra.mxu0 %v6014
        %v6129 = vpop.f32.mrf.mxu0
        %v6130 = vadd.f32 0.0, %v6129
        %6131 = vmatmul.f32.gmra.mxu0 %v6017
        %v6132 = vpop.f32.mrf.mxu0
        %v6133 = vadd.f32 0.0, %v6132
        %6134 = vmatmul.f32.gmra.mxu0 %v6020
        %v6135 = vpop.f32.mrf.mxu0
        %v6136 = vadd.f32 0.0, %v6135
        %6137 = vmatmul.f32.gmra.mxu0 %v6023
        %v6138 = vpop.f32.mrf.mxu0
        %v6139 = vadd.f32 0.0, %v6138
        %6140 = vmatmul.f32.gmra.mxu0 %v6026
        %v6141 = vpop.f32.mrf.mxu0
        %v6142 = vadd.f32 0.0, %v6141
        %6143 = vmatmul.f32.gmra.mxu0 %v6029
        %v6144 = vpop.f32.mrf.mxu0
        %v6145 = vadd.f32 0.0, %v6144
        %6146 = vmatmul.f32.gmra.mxu0 %v6032
        %v6147 = vpop.f32.mrf.mxu0
        %v6148 = vadd.f32 0.0, %v6147
        %6149 = vmatmul.f32.gmra.mxu0 %v6035
        %v6150 = vpop.f32.mrf.mxu0
        %v6151 = vadd.f32 0.0, %v6150
        %6152 = vmatmul.f32.gmra.mxu0 %v6038
        %v6153 = vpop.f32.mrf.mxu0
        %v6154 = vadd.f32 0.0, %v6153
        %6155 = vmatmul.f32.gmra.mxu0 %v6041
        %v6156 = vpop.f32.mrf.mxu0
        %v6157 = vadd.f32 0.0, %v6156
        %6158 = vmatmul.f32.gmra.mxu0 %v6044
        %v6159 = vpop.f32.mrf.mxu0
        %v6160 = vadd.f32 0.0, %v6159
        %6161 = vmatmul.f32.gmra.mxu0 %v6047
        %v6162 = vpop.f32.mrf.mxu0
        %v6163 = vadd.f32 0.0, %v6162
        %6164 = vmatmul.f32.gmra.mxu0 %v6050
        %v6165 = vpop.f32.mrf.mxu0
        %v6166 = vadd.f32 0.0, %v6165
        %6167 = vmatmul.f32.gmra.mxu0 %v6053
        %v6168 = vpop.f32.mrf.mxu0
        %v6169 = vadd.f32 0.0, %v6168
        %6170 = vmatmul.f32.gmra.mxu0 %v6056
        %v6171 = vpop.f32.mrf.mxu0
        %v6172 = vadd.f32 0.0, %v6171
        %6173 = vmatmul.f32.gmra.mxu0 %v6059
        %v6174 = vpop.f32.mrf.mxu0
        %v6175 = vadd.f32 0.0, %v6174
        %6176 = vmatmul.f32.gmra.mxu0 %v6062
        %v6177 = vpop.f32.mrf.mxu0
        %v6178 = vadd.f32 0.0, %v6177
        %6179 = vmatmul.f32.gmra.mxu0 %v6065
        %v6180 = vpop.f32.mrf.mxu0
        %v6181 = vadd.f32 0.0, %v6180
        %6182 = vmatmul.f32.gmra.mxu0 %v6068
        %v6183 = vpop.f32.mrf.mxu0
        %v6184 = vadd.f32 0.0, %v6183
        %6185 = vmatmul.f32.gmra.mxu0 %v6071
        %v6186 = vpop.f32.mrf.mxu0
        %v6187 = vadd.f32 0.0, %v6186
        %6188 = vmatmul.f32.gmra.mxu0 %v6074
        %v6189 = vpop.f32.mrf.mxu0
        %v6190 = vadd.f32 0.0, %v6189
        %6191 = vmatmul.f32.gmra.mxu0 %v6077
        %v6192 = vpop.f32.mrf.mxu0
        %v6193 = vadd.f32 0.0, %v6192
        %6194 = vmatmul.f32.gmra.mxu0 %v6080
        %v6195 = vpop.f32.mrf.mxu0
        %v6196 = vadd.f32 0.0, %v6195
        %6197 = vmatmul.f32.gmra.mxu0 %v6083
        %v6198 = vpop.f32.mrf.mxu0
        %v6199 = vadd.f32 0.0, %v6198
        %6200 = vmatmul.f32.gmra.mxu0 %v6086
        %v6201 = vpop.f32.mrf.mxu0
        %v6202 = vadd.f32 0.0, %v6201
        %6203 = vmatmul.f32.gmra.mxu0 %v6089
        %v6204 = vpop.f32.mrf.mxu0
        %v6205 = vadd.f32 0.0, %v6204
        %6206 = vmatmul.f32.gmra.mxu0 %v6092
        %v6207 = vpop.f32.mrf.mxu0
        %v6208 = vadd.f32 0.0, %v6207
        %6209 = vdwg.mxu0
        %v6210 = vadd.f32 %v5932, %v6115
        %v6211 = vadd.f32 %v5933, %v6118
        %v6212 = vadd.f32 %v5934, %v6121
        %v6213 = vadd.f32 %v5935, %v6124
        %v6214 = vadd.f32 %v5936, %v6127
        %v6215 = vadd.f32 %v5937, %v6130
        %v6216 = vadd.f32 %v5938, %v6133
        %v6217 = vadd.f32 %v5939, %v6136
        %v6218 = vadd.f32 %v5940, %v6139
        %v6219 = vadd.f32 %v5941, %v6142
        %v6220 = vadd.f32 %v5942, %v6145
        %v6221 = vadd.f32 %v5943, %v6148
        %v6222 = vadd.f32 %v5944, %v6151
        %v6223 = vadd.f32 %v5945, %v6154
        %v6224 = vadd.f32 %v5946, %v6157
        %v6225 = vadd.f32 %v5947, %v6160
        %v6226 = vadd.f32 %v5948, %v6163
        %v6227 = vadd.f32 %v5949, %v6166
        %v6228 = vadd.f32 %v5950, %v6169
        %v6229 = vadd.f32 %v5951, %v6172
        %v6230 = vadd.f32 %v5952, %v6175
        %v6231 = vadd.f32 %v5953, %v6178
        %v6232 = vadd.f32 %v5954, %v6181
        %v6233 = vadd.f32 %v5955, %v6184
        %v6234 = vadd.f32 %v5956, %v6187
        %v6235 = vadd.f32 %v5957, %v6190
        %v6236 = vadd.f32 %v5958, %v6193
        %v6237 = vadd.f32 %v5959, %v6196
        %v6238 = vadd.f32 %v5960, %v6199
        %v6239 = vadd.f32 %v5961, %v6202
        %v6240 = vadd.f32 %v5962, %v6205
        %v6241 = vadd.f32 %v5963, %v6208
        %v6242 = vld [vmem:[%s987] sm:$0xff]
        %v6243 = vld [vmem:[%s987 + $0x8] sm:$0xff]
        %v6244 = vld [vmem:[%s987 + $0x18] sm:$0xff]
        %v6245 = vld [vmem:[%s987 + $0x20] sm:$0xff]
        %v6246 = vld [vmem:[%s987 + $0x30] sm:$0xff]
        %v6247 = vld [vmem:[%s987 + $0x38] sm:$0xff]
        %v6248 = vld [vmem:[%s987 + $0x48] sm:$0xff]
        %v6249 = vld [vmem:[%s987 + $0x50] sm:$0xff]
        %v6250 = vld [vmem:[%s987 + $0x60] sm:$0xff]
        %v6251 = vld [vmem:[%s987 + $0x68] sm:$0xff]
        %v6252 = vld [vmem:[%s987 + $0x78] sm:$0xff]
        %v6253 = vld [vmem:[%s987 + $0x80] sm:$0xff]
        %v6254 = vld [vmem:[%s987 + $0x90] sm:$0xff]
        %v6255 = vld [vmem:[%s987 + $0x98] sm:$0xff]
        %v6256 = vld [vmem:[%s987 + $0xa8] sm:$0xff]
        %v6257 = vld [vmem:[%s987 + $0xb0] sm:$0xff]
        %v6258 = vld [vmem:[%s987 + $0xc0] sm:$0xff]
        %v6259 = vld [vmem:[%s987 + $0xc8] sm:$0xff]
        %v6260 = vld [vmem:[%s987 + $0xd8] sm:$0xff]
        %v6261 = vld [vmem:[%s987 + $0xe0] sm:$0xff]
        %v6262 = vld [vmem:[%s987 + $0xf0] sm:$0xff]
        %v6263 = vld [vmem:[%s987 + $0xf8] sm:$0xff]
        %v6264 = vld [vmem:[%s987 + $0x108] sm:$0xff]
        %v6265 = vld [vmem:[%s987 + $0x110] sm:$0xff]
        %v6266 = vld [vmem:[%s987 + $0x120] sm:$0xff]
        %v6267 = vld [vmem:[%s987 + $0x128] sm:$0xff]
        %v6268 = vld [vmem:[%s987 + $0x138] sm:$0xff]
        %v6269 = vld [vmem:[%s987 + $0x140] sm:$0xff]
        %v6270 = vld [vmem:[%s987 + $0x150] sm:$0xff]
        %v6271 = vld [vmem:[%s987 + $0x158] sm:$0xff]
        %v6272 = vld [vmem:[%s987 + $0x168] sm:$0xff]
        %v6273 = vld [vmem:[%s987 + $0x170] sm:$0xff]
        %s6274 = scalar_lea.vmem %s5, 40
        %v6275 = vld [vmem:[%s6274] sm:$0xf]
        %v6277 = vsel %vm368, %v6242, 0
        %v6280 = vsel %vm368, %v6243, 0
        %v6283 = vsel %vm368, %v6244, 0
        %v6286 = vsel %vm368, %v6245, 0
        %v6289 = vsel %vm368, %v6246, 0
        %v6292 = vsel %vm368, %v6247, 0
        %v6295 = vsel %vm368, %v6248, 0
        %v6298 = vsel %vm368, %v6249, 0
        %v6301 = vsel %vm368, %v6250, 0
        %v6304 = vsel %vm368, %v6251, 0
        %v6307 = vsel %vm368, %v6252, 0
        %v6310 = vsel %vm368, %v6253, 0
        %v6313 = vsel %vm368, %v6254, 0
        %v6316 = vsel %vm368, %v6255, 0
        %v6319 = vsel %vm368, %v6256, 0
        %v6322 = vsel %vm368, %v6257, 0
        %v6325 = vsel %vm368, %v6258, 0
        %v6328 = vsel %vm368, %v6259, 0
        %v6331 = vsel %vm368, %v6260, 0
        %v6334 = vsel %vm368, %v6261, 0
        %v6337 = vsel %vm368, %v6262, 0
        %v6340 = vsel %vm368, %v6263, 0
        %v6343 = vsel %vm368, %v6264, 0
        %v6346 = vsel %vm368, %v6265, 0
        %v6349 = vsel %vm368, %v6266, 0
        %v6352 = vsel %vm368, %v6267, 0
        %v6355 = vsel %vm368, %v6268, 0
        %v6358 = vsel %vm368, %v6269, 0
        %v6361 = vsel %vm368, %v6270, 0
        %v6364 = vsel %vm368, %v6271, 0
        %v6367 = vsel %vm368, %v6272, 0
        %v6370 = vsel %vm368, %v6273, 0
        %v6373 = vsel %vm465, %v6275, 0
        %6375 = vmatpush.msra.mxu0 0.0
        %6376 = vmatpush.msra.mxu0 0.0
        %6377 = vmatpush.msra.mxu0 0.0
        %6378 = vmatpush.msra.mxu0 0.0
        %6379 = vmatpush.msra.mxu0 0.0
        %6380 = vmatpush.msra.mxu0 0.0
        %6381 = vmatpush.msra.mxu0 0.0
        %6382 = vmatpush.msra.mxu0 0.0
        %6383 = vmatpush.msra.mxu0 0.0
        %6384 = vmatpush.msra.mxu0 0.0
        %6385 = vmatpush.msra.mxu0 0.0
        %6386 = vmatpush.msra.mxu0 0.0
        %6387 = vmatpush.msra.mxu0 0.0
        %6388 = vmatpush.msra.mxu0 0.0
        %6389 = vmatpush.msra.mxu0 0.0
        %6390 = vmatpush.msra.mxu0 %v6373
        %6391 = vmatmul.f32.gmra.mxu0 %v6277
        %v6392 = vpop.f32.mrf.mxu0
        %v6393 = vadd.f32 0.0, %v6392
        %6394 = vmatmul.f32.gmra.mxu0 %v6280
        %v6395 = vpop.f32.mrf.mxu0
        %v6396 = vadd.f32 0.0, %v6395
        %6397 = vmatmul.f32.gmra.mxu0 %v6283
        %v6398 = vpop.f32.mrf.mxu0
        %v6399 = vadd.f32 0.0, %v6398
        %6400 = vmatmul.f32.gmra.mxu0 %v6286
        %v6401 = vpop.f32.mrf.mxu0
        %v6402 = vadd.f32 0.0, %v6401
        %6403 = vmatmul.f32.gmra.mxu0 %v6289
        %v6404 = vpop.f32.mrf.mxu0
        %v6405 = vadd.f32 0.0, %v6404
        %6406 = vmatmul.f32.gmra.mxu0 %v6292
        %v6407 = vpop.f32.mrf.mxu0
        %v6408 = vadd.f32 0.0, %v6407
        %6409 = vmatmul.f32.gmra.mxu0 %v6295
        %v6410 = vpop.f32.mrf.mxu0
        %v6411 = vadd.f32 0.0, %v6410
        %6412 = vmatmul.f32.gmra.mxu0 %v6298
        %v6413 = vpop.f32.mrf.mxu0
        %v6414 = vadd.f32 0.0, %v6413
        %6415 = vmatmul.f32.gmra.mxu0 %v6301
        %v6416 = vpop.f32.mrf.mxu0
        %v6417 = vadd.f32 0.0, %v6416
        %6418 = vmatmul.f32.gmra.mxu0 %v6304
        %v6419 = vpop.f32.mrf.mxu0
        %v6420 = vadd.f32 0.0, %v6419
        %6421 = vmatmul.f32.gmra.mxu0 %v6307
        %v6422 = vpop.f32.mrf.mxu0
        %v6423 = vadd.f32 0.0, %v6422
        %6424 = vmatmul.f32.gmra.mxu0 %v6310
        %v6425 = vpop.f32.mrf.mxu0
        %v6426 = vadd.f32 0.0, %v6425
        %6427 = vmatmul.f32.gmra.mxu0 %v6313
        %v6428 = vpop.f32.mrf.mxu0
        %v6429 = vadd.f32 0.0, %v6428
        %6430 = vmatmul.f32.gmra.mxu0 %v6316
        %v6431 = vpop.f32.mrf.mxu0
        %v6432 = vadd.f32 0.0, %v6431
        %6433 = vmatmul.f32.gmra.mxu0 %v6319
        %v6434 = vpop.f32.mrf.mxu0
        %v6435 = vadd.f32 0.0, %v6434
        %6436 = vmatmul.f32.gmra.mxu0 %v6322
        %v6437 = vpop.f32.mrf.mxu0
        %v6438 = vadd.f32 0.0, %v6437
        %6439 = vmatmul.f32.gmra.mxu0 %v6325
        %v6440 = vpop.f32.mrf.mxu0
        %v6441 = vadd.f32 0.0, %v6440
        %6442 = vmatmul.f32.gmra.mxu0 %v6328
        %v6443 = vpop.f32.mrf.mxu0
        %v6444 = vadd.f32 0.0, %v6443
        %6445 = vmatmul.f32.gmra.mxu0 %v6331
        %v6446 = vpop.f32.mrf.mxu0
        %v6447 = vadd.f32 0.0, %v6446
        %6448 = vmatmul.f32.gmra.mxu0 %v6334
        %v6449 = vpop.f32.mrf.mxu0
        %v6450 = vadd.f32 0.0, %v6449
        %6451 = vmatmul.f32.gmra.mxu0 %v6337
        %v6452 = vpop.f32.mrf.mxu0
        %v6453 = vadd.f32 0.0, %v6452
        %6454 = vmatmul.f32.gmra.mxu0 %v6340
        %v6455 = vpop.f32.mrf.mxu0
        %v6456 = vadd.f32 0.0, %v6455
        %6457 = vmatmul.f32.gmra.mxu0 %v6343
        %v6458 = vpop.f32.mrf.mxu0
        %v6459 = vadd.f32 0.0, %v6458
        %6460 = vmatmul.f32.gmra.mxu0 %v6346
        %v6461 = vpop.f32.mrf.mxu0
        %v6462 = vadd.f32 0.0, %v6461
        %6463 = vmatmul.f32.gmra.mxu0 %v6349
        %v6464 = vpop.f32.mrf.mxu0
        %v6465 = vadd.f32 0.0, %v6464
        %6466 = vmatmul.f32.gmra.mxu0 %v6352
        %v6467 = vpop.f32.mrf.mxu0
        %v6468 = vadd.f32 0.0, %v6467
        %6469 = vmatmul.f32.gmra.mxu0 %v6355
        %v6470 = vpop.f32.mrf.mxu0
        %v6471 = vadd.f32 0.0, %v6470
        %6472 = vmatmul.f32.gmra.mxu0 %v6358
        %v6473 = vpop.f32.mrf.mxu0
        %v6474 = vadd.f32 0.0, %v6473
        %6475 = vmatmul.f32.gmra.mxu0 %v6361
        %v6476 = vpop.f32.mrf.mxu0
        %v6477 = vadd.f32 0.0, %v6476
        %6478 = vmatmul.f32.gmra.mxu0 %v6364
        %v6479 = vpop.f32.mrf.mxu0
        %v6480 = vadd.f32 0.0, %v6479
        %6481 = vmatmul.f32.gmra.mxu0 %v6367
        %v6482 = vpop.f32.mrf.mxu0
        %v6483 = vadd.f32 0.0, %v6482
        %6484 = vmatmul.f32.gmra.mxu0 %v6370
        %v6485 = vpop.f32.mrf.mxu0
        %v6486 = vadd.f32 0.0, %v6485
        %6487 = vdwg.mxu0
        %v6488 = vadd.f32 %v6210, %v6393
        %v6489 = vadd.f32 %v6211, %v6396
        %v6490 = vadd.f32 %v6212, %v6399
        %v6491 = vadd.f32 %v6213, %v6402
        %v6492 = vadd.f32 %v6214, %v6405
        %v6493 = vadd.f32 %v6215, %v6408
        %v6494 = vadd.f32 %v6216, %v6411
        %v6495 = vadd.f32 %v6217, %v6414
        %v6496 = vadd.f32 %v6218, %v6417
        %v6497 = vadd.f32 %v6219, %v6420
        %v6498 = vadd.f32 %v6220, %v6423
        %v6499 = vadd.f32 %v6221, %v6426
        %v6500 = vadd.f32 %v6222, %v6429
        %v6501 = vadd.f32 %v6223, %v6432
        %v6502 = vadd.f32 %v6224, %v6435
        %v6503 = vadd.f32 %v6225, %v6438
        %v6504 = vadd.f32 %v6226, %v6441
        %v6505 = vadd.f32 %v6227, %v6444
        %v6506 = vadd.f32 %v6228, %v6447
        %v6507 = vadd.f32 %v6229, %v6450
        %v6508 = vadd.f32 %v6230, %v6453
        %v6509 = vadd.f32 %v6231, %v6456
        %v6510 = vadd.f32 %v6232, %v6459
        %v6511 = vadd.f32 %v6233, %v6462
        %v6512 = vadd.f32 %v6234, %v6465
        %v6513 = vadd.f32 %v6235, %v6468
        %v6514 = vadd.f32 %v6236, %v6471
        %v6515 = vadd.f32 %v6237, %v6474
        %v6516 = vadd.f32 %v6238, %v6477
        %v6517 = vadd.f32 %v6239, %v6480
        %v6518 = vadd.f32 %v6240, %v6483
        %v6519 = vadd.f32 %v6241, %v6486
        %v6520 = vld [vmem:[%s987 + $0x1] sm:$0xff]
        %v6521 = vld [vmem:[%s987 + $0x9] sm:$0xff]
        %v6522 = vld [vmem:[%s987 + $0x19] sm:$0xff]
        %v6523 = vld [vmem:[%s987 + $0x21] sm:$0xff]
        %v6524 = vld [vmem:[%s987 + $0x31] sm:$0xff]
        %v6525 = vld [vmem:[%s987 + $0x39] sm:$0xff]
        %v6526 = vld [vmem:[%s987 + $0x49] sm:$0xff]
        %v6527 = vld [vmem:[%s987 + $0x51] sm:$0xff]
        %v6528 = vld [vmem:[%s987 + $0x61] sm:$0xff]
        %v6529 = vld [vmem:[%s987 + $0x69] sm:$0xff]
        %v6530 = vld [vmem:[%s987 + $0x79] sm:$0xff]
        %v6531 = vld [vmem:[%s987 + $0x81] sm:$0xff]
        %v6532 = vld [vmem:[%s987 + $0x91] sm:$0xff]
        %v6533 = vld [vmem:[%s987 + $0x99] sm:$0xff]
        %v6534 = vld [vmem:[%s987 + $0xa9] sm:$0xff]
        %v6535 = vld [vmem:[%s987 + $0xb1] sm:$0xff]
        %v6536 = vld [vmem:[%s987 + $0xc1] sm:$0xff]
        %v6537 = vld [vmem:[%s987 + $0xc9] sm:$0xff]
        %v6538 = vld [vmem:[%s987 + $0xd9] sm:$0xff]
        %v6539 = vld [vmem:[%s987 + $0xe1] sm:$0xff]
        %v6540 = vld [vmem:[%s987 + $0xf1] sm:$0xff]
        %v6541 = vld [vmem:[%s987 + $0xf9] sm:$0xff]
        %v6542 = vld [vmem:[%s987 + $0x109] sm:$0xff]
        %v6543 = vld [vmem:[%s987 + $0x111] sm:$0xff]
        %v6544 = vld [vmem:[%s987 + $0x121] sm:$0xff]
        %v6545 = vld [vmem:[%s987 + $0x129] sm:$0xff]
        %v6546 = vld [vmem:[%s987 + $0x139] sm:$0xff]
        %v6547 = vld [vmem:[%s987 + $0x141] sm:$0xff]
        %v6548 = vld [vmem:[%s987 + $0x151] sm:$0xff]
        %v6549 = vld [vmem:[%s987 + $0x159] sm:$0xff]
        %v6550 = vld [vmem:[%s987 + $0x169] sm:$0xff]
        %v6551 = vld [vmem:[%s987 + $0x171] sm:$0xff]
        %s6552 = scalar_lea.vmem %s5, 44
        %v6553 = vld [vmem:[%s6552] sm:$0xf]
        %v6555 = vsel %vm368, %v6520, 0
        %v6558 = vsel %vm368, %v6521, 0
        %v6561 = vsel %vm368, %v6522, 0
        %v6564 = vsel %vm368, %v6523, 0
        %v6567 = vsel %vm368, %v6524, 0
        %v6570 = vsel %vm368, %v6525, 0
        %v6573 = vsel %vm368, %v6526, 0
        %v6576 = vsel %vm368, %v6527, 0
        %v6579 = vsel %vm368, %v6528, 0
        %v6582 = vsel %vm368, %v6529, 0
        %v6585 = vsel %vm368, %v6530, 0
        %v6588 = vsel %vm368, %v6531, 0
        %v6591 = vsel %vm368, %v6532, 0
        %v6594 = vsel %vm368, %v6533, 0
        %v6597 = vsel %vm368, %v6534, 0
        %v6600 = vsel %vm368, %v6535, 0
        %v6603 = vsel %vm368, %v6536, 0
        %v6606 = vsel %vm368, %v6537, 0
        %v6609 = vsel %vm368, %v6538, 0
        %v6612 = vsel %vm368, %v6539, 0
        %v6615 = vsel %vm368, %v6540, 0
        %v6618 = vsel %vm368, %v6541, 0
        %v6621 = vsel %vm368, %v6542, 0
        %v6624 = vsel %vm368, %v6543, 0
        %v6627 = vsel %vm368, %v6544, 0
        %v6630 = vsel %vm368, %v6545, 0
        %v6633 = vsel %vm368, %v6546, 0
        %v6636 = vsel %vm368, %v6547, 0
        %v6639 = vsel %vm368, %v6548, 0
        %v6642 = vsel %vm368, %v6549, 0
        %v6645 = vsel %vm368, %v6550, 0
        %v6648 = vsel %vm368, %v6551, 0
        %v6651 = vsel %vm465, %v6553, 0
        %6653 = vmatpush.msra.mxu0 0.0
        %6654 = vmatpush.msra.mxu0 0.0
        %6655 = vmatpush.msra.mxu0 0.0
        %6656 = vmatpush.msra.mxu0 0.0
        %6657 = vmatpush.msra.mxu0 0.0
        %6658 = vmatpush.msra.mxu0 0.0
        %6659 = vmatpush.msra.mxu0 0.0
        %6660 = vmatpush.msra.mxu0 0.0
        %6661 = vmatpush.msra.mxu0 0.0
        %6662 = vmatpush.msra.mxu0 0.0
        %6663 = vmatpush.msra.mxu0 0.0
        %6664 = vmatpush.msra.mxu0 0.0
        %6665 = vmatpush.msra.mxu0 0.0
        %6666 = vmatpush.msra.mxu0 0.0
        %6667 = vmatpush.msra.mxu0 0.0
        %6668 = vmatpush.msra.mxu0 %v6651
        %6669 = vmatmul.f32.gmra.mxu0 %v6555
        %v6670 = vpop.f32.mrf.mxu0
        %v6671 = vadd.f32 0.0, %v6670
        %6672 = vmatmul.f32.gmra.mxu0 %v6558
        %v6673 = vpop.f32.mrf.mxu0
        %v6674 = vadd.f32 0.0, %v6673
        %6675 = vmatmul.f32.gmra.mxu0 %v6561
        %v6676 = vpop.f32.mrf.mxu0
        %v6677 = vadd.f32 0.0, %v6676
        %6678 = vmatmul.f32.gmra.mxu0 %v6564
        %v6679 = vpop.f32.mrf.mxu0
        %v6680 = vadd.f32 0.0, %v6679
        %6681 = vmatmul.f32.gmra.mxu0 %v6567
        %v6682 = vpop.f32.mrf.mxu0
        %v6683 = vadd.f32 0.0, %v6682
        %6684 = vmatmul.f32.gmra.mxu0 %v6570
        %v6685 = vpop.f32.mrf.mxu0
        %v6686 = vadd.f32 0.0, %v6685
        %6687 = vmatmul.f32.gmra.mxu0 %v6573
        %v6688 = vpop.f32.mrf.mxu0
        %v6689 = vadd.f32 0.0, %v6688
        %6690 = vmatmul.f32.gmra.mxu0 %v6576
        %v6691 = vpop.f32.mrf.mxu0
        %v6692 = vadd.f32 0.0, %v6691
        %6693 = vmatmul.f32.gmra.mxu0 %v6579
        %v6694 = vpop.f32.mrf.mxu0
        %v6695 = vadd.f32 0.0, %v6694
        %6696 = vmatmul.f32.gmra.mxu0 %v6582
        %v6697 = vpop.f32.mrf.mxu0
        %v6698 = vadd.f32 0.0, %v6697
        %6699 = vmatmul.f32.gmra.mxu0 %v6585
        %v6700 = vpop.f32.mrf.mxu0
        %v6701 = vadd.f32 0.0, %v6700
        %6702 = vmatmul.f32.gmra.mxu0 %v6588
        %v6703 = vpop.f32.mrf.mxu0
        %v6704 = vadd.f32 0.0, %v6703
        %6705 = vmatmul.f32.gmra.mxu0 %v6591
        %v6706 = vpop.f32.mrf.mxu0
        %v6707 = vadd.f32 0.0, %v6706
        %6708 = vmatmul.f32.gmra.mxu0 %v6594
        %v6709 = vpop.f32.mrf.mxu0
        %v6710 = vadd.f32 0.0, %v6709
        %6711 = vmatmul.f32.gmra.mxu0 %v6597
        %v6712 = vpop.f32.mrf.mxu0
        %v6713 = vadd.f32 0.0, %v6712
        %6714 = vmatmul.f32.gmra.mxu0 %v6600
        %v6715 = vpop.f32.mrf.mxu0
        %v6716 = vadd.f32 0.0, %v6715
        %6717 = vmatmul.f32.gmra.mxu0 %v6603
        %v6718 = vpop.f32.mrf.mxu0
        %v6719 = vadd.f32 0.0, %v6718
        %6720 = vmatmul.f32.gmra.mxu0 %v6606
        %v6721 = vpop.f32.mrf.mxu0
        %v6722 = vadd.f32 0.0, %v6721
        %6723 = vmatmul.f32.gmra.mxu0 %v6609
        %v6724 = vpop.f32.mrf.mxu0
        %v6725 = vadd.f32 0.0, %v6724
        %6726 = vmatmul.f32.gmra.mxu0 %v6612
        %v6727 = vpop.f32.mrf.mxu0
        %v6728 = vadd.f32 0.0, %v6727
        %6729 = vmatmul.f32.gmra.mxu0 %v6615
        %v6730 = vpop.f32.mrf.mxu0
        %v6731 = vadd.f32 0.0, %v6730
        %6732 = vmatmul.f32.gmra.mxu0 %v6618
        %v6733 = vpop.f32.mrf.mxu0
        %v6734 = vadd.f32 0.0, %v6733
        %6735 = vmatmul.f32.gmra.mxu0 %v6621
        %v6736 = vpop.f32.mrf.mxu0
        %v6737 = vadd.f32 0.0, %v6736
        %6738 = vmatmul.f32.gmra.mxu0 %v6624
        %v6739 = vpop.f32.mrf.mxu0
        %v6740 = vadd.f32 0.0, %v6739
        %6741 = vmatmul.f32.gmra.mxu0 %v6627
        %v6742 = vpop.f32.mrf.mxu0
        %v6743 = vadd.f32 0.0, %v6742
        %6744 = vmatmul.f32.gmra.mxu0 %v6630
        %v6745 = vpop.f32.mrf.mxu0
        %v6746 = vadd.f32 0.0, %v6745
        %6747 = vmatmul.f32.gmra.mxu0 %v6633
        %v6748 = vpop.f32.mrf.mxu0
        %v6749 = vadd.f32 0.0, %v6748
        %6750 = vmatmul.f32.gmra.mxu0 %v6636
        %v6751 = vpop.f32.mrf.mxu0
        %v6752 = vadd.f32 0.0, %v6751
        %6753 = vmatmul.f32.gmra.mxu0 %v6639
        %v6754 = vpop.f32.mrf.mxu0
        %v6755 = vadd.f32 0.0, %v6754
        %6756 = vmatmul.f32.gmra.mxu0 %v6642
        %v6757 = vpop.f32.mrf.mxu0
        %v6758 = vadd.f32 0.0, %v6757
        %6759 = vmatmul.f32.gmra.mxu0 %v6645
        %v6760 = vpop.f32.mrf.mxu0
        %v6761 = vadd.f32 0.0, %v6760
        %6762 = vmatmul.f32.gmra.mxu0 %v6648
        %v6763 = vpop.f32.mrf.mxu0
        %v6764 = vadd.f32 0.0, %v6763
        %6765 = vdwg.mxu0
        %v6766 = vadd.f32 %v6488, %v6671
        %v6767 = vadd.f32 %v6489, %v6674
        %v6768 = vadd.f32 %v6490, %v6677
        %v6769 = vadd.f32 %v6491, %v6680
        %v6770 = vadd.f32 %v6492, %v6683
        %v6771 = vadd.f32 %v6493, %v6686
        %v6772 = vadd.f32 %v6494, %v6689
        %v6773 = vadd.f32 %v6495, %v6692
        %v6774 = vadd.f32 %v6496, %v6695
        %v6775 = vadd.f32 %v6497, %v6698
        %v6776 = vadd.f32 %v6498, %v6701
        %v6777 = vadd.f32 %v6499, %v6704
        %v6778 = vadd.f32 %v6500, %v6707
        %v6779 = vadd.f32 %v6501, %v6710
        %v6780 = vadd.f32 %v6502, %v6713
        %v6781 = vadd.f32 %v6503, %v6716
        %v6782 = vadd.f32 %v6504, %v6719
        %v6783 = vadd.f32 %v6505, %v6722
        %v6784 = vadd.f32 %v6506, %v6725
        %v6785 = vadd.f32 %v6507, %v6728
        %v6786 = vadd.f32 %v6508, %v6731
        %v6787 = vadd.f32 %v6509, %v6734
        %v6788 = vadd.f32 %v6510, %v6737
        %v6789 = vadd.f32 %v6511, %v6740
        %v6790 = vadd.f32 %v6512, %v6743
        %v6791 = vadd.f32 %v6513, %v6746
        %v6792 = vadd.f32 %v6514, %v6749
        %v6793 = vadd.f32 %v6515, %v6752
        %v6794 = vadd.f32 %v6516, %v6755
        %v6795 = vadd.f32 %v6517, %v6758
        %v6796 = vadd.f32 %v6518, %v6761
        %v6797 = vadd.f32 %v6519, %v6764
        %v6798 = vld [vmem:[%s987 + $0x2] sm:$0xff]
        %v6799 = vld [vmem:[%s987 + $0xa] sm:$0xff]
        %v6800 = vld [vmem:[%s987 + $0x1a] sm:$0xff]
        %v6801 = vld [vmem:[%s987 + $0x22] sm:$0xff]
        %v6802 = vld [vmem:[%s987 + $0x32] sm:$0xff]
        %v6803 = vld [vmem:[%s987 + $0x3a] sm:$0xff]
        %v6804 = vld [vmem:[%s987 + $0x4a] sm:$0xff]
        %v6805 = vld [vmem:[%s987 + $0x52] sm:$0xff]
        %v6806 = vld [vmem:[%s987 + $0x62] sm:$0xff]
        %v6807 = vld [vmem:[%s987 + $0x6a] sm:$0xff]
        %v6808 = vld [vmem:[%s987 + $0x7a] sm:$0xff]
        %v6809 = vld [vmem:[%s987 + $0x82] sm:$0xff]
        %v6810 = vld [vmem:[%s987 + $0x92] sm:$0xff]
        %v6811 = vld [vmem:[%s987 + $0x9a] sm:$0xff]
        %v6812 = vld [vmem:[%s987 + $0xaa] sm:$0xff]
        %v6813 = vld [vmem:[%s987 + $0xb2] sm:$0xff]
        %v6814 = vld [vmem:[%s987 + $0xc2] sm:$0xff]
        %v6815 = vld [vmem:[%s987 + $0xca] sm:$0xff]
        %v6816 = vld [vmem:[%s987 + $0xda] sm:$0xff]
        %v6817 = vld [vmem:[%s987 + $0xe2] sm:$0xff]
        %v6818 = vld [vmem:[%s987 + $0xf2] sm:$0xff]
        %v6819 = vld [vmem:[%s987 + $0xfa] sm:$0xff]
        %v6820 = vld [vmem:[%s987 + $0x10a] sm:$0xff]
        %v6821 = vld [vmem:[%s987 + $0x112] sm:$0xff]
        %v6822 = vld [vmem:[%s987 + $0x122] sm:$0xff]
        %v6823 = vld [vmem:[%s987 + $0x12a] sm:$0xff]
        %v6824 = vld [vmem:[%s987 + $0x13a] sm:$0xff]
        %v6825 = vld [vmem:[%s987 + $0x142] sm:$0xff]
        %v6826 = vld [vmem:[%s987 + $0x152] sm:$0xff]
        %v6827 = vld [vmem:[%s987 + $0x15a] sm:$0xff]
        %v6828 = vld [vmem:[%s987 + $0x16a] sm:$0xff]
        %v6829 = vld [vmem:[%s987 + $0x172] sm:$0xff]
        %s6830 = scalar_lea.vmem %s5, 48
        %v6831 = vld [vmem:[%s6830] sm:$0xf]
        %v6833 = vsel %vm368, %v6798, 0
        %v6836 = vsel %vm368, %v6799, 0
        %v6839 = vsel %vm368, %v6800, 0
        %v6842 = vsel %vm368, %v6801, 0
        %v6845 = vsel %vm368, %v6802, 0
        %v6848 = vsel %vm368, %v6803, 0
        %v6851 = vsel %vm368, %v6804, 0
        %v6854 = vsel %vm368, %v6805, 0
        %v6857 = vsel %vm368, %v6806, 0
        %v6860 = vsel %vm368, %v6807, 0
        %v6863 = vsel %vm368, %v6808, 0
        %v6866 = vsel %vm368, %v6809, 0
        %v6869 = vsel %vm368, %v6810, 0
        %v6872 = vsel %vm368, %v6811, 0
        %v6875 = vsel %vm368, %v6812, 0
        %v6878 = vsel %vm368, %v6813, 0
        %v6881 = vsel %vm368, %v6814, 0
        %v6884 = vsel %vm368, %v6815, 0
        %v6887 = vsel %vm368, %v6816, 0
        %v6890 = vsel %vm368, %v6817, 0
        %v6893 = vsel %vm368, %v6818, 0
        %v6896 = vsel %vm368, %v6819, 0
        %v6899 = vsel %vm368, %v6820, 0
        %v6902 = vsel %vm368, %v6821, 0
        %v6905 = vsel %vm368, %v6822, 0
        %v6908 = vsel %vm368, %v6823, 0
        %v6911 = vsel %vm368, %v6824, 0
        %v6914 = vsel %vm368, %v6825, 0
        %v6917 = vsel %vm368, %v6826, 0
        %v6920 = vsel %vm368, %v6827, 0
        %v6923 = vsel %vm368, %v6828, 0
        %v6926 = vsel %vm368, %v6829, 0
        %v6929 = vsel %vm465, %v6831, 0
        %6931 = vmatpush.msra.mxu0 0.0
        %6932 = vmatpush.msra.mxu0 0.0
        %6933 = vmatpush.msra.mxu0 0.0
        %6934 = vmatpush.msra.mxu0 0.0
        %6935 = vmatpush.msra.mxu0 0.0
        %6936 = vmatpush.msra.mxu0 0.0
        %6937 = vmatpush.msra.mxu0 0.0
        %6938 = vmatpush.msra.mxu0 0.0
        %6939 = vmatpush.msra.mxu0 0.0
        %6940 = vmatpush.msra.mxu0 0.0
        %6941 = vmatpush.msra.mxu0 0.0
        %6942 = vmatpush.msra.mxu0 0.0
        %6943 = vmatpush.msra.mxu0 0.0
        %6944 = vmatpush.msra.mxu0 0.0
        %6945 = vmatpush.msra.mxu0 0.0
        %6946 = vmatpush.msra.mxu0 %v6929
        %6947 = vmatmul.f32.gmra.mxu0 %v6833
        %v6948 = vpop.f32.mrf.mxu0
        %v6949 = vadd.f32 0.0, %v6948
        %6950 = vmatmul.f32.gmra.mxu0 %v6836
        %v6951 = vpop.f32.mrf.mxu0
        %v6952 = vadd.f32 0.0, %v6951
        %6953 = vmatmul.f32.gmra.mxu0 %v6839
        %v6954 = vpop.f32.mrf.mxu0
        %v6955 = vadd.f32 0.0, %v6954
        %6956 = vmatmul.f32.gmra.mxu0 %v6842
        %v6957 = vpop.f32.mrf.mxu0
        %v6958 = vadd.f32 0.0, %v6957
        %6959 = vmatmul.f32.gmra.mxu0 %v6845
        %v6960 = vpop.f32.mrf.mxu0
        %v6961 = vadd.f32 0.0, %v6960
        %6962 = vmatmul.f32.gmra.mxu0 %v6848
        %v6963 = vpop.f32.mrf.mxu0
        %v6964 = vadd.f32 0.0, %v6963
        %6965 = vmatmul.f32.gmra.mxu0 %v6851
        %v6966 = vpop.f32.mrf.mxu0
        %v6967 = vadd.f32 0.0, %v6966
        %6968 = vmatmul.f32.gmra.mxu0 %v6854
        %v6969 = vpop.f32.mrf.mxu0
        %v6970 = vadd.f32 0.0, %v6969
        %6971 = vmatmul.f32.gmra.mxu0 %v6857
        %v6972 = vpop.f32.mrf.mxu0
        %v6973 = vadd.f32 0.0, %v6972
        %6974 = vmatmul.f32.gmra.mxu0 %v6860
        %v6975 = vpop.f32.mrf.mxu0
        %v6976 = vadd.f32 0.0, %v6975
        %6977 = vmatmul.f32.gmra.mxu0 %v6863
        %v6978 = vpop.f32.mrf.mxu0
        %v6979 = vadd.f32 0.0, %v6978
        %6980 = vmatmul.f32.gmra.mxu0 %v6866
        %v6981 = vpop.f32.mrf.mxu0
        %v6982 = vadd.f32 0.0, %v6981
        %6983 = vmatmul.f32.gmra.mxu0 %v6869
        %v6984 = vpop.f32.mrf.mxu0
        %v6985 = vadd.f32 0.0, %v6984
        %6986 = vmatmul.f32.gmra.mxu0 %v6872
        %v6987 = vpop.f32.mrf.mxu0
        %v6988 = vadd.f32 0.0, %v6987
        %6989 = vmatmul.f32.gmra.mxu0 %v6875
        %v6990 = vpop.f32.mrf.mxu0
        %v6991 = vadd.f32 0.0, %v6990
        %6992 = vmatmul.f32.gmra.mxu0 %v6878
        %v6993 = vpop.f32.mrf.mxu0
        %v6994 = vadd.f32 0.0, %v6993
        %6995 = vmatmul.f32.gmra.mxu0 %v6881
        %v6996 = vpop.f32.mrf.mxu0
        %v6997 = vadd.f32 0.0, %v6996
        %6998 = vmatmul.f32.gmra.mxu0 %v6884
        %v6999 = vpop.f32.mrf.mxu0
        %v7000 = vadd.f32 0.0, %v6999
        %7001 = vmatmul.f32.gmra.mxu0 %v6887
        %v7002 = vpop.f32.mrf.mxu0
        %v7003 = vadd.f32 0.0, %v7002
        %7004 = vmatmul.f32.gmra.mxu0 %v6890
        %v7005 = vpop.f32.mrf.mxu0
        %v7006 = vadd.f32 0.0, %v7005
        %7007 = vmatmul.f32.gmra.mxu0 %v6893
        %v7008 = vpop.f32.mrf.mxu0
        %v7009 = vadd.f32 0.0, %v7008
        %7010 = vmatmul.f32.gmra.mxu0 %v6896
        %v7011 = vpop.f32.mrf.mxu0
        %v7012 = vadd.f32 0.0, %v7011
        %7013 = vmatmul.f32.gmra.mxu0 %v6899
        %v7014 = vpop.f32.mrf.mxu0
        %v7015 = vadd.f32 0.0, %v7014
        %7016 = vmatmul.f32.gmra.mxu0 %v6902
        %v7017 = vpop.f32.mrf.mxu0
        %v7018 = vadd.f32 0.0, %v7017
        %7019 = vmatmul.f32.gmra.mxu0 %v6905
        %v7020 = vpop.f32.mrf.mxu0
        %v7021 = vadd.f32 0.0, %v7020
        %7022 = vmatmul.f32.gmra.mxu0 %v6908
        %v7023 = vpop.f32.mrf.mxu0
        %v7024 = vadd.f32 0.0, %v7023
        %7025 = vmatmul.f32.gmra.mxu0 %v6911
        %v7026 = vpop.f32.mrf.mxu0
        %v7027 = vadd.f32 0.0, %v7026
        %7028 = vmatmul.f32.gmra.mxu0 %v6914
        %v7029 = vpop.f32.mrf.mxu0
        %v7030 = vadd.f32 0.0, %v7029
        %7031 = vmatmul.f32.gmra.mxu0 %v6917
        %v7032 = vpop.f32.mrf.mxu0
        %v7033 = vadd.f32 0.0, %v7032
        %7034 = vmatmul.f32.gmra.mxu0 %v6920
        %v7035 = vpop.f32.mrf.mxu0
        %v7036 = vadd.f32 0.0, %v7035
        %7037 = vmatmul.f32.gmra.mxu0 %v6923
        %v7038 = vpop.f32.mrf.mxu0
        %v7039 = vadd.f32 0.0, %v7038
        %7040 = vmatmul.f32.gmra.mxu0 %v6926
        %v7041 = vpop.f32.mrf.mxu0
        %v7042 = vadd.f32 0.0, %v7041
        %7043 = vdwg.mxu0
        %v7044 = vadd.f32 %v6766, %v6949
        %v7045 = vadd.f32 %v6767, %v6952
        %v7046 = vadd.f32 %v6768, %v6955
        %v7047 = vadd.f32 %v6769, %v6958
        %v7048 = vadd.f32 %v6770, %v6961
        %v7049 = vadd.f32 %v6771, %v6964
        %v7050 = vadd.f32 %v6772, %v6967
        %v7051 = vadd.f32 %v6773, %v6970
        %v7052 = vadd.f32 %v6774, %v6973
        %v7053 = vadd.f32 %v6775, %v6976
        %v7054 = vadd.f32 %v6776, %v6979
        %v7055 = vadd.f32 %v6777, %v6982
        %v7056 = vadd.f32 %v6778, %v6985
        %v7057 = vadd.f32 %v6779, %v6988
        %v7058 = vadd.f32 %v6780, %v6991
        %v7059 = vadd.f32 %v6781, %v6994
        %v7060 = vadd.f32 %v6782, %v6997
        %v7061 = vadd.f32 %v6783, %v7000
        %v7062 = vadd.f32 %v6784, %v7003
        %v7063 = vadd.f32 %v6785, %v7006
        %v7064 = vadd.f32 %v6786, %v7009
        %v7065 = vadd.f32 %v6787, %v7012
        %v7066 = vadd.f32 %v6788, %v7015
        %v7067 = vadd.f32 %v6789, %v7018
        %v7068 = vadd.f32 %v6790, %v7021
        %v7069 = vadd.f32 %v6791, %v7024
        %v7070 = vadd.f32 %v6792, %v7027
        %v7071 = vadd.f32 %v6793, %v7030
        %v7072 = vadd.f32 %v6794, %v7033
        %v7073 = vadd.f32 %v6795, %v7036
        %v7074 = vadd.f32 %v6796, %v7039
        %v7075 = vadd.f32 %v6797, %v7042
        %v7076 = vld [vmem:[%s987 + $0x3] sm:$0xff]
        %v7077 = vld [vmem:[%s987 + $0xb] sm:$0xff]
        %v7078 = vld [vmem:[%s987 + $0x1b] sm:$0xff]
        %v7079 = vld [vmem:[%s987 + $0x23] sm:$0xff]
        %v7080 = vld [vmem:[%s987 + $0x33] sm:$0xff]
        %v7081 = vld [vmem:[%s987 + $0x3b] sm:$0xff]
        %v7082 = vld [vmem:[%s987 + $0x4b] sm:$0xff]
        %v7083 = vld [vmem:[%s987 + $0x53] sm:$0xff]
        %v7084 = vld [vmem:[%s987 + $0x63] sm:$0xff]
        %v7085 = vld [vmem:[%s987 + $0x6b] sm:$0xff]
        %v7086 = vld [vmem:[%s987 + $0x7b] sm:$0xff]
        %v7087 = vld [vmem:[%s987 + $0x83] sm:$0xff]
        %v7088 = vld [vmem:[%s987 + $0x93] sm:$0xff]
        %v7089 = vld [vmem:[%s987 + $0x9b] sm:$0xff]
        %v7090 = vld [vmem:[%s987 + $0xab] sm:$0xff]
        %v7091 = vld [vmem:[%s987 + $0xb3] sm:$0xff]
        %v7092 = vld [vmem:[%s987 + $0xc3] sm:$0xff]
        %v7093 = vld [vmem:[%s987 + $0xcb] sm:$0xff]
        %v7094 = vld [vmem:[%s987 + $0xdb] sm:$0xff]
        %v7095 = vld [vmem:[%s987 + $0xe3] sm:$0xff]
        %v7096 = vld [vmem:[%s987 + $0xf3] sm:$0xff]
        %v7097 = vld [vmem:[%s987 + $0xfb] sm:$0xff]
        %v7098 = vld [vmem:[%s987 + $0x10b] sm:$0xff]
        %v7099 = vld [vmem:[%s987 + $0x113] sm:$0xff]
        %v7100 = vld [vmem:[%s987 + $0x123] sm:$0xff]
        %v7101 = vld [vmem:[%s987 + $0x12b] sm:$0xff]
        %v7102 = vld [vmem:[%s987 + $0x13b] sm:$0xff]
        %v7103 = vld [vmem:[%s987 + $0x143] sm:$0xff]
        %v7104 = vld [vmem:[%s987 + $0x153] sm:$0xff]
        %v7105 = vld [vmem:[%s987 + $0x15b] sm:$0xff]
        %v7106 = vld [vmem:[%s987 + $0x16b] sm:$0xff]
        %v7107 = vld [vmem:[%s987 + $0x173] sm:$0xff]
        %s7108 = scalar_lea.vmem %s5, 52
        %v7109 = vld [vmem:[%s7108] sm:$0xf]
        %v7111 = vsel %vm368, %v7076, 0
        %v7114 = vsel %vm368, %v7077, 0
        %v7117 = vsel %vm368, %v7078, 0
        %v7120 = vsel %vm368, %v7079, 0
        %v7123 = vsel %vm368, %v7080, 0
        %v7126 = vsel %vm368, %v7081, 0
        %v7129 = vsel %vm368, %v7082, 0
        %v7132 = vsel %vm368, %v7083, 0
        %v7135 = vsel %vm368, %v7084, 0
        %v7138 = vsel %vm368, %v7085, 0
        %v7141 = vsel %vm368, %v7086, 0
        %v7144 = vsel %vm368, %v7087, 0
        %v7147 = vsel %vm368, %v7088, 0
        %v7150 = vsel %vm368, %v7089, 0
        %v7153 = vsel %vm368, %v7090, 0
        %v7156 = vsel %vm368, %v7091, 0
        %v7159 = vsel %vm368, %v7092, 0
        %v7162 = vsel %vm368, %v7093, 0
        %v7165 = vsel %vm368, %v7094, 0
        %v7168 = vsel %vm368, %v7095, 0
        %v7171 = vsel %vm368, %v7096, 0
        %v7174 = vsel %vm368, %v7097, 0
        %v7177 = vsel %vm368, %v7098, 0
        %v7180 = vsel %vm368, %v7099, 0
        %v7183 = vsel %vm368, %v7100, 0
        %v7186 = vsel %vm368, %v7101, 0
        %v7189 = vsel %vm368, %v7102, 0
        %v7192 = vsel %vm368, %v7103, 0
        %v7195 = vsel %vm368, %v7104, 0
        %v7198 = vsel %vm368, %v7105, 0
        %v7201 = vsel %vm368, %v7106, 0
        %v7204 = vsel %vm368, %v7107, 0
        %v7207 = vsel %vm465, %v7109, 0
        %7209 = vmatpush.msra.mxu0 0.0
        %7210 = vmatpush.msra.mxu0 0.0
        %7211 = vmatpush.msra.mxu0 0.0
        %7212 = vmatpush.msra.mxu0 0.0
        %7213 = vmatpush.msra.mxu0 0.0
        %7214 = vmatpush.msra.mxu0 0.0
        %7215 = vmatpush.msra.mxu0 0.0
        %7216 = vmatpush.msra.mxu0 0.0
        %7217 = vmatpush.msra.mxu0 0.0
        %7218 = vmatpush.msra.mxu0 0.0
        %7219 = vmatpush.msra.mxu0 0.0
        %7220 = vmatpush.msra.mxu0 0.0
        %7221 = vmatpush.msra.mxu0 0.0
        %7222 = vmatpush.msra.mxu0 0.0
        %7223 = vmatpush.msra.mxu0 0.0
        %7224 = vmatpush.msra.mxu0 %v7207
        %7225 = vmatmul.f32.gmra.mxu0 %v7111
        %v7226 = vpop.f32.mrf.mxu0
        %v7227 = vadd.f32 0.0, %v7226
        %7228 = vmatmul.f32.gmra.mxu0 %v7114
        %v7229 = vpop.f32.mrf.mxu0
        %v7230 = vadd.f32 0.0, %v7229
        %7231 = vmatmul.f32.gmra.mxu0 %v7117
        %v7232 = vpop.f32.mrf.mxu0
        %v7233 = vadd.f32 0.0, %v7232
        %7234 = vmatmul.f32.gmra.mxu0 %v7120
        %v7235 = vpop.f32.mrf.mxu0
        %v7236 = vadd.f32 0.0, %v7235
        %7237 = vmatmul.f32.gmra.mxu0 %v7123
        %v7238 = vpop.f32.mrf.mxu0
        %v7239 = vadd.f32 0.0, %v7238
        %7240 = vmatmul.f32.gmra.mxu0 %v7126
        %v7241 = vpop.f32.mrf.mxu0
        %v7242 = vadd.f32 0.0, %v7241
        %7243 = vmatmul.f32.gmra.mxu0 %v7129
        %v7244 = vpop.f32.mrf.mxu0
        %v7245 = vadd.f32 0.0, %v7244
        %7246 = vmatmul.f32.gmra.mxu0 %v7132
        %v7247 = vpop.f32.mrf.mxu0
        %v7248 = vadd.f32 0.0, %v7247
        %7249 = vmatmul.f32.gmra.mxu0 %v7135
        %v7250 = vpop.f32.mrf.mxu0
        %v7251 = vadd.f32 0.0, %v7250
        %7252 = vmatmul.f32.gmra.mxu0 %v7138
        %v7253 = vpop.f32.mrf.mxu0
        %v7254 = vadd.f32 0.0, %v7253
        %7255 = vmatmul.f32.gmra.mxu0 %v7141
        %v7256 = vpop.f32.mrf.mxu0
        %v7257 = vadd.f32 0.0, %v7256
        %7258 = vmatmul.f32.gmra.mxu0 %v7144
        %v7259 = vpop.f32.mrf.mxu0
        %v7260 = vadd.f32 0.0, %v7259
        %7261 = vmatmul.f32.gmra.mxu0 %v7147
        %v7262 = vpop.f32.mrf.mxu0
        %v7263 = vadd.f32 0.0, %v7262
        %7264 = vmatmul.f32.gmra.mxu0 %v7150
        %v7265 = vpop.f32.mrf.mxu0
        %v7266 = vadd.f32 0.0, %v7265
        %7267 = vmatmul.f32.gmra.mxu0 %v7153
        %v7268 = vpop.f32.mrf.mxu0
        %v7269 = vadd.f32 0.0, %v7268
        %7270 = vmatmul.f32.gmra.mxu0 %v7156
        %v7271 = vpop.f32.mrf.mxu0
        %v7272 = vadd.f32 0.0, %v7271
        %7273 = vmatmul.f32.gmra.mxu0 %v7159
        %v7274 = vpop.f32.mrf.mxu0
        %v7275 = vadd.f32 0.0, %v7274
        %7276 = vmatmul.f32.gmra.mxu0 %v7162
        %v7277 = vpop.f32.mrf.mxu0
        %v7278 = vadd.f32 0.0, %v7277
        %7279 = vmatmul.f32.gmra.mxu0 %v7165
        %v7280 = vpop.f32.mrf.mxu0
        %v7281 = vadd.f32 0.0, %v7280
        %7282 = vmatmul.f32.gmra.mxu0 %v7168
        %v7283 = vpop.f32.mrf.mxu0
        %v7284 = vadd.f32 0.0, %v7283
        %7285 = vmatmul.f32.gmra.mxu0 %v7171
        %v7286 = vpop.f32.mrf.mxu0
        %v7287 = vadd.f32 0.0, %v7286
        %7288 = vmatmul.f32.gmra.mxu0 %v7174
        %v7289 = vpop.f32.mrf.mxu0
        %v7290 = vadd.f32 0.0, %v7289
        %7291 = vmatmul.f32.gmra.mxu0 %v7177
        %v7292 = vpop.f32.mrf.mxu0
        %v7293 = vadd.f32 0.0, %v7292
        %7294 = vmatmul.f32.gmra.mxu0 %v7180
        %v7295 = vpop.f32.mrf.mxu0
        %v7296 = vadd.f32 0.0, %v7295
        %7297 = vmatmul.f32.gmra.mxu0 %v7183
        %v7298 = vpop.f32.mrf.mxu0
        %v7299 = vadd.f32 0.0, %v7298
        %7300 = vmatmul.f32.gmra.mxu0 %v7186
        %v7301 = vpop.f32.mrf.mxu0
        %v7302 = vadd.f32 0.0, %v7301
        %7303 = vmatmul.f32.gmra.mxu0 %v7189
        %v7304 = vpop.f32.mrf.mxu0
        %v7305 = vadd.f32 0.0, %v7304
        %7306 = vmatmul.f32.gmra.mxu0 %v7192
        %v7307 = vpop.f32.mrf.mxu0
        %v7308 = vadd.f32 0.0, %v7307
        %7309 = vmatmul.f32.gmra.mxu0 %v7195
        %v7310 = vpop.f32.mrf.mxu0
        %v7311 = vadd.f32 0.0, %v7310
        %7312 = vmatmul.f32.gmra.mxu0 %v7198
        %v7313 = vpop.f32.mrf.mxu0
        %v7314 = vadd.f32 0.0, %v7313
        %7315 = vmatmul.f32.gmra.mxu0 %v7201
        %v7316 = vpop.f32.mrf.mxu0
        %v7317 = vadd.f32 0.0, %v7316
        %7318 = vmatmul.f32.gmra.mxu0 %v7204
        %v7319 = vpop.f32.mrf.mxu0
        %v7320 = vadd.f32 0.0, %v7319
        %7321 = vdwg.mxu0
        %v7322 = vadd.f32 %v7044, %v7227
        %v7323 = vadd.f32 %v7045, %v7230
        %v7324 = vadd.f32 %v7046, %v7233
        %v7325 = vadd.f32 %v7047, %v7236
        %v7326 = vadd.f32 %v7048, %v7239
        %v7327 = vadd.f32 %v7049, %v7242
        %v7328 = vadd.f32 %v7050, %v7245
        %v7329 = vadd.f32 %v7051, %v7248
        %v7330 = vadd.f32 %v7052, %v7251
        %v7331 = vadd.f32 %v7053, %v7254
        %v7332 = vadd.f32 %v7054, %v7257
        %v7333 = vadd.f32 %v7055, %v7260
        %v7334 = vadd.f32 %v7056, %v7263
        %v7335 = vadd.f32 %v7057, %v7266
        %v7336 = vadd.f32 %v7058, %v7269
        %v7337 = vadd.f32 %v7059, %v7272
        %v7338 = vadd.f32 %v7060, %v7275
        %v7339 = vadd.f32 %v7061, %v7278
        %v7340 = vadd.f32 %v7062, %v7281
        %v7341 = vadd.f32 %v7063, %v7284
        %v7342 = vadd.f32 %v7064, %v7287
        %v7343 = vadd.f32 %v7065, %v7290
        %v7344 = vadd.f32 %v7066, %v7293
        %v7345 = vadd.f32 %v7067, %v7296
        %v7346 = vadd.f32 %v7068, %v7299
        %v7347 = vadd.f32 %v7069, %v7302
        %v7348 = vadd.f32 %v7070, %v7305
        %v7349 = vadd.f32 %v7071, %v7308
        %v7350 = vadd.f32 %v7072, %v7311
        %v7351 = vadd.f32 %v7073, %v7314
        %v7352 = vadd.f32 %v7074, %v7317
        %v7353 = vadd.f32 %v7075, %v7320
        %v7354 = vld [vmem:[%s987 + $0x4] sm:$0xff]
        %v7355 = vld [vmem:[%s987 + $0xc] sm:$0xff]
        %v7356 = vld [vmem:[%s987 + $0x1c] sm:$0xff]
        %v7357 = vld [vmem:[%s987 + $0x24] sm:$0xff]
        %v7358 = vld [vmem:[%s987 + $0x34] sm:$0xff]
        %v7359 = vld [vmem:[%s987 + $0x3c] sm:$0xff]
        %v7360 = vld [vmem:[%s987 + $0x4c] sm:$0xff]
        %v7361 = vld [vmem:[%s987 + $0x54] sm:$0xff]
        %v7362 = vld [vmem:[%s987 + $0x64] sm:$0xff]
        %v7363 = vld [vmem:[%s987 + $0x6c] sm:$0xff]
        %v7364 = vld [vmem:[%s987 + $0x7c] sm:$0xff]
        %v7365 = vld [vmem:[%s987 + $0x84] sm:$0xff]
        %v7366 = vld [vmem:[%s987 + $0x94] sm:$0xff]
        %v7367 = vld [vmem:[%s987 + $0x9c] sm:$0xff]
        %v7368 = vld [vmem:[%s987 + $0xac] sm:$0xff]
        %v7369 = vld [vmem:[%s987 + $0xb4] sm:$0xff]
        %v7370 = vld [vmem:[%s987 + $0xc4] sm:$0xff]
        %v7371 = vld [vmem:[%s987 + $0xcc] sm:$0xff]
        %v7372 = vld [vmem:[%s987 + $0xdc] sm:$0xff]
        %v7373 = vld [vmem:[%s987 + $0xe4] sm:$0xff]
        %v7374 = vld [vmem:[%s987 + $0xf4] sm:$0xff]
        %v7375 = vld [vmem:[%s987 + $0xfc] sm:$0xff]
        %v7376 = vld [vmem:[%s987 + $0x10c] sm:$0xff]
        %v7377 = vld [vmem:[%s987 + $0x114] sm:$0xff]
        %v7378 = vld [vmem:[%s987 + $0x124] sm:$0xff]
        %v7379 = vld [vmem:[%s987 + $0x12c] sm:$0xff]
        %v7380 = vld [vmem:[%s987 + $0x13c] sm:$0xff]
        %v7381 = vld [vmem:[%s987 + $0x144] sm:$0xff]
        %v7382 = vld [vmem:[%s987 + $0x154] sm:$0xff]
        %v7383 = vld [vmem:[%s987 + $0x15c] sm:$0xff]
        %v7384 = vld [vmem:[%s987 + $0x16c] sm:$0xff]
        %v7385 = vld [vmem:[%s987 + $0x174] sm:$0xff]
        %s7386 = scalar_lea.vmem %s5, 56
        %v7387 = vld [vmem:[%s7386] sm:$0xf]
        %v7389 = vsel %vm368, %v7354, 0
        %v7392 = vsel %vm368, %v7355, 0
        %v7395 = vsel %vm368, %v7356, 0
        %v7398 = vsel %vm368, %v7357, 0
        %v7401 = vsel %vm368, %v7358, 0
        %v7404 = vsel %vm368, %v7359, 0
        %v7407 = vsel %vm368, %v7360, 0
        %v7410 = vsel %vm368, %v7361, 0
        %v7413 = vsel %vm368, %v7362, 0
        %v7416 = vsel %vm368, %v7363, 0
        %v7419 = vsel %vm368, %v7364, 0
        %v7422 = vsel %vm368, %v7365, 0
        %v7425 = vsel %vm368, %v7366, 0
        %v7428 = vsel %vm368, %v7367, 0
        %v7431 = vsel %vm368, %v7368, 0
        %v7434 = vsel %vm368, %v7369, 0
        %v7437 = vsel %vm368, %v7370, 0
        %v7440 = vsel %vm368, %v7371, 0
        %v7443 = vsel %vm368, %v7372, 0
        %v7446 = vsel %vm368, %v7373, 0
        %v7449 = vsel %vm368, %v7374, 0
        %v7452 = vsel %vm368, %v7375, 0
        %v7455 = vsel %vm368, %v7376, 0
        %v7458 = vsel %vm368, %v7377, 0
        %v7461 = vsel %vm368, %v7378, 0
        %v7464 = vsel %vm368, %v7379, 0
        %v7467 = vsel %vm368, %v7380, 0
        %v7470 = vsel %vm368, %v7381, 0
        %v7473 = vsel %vm368, %v7382, 0
        %v7476 = vsel %vm368, %v7383, 0
        %v7479 = vsel %vm368, %v7384, 0
        %v7482 = vsel %vm368, %v7385, 0
        %v7485 = vsel %vm465, %v7387, 0
        %7487 = vmatpush.msra.mxu0 0.0
        %7488 = vmatpush.msra.mxu0 0.0
        %7489 = vmatpush.msra.mxu0 0.0
        %7490 = vmatpush.msra.mxu0 0.0
        %7491 = vmatpush.msra.mxu0 0.0
        %7492 = vmatpush.msra.mxu0 0.0
        %7493 = vmatpush.msra.mxu0 0.0
        %7494 = vmatpush.msra.mxu0 0.0
        %7495 = vmatpush.msra.mxu0 0.0
        %7496 = vmatpush.msra.mxu0 0.0
        %7497 = vmatpush.msra.mxu0 0.0
        %7498 = vmatpush.msra.mxu0 0.0
        %7499 = vmatpush.msra.mxu0 0.0
        %7500 = vmatpush.msra.mxu0 0.0
        %7501 = vmatpush.msra.mxu0 0.0
        %7502 = vmatpush.msra.mxu0 %v7485
        %7503 = vmatmul.f32.gmra.mxu0 %v7389
        %v7504 = vpop.f32.mrf.mxu0
        %v7505 = vadd.f32 0.0, %v7504
        %7506 = vmatmul.f32.gmra.mxu0 %v7392
        %v7507 = vpop.f32.mrf.mxu0
        %v7508 = vadd.f32 0.0, %v7507
        %7509 = vmatmul.f32.gmra.mxu0 %v7395
        %v7510 = vpop.f32.mrf.mxu0
        %v7511 = vadd.f32 0.0, %v7510
        %7512 = vmatmul.f32.gmra.mxu0 %v7398
        %v7513 = vpop.f32.mrf.mxu0
        %v7514 = vadd.f32 0.0, %v7513
        %7515 = vmatmul.f32.gmra.mxu0 %v7401
        %v7516 = vpop.f32.mrf.mxu0
        %v7517 = vadd.f32 0.0, %v7516
        %7518 = vmatmul.f32.gmra.mxu0 %v7404
        %v7519 = vpop.f32.mrf.mxu0
        %v7520 = vadd.f32 0.0, %v7519
        %7521 = vmatmul.f32.gmra.mxu0 %v7407
        %v7522 = vpop.f32.mrf.mxu0
        %v7523 = vadd.f32 0.0, %v7522
        %7524 = vmatmul.f32.gmra.mxu0 %v7410
        %v7525 = vpop.f32.mrf.mxu0
        %v7526 = vadd.f32 0.0, %v7525
        %7527 = vmatmul.f32.gmra.mxu0 %v7413
        %v7528 = vpop.f32.mrf.mxu0
        %v7529 = vadd.f32 0.0, %v7528
        %7530 = vmatmul.f32.gmra.mxu0 %v7416
        %v7531 = vpop.f32.mrf.mxu0
        %v7532 = vadd.f32 0.0, %v7531
        %7533 = vmatmul.f32.gmra.mxu0 %v7419
        %v7534 = vpop.f32.mrf.mxu0
        %v7535 = vadd.f32 0.0, %v7534
        %7536 = vmatmul.f32.gmra.mxu0 %v7422
        %v7537 = vpop.f32.mrf.mxu0
        %v7538 = vadd.f32 0.0, %v7537
        %7539 = vmatmul.f32.gmra.mxu0 %v7425
        %v7540 = vpop.f32.mrf.mxu0
        %v7541 = vadd.f32 0.0, %v7540
        %7542 = vmatmul.f32.gmra.mxu0 %v7428
        %v7543 = vpop.f32.mrf.mxu0
        %v7544 = vadd.f32 0.0, %v7543
        %7545 = vmatmul.f32.gmra.mxu0 %v7431
        %v7546 = vpop.f32.mrf.mxu0
        %v7547 = vadd.f32 0.0, %v7546
        %7548 = vmatmul.f32.gmra.mxu0 %v7434
        %v7549 = vpop.f32.mrf.mxu0
        %v7550 = vadd.f32 0.0, %v7549
        %7551 = vmatmul.f32.gmra.mxu0 %v7437
        %v7552 = vpop.f32.mrf.mxu0
        %v7553 = vadd.f32 0.0, %v7552
        %7554 = vmatmul.f32.gmra.mxu0 %v7440
        %v7555 = vpop.f32.mrf.mxu0
        %v7556 = vadd.f32 0.0, %v7555
        %7557 = vmatmul.f32.gmra.mxu0 %v7443
        %v7558 = vpop.f32.mrf.mxu0
        %v7559 = vadd.f32 0.0, %v7558
        %7560 = vmatmul.f32.gmra.mxu0 %v7446
        %v7561 = vpop.f32.mrf.mxu0
        %v7562 = vadd.f32 0.0, %v7561
        %7563 = vmatmul.f32.gmra.mxu0 %v7449
        %v7564 = vpop.f32.mrf.mxu0
        %v7565 = vadd.f32 0.0, %v7564
        %7566 = vmatmul.f32.gmra.mxu0 %v7452
        %v7567 = vpop.f32.mrf.mxu0
        %v7568 = vadd.f32 0.0, %v7567
        %7569 = vmatmul.f32.gmra.mxu0 %v7455
        %v7570 = vpop.f32.mrf.mxu0
        %v7571 = vadd.f32 0.0, %v7570
        %7572 = vmatmul.f32.gmra.mxu0 %v7458
        %v7573 = vpop.f32.mrf.mxu0
        %v7574 = vadd.f32 0.0, %v7573
        %7575 = vmatmul.f32.gmra.mxu0 %v7461
        %v7576 = vpop.f32.mrf.mxu0
        %v7577 = vadd.f32 0.0, %v7576
        %7578 = vmatmul.f32.gmra.mxu0 %v7464
        %v7579 = vpop.f32.mrf.mxu0
        %v7580 = vadd.f32 0.0, %v7579
        %7581 = vmatmul.f32.gmra.mxu0 %v7467
        %v7582 = vpop.f32.mrf.mxu0
        %v7583 = vadd.f32 0.0, %v7582
        %7584 = vmatmul.f32.gmra.mxu0 %v7470
        %v7585 = vpop.f32.mrf.mxu0
        %v7586 = vadd.f32 0.0, %v7585
        %7587 = vmatmul.f32.gmra.mxu0 %v7473
        %v7588 = vpop.f32.mrf.mxu0
        %v7589 = vadd.f32 0.0, %v7588
        %7590 = vmatmul.f32.gmra.mxu0 %v7476
        %v7591 = vpop.f32.mrf.mxu0
        %v7592 = vadd.f32 0.0, %v7591
        %7593 = vmatmul.f32.gmra.mxu0 %v7479
        %v7594 = vpop.f32.mrf.mxu0
        %v7595 = vadd.f32 0.0, %v7594
        %7596 = vmatmul.f32.gmra.mxu0 %v7482
        %v7597 = vpop.f32.mrf.mxu0
        %v7598 = vadd.f32 0.0, %v7597
        %7599 = vdwg.mxu0
        %v7600 = vadd.f32 %v7322, %v7505
        %v7601 = vadd.f32 %v7323, %v7508
        %v7602 = vadd.f32 %v7324, %v7511
        %v7603 = vadd.f32 %v7325, %v7514
        %v7604 = vadd.f32 %v7326, %v7517
        %v7605 = vadd.f32 %v7327, %v7520
        %v7606 = vadd.f32 %v7328, %v7523
        %v7607 = vadd.f32 %v7329, %v7526
        %v7608 = vadd.f32 %v7330, %v7529
        %v7609 = vadd.f32 %v7331, %v7532
        %v7610 = vadd.f32 %v7332, %v7535
        %v7611 = vadd.f32 %v7333, %v7538
        %v7612 = vadd.f32 %v7334, %v7541
        %v7613 = vadd.f32 %v7335, %v7544
        %v7614 = vadd.f32 %v7336, %v7547
        %v7615 = vadd.f32 %v7337, %v7550
        %v7616 = vadd.f32 %v7338, %v7553
        %v7617 = vadd.f32 %v7339, %v7556
        %v7618 = vadd.f32 %v7340, %v7559
        %v7619 = vadd.f32 %v7341, %v7562
        %v7620 = vadd.f32 %v7342, %v7565
        %v7621 = vadd.f32 %v7343, %v7568
        %v7622 = vadd.f32 %v7344, %v7571
        %v7623 = vadd.f32 %v7345, %v7574
        %v7624 = vadd.f32 %v7346, %v7577
        %v7625 = vadd.f32 %v7347, %v7580
        %v7626 = vadd.f32 %v7348, %v7583
        %v7627 = vadd.f32 %v7349, %v7586
        %v7628 = vadd.f32 %v7350, %v7589
        %v7629 = vadd.f32 %v7351, %v7592
        %v7630 = vadd.f32 %v7352, %v7595
        %v7631 = vadd.f32 %v7353, %v7598
        %s7632 = scalar_lea.vmem [#allocation3], 72
        %v7633 = vld [vmem:[%s7632] sm:$0xff]
        %v7634 = vld [vmem:[%s7632 + $0x8] sm:$0xff]
        %v7635 = vld [vmem:[%s7632 + $0x18] sm:$0xff]
        %v7636 = vld [vmem:[%s7632 + $0x20] sm:$0xff]
        %v7637 = vld [vmem:[%s7632 + $0x30] sm:$0xff]
        %v7638 = vld [vmem:[%s7632 + $0x38] sm:$0xff]
        %v7639 = vld [vmem:[%s7632 + $0x48] sm:$0xff]
        %v7640 = vld [vmem:[%s7632 + $0x50] sm:$0xff]
        %v7641 = vld [vmem:[%s7632 + $0x60] sm:$0xff]
        %v7642 = vld [vmem:[%s7632 + $0x68] sm:$0xff]
        %v7643 = vld [vmem:[%s7632 + $0x78] sm:$0xff]
        %v7644 = vld [vmem:[%s7632 + $0x80] sm:$0xff]
        %v7645 = vld [vmem:[%s7632 + $0x90] sm:$0xff]
        %v7646 = vld [vmem:[%s7632 + $0x98] sm:$0xff]
        %v7647 = vld [vmem:[%s7632 + $0xa8] sm:$0xff]
        %v7648 = vld [vmem:[%s7632 + $0xb0] sm:$0xff]
        %v7649 = vld [vmem:[%s7632 + $0xc0] sm:$0xff]
        %v7650 = vld [vmem:[%s7632 + $0xc8] sm:$0xff]
        %v7651 = vld [vmem:[%s7632 + $0xd8] sm:$0xff]
        %v7652 = vld [vmem:[%s7632 + $0xe0] sm:$0xff]
        %v7653 = vld [vmem:[%s7632 + $0xf0] sm:$0xff]
        %v7654 = vld [vmem:[%s7632 + $0xf8] sm:$0xff]
        %v7655 = vld [vmem:[%s7632 + $0x108] sm:$0xff]
        %v7656 = vld [vmem:[%s7632 + $0x110] sm:$0xff]
        %v7657 = vld [vmem:[%s7632 + $0x120] sm:$0xff]
        %v7658 = vld [vmem:[%s7632 + $0x128] sm:$0xff]
        %v7659 = vld [vmem:[%s7632 + $0x138] sm:$0xff]
        %v7660 = vld [vmem:[%s7632 + $0x140] sm:$0xff]
        %v7661 = vld [vmem:[%s7632 + $0x150] sm:$0xff]
        %v7662 = vld [vmem:[%s7632 + $0x158] sm:$0xff]
        %v7663 = vld [vmem:[%s7632 + $0x168] sm:$0xff]
        %v7664 = vld [vmem:[%s7632 + $0x170] sm:$0xff]
        %s7665 = scalar_lea.vmem %s5, 60
        %v7666 = vld [vmem:[%s7665] sm:$0xf]
        %v7668 = vsel %vm368, %v7633, 0
        %v7671 = vsel %vm368, %v7634, 0
        %v7674 = vsel %vm368, %v7635, 0
        %v7677 = vsel %vm368, %v7636, 0
        %v7680 = vsel %vm368, %v7637, 0
        %v7683 = vsel %vm368, %v7638, 0
        %v7686 = vsel %vm368, %v7639, 0
        %v7689 = vsel %vm368, %v7640, 0
        %v7692 = vsel %vm368, %v7641, 0
        %v7695 = vsel %vm368, %v7642, 0
        %v7698 = vsel %vm368, %v7643, 0
        %v7701 = vsel %vm368, %v7644, 0
        %v7704 = vsel %vm368, %v7645, 0
        %v7707 = vsel %vm368, %v7646, 0
        %v7710 = vsel %vm368, %v7647, 0
        %v7713 = vsel %vm368, %v7648, 0
        %v7716 = vsel %vm368, %v7649, 0
        %v7719 = vsel %vm368, %v7650, 0
        %v7722 = vsel %vm368, %v7651, 0
        %v7725 = vsel %vm368, %v7652, 0
        %v7728 = vsel %vm368, %v7653, 0
        %v7731 = vsel %vm368, %v7654, 0
        %v7734 = vsel %vm368, %v7655, 0
        %v7737 = vsel %vm368, %v7656, 0
        %v7740 = vsel %vm368, %v7657, 0
        %v7743 = vsel %vm368, %v7658, 0
        %v7746 = vsel %vm368, %v7659, 0
        %v7749 = vsel %vm368, %v7660, 0
        %v7752 = vsel %vm368, %v7661, 0
        %v7755 = vsel %vm368, %v7662, 0
        %v7758 = vsel %vm368, %v7663, 0
        %v7761 = vsel %vm368, %v7664, 0
        %v7764 = vsel %vm465, %v7666, 0
        %7766 = vmatpush.msra.mxu0 0.0
        %7767 = vmatpush.msra.mxu0 0.0
        %7768 = vmatpush.msra.mxu0 0.0
        %7769 = vmatpush.msra.mxu0 0.0
        %7770 = vmatpush.msra.mxu0 0.0
        %7771 = vmatpush.msra.mxu0 0.0
        %7772 = vmatpush.msra.mxu0 0.0
        %7773 = vmatpush.msra.mxu0 0.0
        %7774 = vmatpush.msra.mxu0 0.0
        %7775 = vmatpush.msra.mxu0 0.0
        %7776 = vmatpush.msra.mxu0 0.0
        %7777 = vmatpush.msra.mxu0 0.0
        %7778 = vmatpush.msra.mxu0 0.0
        %7779 = vmatpush.msra.mxu0 0.0
        %7780 = vmatpush.msra.mxu0 0.0
        %7781 = vmatpush.msra.mxu0 %v7764
        %7782 = vmatmul.f32.gmra.mxu0 %v7668
        %v7783 = vpop.f32.mrf.mxu0
        %v7784 = vadd.f32 0.0, %v7783
        %7785 = vmatmul.f32.gmra.mxu0 %v7671
        %v7786 = vpop.f32.mrf.mxu0
        %v7787 = vadd.f32 0.0, %v7786
        %7788 = vmatmul.f32.gmra.mxu0 %v7674
        %v7789 = vpop.f32.mrf.mxu0
        %v7790 = vadd.f32 0.0, %v7789
        %7791 = vmatmul.f32.gmra.mxu0 %v7677
        %v7792 = vpop.f32.mrf.mxu0
        %v7793 = vadd.f32 0.0, %v7792
        %7794 = vmatmul.f32.gmra.mxu0 %v7680
        %v7795 = vpop.f32.mrf.mxu0
        %v7796 = vadd.f32 0.0, %v7795
        %7797 = vmatmul.f32.gmra.mxu0 %v7683
        %v7798 = vpop.f32.mrf.mxu0
        %v7799 = vadd.f32 0.0, %v7798
        %7800 = vmatmul.f32.gmra.mxu0 %v7686
        %v7801 = vpop.f32.mrf.mxu0
        %v7802 = vadd.f32 0.0, %v7801
        %7803 = vmatmul.f32.gmra.mxu0 %v7689
        %v7804 = vpop.f32.mrf.mxu0
        %v7805 = vadd.f32 0.0, %v7804
        %7806 = vmatmul.f32.gmra.mxu0 %v7692
        %v7807 = vpop.f32.mrf.mxu0
        %v7808 = vadd.f32 0.0, %v7807
        %7809 = vmatmul.f32.gmra.mxu0 %v7695
        %v7810 = vpop.f32.mrf.mxu0
        %v7811 = vadd.f32 0.0, %v7810
        %7812 = vmatmul.f32.gmra.mxu0 %v7698
        %v7813 = vpop.f32.mrf.mxu0
        %v7814 = vadd.f32 0.0, %v7813
        %7815 = vmatmul.f32.gmra.mxu0 %v7701
        %v7816 = vpop.f32.mrf.mxu0
        %v7817 = vadd.f32 0.0, %v7816
        %7818 = vmatmul.f32.gmra.mxu0 %v7704
        %v7819 = vpop.f32.mrf.mxu0
        %v7820 = vadd.f32 0.0, %v7819
        %7821 = vmatmul.f32.gmra.mxu0 %v7707
        %v7822 = vpop.f32.mrf.mxu0
        %v7823 = vadd.f32 0.0, %v7822
        %7824 = vmatmul.f32.gmra.mxu0 %v7710
        %v7825 = vpop.f32.mrf.mxu0
        %v7826 = vadd.f32 0.0, %v7825
        %7827 = vmatmul.f32.gmra.mxu0 %v7713
        %v7828 = vpop.f32.mrf.mxu0
        %v7829 = vadd.f32 0.0, %v7828
        %7830 = vmatmul.f32.gmra.mxu0 %v7716
        %v7831 = vpop.f32.mrf.mxu0
        %v7832 = vadd.f32 0.0, %v7831
        %7833 = vmatmul.f32.gmra.mxu0 %v7719
        %v7834 = vpop.f32.mrf.mxu0
        %v7835 = vadd.f32 0.0, %v7834
        %7836 = vmatmul.f32.gmra.mxu0 %v7722
        %v7837 = vpop.f32.mrf.mxu0
        %v7838 = vadd.f32 0.0, %v7837
        %7839 = vmatmul.f32.gmra.mxu0 %v7725
        %v7840 = vpop.f32.mrf.mxu0
        %v7841 = vadd.f32 0.0, %v7840
        %7842 = vmatmul.f32.gmra.mxu0 %v7728
        %v7843 = vpop.f32.mrf.mxu0
        %v7844 = vadd.f32 0.0, %v7843
        %7845 = vmatmul.f32.gmra.mxu0 %v7731
        %v7846 = vpop.f32.mrf.mxu0
        %v7847 = vadd.f32 0.0, %v7846
        %7848 = vmatmul.f32.gmra.mxu0 %v7734
        %v7849 = vpop.f32.mrf.mxu0
        %v7850 = vadd.f32 0.0, %v7849
        %7851 = vmatmul.f32.gmra.mxu0 %v7737
        %v7852 = vpop.f32.mrf.mxu0
        %v7853 = vadd.f32 0.0, %v7852
        %7854 = vmatmul.f32.gmra.mxu0 %v7740
        %v7855 = vpop.f32.mrf.mxu0
        %v7856 = vadd.f32 0.0, %v7855
        %7857 = vmatmul.f32.gmra.mxu0 %v7743
        %v7858 = vpop.f32.mrf.mxu0
        %v7859 = vadd.f32 0.0, %v7858
        %7860 = vmatmul.f32.gmra.mxu0 %v7746
        %v7861 = vpop.f32.mrf.mxu0
        %v7862 = vadd.f32 0.0, %v7861
        %7863 = vmatmul.f32.gmra.mxu0 %v7749
        %v7864 = vpop.f32.mrf.mxu0
        %v7865 = vadd.f32 0.0, %v7864
        %7866 = vmatmul.f32.gmra.mxu0 %v7752
        %v7867 = vpop.f32.mrf.mxu0
        %v7868 = vadd.f32 0.0, %v7867
        %7869 = vmatmul.f32.gmra.mxu0 %v7755
        %v7870 = vpop.f32.mrf.mxu0
        %v7871 = vadd.f32 0.0, %v7870
        %7872 = vmatmul.f32.gmra.mxu0 %v7758
        %v7873 = vpop.f32.mrf.mxu0
        %v7874 = vadd.f32 0.0, %v7873
        %7875 = vmatmul.f32.gmra.mxu0 %v7761
        %v7876 = vpop.f32.mrf.mxu0
        %v7877 = vadd.f32 0.0, %v7876
        %7878 = vdwg.mxu0
        %v7879 = vadd.f32 %v7600, %v7784
        %v7880 = vadd.f32 %v7601, %v7787
        %v7881 = vadd.f32 %v7602, %v7790
        %v7882 = vadd.f32 %v7603, %v7793
        %v7883 = vadd.f32 %v7604, %v7796
        %v7884 = vadd.f32 %v7605, %v7799
        %v7885 = vadd.f32 %v7606, %v7802
        %v7886 = vadd.f32 %v7607, %v7805
        %v7887 = vadd.f32 %v7608, %v7808
        %v7888 = vadd.f32 %v7609, %v7811
        %v7889 = vadd.f32 %v7610, %v7814
        %v7890 = vadd.f32 %v7611, %v7817
        %v7891 = vadd.f32 %v7612, %v7820
        %v7892 = vadd.f32 %v7613, %v7823
        %v7893 = vadd.f32 %v7614, %v7826
        %v7894 = vadd.f32 %v7615, %v7829
        %v7895 = vadd.f32 %v7616, %v7832
        %v7896 = vadd.f32 %v7617, %v7835
        %v7897 = vadd.f32 %v7618, %v7838
        %v7898 = vadd.f32 %v7619, %v7841
        %v7899 = vadd.f32 %v7620, %v7844
        %v7900 = vadd.f32 %v7621, %v7847
        %v7901 = vadd.f32 %v7622, %v7850
        %v7902 = vadd.f32 %v7623, %v7853
        %v7903 = vadd.f32 %v7624, %v7856
        %v7904 = vadd.f32 %v7625, %v7859
        %v7905 = vadd.f32 %v7626, %v7862
        %v7906 = vadd.f32 %v7627, %v7865
        %v7907 = vadd.f32 %v7628, %v7868
        %v7908 = vadd.f32 %v7629, %v7871
        %v7909 = vadd.f32 %v7630, %v7874
        %v7910 = vadd.f32 %v7631, %v7877
        %v7911 = vld [vmem:[%s7632 + $0x1] sm:$0xff]
        %v7912 = vld [vmem:[%s7632 + $0x9] sm:$0xff]
        %v7913 = vld [vmem:[%s7632 + $0x19] sm:$0xff]
        %v7914 = vld [vmem:[%s7632 + $0x21] sm:$0xff]
        %v7915 = vld [vmem:[%s7632 + $0x31] sm:$0xff]
        %v7916 = vld [vmem:[%s7632 + $0x39] sm:$0xff]
        %v7917 = vld [vmem:[%s7632 + $0x49] sm:$0xff]
        %v7918 = vld [vmem:[%s7632 + $0x51] sm:$0xff]
        %v7919 = vld [vmem:[%s7632 + $0x61] sm:$0xff]
        %v7920 = vld [vmem:[%s7632 + $0x69] sm:$0xff]
        %v7921 = vld [vmem:[%s7632 + $0x79] sm:$0xff]
        %v7922 = vld [vmem:[%s7632 + $0x81] sm:$0xff]
        %v7923 = vld [vmem:[%s7632 + $0x91] sm:$0xff]
        %v7924 = vld [vmem:[%s7632 + $0x99] sm:$0xff]
        %v7925 = vld [vmem:[%s7632 + $0xa9] sm:$0xff]
        %v7926 = vld [vmem:[%s7632 + $0xb1] sm:$0xff]
        %v7927 = vld [vmem:[%s7632 + $0xc1] sm:$0xff]
        %v7928 = vld [vmem:[%s7632 + $0xc9] sm:$0xff]
        %v7929 = vld [vmem:[%s7632 + $0xd9] sm:$0xff]
        %v7930 = vld [vmem:[%s7632 + $0xe1] sm:$0xff]
        %v7931 = vld [vmem:[%s7632 + $0xf1] sm:$0xff]
        %v7932 = vld [vmem:[%s7632 + $0xf9] sm:$0xff]
        %v7933 = vld [vmem:[%s7632 + $0x109] sm:$0xff]
        %v7934 = vld [vmem:[%s7632 + $0x111] sm:$0xff]
        %v7935 = vld [vmem:[%s7632 + $0x121] sm:$0xff]
        %v7936 = vld [vmem:[%s7632 + $0x129] sm:$0xff]
        %v7937 = vld [vmem:[%s7632 + $0x139] sm:$0xff]
        %v7938 = vld [vmem:[%s7632 + $0x141] sm:$0xff]
        %v7939 = vld [vmem:[%s7632 + $0x151] sm:$0xff]
        %v7940 = vld [vmem:[%s7632 + $0x159] sm:$0xff]
        %v7941 = vld [vmem:[%s7632 + $0x169] sm:$0xff]
        %v7942 = vld [vmem:[%s7632 + $0x171] sm:$0xff]
        %s7943 = scalar_lea.vmem %s5, 64
        %v7944 = vld [vmem:[%s7943] sm:$0xf]
        %v7946 = vsel %vm368, %v7911, 0
        %v7949 = vsel %vm368, %v7912, 0
        %v7952 = vsel %vm368, %v7913, 0
        %v7955 = vsel %vm368, %v7914, 0
        %v7958 = vsel %vm368, %v7915, 0
        %v7961 = vsel %vm368, %v7916, 0
        %v7964 = vsel %vm368, %v7917, 0
        %v7967 = vsel %vm368, %v7918, 0
        %v7970 = vsel %vm368, %v7919, 0
        %v7973 = vsel %vm368, %v7920, 0
        %v7976 = vsel %vm368, %v7921, 0
        %v7979 = vsel %vm368, %v7922, 0
        %v7982 = vsel %vm368, %v7923, 0
        %v7985 = vsel %vm368, %v7924, 0
        %v7988 = vsel %vm368, %v7925, 0
        %v7991 = vsel %vm368, %v7926, 0
        %v7994 = vsel %vm368, %v7927, 0
        %v7997 = vsel %vm368, %v7928, 0
        %v8000 = vsel %vm368, %v7929, 0
        %v8003 = vsel %vm368, %v7930, 0
        %v8006 = vsel %vm368, %v7931, 0
        %v8009 = vsel %vm368, %v7932, 0
        %v8012 = vsel %vm368, %v7933, 0
        %v8015 = vsel %vm368, %v7934, 0
        %v8018 = vsel %vm368, %v7935, 0
        %v8021 = vsel %vm368, %v7936, 0
        %v8024 = vsel %vm368, %v7937, 0
        %v8027 = vsel %vm368, %v7938, 0
        %v8030 = vsel %vm368, %v7939, 0
        %v8033 = vsel %vm368, %v7940, 0
        %v8036 = vsel %vm368, %v7941, 0
        %v8039 = vsel %vm368, %v7942, 0
        %v8042 = vsel %vm465, %v7944, 0
        %8044 = vmatpush.msra.mxu0 0.0
        %8045 = vmatpush.msra.mxu0 0.0
        %8046 = vmatpush.msra.mxu0 0.0
        %8047 = vmatpush.msra.mxu0 0.0
        %8048 = vmatpush.msra.mxu0 0.0
        %8049 = vmatpush.msra.mxu0 0.0
        %8050 = vmatpush.msra.mxu0 0.0
        %8051 = vmatpush.msra.mxu0 0.0
        %8052 = vmatpush.msra.mxu0 0.0
        %8053 = vmatpush.msra.mxu0 0.0
        %8054 = vmatpush.msra.mxu0 0.0
        %8055 = vmatpush.msra.mxu0 0.0
        %8056 = vmatpush.msra.mxu0 0.0
        %8057 = vmatpush.msra.mxu0 0.0
        %8058 = vmatpush.msra.mxu0 0.0
        %8059 = vmatpush.msra.mxu0 %v8042
        %8060 = vmatmul.f32.gmra.mxu0 %v7946
        %v8061 = vpop.f32.mrf.mxu0
        %v8062 = vadd.f32 0.0, %v8061
        %8063 = vmatmul.f32.gmra.mxu0 %v7949
        %v8064 = vpop.f32.mrf.mxu0
        %v8065 = vadd.f32 0.0, %v8064
        %8066 = vmatmul.f32.gmra.mxu0 %v7952
        %v8067 = vpop.f32.mrf.mxu0
        %v8068 = vadd.f32 0.0, %v8067
        %8069 = vmatmul.f32.gmra.mxu0 %v7955
        %v8070 = vpop.f32.mrf.mxu0
        %v8071 = vadd.f32 0.0, %v8070
        %8072 = vmatmul.f32.gmra.mxu0 %v7958
        %v8073 = vpop.f32.mrf.mxu0
        %v8074 = vadd.f32 0.0, %v8073
        %8075 = vmatmul.f32.gmra.mxu0 %v7961
        %v8076 = vpop.f32.mrf.mxu0
        %v8077 = vadd.f32 0.0, %v8076
        %8078 = vmatmul.f32.gmra.mxu0 %v7964
        %v8079 = vpop.f32.mrf.mxu0
        %v8080 = vadd.f32 0.0, %v8079
        %8081 = vmatmul.f32.gmra.mxu0 %v7967
        %v8082 = vpop.f32.mrf.mxu0
        %v8083 = vadd.f32 0.0, %v8082
        %8084 = vmatmul.f32.gmra.mxu0 %v7970
        %v8085 = vpop.f32.mrf.mxu0
        %v8086 = vadd.f32 0.0, %v8085
        %8087 = vmatmul.f32.gmra.mxu0 %v7973
        %v8088 = vpop.f32.mrf.mxu0
        %v8089 = vadd.f32 0.0, %v8088
        %8090 = vmatmul.f32.gmra.mxu0 %v7976
        %v8091 = vpop.f32.mrf.mxu0
        %v8092 = vadd.f32 0.0, %v8091
        %8093 = vmatmul.f32.gmra.mxu0 %v7979
        %v8094 = vpop.f32.mrf.mxu0
        %v8095 = vadd.f32 0.0, %v8094
        %8096 = vmatmul.f32.gmra.mxu0 %v7982
        %v8097 = vpop.f32.mrf.mxu0
        %v8098 = vadd.f32 0.0, %v8097
        %8099 = vmatmul.f32.gmra.mxu0 %v7985
        %v8100 = vpop.f32.mrf.mxu0
        %v8101 = vadd.f32 0.0, %v8100
        %8102 = vmatmul.f32.gmra.mxu0 %v7988
        %v8103 = vpop.f32.mrf.mxu0
        %v8104 = vadd.f32 0.0, %v8103
        %8105 = vmatmul.f32.gmra.mxu0 %v7991
        %v8106 = vpop.f32.mrf.mxu0
        %v8107 = vadd.f32 0.0, %v8106
        %8108 = vmatmul.f32.gmra.mxu0 %v7994
        %v8109 = vpop.f32.mrf.mxu0
        %v8110 = vadd.f32 0.0, %v8109
        %8111 = vmatmul.f32.gmra.mxu0 %v7997
        %v8112 = vpop.f32.mrf.mxu0
        %v8113 = vadd.f32 0.0, %v8112
        %8114 = vmatmul.f32.gmra.mxu0 %v8000
        %v8115 = vpop.f32.mrf.mxu0
        %v8116 = vadd.f32 0.0, %v8115
        %8117 = vmatmul.f32.gmra.mxu0 %v8003
        %v8118 = vpop.f32.mrf.mxu0
        %v8119 = vadd.f32 0.0, %v8118
        %8120 = vmatmul.f32.gmra.mxu0 %v8006
        %v8121 = vpop.f32.mrf.mxu0
        %v8122 = vadd.f32 0.0, %v8121
        %8123 = vmatmul.f32.gmra.mxu0 %v8009
        %v8124 = vpop.f32.mrf.mxu0
        %v8125 = vadd.f32 0.0, %v8124
        %8126 = vmatmul.f32.gmra.mxu0 %v8012
        %v8127 = vpop.f32.mrf.mxu0
        %v8128 = vadd.f32 0.0, %v8127
        %8129 = vmatmul.f32.gmra.mxu0 %v8015
        %v8130 = vpop.f32.mrf.mxu0
        %v8131 = vadd.f32 0.0, %v8130
        %8132 = vmatmul.f32.gmra.mxu0 %v8018
        %v8133 = vpop.f32.mrf.mxu0
        %v8134 = vadd.f32 0.0, %v8133
        %8135 = vmatmul.f32.gmra.mxu0 %v8021
        %v8136 = vpop.f32.mrf.mxu0
        %v8137 = vadd.f32 0.0, %v8136
        %8138 = vmatmul.f32.gmra.mxu0 %v8024
        %v8139 = vpop.f32.mrf.mxu0
        %v8140 = vadd.f32 0.0, %v8139
        %8141 = vmatmul.f32.gmra.mxu0 %v8027
        %v8142 = vpop.f32.mrf.mxu0
        %v8143 = vadd.f32 0.0, %v8142
        %8144 = vmatmul.f32.gmra.mxu0 %v8030
        %v8145 = vpop.f32.mrf.mxu0
        %v8146 = vadd.f32 0.0, %v8145
        %8147 = vmatmul.f32.gmra.mxu0 %v8033
        %v8148 = vpop.f32.mrf.mxu0
        %v8149 = vadd.f32 0.0, %v8148
        %8150 = vmatmul.f32.gmra.mxu0 %v8036
        %v8151 = vpop.f32.mrf.mxu0
        %v8152 = vadd.f32 0.0, %v8151
        %8153 = vmatmul.f32.gmra.mxu0 %v8039
        %v8154 = vpop.f32.mrf.mxu0
        %v8155 = vadd.f32 0.0, %v8154
        %8156 = vdwg.mxu0
        %v8157 = vadd.f32 %v7879, %v8062
        %v8158 = vadd.f32 %v7880, %v8065
        %v8159 = vadd.f32 %v7881, %v8068
        %v8160 = vadd.f32 %v7882, %v8071
        %v8161 = vadd.f32 %v7883, %v8074
        %v8162 = vadd.f32 %v7884, %v8077
        %v8163 = vadd.f32 %v7885, %v8080
        %v8164 = vadd.f32 %v7886, %v8083
        %v8165 = vadd.f32 %v7887, %v8086
        %v8166 = vadd.f32 %v7888, %v8089
        %v8167 = vadd.f32 %v7889, %v8092
        %v8168 = vadd.f32 %v7890, %v8095
        %v8169 = vadd.f32 %v7891, %v8098
        %v8170 = vadd.f32 %v7892, %v8101
        %v8171 = vadd.f32 %v7893, %v8104
        %v8172 = vadd.f32 %v7894, %v8107
        %v8173 = vadd.f32 %v7895, %v8110
        %v8174 = vadd.f32 %v7896, %v8113
        %v8175 = vadd.f32 %v7897, %v8116
        %v8176 = vadd.f32 %v7898, %v8119
        %v8177 = vadd.f32 %v7899, %v8122
        %v8178 = vadd.f32 %v7900, %v8125
        %v8179 = vadd.f32 %v7901, %v8128
        %v8180 = vadd.f32 %v7902, %v8131
        %v8181 = vadd.f32 %v7903, %v8134
        %v8182 = vadd.f32 %v7904, %v8137
        %v8183 = vadd.f32 %v7905, %v8140
        %v8184 = vadd.f32 %v7906, %v8143
        %v8185 = vadd.f32 %v7907, %v8146
        %v8186 = vadd.f32 %v7908, %v8149
        %v8187 = vadd.f32 %v7909, %v8152
        %v8188 = vadd.f32 %v7910, %v8155
        %v8189 = vld [vmem:[%s7632 + $0x2] sm:$0xff]
        %v8190 = vld [vmem:[%s7632 + $0xa] sm:$0xff]
        %v8191 = vld [vmem:[%s7632 + $0x1a] sm:$0xff]
        %v8192 = vld [vmem:[%s7632 + $0x22] sm:$0xff]
        %v8193 = vld [vmem:[%s7632 + $0x32] sm:$0xff]
        %v8194 = vld [vmem:[%s7632 + $0x3a] sm:$0xff]
        %v8195 = vld [vmem:[%s7632 + $0x4a] sm:$0xff]
        %v8196 = vld [vmem:[%s7632 + $0x52] sm:$0xff]
        %v8197 = vld [vmem:[%s7632 + $0x62] sm:$0xff]
        %v8198 = vld [vmem:[%s7632 + $0x6a] sm:$0xff]
        %v8199 = vld [vmem:[%s7632 + $0x7a] sm:$0xff]
        %v8200 = vld [vmem:[%s7632 + $0x82] sm:$0xff]
        %v8201 = vld [vmem:[%s7632 + $0x92] sm:$0xff]
        %v8202 = vld [vmem:[%s7632 + $0x9a] sm:$0xff]
        %v8203 = vld [vmem:[%s7632 + $0xaa] sm:$0xff]
        %v8204 = vld [vmem:[%s7632 + $0xb2] sm:$0xff]
        %v8205 = vld [vmem:[%s7632 + $0xc2] sm:$0xff]
        %v8206 = vld [vmem:[%s7632 + $0xca] sm:$0xff]
        %v8207 = vld [vmem:[%s7632 + $0xda] sm:$0xff]
        %v8208 = vld [vmem:[%s7632 + $0xe2] sm:$0xff]
        %v8209 = vld [vmem:[%s7632 + $0xf2] sm:$0xff]
        %v8210 = vld [vmem:[%s7632 + $0xfa] sm:$0xff]
        %v8211 = vld [vmem:[%s7632 + $0x10a] sm:$0xff]
        %v8212 = vld [vmem:[%s7632 + $0x112] sm:$0xff]
        %v8213 = vld [vmem:[%s7632 + $0x122] sm:$0xff]
        %v8214 = vld [vmem:[%s7632 + $0x12a] sm:$0xff]
        %v8215 = vld [vmem:[%s7632 + $0x13a] sm:$0xff]
        %v8216 = vld [vmem:[%s7632 + $0x142] sm:$0xff]
        %v8217 = vld [vmem:[%s7632 + $0x152] sm:$0xff]
        %v8218 = vld [vmem:[%s7632 + $0x15a] sm:$0xff]
        %v8219 = vld [vmem:[%s7632 + $0x16a] sm:$0xff]
        %v8220 = vld [vmem:[%s7632 + $0x172] sm:$0xff]
        %s8221 = scalar_lea.vmem %s5, 68
        %v8222 = vld [vmem:[%s8221] sm:$0xf]
        %v8224 = vsel %vm368, %v8189, 0
        %v8227 = vsel %vm368, %v8190, 0
        %v8230 = vsel %vm368, %v8191, 0
        %v8233 = vsel %vm368, %v8192, 0
        %v8236 = vsel %vm368, %v8193, 0
        %v8239 = vsel %vm368, %v8194, 0
        %v8242 = vsel %vm368, %v8195, 0
        %v8245 = vsel %vm368, %v8196, 0
        %v8248 = vsel %vm368, %v8197, 0
        %v8251 = vsel %vm368, %v8198, 0
        %v8254 = vsel %vm368, %v8199, 0
        %v8257 = vsel %vm368, %v8200, 0
        %v8260 = vsel %vm368, %v8201, 0
        %v8263 = vsel %vm368, %v8202, 0
        %v8266 = vsel %vm368, %v8203, 0
        %v8269 = vsel %vm368, %v8204, 0
        %v8272 = vsel %vm368, %v8205, 0
        %v8275 = vsel %vm368, %v8206, 0
        %v8278 = vsel %vm368, %v8207, 0
        %v8281 = vsel %vm368, %v8208, 0
        %v8284 = vsel %vm368, %v8209, 0
        %v8287 = vsel %vm368, %v8210, 0
        %v8290 = vsel %vm368, %v8211, 0
        %v8293 = vsel %vm368, %v8212, 0
        %v8296 = vsel %vm368, %v8213, 0
        %v8299 = vsel %vm368, %v8214, 0
        %v8302 = vsel %vm368, %v8215, 0
        %v8305 = vsel %vm368, %v8216, 0
        %v8308 = vsel %vm368, %v8217, 0
        %v8311 = vsel %vm368, %v8218, 0
        %v8314 = vsel %vm368, %v8219, 0
        %v8317 = vsel %vm368, %v8220, 0
        %v8320 = vsel %vm465, %v8222, 0
        %8322 = vmatpush.msra.mxu0 0.0
        %8323 = vmatpush.msra.mxu0 0.0
        %8324 = vmatpush.msra.mxu0 0.0
        %8325 = vmatpush.msra.mxu0 0.0
        %8326 = vmatpush.msra.mxu0 0.0
        %8327 = vmatpush.msra.mxu0 0.0
        %8328 = vmatpush.msra.mxu0 0.0
        %8329 = vmatpush.msra.mxu0 0.0
        %8330 = vmatpush.msra.mxu0 0.0
        %8331 = vmatpush.msra.mxu0 0.0
        %8332 = vmatpush.msra.mxu0 0.0
        %8333 = vmatpush.msra.mxu0 0.0
        %8334 = vmatpush.msra.mxu0 0.0
        %8335 = vmatpush.msra.mxu0 0.0
        %8336 = vmatpush.msra.mxu0 0.0
        %8337 = vmatpush.msra.mxu0 %v8320
        %8338 = vmatmul.f32.gmra.mxu0 %v8224
        %v8339 = vpop.f32.mrf.mxu0
        %v8340 = vadd.f32 0.0, %v8339
        %8341 = vmatmul.f32.gmra.mxu0 %v8227
        %v8342 = vpop.f32.mrf.mxu0
        %v8343 = vadd.f32 0.0, %v8342
        %8344 = vmatmul.f32.gmra.mxu0 %v8230
        %v8345 = vpop.f32.mrf.mxu0
        %v8346 = vadd.f32 0.0, %v8345
        %8347 = vmatmul.f32.gmra.mxu0 %v8233
        %v8348 = vpop.f32.mrf.mxu0
        %v8349 = vadd.f32 0.0, %v8348
        %8350 = vmatmul.f32.gmra.mxu0 %v8236
        %v8351 = vpop.f32.mrf.mxu0
        %v8352 = vadd.f32 0.0, %v8351
        %8353 = vmatmul.f32.gmra.mxu0 %v8239
        %v8354 = vpop.f32.mrf.mxu0
        %v8355 = vadd.f32 0.0, %v8354
        %8356 = vmatmul.f32.gmra.mxu0 %v8242
        %v8357 = vpop.f32.mrf.mxu0
        %v8358 = vadd.f32 0.0, %v8357
        %8359 = vmatmul.f32.gmra.mxu0 %v8245
        %v8360 = vpop.f32.mrf.mxu0
        %v8361 = vadd.f32 0.0, %v8360
        %8362 = vmatmul.f32.gmra.mxu0 %v8248
        %v8363 = vpop.f32.mrf.mxu0
        %v8364 = vadd.f32 0.0, %v8363
        %8365 = vmatmul.f32.gmra.mxu0 %v8251
        %v8366 = vpop.f32.mrf.mxu0
        %v8367 = vadd.f32 0.0, %v8366
        %8368 = vmatmul.f32.gmra.mxu0 %v8254
        %v8369 = vpop.f32.mrf.mxu0
        %v8370 = vadd.f32 0.0, %v8369
        %8371 = vmatmul.f32.gmra.mxu0 %v8257
        %v8372 = vpop.f32.mrf.mxu0
        %v8373 = vadd.f32 0.0, %v8372
        %8374 = vmatmul.f32.gmra.mxu0 %v8260
        %v8375 = vpop.f32.mrf.mxu0
        %v8376 = vadd.f32 0.0, %v8375
        %8377 = vmatmul.f32.gmra.mxu0 %v8263
        %v8378 = vpop.f32.mrf.mxu0
        %v8379 = vadd.f32 0.0, %v8378
        %8380 = vmatmul.f32.gmra.mxu0 %v8266
        %v8381 = vpop.f32.mrf.mxu0
        %v8382 = vadd.f32 0.0, %v8381
        %8383 = vmatmul.f32.gmra.mxu0 %v8269
        %v8384 = vpop.f32.mrf.mxu0
        %v8385 = vadd.f32 0.0, %v8384
        %8386 = vmatmul.f32.gmra.mxu0 %v8272
        %v8387 = vpop.f32.mrf.mxu0
        %v8388 = vadd.f32 0.0, %v8387
        %8389 = vmatmul.f32.gmra.mxu0 %v8275
        %v8390 = vpop.f32.mrf.mxu0
        %v8391 = vadd.f32 0.0, %v8390
        %8392 = vmatmul.f32.gmra.mxu0 %v8278
        %v8393 = vpop.f32.mrf.mxu0
        %v8394 = vadd.f32 0.0, %v8393
        %8395 = vmatmul.f32.gmra.mxu0 %v8281
        %v8396 = vpop.f32.mrf.mxu0
        %v8397 = vadd.f32 0.0, %v8396
        %8398 = vmatmul.f32.gmra.mxu0 %v8284
        %v8399 = vpop.f32.mrf.mxu0
        %v8400 = vadd.f32 0.0, %v8399
        %8401 = vmatmul.f32.gmra.mxu0 %v8287
        %v8402 = vpop.f32.mrf.mxu0
        %v8403 = vadd.f32 0.0, %v8402
        %8404 = vmatmul.f32.gmra.mxu0 %v8290
        %v8405 = vpop.f32.mrf.mxu0
        %v8406 = vadd.f32 0.0, %v8405
        %8407 = vmatmul.f32.gmra.mxu0 %v8293
        %v8408 = vpop.f32.mrf.mxu0
        %v8409 = vadd.f32 0.0, %v8408
        %8410 = vmatmul.f32.gmra.mxu0 %v8296
        %v8411 = vpop.f32.mrf.mxu0
        %v8412 = vadd.f32 0.0, %v8411
        %8413 = vmatmul.f32.gmra.mxu0 %v8299
        %v8414 = vpop.f32.mrf.mxu0
        %v8415 = vadd.f32 0.0, %v8414
        %8416 = vmatmul.f32.gmra.mxu0 %v8302
        %v8417 = vpop.f32.mrf.mxu0
        %v8418 = vadd.f32 0.0, %v8417
        %8419 = vmatmul.f32.gmra.mxu0 %v8305
        %v8420 = vpop.f32.mrf.mxu0
        %v8421 = vadd.f32 0.0, %v8420
        %8422 = vmatmul.f32.gmra.mxu0 %v8308
        %v8423 = vpop.f32.mrf.mxu0
        %v8424 = vadd.f32 0.0, %v8423
        %8425 = vmatmul.f32.gmra.mxu0 %v8311
        %v8426 = vpop.f32.mrf.mxu0
        %v8427 = vadd.f32 0.0, %v8426
        %8428 = vmatmul.f32.gmra.mxu0 %v8314
        %v8429 = vpop.f32.mrf.mxu0
        %v8430 = vadd.f32 0.0, %v8429
        %8431 = vmatmul.f32.gmra.mxu0 %v8317
        %v8432 = vpop.f32.mrf.mxu0
        %v8433 = vadd.f32 0.0, %v8432
        %8434 = vdwg.mxu0
        %v8435 = vadd.f32 %v8157, %v8340
        %v8436 = vadd.f32 %v8158, %v8343
        %v8437 = vadd.f32 %v8159, %v8346
        %v8438 = vadd.f32 %v8160, %v8349
        %v8439 = vadd.f32 %v8161, %v8352
        %v8440 = vadd.f32 %v8162, %v8355
        %v8441 = vadd.f32 %v8163, %v8358
        %v8442 = vadd.f32 %v8164, %v8361
        %v8443 = vadd.f32 %v8165, %v8364
        %v8444 = vadd.f32 %v8166, %v8367
        %v8445 = vadd.f32 %v8167, %v8370
        %v8446 = vadd.f32 %v8168, %v8373
        %v8447 = vadd.f32 %v8169, %v8376
        %v8448 = vadd.f32 %v8170, %v8379
        %v8449 = vadd.f32 %v8171, %v8382
        %v8450 = vadd.f32 %v8172, %v8385
        %v8451 = vadd.f32 %v8173, %v8388
        %v8452 = vadd.f32 %v8174, %v8391
        %v8453 = vadd.f32 %v8175, %v8394
        %v8454 = vadd.f32 %v8176, %v8397
        %v8455 = vadd.f32 %v8177, %v8400
        %v8456 = vadd.f32 %v8178, %v8403
        %v8457 = vadd.f32 %v8179, %v8406
        %v8458 = vadd.f32 %v8180, %v8409
        %v8459 = vadd.f32 %v8181, %v8412
        %v8460 = vadd.f32 %v8182, %v8415
        %v8461 = vadd.f32 %v8183, %v8418
        %v8462 = vadd.f32 %v8184, %v8421
        %v8463 = vadd.f32 %v8185, %v8424
        %v8464 = vadd.f32 %v8186, %v8427
        %v8465 = vadd.f32 %v8187, %v8430
        %v8466 = vadd.f32 %v8188, %v8433
        %v8467 = vld [vmem:[%s7632 + $0x3] sm:$0xff]
        %v8468 = vld [vmem:[%s7632 + $0xb] sm:$0xff]
        %v8469 = vld [vmem:[%s7632 + $0x1b] sm:$0xff]
        %v8470 = vld [vmem:[%s7632 + $0x23] sm:$0xff]
        %v8471 = vld [vmem:[%s7632 + $0x33] sm:$0xff]
        %v8472 = vld [vmem:[%s7632 + $0x3b] sm:$0xff]
        %v8473 = vld [vmem:[%s7632 + $0x4b] sm:$0xff]
        %v8474 = vld [vmem:[%s7632 + $0x53] sm:$0xff]
        %v8475 = vld [vmem:[%s7632 + $0x63] sm:$0xff]
        %v8476 = vld [vmem:[%s7632 + $0x6b] sm:$0xff]
        %v8477 = vld [vmem:[%s7632 + $0x7b] sm:$0xff]
        %v8478 = vld [vmem:[%s7632 + $0x83] sm:$0xff]
        %v8479 = vld [vmem:[%s7632 + $0x93] sm:$0xff]
        %v8480 = vld [vmem:[%s7632 + $0x9b] sm:$0xff]
        %v8481 = vld [vmem:[%s7632 + $0xab] sm:$0xff]
        %v8482 = vld [vmem:[%s7632 + $0xb3] sm:$0xff]
        %v8483 = vld [vmem:[%s7632 + $0xc3] sm:$0xff]
        %v8484 = vld [vmem:[%s7632 + $0xcb] sm:$0xff]
        %v8485 = vld [vmem:[%s7632 + $0xdb] sm:$0xff]
        %v8486 = vld [vmem:[%s7632 + $0xe3] sm:$0xff]
        %v8487 = vld [vmem:[%s7632 + $0xf3] sm:$0xff]
        %v8488 = vld [vmem:[%s7632 + $0xfb] sm:$0xff]
        %v8489 = vld [vmem:[%s7632 + $0x10b] sm:$0xff]
        %v8490 = vld [vmem:[%s7632 + $0x113] sm:$0xff]
        %v8491 = vld [vmem:[%s7632 + $0x123] sm:$0xff]
        %v8492 = vld [vmem:[%s7632 + $0x12b] sm:$0xff]
        %v8493 = vld [vmem:[%s7632 + $0x13b] sm:$0xff]
        %v8494 = vld [vmem:[%s7632 + $0x143] sm:$0xff]
        %v8495 = vld [vmem:[%s7632 + $0x153] sm:$0xff]
        %v8496 = vld [vmem:[%s7632 + $0x15b] sm:$0xff]
        %v8497 = vld [vmem:[%s7632 + $0x16b] sm:$0xff]
        %v8498 = vld [vmem:[%s7632 + $0x173] sm:$0xff]
        %s8499 = scalar_lea.vmem %s5, 72
        %v8500 = vld [vmem:[%s8499] sm:$0xf]
        %v8502 = vsel %vm368, %v8467, 0
        %v8505 = vsel %vm368, %v8468, 0
        %v8508 = vsel %vm368, %v8469, 0
        %v8511 = vsel %vm368, %v8470, 0
        %v8514 = vsel %vm368, %v8471, 0
        %v8517 = vsel %vm368, %v8472, 0
        %v8520 = vsel %vm368, %v8473, 0
        %v8523 = vsel %vm368, %v8474, 0
        %v8526 = vsel %vm368, %v8475, 0
        %v8529 = vsel %vm368, %v8476, 0
        %v8532 = vsel %vm368, %v8477, 0
        %v8535 = vsel %vm368, %v8478, 0
        %v8538 = vsel %vm368, %v8479, 0
        %v8541 = vsel %vm368, %v8480, 0
        %v8544 = vsel %vm368, %v8481, 0
        %v8547 = vsel %vm368, %v8482, 0
        %v8550 = vsel %vm368, %v8483, 0
        %v8553 = vsel %vm368, %v8484, 0
        %v8556 = vsel %vm368, %v8485, 0
        %v8559 = vsel %vm368, %v8486, 0
        %v8562 = vsel %vm368, %v8487, 0
        %v8565 = vsel %vm368, %v8488, 0
        %v8568 = vsel %vm368, %v8489, 0
        %v8571 = vsel %vm368, %v8490, 0
        %v8574 = vsel %vm368, %v8491, 0
        %v8577 = vsel %vm368, %v8492, 0
        %v8580 = vsel %vm368, %v8493, 0
        %v8583 = vsel %vm368, %v8494, 0
        %v8586 = vsel %vm368, %v8495, 0
        %v8589 = vsel %vm368, %v8496, 0
        %v8592 = vsel %vm368, %v8497, 0
        %v8595 = vsel %vm368, %v8498, 0
        %v8598 = vsel %vm465, %v8500, 0
        %8600 = vmatpush.msra.mxu0 0.0
        %8601 = vmatpush.msra.mxu0 0.0
        %8602 = vmatpush.msra.mxu0 0.0
        %8603 = vmatpush.msra.mxu0 0.0
        %8604 = vmatpush.msra.mxu0 0.0
        %8605 = vmatpush.msra.mxu0 0.0
        %8606 = vmatpush.msra.mxu0 0.0
        %8607 = vmatpush.msra.mxu0 0.0
        %8608 = vmatpush.msra.mxu0 0.0
        %8609 = vmatpush.msra.mxu0 0.0
        %8610 = vmatpush.msra.mxu0 0.0
        %8611 = vmatpush.msra.mxu0 0.0
        %8612 = vmatpush.msra.mxu0 0.0
        %8613 = vmatpush.msra.mxu0 0.0
        %8614 = vmatpush.msra.mxu0 0.0
        %8615 = vmatpush.msra.mxu0 %v8598
        %8616 = vmatmul.f32.gmra.mxu0 %v8502
        %v8617 = vpop.f32.mrf.mxu0
        %v8618 = vadd.f32 0.0, %v8617
        %8619 = vmatmul.f32.gmra.mxu0 %v8505
        %v8620 = vpop.f32.mrf.mxu0
        %v8621 = vadd.f32 0.0, %v8620
        %8622 = vmatmul.f32.gmra.mxu0 %v8508
        %v8623 = vpop.f32.mrf.mxu0
        %v8624 = vadd.f32 0.0, %v8623
        %8625 = vmatmul.f32.gmra.mxu0 %v8511
        %v8626 = vpop.f32.mrf.mxu0
        %v8627 = vadd.f32 0.0, %v8626
        %8628 = vmatmul.f32.gmra.mxu0 %v8514
        %v8629 = vpop.f32.mrf.mxu0
        %v8630 = vadd.f32 0.0, %v8629
        %8631 = vmatmul.f32.gmra.mxu0 %v8517
        %v8632 = vpop.f32.mrf.mxu0
        %v8633 = vadd.f32 0.0, %v8632
        %8634 = vmatmul.f32.gmra.mxu0 %v8520
        %v8635 = vpop.f32.mrf.mxu0
        %v8636 = vadd.f32 0.0, %v8635
        %8637 = vmatmul.f32.gmra.mxu0 %v8523
        %v8638 = vpop.f32.mrf.mxu0
        %v8639 = vadd.f32 0.0, %v8638
        %8640 = vmatmul.f32.gmra.mxu0 %v8526
        %v8641 = vpop.f32.mrf.mxu0
        %v8642 = vadd.f32 0.0, %v8641
        %8643 = vmatmul.f32.gmra.mxu0 %v8529
        %v8644 = vpop.f32.mrf.mxu0
        %v8645 = vadd.f32 0.0, %v8644
        %8646 = vmatmul.f32.gmra.mxu0 %v8532
        %v8647 = vpop.f32.mrf.mxu0
        %v8648 = vadd.f32 0.0, %v8647
        %8649 = vmatmul.f32.gmra.mxu0 %v8535
        %v8650 = vpop.f32.mrf.mxu0
        %v8651 = vadd.f32 0.0, %v8650
        %8652 = vmatmul.f32.gmra.mxu0 %v8538
        %v8653 = vpop.f32.mrf.mxu0
        %v8654 = vadd.f32 0.0, %v8653
        %8655 = vmatmul.f32.gmra.mxu0 %v8541
        %v8656 = vpop.f32.mrf.mxu0
        %v8657 = vadd.f32 0.0, %v8656
        %8658 = vmatmul.f32.gmra.mxu0 %v8544
        %v8659 = vpop.f32.mrf.mxu0
        %v8660 = vadd.f32 0.0, %v8659
        %8661 = vmatmul.f32.gmra.mxu0 %v8547
        %v8662 = vpop.f32.mrf.mxu0
        %v8663 = vadd.f32 0.0, %v8662
        %8664 = vmatmul.f32.gmra.mxu0 %v8550
        %v8665 = vpop.f32.mrf.mxu0
        %v8666 = vadd.f32 0.0, %v8665
        %8667 = vmatmul.f32.gmra.mxu0 %v8553
        %v8668 = vpop.f32.mrf.mxu0
        %v8669 = vadd.f32 0.0, %v8668
        %8670 = vmatmul.f32.gmra.mxu0 %v8556
        %v8671 = vpop.f32.mrf.mxu0
        %v8672 = vadd.f32 0.0, %v8671
        %8673 = vmatmul.f32.gmra.mxu0 %v8559
        %v8674 = vpop.f32.mrf.mxu0
        %v8675 = vadd.f32 0.0, %v8674
        %8676 = vmatmul.f32.gmra.mxu0 %v8562
        %v8677 = vpop.f32.mrf.mxu0
        %v8678 = vadd.f32 0.0, %v8677
        %8679 = vmatmul.f32.gmra.mxu0 %v8565
        %v8680 = vpop.f32.mrf.mxu0
        %v8681 = vadd.f32 0.0, %v8680
        %8682 = vmatmul.f32.gmra.mxu0 %v8568
        %v8683 = vpop.f32.mrf.mxu0
        %v8684 = vadd.f32 0.0, %v8683
        %8685 = vmatmul.f32.gmra.mxu0 %v8571
        %v8686 = vpop.f32.mrf.mxu0
        %v8687 = vadd.f32 0.0, %v8686
        %8688 = vmatmul.f32.gmra.mxu0 %v8574
        %v8689 = vpop.f32.mrf.mxu0
        %v8690 = vadd.f32 0.0, %v8689
        %8691 = vmatmul.f32.gmra.mxu0 %v8577
        %v8692 = vpop.f32.mrf.mxu0
        %v8693 = vadd.f32 0.0, %v8692
        %8694 = vmatmul.f32.gmra.mxu0 %v8580
        %v8695 = vpop.f32.mrf.mxu0
        %v8696 = vadd.f32 0.0, %v8695
        %8697 = vmatmul.f32.gmra.mxu0 %v8583
        %v8698 = vpop.f32.mrf.mxu0
        %v8699 = vadd.f32 0.0, %v8698
        %8700 = vmatmul.f32.gmra.mxu0 %v8586
        %v8701 = vpop.f32.mrf.mxu0
        %v8702 = vadd.f32 0.0, %v8701
        %8703 = vmatmul.f32.gmra.mxu0 %v8589
        %v8704 = vpop.f32.mrf.mxu0
        %v8705 = vadd.f32 0.0, %v8704
        %8706 = vmatmul.f32.gmra.mxu0 %v8592
        %v8707 = vpop.f32.mrf.mxu0
        %v8708 = vadd.f32 0.0, %v8707
        %8709 = vmatmul.f32.gmra.mxu0 %v8595
        %v8710 = vpop.f32.mrf.mxu0
        %v8711 = vadd.f32 0.0, %v8710
        %8712 = vdwg.mxu0
        %v8713 = vadd.f32 %v8435, %v8618
        %v8714 = vadd.f32 %v8436, %v8621
        %v8715 = vadd.f32 %v8437, %v8624
        %v8716 = vadd.f32 %v8438, %v8627
        %v8717 = vadd.f32 %v8439, %v8630
        %v8718 = vadd.f32 %v8440, %v8633
        %v8719 = vadd.f32 %v8441, %v8636
        %v8720 = vadd.f32 %v8442, %v8639
        %v8721 = vadd.f32 %v8443, %v8642
        %v8722 = vadd.f32 %v8444, %v8645
        %v8723 = vadd.f32 %v8445, %v8648
        %v8724 = vadd.f32 %v8446, %v8651
        %v8725 = vadd.f32 %v8447, %v8654
        %v8726 = vadd.f32 %v8448, %v8657
        %v8727 = vadd.f32 %v8449, %v8660
        %v8728 = vadd.f32 %v8450, %v8663
        %v8729 = vadd.f32 %v8451, %v8666
        %v8730 = vadd.f32 %v8452, %v8669
        %v8731 = vadd.f32 %v8453, %v8672
        %v8732 = vadd.f32 %v8454, %v8675
        %v8733 = vadd.f32 %v8455, %v8678
        %v8734 = vadd.f32 %v8456, %v8681
        %v8735 = vadd.f32 %v8457, %v8684
        %v8736 = vadd.f32 %v8458, %v8687
        %v8737 = vadd.f32 %v8459, %v8690
        %v8738 = vadd.f32 %v8460, %v8693
        %v8739 = vadd.f32 %v8461, %v8696
        %v8740 = vadd.f32 %v8462, %v8699
        %v8741 = vadd.f32 %v8463, %v8702
        %v8742 = vadd.f32 %v8464, %v8705
        %v8743 = vadd.f32 %v8465, %v8708
        %v8744 = vadd.f32 %v8466, %v8711
        %v8745 = vld [vmem:[%s7632 + $0x4] sm:$0xff]
        %v8746 = vld [vmem:[%s7632 + $0xc] sm:$0xff]
        %v8747 = vld [vmem:[%s7632 + $0x1c] sm:$0xff]
        %v8748 = vld [vmem:[%s7632 + $0x24] sm:$0xff]
        %v8749 = vld [vmem:[%s7632 + $0x34] sm:$0xff]
        %v8750 = vld [vmem:[%s7632 + $0x3c] sm:$0xff]
        %v8751 = vld [vmem:[%s7632 + $0x4c] sm:$0xff]
        %v8752 = vld [vmem:[%s7632 + $0x54] sm:$0xff]
        %v8753 = vld [vmem:[%s7632 + $0x64] sm:$0xff]
        %v8754 = vld [vmem:[%s7632 + $0x6c] sm:$0xff]
        %v8755 = vld [vmem:[%s7632 + $0x7c] sm:$0xff]
        %v8756 = vld [vmem:[%s7632 + $0x84] sm:$0xff]
        %v8757 = vld [vmem:[%s7632 + $0x94] sm:$0xff]
        %v8758 = vld [vmem:[%s7632 + $0x9c] sm:$0xff]
        %v8759 = vld [vmem:[%s7632 + $0xac] sm:$0xff]
        %v8760 = vld [vmem:[%s7632 + $0xb4] sm:$0xff]
        %v8761 = vld [vmem:[%s7632 + $0xc4] sm:$0xff]
        %v8762 = vld [vmem:[%s7632 + $0xcc] sm:$0xff]
        %v8763 = vld [vmem:[%s7632 + $0xdc] sm:$0xff]
        %v8764 = vld [vmem:[%s7632 + $0xe4] sm:$0xff]
        %v8765 = vld [vmem:[%s7632 + $0xf4] sm:$0xff]
        %v8766 = vld [vmem:[%s7632 + $0xfc] sm:$0xff]
        %v8767 = vld [vmem:[%s7632 + $0x10c] sm:$0xff]
        %v8768 = vld [vmem:[%s7632 + $0x114] sm:$0xff]
        %v8769 = vld [vmem:[%s7632 + $0x124] sm:$0xff]
        %v8770 = vld [vmem:[%s7632 + $0x12c] sm:$0xff]
        %v8771 = vld [vmem:[%s7632 + $0x13c] sm:$0xff]
        %v8772 = vld [vmem:[%s7632 + $0x144] sm:$0xff]
        %v8773 = vld [vmem:[%s7632 + $0x154] sm:$0xff]
        %v8774 = vld [vmem:[%s7632 + $0x15c] sm:$0xff]
        %v8775 = vld [vmem:[%s7632 + $0x16c] sm:$0xff]
        %v8776 = vld [vmem:[%s7632 + $0x174] sm:$0xff]
        %s8777 = scalar_lea.vmem %s5, 76
        %v8778 = vld [vmem:[%s8777] sm:$0xf]
        %v8780 = vsel %vm368, %v8745, 0
        %v8783 = vsel %vm368, %v8746, 0
        %v8786 = vsel %vm368, %v8747, 0
        %v8789 = vsel %vm368, %v8748, 0
        %v8792 = vsel %vm368, %v8749, 0
        %v8795 = vsel %vm368, %v8750, 0
        %v8798 = vsel %vm368, %v8751, 0
        %v8801 = vsel %vm368, %v8752, 0
        %v8804 = vsel %vm368, %v8753, 0
        %v8807 = vsel %vm368, %v8754, 0
        %v8810 = vsel %vm368, %v8755, 0
        %v8813 = vsel %vm368, %v8756, 0
        %v8816 = vsel %vm368, %v8757, 0
        %v8819 = vsel %vm368, %v8758, 0
        %v8822 = vsel %vm368, %v8759, 0
        %v8825 = vsel %vm368, %v8760, 0
        %v8828 = vsel %vm368, %v8761, 0
        %v8831 = vsel %vm368, %v8762, 0
        %v8834 = vsel %vm368, %v8763, 0
        %v8837 = vsel %vm368, %v8764, 0
        %v8840 = vsel %vm368, %v8765, 0
        %v8843 = vsel %vm368, %v8766, 0
        %v8846 = vsel %vm368, %v8767, 0
        %v8849 = vsel %vm368, %v8768, 0
        %v8852 = vsel %vm368, %v8769, 0
        %v8855 = vsel %vm368, %v8770, 0
        %v8858 = vsel %vm368, %v8771, 0
        %v8861 = vsel %vm368, %v8772, 0
        %v8864 = vsel %vm368, %v8773, 0
        %v8867 = vsel %vm368, %v8774, 0
        %v8870 = vsel %vm368, %v8775, 0
        %v8873 = vsel %vm368, %v8776, 0
        %v8876 = vsel %vm465, %v8778, 0
        %8878 = vmatpush.msra.mxu0 0.0
        %8879 = vmatpush.msra.mxu0 0.0
        %8880 = vmatpush.msra.mxu0 0.0
        %8881 = vmatpush.msra.mxu0 0.0
        %8882 = vmatpush.msra.mxu0 0.0
        %8883 = vmatpush.msra.mxu0 0.0
        %8884 = vmatpush.msra.mxu0 0.0
        %8885 = vmatpush.msra.mxu0 0.0
        %8886 = vmatpush.msra.mxu0 0.0
        %8887 = vmatpush.msra.mxu0 0.0
        %8888 = vmatpush.msra.mxu0 0.0
        %8889 = vmatpush.msra.mxu0 0.0
        %8890 = vmatpush.msra.mxu0 0.0
        %8891 = vmatpush.msra.mxu0 0.0
        %8892 = vmatpush.msra.mxu0 0.0
        %8893 = vmatpush.msra.mxu0 %v8876
        %8894 = vmatmul.f32.gmra.mxu0 %v8780
        %v8895 = vpop.f32.mrf.mxu0
        %v8896 = vadd.f32 0.0, %v8895
        %8897 = vmatmul.f32.gmra.mxu0 %v8783
        %v8898 = vpop.f32.mrf.mxu0
        %v8899 = vadd.f32 0.0, %v8898
        %8900 = vmatmul.f32.gmra.mxu0 %v8786
        %v8901 = vpop.f32.mrf.mxu0
        %v8902 = vadd.f32 0.0, %v8901
        %8903 = vmatmul.f32.gmra.mxu0 %v8789
        %v8904 = vpop.f32.mrf.mxu0
        %v8905 = vadd.f32 0.0, %v8904
        %8906 = vmatmul.f32.gmra.mxu0 %v8792
        %v8907 = vpop.f32.mrf.mxu0
        %v8908 = vadd.f32 0.0, %v8907
        %8909 = vmatmul.f32.gmra.mxu0 %v8795
        %v8910 = vpop.f32.mrf.mxu0
        %v8911 = vadd.f32 0.0, %v8910
        %8912 = vmatmul.f32.gmra.mxu0 %v8798
        %v8913 = vpop.f32.mrf.mxu0
        %v8914 = vadd.f32 0.0, %v8913
        %8915 = vmatmul.f32.gmra.mxu0 %v8801
        %v8916 = vpop.f32.mrf.mxu0
        %v8917 = vadd.f32 0.0, %v8916
        %8918 = vmatmul.f32.gmra.mxu0 %v8804
        %v8919 = vpop.f32.mrf.mxu0
        %v8920 = vadd.f32 0.0, %v8919
        %8921 = vmatmul.f32.gmra.mxu0 %v8807
        %v8922 = vpop.f32.mrf.mxu0
        %v8923 = vadd.f32 0.0, %v8922
        %8924 = vmatmul.f32.gmra.mxu0 %v8810
        %v8925 = vpop.f32.mrf.mxu0
        %v8926 = vadd.f32 0.0, %v8925
        %8927 = vmatmul.f32.gmra.mxu0 %v8813
        %v8928 = vpop.f32.mrf.mxu0
        %v8929 = vadd.f32 0.0, %v8928
        %8930 = vmatmul.f32.gmra.mxu0 %v8816
        %v8931 = vpop.f32.mrf.mxu0
        %v8932 = vadd.f32 0.0, %v8931
        %8933 = vmatmul.f32.gmra.mxu0 %v8819
        %v8934 = vpop.f32.mrf.mxu0
        %v8935 = vadd.f32 0.0, %v8934
        %8936 = vmatmul.f32.gmra.mxu0 %v8822
        %v8937 = vpop.f32.mrf.mxu0
        %v8938 = vadd.f32 0.0, %v8937
        %8939 = vmatmul.f32.gmra.mxu0 %v8825
        %v8940 = vpop.f32.mrf.mxu0
        %v8941 = vadd.f32 0.0, %v8940
        %8942 = vmatmul.f32.gmra.mxu0 %v8828
        %v8943 = vpop.f32.mrf.mxu0
        %v8944 = vadd.f32 0.0, %v8943
        %8945 = vmatmul.f32.gmra.mxu0 %v8831
        %v8946 = vpop.f32.mrf.mxu0
        %v8947 = vadd.f32 0.0, %v8946
        %8948 = vmatmul.f32.gmra.mxu0 %v8834
        %v8949 = vpop.f32.mrf.mxu0
        %v8950 = vadd.f32 0.0, %v8949
        %8951 = vmatmul.f32.gmra.mxu0 %v8837
        %v8952 = vpop.f32.mrf.mxu0
        %v8953 = vadd.f32 0.0, %v8952
        %8954 = vmatmul.f32.gmra.mxu0 %v8840
        %v8955 = vpop.f32.mrf.mxu0
        %v8956 = vadd.f32 0.0, %v8955
        %8957 = vmatmul.f32.gmra.mxu0 %v8843
        %v8958 = vpop.f32.mrf.mxu0
        %v8959 = vadd.f32 0.0, %v8958
        %8960 = vmatmul.f32.gmra.mxu0 %v8846
        %v8961 = vpop.f32.mrf.mxu0
        %v8962 = vadd.f32 0.0, %v8961
        %8963 = vmatmul.f32.gmra.mxu0 %v8849
        %v8964 = vpop.f32.mrf.mxu0
        %v8965 = vadd.f32 0.0, %v8964
        %8966 = vmatmul.f32.gmra.mxu0 %v8852
        %v8967 = vpop.f32.mrf.mxu0
        %v8968 = vadd.f32 0.0, %v8967
        %8969 = vmatmul.f32.gmra.mxu0 %v8855
        %v8970 = vpop.f32.mrf.mxu0
        %v8971 = vadd.f32 0.0, %v8970
        %8972 = vmatmul.f32.gmra.mxu0 %v8858
        %v8973 = vpop.f32.mrf.mxu0
        %v8974 = vadd.f32 0.0, %v8973
        %8975 = vmatmul.f32.gmra.mxu0 %v8861
        %v8976 = vpop.f32.mrf.mxu0
        %v8977 = vadd.f32 0.0, %v8976
        %8978 = vmatmul.f32.gmra.mxu0 %v8864
        %v8979 = vpop.f32.mrf.mxu0
        %v8980 = vadd.f32 0.0, %v8979
        %8981 = vmatmul.f32.gmra.mxu0 %v8867
        %v8982 = vpop.f32.mrf.mxu0
        %v8983 = vadd.f32 0.0, %v8982
        %8984 = vmatmul.f32.gmra.mxu0 %v8870
        %v8985 = vpop.f32.mrf.mxu0
        %v8986 = vadd.f32 0.0, %v8985
        %8987 = vmatmul.f32.gmra.mxu0 %v8873
        %v8988 = vpop.f32.mrf.mxu0
        %v8989 = vadd.f32 0.0, %v8988
        %8990 = vdwg.mxu0
        %v8991 = vadd.f32 %v8713, %v8896
        %v8992 = vadd.f32 %v8714, %v8899
        %v8993 = vadd.f32 %v8715, %v8902
        %v8994 = vadd.f32 %v8716, %v8905
        %v8995 = vadd.f32 %v8717, %v8908
        %v8996 = vadd.f32 %v8718, %v8911
        %v8997 = vadd.f32 %v8719, %v8914
        %v8998 = vadd.f32 %v8720, %v8917
        %v8999 = vadd.f32 %v8721, %v8920
        %v9000 = vadd.f32 %v8722, %v8923
        %v9001 = vadd.f32 %v8723, %v8926
        %v9002 = vadd.f32 %v8724, %v8929
        %v9003 = vadd.f32 %v8725, %v8932
        %v9004 = vadd.f32 %v8726, %v8935
        %v9005 = vadd.f32 %v8727, %v8938
        %v9006 = vadd.f32 %v8728, %v8941
        %v9007 = vadd.f32 %v8729, %v8944
        %v9008 = vadd.f32 %v8730, %v8947
        %v9009 = vadd.f32 %v8731, %v8950
        %v9010 = vadd.f32 %v8732, %v8953
        %v9011 = vadd.f32 %v8733, %v8956
        %v9012 = vadd.f32 %v8734, %v8959
        %v9013 = vadd.f32 %v8735, %v8962
        %v9014 = vadd.f32 %v8736, %v8965
        %v9015 = vadd.f32 %v8737, %v8968
        %v9016 = vadd.f32 %v8738, %v8971
        %v9017 = vadd.f32 %v8739, %v8974
        %v9018 = vadd.f32 %v8740, %v8977
        %v9019 = vadd.f32 %v8741, %v8980
        %v9020 = vadd.f32 %v8742, %v8983
        %v9021 = vadd.f32 %v8743, %v8986
        %v9022 = vadd.f32 %v8744, %v8989
        %s9023 = scalar_lea.vmem [#allocation3], 96
        %v9024 = vld [vmem:[%s9023] sm:$0xff]
        %v9025 = vld [vmem:[%s9023 + $0x8] sm:$0xff]
        %v9026 = vld [vmem:[%s9023 + $0x18] sm:$0xff]
        %v9027 = vld [vmem:[%s9023 + $0x20] sm:$0xff]
        %v9028 = vld [vmem:[%s9023 + $0x30] sm:$0xff]
        %v9029 = vld [vmem:[%s9023 + $0x38] sm:$0xff]
        %v9030 = vld [vmem:[%s9023 + $0x48] sm:$0xff]
        %v9031 = vld [vmem:[%s9023 + $0x50] sm:$0xff]
        %v9032 = vld [vmem:[%s9023 + $0x60] sm:$0xff]
        %v9033 = vld [vmem:[%s9023 + $0x68] sm:$0xff]
        %v9034 = vld [vmem:[%s9023 + $0x78] sm:$0xff]
        %v9035 = vld [vmem:[%s9023 + $0x80] sm:$0xff]
        %v9036 = vld [vmem:[%s9023 + $0x90] sm:$0xff]
        %v9037 = vld [vmem:[%s9023 + $0x98] sm:$0xff]
        %v9038 = vld [vmem:[%s9023 + $0xa8] sm:$0xff]
        %v9039 = vld [vmem:[%s9023 + $0xb0] sm:$0xff]
        %v9040 = vld [vmem:[%s9023 + $0xc0] sm:$0xff]
        %v9041 = vld [vmem:[%s9023 + $0xc8] sm:$0xff]
        %v9042 = vld [vmem:[%s9023 + $0xd8] sm:$0xff]
        %v9043 = vld [vmem:[%s9023 + $0xe0] sm:$0xff]
        %v9044 = vld [vmem:[%s9023 + $0xf0] sm:$0xff]
        %v9045 = vld [vmem:[%s9023 + $0xf8] sm:$0xff]
        %v9046 = vld [vmem:[%s9023 + $0x108] sm:$0xff]
        %v9047 = vld [vmem:[%s9023 + $0x110] sm:$0xff]
        %v9048 = vld [vmem:[%s9023 + $0x120] sm:$0xff]
        %v9049 = vld [vmem:[%s9023 + $0x128] sm:$0xff]
        %v9050 = vld [vmem:[%s9023 + $0x138] sm:$0xff]
        %v9051 = vld [vmem:[%s9023 + $0x140] sm:$0xff]
        %v9052 = vld [vmem:[%s9023 + $0x150] sm:$0xff]
        %v9053 = vld [vmem:[%s9023 + $0x158] sm:$0xff]
        %v9054 = vld [vmem:[%s9023 + $0x168] sm:$0xff]
        %v9055 = vld [vmem:[%s9023 + $0x170] sm:$0xff]
        %s9056 = scalar_lea.vmem %s5, 80
        %v9057 = vld [vmem:[%s9056] sm:$0xf]
        %v9059 = vsel %vm368, %v9024, 0
        %v9062 = vsel %vm368, %v9025, 0
        %v9065 = vsel %vm368, %v9026, 0
        %v9068 = vsel %vm368, %v9027, 0
        %v9071 = vsel %vm368, %v9028, 0
        %v9074 = vsel %vm368, %v9029, 0
        %v9077 = vsel %vm368, %v9030, 0
        %v9080 = vsel %vm368, %v9031, 0
        %v9083 = vsel %vm368, %v9032, 0
        %v9086 = vsel %vm368, %v9033, 0
        %v9089 = vsel %vm368, %v9034, 0
        %v9092 = vsel %vm368, %v9035, 0
        %v9095 = vsel %vm368, %v9036, 0
        %v9098 = vsel %vm368, %v9037, 0
        %v9101 = vsel %vm368, %v9038, 0
        %v9104 = vsel %vm368, %v9039, 0
        %v9107 = vsel %vm368, %v9040, 0
        %v9110 = vsel %vm368, %v9041, 0
        %v9113 = vsel %vm368, %v9042, 0
        %v9116 = vsel %vm368, %v9043, 0
        %v9119 = vsel %vm368, %v9044, 0
        %v9122 = vsel %vm368, %v9045, 0
        %v9125 = vsel %vm368, %v9046, 0
        %v9128 = vsel %vm368, %v9047, 0
        %v9131 = vsel %vm368, %v9048, 0
        %v9134 = vsel %vm368, %v9049, 0
        %v9137 = vsel %vm368, %v9050, 0
        %v9140 = vsel %vm368, %v9051, 0
        %v9143 = vsel %vm368, %v9052, 0
        %v9146 = vsel %vm368, %v9053, 0
        %v9149 = vsel %vm368, %v9054, 0
        %v9152 = vsel %vm368, %v9055, 0
        %v9155 = vsel %vm465, %v9057, 0
        %9157 = vmatpush.msra.mxu0 0.0
        %9158 = vmatpush.msra.mxu0 0.0
        %9159 = vmatpush.msra.mxu0 0.0
        %9160 = vmatpush.msra.mxu0 0.0
        %9161 = vmatpush.msra.mxu0 0.0
        %9162 = vmatpush.msra.mxu0 0.0
        %9163 = vmatpush.msra.mxu0 0.0
        %9164 = vmatpush.msra.mxu0 0.0
        %9165 = vmatpush.msra.mxu0 0.0
        %9166 = vmatpush.msra.mxu0 0.0
        %9167 = vmatpush.msra.mxu0 0.0
        %9168 = vmatpush.msra.mxu0 0.0
        %9169 = vmatpush.msra.mxu0 0.0
        %9170 = vmatpush.msra.mxu0 0.0
        %9171 = vmatpush.msra.mxu0 0.0
        %9172 = vmatpush.msra.mxu0 %v9155
        %9173 = vmatmul.f32.gmra.mxu0 %v9059
        %v9174 = vpop.f32.mrf.mxu0
        %v9175 = vadd.f32 0.0, %v9174
        %9176 = vmatmul.f32.gmra.mxu0 %v9062
        %v9177 = vpop.f32.mrf.mxu0
        %v9178 = vadd.f32 0.0, %v9177
        %9179 = vmatmul.f32.gmra.mxu0 %v9065
        %v9180 = vpop.f32.mrf.mxu0
        %v9181 = vadd.f32 0.0, %v9180
        %9182 = vmatmul.f32.gmra.mxu0 %v9068
        %v9183 = vpop.f32.mrf.mxu0
        %v9184 = vadd.f32 0.0, %v9183
        %9185 = vmatmul.f32.gmra.mxu0 %v9071
        %v9186 = vpop.f32.mrf.mxu0
        %v9187 = vadd.f32 0.0, %v9186
        %9188 = vmatmul.f32.gmra.mxu0 %v9074
        %v9189 = vpop.f32.mrf.mxu0
        %v9190 = vadd.f32 0.0, %v9189
        %9191 = vmatmul.f32.gmra.mxu0 %v9077
        %v9192 = vpop.f32.mrf.mxu0
        %v9193 = vadd.f32 0.0, %v9192
        %9194 = vmatmul.f32.gmra.mxu0 %v9080
        %v9195 = vpop.f32.mrf.mxu0
        %v9196 = vadd.f32 0.0, %v9195
        %9197 = vmatmul.f32.gmra.mxu0 %v9083
        %v9198 = vpop.f32.mrf.mxu0
        %v9199 = vadd.f32 0.0, %v9198
        %9200 = vmatmul.f32.gmra.mxu0 %v9086
        %v9201 = vpop.f32.mrf.mxu0
        %v9202 = vadd.f32 0.0, %v9201
        %9203 = vmatmul.f32.gmra.mxu0 %v9089
        %v9204 = vpop.f32.mrf.mxu0
        %v9205 = vadd.f32 0.0, %v9204
        %9206 = vmatmul.f32.gmra.mxu0 %v9092
        %v9207 = vpop.f32.mrf.mxu0
        %v9208 = vadd.f32 0.0, %v9207
        %9209 = vmatmul.f32.gmra.mxu0 %v9095
        %v9210 = vpop.f32.mrf.mxu0
        %v9211 = vadd.f32 0.0, %v9210
        %9212 = vmatmul.f32.gmra.mxu0 %v9098
        %v9213 = vpop.f32.mrf.mxu0
        %v9214 = vadd.f32 0.0, %v9213
        %9215 = vmatmul.f32.gmra.mxu0 %v9101
        %v9216 = vpop.f32.mrf.mxu0
        %v9217 = vadd.f32 0.0, %v9216
        %9218 = vmatmul.f32.gmra.mxu0 %v9104
        %v9219 = vpop.f32.mrf.mxu0
        %v9220 = vadd.f32 0.0, %v9219
        %9221 = vmatmul.f32.gmra.mxu0 %v9107
        %v9222 = vpop.f32.mrf.mxu0
        %v9223 = vadd.f32 0.0, %v9222
        %9224 = vmatmul.f32.gmra.mxu0 %v9110
        %v9225 = vpop.f32.mrf.mxu0
        %v9226 = vadd.f32 0.0, %v9225
        %9227 = vmatmul.f32.gmra.mxu0 %v9113
        %v9228 = vpop.f32.mrf.mxu0
        %v9229 = vadd.f32 0.0, %v9228
        %9230 = vmatmul.f32.gmra.mxu0 %v9116
        %v9231 = vpop.f32.mrf.mxu0
        %v9232 = vadd.f32 0.0, %v9231
        %9233 = vmatmul.f32.gmra.mxu0 %v9119
        %v9234 = vpop.f32.mrf.mxu0
        %v9235 = vadd.f32 0.0, %v9234
        %9236 = vmatmul.f32.gmra.mxu0 %v9122
        %v9237 = vpop.f32.mrf.mxu0
        %v9238 = vadd.f32 0.0, %v9237
        %9239 = vmatmul.f32.gmra.mxu0 %v9125
        %v9240 = vpop.f32.mrf.mxu0
        %v9241 = vadd.f32 0.0, %v9240
        %9242 = vmatmul.f32.gmra.mxu0 %v9128
        %v9243 = vpop.f32.mrf.mxu0
        %v9244 = vadd.f32 0.0, %v9243
        %9245 = vmatmul.f32.gmra.mxu0 %v9131
        %v9246 = vpop.f32.mrf.mxu0
        %v9247 = vadd.f32 0.0, %v9246
        %9248 = vmatmul.f32.gmra.mxu0 %v9134
        %v9249 = vpop.f32.mrf.mxu0
        %v9250 = vadd.f32 0.0, %v9249
        %9251 = vmatmul.f32.gmra.mxu0 %v9137
        %v9252 = vpop.f32.mrf.mxu0
        %v9253 = vadd.f32 0.0, %v9252
        %9254 = vmatmul.f32.gmra.mxu0 %v9140
        %v9255 = vpop.f32.mrf.mxu0
        %v9256 = vadd.f32 0.0, %v9255
        %9257 = vmatmul.f32.gmra.mxu0 %v9143
        %v9258 = vpop.f32.mrf.mxu0
        %v9259 = vadd.f32 0.0, %v9258
        %9260 = vmatmul.f32.gmra.mxu0 %v9146
        %v9261 = vpop.f32.mrf.mxu0
        %v9262 = vadd.f32 0.0, %v9261
        %9263 = vmatmul.f32.gmra.mxu0 %v9149
        %v9264 = vpop.f32.mrf.mxu0
        %v9265 = vadd.f32 0.0, %v9264
        %9266 = vmatmul.f32.gmra.mxu0 %v9152
        %v9267 = vpop.f32.mrf.mxu0
        %v9268 = vadd.f32 0.0, %v9267
        %9269 = vdwg.mxu0
        %v9270 = vadd.f32 %v8991, %v9175
        %v9271 = vadd.f32 %v8992, %v9178
        %v9272 = vadd.f32 %v8993, %v9181
        %v9273 = vadd.f32 %v8994, %v9184
        %v9274 = vadd.f32 %v8995, %v9187
        %v9275 = vadd.f32 %v8996, %v9190
        %v9276 = vadd.f32 %v8997, %v9193
        %v9277 = vadd.f32 %v8998, %v9196
        %v9278 = vadd.f32 %v8999, %v9199
        %v9279 = vadd.f32 %v9000, %v9202
        %v9280 = vadd.f32 %v9001, %v9205
        %v9281 = vadd.f32 %v9002, %v9208
        %v9282 = vadd.f32 %v9003, %v9211
        %v9283 = vadd.f32 %v9004, %v9214
        %v9284 = vadd.f32 %v9005, %v9217
        %v9285 = vadd.f32 %v9006, %v9220
        %v9286 = vadd.f32 %v9007, %v9223
        %v9287 = vadd.f32 %v9008, %v9226
        %v9288 = vadd.f32 %v9009, %v9229
        %v9289 = vadd.f32 %v9010, %v9232
        %v9290 = vadd.f32 %v9011, %v9235
        %v9291 = vadd.f32 %v9012, %v9238
        %v9292 = vadd.f32 %v9013, %v9241
        %v9293 = vadd.f32 %v9014, %v9244
        %v9294 = vadd.f32 %v9015, %v9247
        %v9295 = vadd.f32 %v9016, %v9250
        %v9296 = vadd.f32 %v9017, %v9253
        %v9297 = vadd.f32 %v9018, %v9256
        %v9298 = vadd.f32 %v9019, %v9259
        %v9299 = vadd.f32 %v9020, %v9262
        %v9300 = vadd.f32 %v9021, %v9265
        %v9301 = vadd.f32 %v9022, %v9268
        %v9302 = vld [vmem:[%s9023 + $0x1] sm:$0xff]
        %v9303 = vld [vmem:[%s9023 + $0x9] sm:$0xff]
        %v9304 = vld [vmem:[%s9023 + $0x19] sm:$0xff]
        %v9305 = vld [vmem:[%s9023 + $0x21] sm:$0xff]
        %v9306 = vld [vmem:[%s9023 + $0x31] sm:$0xff]
        %v9307 = vld [vmem:[%s9023 + $0x39] sm:$0xff]
        %v9308 = vld [vmem:[%s9023 + $0x49] sm:$0xff]
        %v9309 = vld [vmem:[%s9023 + $0x51] sm:$0xff]
        %v9310 = vld [vmem:[%s9023 + $0x61] sm:$0xff]
        %v9311 = vld [vmem:[%s9023 + $0x69] sm:$0xff]
        %v9312 = vld [vmem:[%s9023 + $0x79] sm:$0xff]
        %v9313 = vld [vmem:[%s9023 + $0x81] sm:$0xff]
        %v9314 = vld [vmem:[%s9023 + $0x91] sm:$0xff]
        %v9315 = vld [vmem:[%s9023 + $0x99] sm:$0xff]
        %v9316 = vld [vmem:[%s9023 + $0xa9] sm:$0xff]
        %v9317 = vld [vmem:[%s9023 + $0xb1] sm:$0xff]
        %v9318 = vld [vmem:[%s9023 + $0xc1] sm:$0xff]
        %v9319 = vld [vmem:[%s9023 + $0xc9] sm:$0xff]
        %v9320 = vld [vmem:[%s9023 + $0xd9] sm:$0xff]
        %v9321 = vld [vmem:[%s9023 + $0xe1] sm:$0xff]
        %v9322 = vld [vmem:[%s9023 + $0xf1] sm:$0xff]
        %v9323 = vld [vmem:[%s9023 + $0xf9] sm:$0xff]
        %v9324 = vld [vmem:[%s9023 + $0x109] sm:$0xff]
        %v9325 = vld [vmem:[%s9023 + $0x111] sm:$0xff]
        %v9326 = vld [vmem:[%s9023 + $0x121] sm:$0xff]
        %v9327 = vld [vmem:[%s9023 + $0x129] sm:$0xff]
        %v9328 = vld [vmem:[%s9023 + $0x139] sm:$0xff]
        %v9329 = vld [vmem:[%s9023 + $0x141] sm:$0xff]
        %v9330 = vld [vmem:[%s9023 + $0x151] sm:$0xff]
        %v9331 = vld [vmem:[%s9023 + $0x159] sm:$0xff]
        %v9332 = vld [vmem:[%s9023 + $0x169] sm:$0xff]
        %v9333 = vld [vmem:[%s9023 + $0x171] sm:$0xff]
        %s9334 = scalar_lea.vmem %s5, 84
        %v9335 = vld [vmem:[%s9334] sm:$0xf]
        %v9337 = vsel %vm368, %v9302, 0
        %v9340 = vsel %vm368, %v9303, 0
        %v9343 = vsel %vm368, %v9304, 0
        %v9346 = vsel %vm368, %v9305, 0
        %v9349 = vsel %vm368, %v9306, 0
        %v9352 = vsel %vm368, %v9307, 0
        %v9355 = vsel %vm368, %v9308, 0
        %v9358 = vsel %vm368, %v9309, 0
        %v9361 = vsel %vm368, %v9310, 0
        %v9364 = vsel %vm368, %v9311, 0
        %v9367 = vsel %vm368, %v9312, 0
        %v9370 = vsel %vm368, %v9313, 0
        %v9373 = vsel %vm368, %v9314, 0
        %v9376 = vsel %vm368, %v9315, 0
        %v9379 = vsel %vm368, %v9316, 0
        %v9382 = vsel %vm368, %v9317, 0
        %v9385 = vsel %vm368, %v9318, 0
        %v9388 = vsel %vm368, %v9319, 0
        %v9391 = vsel %vm368, %v9320, 0
        %v9394 = vsel %vm368, %v9321, 0
        %v9397 = vsel %vm368, %v9322, 0
        %v9400 = vsel %vm368, %v9323, 0
        %v9403 = vsel %vm368, %v9324, 0
        %v9406 = vsel %vm368, %v9325, 0
        %v9409 = vsel %vm368, %v9326, 0
        %v9412 = vsel %vm368, %v9327, 0
        %v9415 = vsel %vm368, %v9328, 0
        %v9418 = vsel %vm368, %v9329, 0
        %v9421 = vsel %vm368, %v9330, 0
        %v9424 = vsel %vm368, %v9331, 0
        %v9427 = vsel %vm368, %v9332, 0
        %v9430 = vsel %vm368, %v9333, 0
        %v9433 = vsel %vm465, %v9335, 0
        %9435 = vmatpush.msra.mxu0 0.0
        %9436 = vmatpush.msra.mxu0 0.0
        %9437 = vmatpush.msra.mxu0 0.0
        %9438 = vmatpush.msra.mxu0 0.0
        %9439 = vmatpush.msra.mxu0 0.0
        %9440 = vmatpush.msra.mxu0 0.0
        %9441 = vmatpush.msra.mxu0 0.0
        %9442 = vmatpush.msra.mxu0 0.0
        %9443 = vmatpush.msra.mxu0 0.0
        %9444 = vmatpush.msra.mxu0 0.0
        %9445 = vmatpush.msra.mxu0 0.0
        %9446 = vmatpush.msra.mxu0 0.0
        %9447 = vmatpush.msra.mxu0 0.0
        %9448 = vmatpush.msra.mxu0 0.0
        %9449 = vmatpush.msra.mxu0 0.0
        %9450 = vmatpush.msra.mxu0 %v9433
        %9451 = vmatmul.f32.gmra.mxu0 %v9337
        %v9452 = vpop.f32.mrf.mxu0
        %v9453 = vadd.f32 0.0, %v9452
        %9454 = vmatmul.f32.gmra.mxu0 %v9340
        %v9455 = vpop.f32.mrf.mxu0
        %v9456 = vadd.f32 0.0, %v9455
        %9457 = vmatmul.f32.gmra.mxu0 %v9343
        %v9458 = vpop.f32.mrf.mxu0
        %v9459 = vadd.f32 0.0, %v9458
        %9460 = vmatmul.f32.gmra.mxu0 %v9346
        %v9461 = vpop.f32.mrf.mxu0
        %v9462 = vadd.f32 0.0, %v9461
        %9463 = vmatmul.f32.gmra.mxu0 %v9349
        %v9464 = vpop.f32.mrf.mxu0
        %v9465 = vadd.f32 0.0, %v9464
        %9466 = vmatmul.f32.gmra.mxu0 %v9352
        %v9467 = vpop.f32.mrf.mxu0
        %v9468 = vadd.f32 0.0, %v9467
        %9469 = vmatmul.f32.gmra.mxu0 %v9355
        %v9470 = vpop.f32.mrf.mxu0
        %v9471 = vadd.f32 0.0, %v9470
        %9472 = vmatmul.f32.gmra.mxu0 %v9358
        %v9473 = vpop.f32.mrf.mxu0
        %v9474 = vadd.f32 0.0, %v9473
        %9475 = vmatmul.f32.gmra.mxu0 %v9361
        %v9476 = vpop.f32.mrf.mxu0
        %v9477 = vadd.f32 0.0, %v9476
        %9478 = vmatmul.f32.gmra.mxu0 %v9364
        %v9479 = vpop.f32.mrf.mxu0
        %v9480 = vadd.f32 0.0, %v9479
        %9481 = vmatmul.f32.gmra.mxu0 %v9367
        %v9482 = vpop.f32.mrf.mxu0
        %v9483 = vadd.f32 0.0, %v9482
        %9484 = vmatmul.f32.gmra.mxu0 %v9370
        %v9485 = vpop.f32.mrf.mxu0
        %v9486 = vadd.f32 0.0, %v9485
        %9487 = vmatmul.f32.gmra.mxu0 %v9373
        %v9488 = vpop.f32.mrf.mxu0
        %v9489 = vadd.f32 0.0, %v9488
        %9490 = vmatmul.f32.gmra.mxu0 %v9376
        %v9491 = vpop.f32.mrf.mxu0
        %v9492 = vadd.f32 0.0, %v9491
        %9493 = vmatmul.f32.gmra.mxu0 %v9379
        %v9494 = vpop.f32.mrf.mxu0
        %v9495 = vadd.f32 0.0, %v9494
        %9496 = vmatmul.f32.gmra.mxu0 %v9382
        %v9497 = vpop.f32.mrf.mxu0
        %v9498 = vadd.f32 0.0, %v9497
        %9499 = vmatmul.f32.gmra.mxu0 %v9385
        %v9500 = vpop.f32.mrf.mxu0
        %v9501 = vadd.f32 0.0, %v9500
        %9502 = vmatmul.f32.gmra.mxu0 %v9388
        %v9503 = vpop.f32.mrf.mxu0
        %v9504 = vadd.f32 0.0, %v9503
        %9505 = vmatmul.f32.gmra.mxu0 %v9391
        %v9506 = vpop.f32.mrf.mxu0
        %v9507 = vadd.f32 0.0, %v9506
        %9508 = vmatmul.f32.gmra.mxu0 %v9394
        %v9509 = vpop.f32.mrf.mxu0
        %v9510 = vadd.f32 0.0, %v9509
        %9511 = vmatmul.f32.gmra.mxu0 %v9397
        %v9512 = vpop.f32.mrf.mxu0
        %v9513 = vadd.f32 0.0, %v9512
        %9514 = vmatmul.f32.gmra.mxu0 %v9400
        %v9515 = vpop.f32.mrf.mxu0
        %v9516 = vadd.f32 0.0, %v9515
        %9517 = vmatmul.f32.gmra.mxu0 %v9403
        %v9518 = vpop.f32.mrf.mxu0
        %v9519 = vadd.f32 0.0, %v9518
        %9520 = vmatmul.f32.gmra.mxu0 %v9406
        %v9521 = vpop.f32.mrf.mxu0
        %v9522 = vadd.f32 0.0, %v9521
        %9523 = vmatmul.f32.gmra.mxu0 %v9409
        %v9524 = vpop.f32.mrf.mxu0
        %v9525 = vadd.f32 0.0, %v9524
        %9526 = vmatmul.f32.gmra.mxu0 %v9412
        %v9527 = vpop.f32.mrf.mxu0
        %v9528 = vadd.f32 0.0, %v9527
        %9529 = vmatmul.f32.gmra.mxu0 %v9415
        %v9530 = vpop.f32.mrf.mxu0
        %v9531 = vadd.f32 0.0, %v9530
        %9532 = vmatmul.f32.gmra.mxu0 %v9418
        %v9533 = vpop.f32.mrf.mxu0
        %v9534 = vadd.f32 0.0, %v9533
        %9535 = vmatmul.f32.gmra.mxu0 %v9421
        %v9536 = vpop.f32.mrf.mxu0
        %v9537 = vadd.f32 0.0, %v9536
        %9538 = vmatmul.f32.gmra.mxu0 %v9424
        %v9539 = vpop.f32.mrf.mxu0
        %v9540 = vadd.f32 0.0, %v9539
        %9541 = vmatmul.f32.gmra.mxu0 %v9427
        %v9542 = vpop.f32.mrf.mxu0
        %v9543 = vadd.f32 0.0, %v9542
        %9544 = vmatmul.f32.gmra.mxu0 %v9430
        %v9545 = vpop.f32.mrf.mxu0
        %v9546 = vadd.f32 0.0, %v9545
        %9547 = vdwg.mxu0
        %v9548 = vadd.f32 %v9270, %v9453
        %v9549 = vadd.f32 %v9271, %v9456
        %v9550 = vadd.f32 %v9272, %v9459
        %v9551 = vadd.f32 %v9273, %v9462
        %v9552 = vadd.f32 %v9274, %v9465
        %v9553 = vadd.f32 %v9275, %v9468
        %v9554 = vadd.f32 %v9276, %v9471
        %v9555 = vadd.f32 %v9277, %v9474
        %v9556 = vadd.f32 %v9278, %v9477
        %v9557 = vadd.f32 %v9279, %v9480
        %v9558 = vadd.f32 %v9280, %v9483
        %v9559 = vadd.f32 %v9281, %v9486
        %v9560 = vadd.f32 %v9282, %v9489
        %v9561 = vadd.f32 %v9283, %v9492
        %v9562 = vadd.f32 %v9284, %v9495
        %v9563 = vadd.f32 %v9285, %v9498
        %v9564 = vadd.f32 %v9286, %v9501
        %v9565 = vadd.f32 %v9287, %v9504
        %v9566 = vadd.f32 %v9288, %v9507
        %v9567 = vadd.f32 %v9289, %v9510
        %v9568 = vadd.f32 %v9290, %v9513
        %v9569 = vadd.f32 %v9291, %v9516
        %v9570 = vadd.f32 %v9292, %v9519
        %v9571 = vadd.f32 %v9293, %v9522
        %v9572 = vadd.f32 %v9294, %v9525
        %v9573 = vadd.f32 %v9295, %v9528
        %v9574 = vadd.f32 %v9296, %v9531
        %v9575 = vadd.f32 %v9297, %v9534
        %v9576 = vadd.f32 %v9298, %v9537
        %v9577 = vadd.f32 %v9299, %v9540
        %v9578 = vadd.f32 %v9300, %v9543
        %v9579 = vadd.f32 %v9301, %v9546
        %v9580 = vld [vmem:[%s9023 + $0x2] sm:$0xff]
        %v9581 = vld [vmem:[%s9023 + $0xa] sm:$0xff]
        %v9582 = vld [vmem:[%s9023 + $0x1a] sm:$0xff]
        %v9583 = vld [vmem:[%s9023 + $0x22] sm:$0xff]
        %v9584 = vld [vmem:[%s9023 + $0x32] sm:$0xff]
        %v9585 = vld [vmem:[%s9023 + $0x3a] sm:$0xff]
        %v9586 = vld [vmem:[%s9023 + $0x4a] sm:$0xff]
        %v9587 = vld [vmem:[%s9023 + $0x52] sm:$0xff]
        %v9588 = vld [vmem:[%s9023 + $0x62] sm:$0xff]
        %v9589 = vld [vmem:[%s9023 + $0x6a] sm:$0xff]
        %v9590 = vld [vmem:[%s9023 + $0x7a] sm:$0xff]
        %v9591 = vld [vmem:[%s9023 + $0x82] sm:$0xff]
        %v9592 = vld [vmem:[%s9023 + $0x92] sm:$0xff]
        %v9593 = vld [vmem:[%s9023 + $0x9a] sm:$0xff]
        %v9594 = vld [vmem:[%s9023 + $0xaa] sm:$0xff]
        %v9595 = vld [vmem:[%s9023 + $0xb2] sm:$0xff]
        %v9596 = vld [vmem:[%s9023 + $0xc2] sm:$0xff]
        %v9597 = vld [vmem:[%s9023 + $0xca] sm:$0xff]
        %v9598 = vld [vmem:[%s9023 + $0xda] sm:$0xff]
        %v9599 = vld [vmem:[%s9023 + $0xe2] sm:$0xff]
        %v9600 = vld [vmem:[%s9023 + $0xf2] sm:$0xff]
        %v9601 = vld [vmem:[%s9023 + $0xfa] sm:$0xff]
        %v9602 = vld [vmem:[%s9023 + $0x10a] sm:$0xff]
        %v9603 = vld [vmem:[%s9023 + $0x112] sm:$0xff]
        %v9604 = vld [vmem:[%s9023 + $0x122] sm:$0xff]
        %v9605 = vld [vmem:[%s9023 + $0x12a] sm:$0xff]
        %v9606 = vld [vmem:[%s9023 + $0x13a] sm:$0xff]
        %v9607 = vld [vmem:[%s9023 + $0x142] sm:$0xff]
        %v9608 = vld [vmem:[%s9023 + $0x152] sm:$0xff]
        %v9609 = vld [vmem:[%s9023 + $0x15a] sm:$0xff]
        %v9610 = vld [vmem:[%s9023 + $0x16a] sm:$0xff]
        %v9611 = vld [vmem:[%s9023 + $0x172] sm:$0xff]
        %s9612 = scalar_lea.vmem %s5, 88
        %v9613 = vld [vmem:[%s9612] sm:$0xf]
        %v9615 = vsel %vm368, %v9580, 0
        %v9618 = vsel %vm368, %v9581, 0
        %v9621 = vsel %vm368, %v9582, 0
        %v9624 = vsel %vm368, %v9583, 0
        %v9627 = vsel %vm368, %v9584, 0
        %v9630 = vsel %vm368, %v9585, 0
        %v9633 = vsel %vm368, %v9586, 0
        %v9636 = vsel %vm368, %v9587, 0
        %v9639 = vsel %vm368, %v9588, 0
        %v9642 = vsel %vm368, %v9589, 0
        %v9645 = vsel %vm368, %v9590, 0
        %v9648 = vsel %vm368, %v9591, 0
        %v9651 = vsel %vm368, %v9592, 0
        %v9654 = vsel %vm368, %v9593, 0
        %v9657 = vsel %vm368, %v9594, 0
        %v9660 = vsel %vm368, %v9595, 0
        %v9663 = vsel %vm368, %v9596, 0
        %v9666 = vsel %vm368, %v9597, 0
        %v9669 = vsel %vm368, %v9598, 0
        %v9672 = vsel %vm368, %v9599, 0
        %v9675 = vsel %vm368, %v9600, 0
        %v9678 = vsel %vm368, %v9601, 0
        %v9681 = vsel %vm368, %v9602, 0
        %v9684 = vsel %vm368, %v9603, 0
        %v9687 = vsel %vm368, %v9604, 0
        %v9690 = vsel %vm368, %v9605, 0
        %v9693 = vsel %vm368, %v9606, 0
        %v9696 = vsel %vm368, %v9607, 0
        %v9699 = vsel %vm368, %v9608, 0
        %v9702 = vsel %vm368, %v9609, 0
        %v9705 = vsel %vm368, %v9610, 0
        %v9708 = vsel %vm368, %v9611, 0
        %v9711 = vsel %vm465, %v9613, 0
        %9713 = vmatpush.msra.mxu0 0.0
        %9714 = vmatpush.msra.mxu0 0.0
        %9715 = vmatpush.msra.mxu0 0.0
        %9716 = vmatpush.msra.mxu0 0.0
        %9717 = vmatpush.msra.mxu0 0.0
        %9718 = vmatpush.msra.mxu0 0.0
        %9719 = vmatpush.msra.mxu0 0.0
        %9720 = vmatpush.msra.mxu0 0.0
        %9721 = vmatpush.msra.mxu0 0.0
        %9722 = vmatpush.msra.mxu0 0.0
        %9723 = vmatpush.msra.mxu0 0.0
        %9724 = vmatpush.msra.mxu0 0.0
        %9725 = vmatpush.msra.mxu0 0.0
        %9726 = vmatpush.msra.mxu0 0.0
        %9727 = vmatpush.msra.mxu0 0.0
        %9728 = vmatpush.msra.mxu0 %v9711
        %9729 = vmatmul.f32.gmra.mxu0 %v9615
        %v9730 = vpop.f32.mrf.mxu0
        %v9731 = vadd.f32 0.0, %v9730
        %9732 = vmatmul.f32.gmra.mxu0 %v9618
        %v9733 = vpop.f32.mrf.mxu0
        %v9734 = vadd.f32 0.0, %v9733
        %9735 = vmatmul.f32.gmra.mxu0 %v9621
        %v9736 = vpop.f32.mrf.mxu0
        %v9737 = vadd.f32 0.0, %v9736
        %9738 = vmatmul.f32.gmra.mxu0 %v9624
        %v9739 = vpop.f32.mrf.mxu0
        %v9740 = vadd.f32 0.0, %v9739
        %9741 = vmatmul.f32.gmra.mxu0 %v9627
        %v9742 = vpop.f32.mrf.mxu0
        %v9743 = vadd.f32 0.0, %v9742
        %9744 = vmatmul.f32.gmra.mxu0 %v9630
        %v9745 = vpop.f32.mrf.mxu0
        %v9746 = vadd.f32 0.0, %v9745
        %9747 = vmatmul.f32.gmra.mxu0 %v9633
        %v9748 = vpop.f32.mrf.mxu0
        %v9749 = vadd.f32 0.0, %v9748
        %9750 = vmatmul.f32.gmra.mxu0 %v9636
        %v9751 = vpop.f32.mrf.mxu0
        %v9752 = vadd.f32 0.0, %v9751
        %9753 = vmatmul.f32.gmra.mxu0 %v9639
        %v9754 = vpop.f32.mrf.mxu0
        %v9755 = vadd.f32 0.0, %v9754
        %9756 = vmatmul.f32.gmra.mxu0 %v9642
        %v9757 = vpop.f32.mrf.mxu0
        %v9758 = vadd.f32 0.0, %v9757
        %9759 = vmatmul.f32.gmra.mxu0 %v9645
        %v9760 = vpop.f32.mrf.mxu0
        %v9761 = vadd.f32 0.0, %v9760
        %9762 = vmatmul.f32.gmra.mxu0 %v9648
        %v9763 = vpop.f32.mrf.mxu0
        %v9764 = vadd.f32 0.0, %v9763
        %9765 = vmatmul.f32.gmra.mxu0 %v9651
        %v9766 = vpop.f32.mrf.mxu0
        %v9767 = vadd.f32 0.0, %v9766
        %9768 = vmatmul.f32.gmra.mxu0 %v9654
        %v9769 = vpop.f32.mrf.mxu0
        %v9770 = vadd.f32 0.0, %v9769
        %9771 = vmatmul.f32.gmra.mxu0 %v9657
        %v9772 = vpop.f32.mrf.mxu0
        %v9773 = vadd.f32 0.0, %v9772
        %9774 = vmatmul.f32.gmra.mxu0 %v9660
        %v9775 = vpop.f32.mrf.mxu0
        %v9776 = vadd.f32 0.0, %v9775
        %9777 = vmatmul.f32.gmra.mxu0 %v9663
        %v9778 = vpop.f32.mrf.mxu0
        %v9779 = vadd.f32 0.0, %v9778
        %9780 = vmatmul.f32.gmra.mxu0 %v9666
        %v9781 = vpop.f32.mrf.mxu0
        %v9782 = vadd.f32 0.0, %v9781
        %9783 = vmatmul.f32.gmra.mxu0 %v9669
        %v9784 = vpop.f32.mrf.mxu0
        %v9785 = vadd.f32 0.0, %v9784
        %9786 = vmatmul.f32.gmra.mxu0 %v9672
        %v9787 = vpop.f32.mrf.mxu0
        %v9788 = vadd.f32 0.0, %v9787
        %9789 = vmatmul.f32.gmra.mxu0 %v9675
        %v9790 = vpop.f32.mrf.mxu0
        %v9791 = vadd.f32 0.0, %v9790
        %9792 = vmatmul.f32.gmra.mxu0 %v9678
        %v9793 = vpop.f32.mrf.mxu0
        %v9794 = vadd.f32 0.0, %v9793
        %9795 = vmatmul.f32.gmra.mxu0 %v9681
        %v9796 = vpop.f32.mrf.mxu0
        %v9797 = vadd.f32 0.0, %v9796
        %9798 = vmatmul.f32.gmra.mxu0 %v9684
        %v9799 = vpop.f32.mrf.mxu0
        %v9800 = vadd.f32 0.0, %v9799
        %9801 = vmatmul.f32.gmra.mxu0 %v9687
        %v9802 = vpop.f32.mrf.mxu0
        %v9803 = vadd.f32 0.0, %v9802
        %9804 = vmatmul.f32.gmra.mxu0 %v9690
        %v9805 = vpop.f32.mrf.mxu0
        %v9806 = vadd.f32 0.0, %v9805
        %9807 = vmatmul.f32.gmra.mxu0 %v9693
        %v9808 = vpop.f32.mrf.mxu0
        %v9809 = vadd.f32 0.0, %v9808
        %9810 = vmatmul.f32.gmra.mxu0 %v9696
        %v9811 = vpop.f32.mrf.mxu0
        %v9812 = vadd.f32 0.0, %v9811
        %9813 = vmatmul.f32.gmra.mxu0 %v9699
        %v9814 = vpop.f32.mrf.mxu0
        %v9815 = vadd.f32 0.0, %v9814
        %9816 = vmatmul.f32.gmra.mxu0 %v9702
        %v9817 = vpop.f32.mrf.mxu0
        %v9818 = vadd.f32 0.0, %v9817
        %9819 = vmatmul.f32.gmra.mxu0 %v9705
        %v9820 = vpop.f32.mrf.mxu0
        %v9821 = vadd.f32 0.0, %v9820
        %9822 = vmatmul.f32.gmra.mxu0 %v9708
        %v9823 = vpop.f32.mrf.mxu0
        %v9824 = vadd.f32 0.0, %v9823
        %9825 = vdwg.mxu0
        %v9826 = vadd.f32 %v9548, %v9731
        %v9827 = vadd.f32 %v9549, %v9734
        %v9828 = vadd.f32 %v9550, %v9737
        %v9829 = vadd.f32 %v9551, %v9740
        %v9830 = vadd.f32 %v9552, %v9743
        %v9831 = vadd.f32 %v9553, %v9746
        %v9832 = vadd.f32 %v9554, %v9749
        %v9833 = vadd.f32 %v9555, %v9752
        %v9834 = vadd.f32 %v9556, %v9755
        %v9835 = vadd.f32 %v9557, %v9758
        %v9836 = vadd.f32 %v9558, %v9761
        %v9837 = vadd.f32 %v9559, %v9764
        %v9838 = vadd.f32 %v9560, %v9767
        %v9839 = vadd.f32 %v9561, %v9770
        %v9840 = vadd.f32 %v9562, %v9773
        %v9841 = vadd.f32 %v9563, %v9776
        %v9842 = vadd.f32 %v9564, %v9779
        %v9843 = vadd.f32 %v9565, %v9782
        %v9844 = vadd.f32 %v9566, %v9785
        %v9845 = vadd.f32 %v9567, %v9788
        %v9846 = vadd.f32 %v9568, %v9791
        %v9847 = vadd.f32 %v9569, %v9794
        %v9848 = vadd.f32 %v9570, %v9797
        %v9849 = vadd.f32 %v9571, %v9800
        %v9850 = vadd.f32 %v9572, %v9803
        %v9851 = vadd.f32 %v9573, %v9806
        %v9852 = vadd.f32 %v9574, %v9809
        %v9853 = vadd.f32 %v9575, %v9812
        %v9854 = vadd.f32 %v9576, %v9815
        %v9855 = vadd.f32 %v9577, %v9818
        %v9856 = vadd.f32 %v9578, %v9821
        %v9857 = vadd.f32 %v9579, %v9824
        %v9858 = vld [vmem:[%s9023 + $0x3] sm:$0xff]
        %v9859 = vld [vmem:[%s9023 + $0xb] sm:$0xff]
        %v9860 = vld [vmem:[%s9023 + $0x1b] sm:$0xff]
        %v9861 = vld [vmem:[%s9023 + $0x23] sm:$0xff]
        %v9862 = vld [vmem:[%s9023 + $0x33] sm:$0xff]
        %v9863 = vld [vmem:[%s9023 + $0x3b] sm:$0xff]
        %v9864 = vld [vmem:[%s9023 + $0x4b] sm:$0xff]
        %v9865 = vld [vmem:[%s9023 + $0x53] sm:$0xff]
        %v9866 = vld [vmem:[%s9023 + $0x63] sm:$0xff]
        %v9867 = vld [vmem:[%s9023 + $0x6b] sm:$0xff]
        %v9868 = vld [vmem:[%s9023 + $0x7b] sm:$0xff]
        %v9869 = vld [vmem:[%s9023 + $0x83] sm:$0xff]
        %v9870 = vld [vmem:[%s9023 + $0x93] sm:$0xff]
        %v9871 = vld [vmem:[%s9023 + $0x9b] sm:$0xff]
        %v9872 = vld [vmem:[%s9023 + $0xab] sm:$0xff]
        %v9873 = vld [vmem:[%s9023 + $0xb3] sm:$0xff]
        %v9874 = vld [vmem:[%s9023 + $0xc3] sm:$0xff]
        %v9875 = vld [vmem:[%s9023 + $0xcb] sm:$0xff]
        %v9876 = vld [vmem:[%s9023 + $0xdb] sm:$0xff]
        %v9877 = vld [vmem:[%s9023 + $0xe3] sm:$0xff]
        %v9878 = vld [vmem:[%s9023 + $0xf3] sm:$0xff]
        %v9879 = vld [vmem:[%s9023 + $0xfb] sm:$0xff]
        %v9880 = vld [vmem:[%s9023 + $0x10b] sm:$0xff]
        %v9881 = vld [vmem:[%s9023 + $0x113] sm:$0xff]
        %v9882 = vld [vmem:[%s9023 + $0x123] sm:$0xff]
        %v9883 = vld [vmem:[%s9023 + $0x12b] sm:$0xff]
        %v9884 = vld [vmem:[%s9023 + $0x13b] sm:$0xff]
        %v9885 = vld [vmem:[%s9023 + $0x143] sm:$0xff]
        %v9886 = vld [vmem:[%s9023 + $0x153] sm:$0xff]
        %v9887 = vld [vmem:[%s9023 + $0x15b] sm:$0xff]
        %v9888 = vld [vmem:[%s9023 + $0x16b] sm:$0xff]
        %v9889 = vld [vmem:[%s9023 + $0x173] sm:$0xff]
        %s9890 = scalar_lea.vmem %s5, 92
        %v9891 = vld [vmem:[%s9890] sm:$0xf]
        %v9893 = vsel %vm368, %v9858, 0
        %v9896 = vsel %vm368, %v9859, 0
        %v9899 = vsel %vm368, %v9860, 0
        %v9902 = vsel %vm368, %v9861, 0
        %v9905 = vsel %vm368, %v9862, 0
        %v9908 = vsel %vm368, %v9863, 0
        %v9911 = vsel %vm368, %v9864, 0
        %v9914 = vsel %vm368, %v9865, 0
        %v9917 = vsel %vm368, %v9866, 0
        %v9920 = vsel %vm368, %v9867, 0
        %v9923 = vsel %vm368, %v9868, 0
        %v9926 = vsel %vm368, %v9869, 0
        %v9929 = vsel %vm368, %v9870, 0
        %v9932 = vsel %vm368, %v9871, 0
        %v9935 = vsel %vm368, %v9872, 0
        %v9938 = vsel %vm368, %v9873, 0
        %v9941 = vsel %vm368, %v9874, 0
        %v9944 = vsel %vm368, %v9875, 0
        %v9947 = vsel %vm368, %v9876, 0
        %v9950 = vsel %vm368, %v9877, 0
        %v9953 = vsel %vm368, %v9878, 0
        %v9956 = vsel %vm368, %v9879, 0
        %v9959 = vsel %vm368, %v9880, 0
        %v9962 = vsel %vm368, %v9881, 0
        %v9965 = vsel %vm368, %v9882, 0
        %v9968 = vsel %vm368, %v9883, 0
        %v9971 = vsel %vm368, %v9884, 0
        %v9974 = vsel %vm368, %v9885, 0
        %v9977 = vsel %vm368, %v9886, 0
        %v9980 = vsel %vm368, %v9887, 0
        %v9983 = vsel %vm368, %v9888, 0
        %v9986 = vsel %vm368, %v9889, 0
        %v9989 = vsel %vm465, %v9891, 0
        %9991 = vmatpush.msra.mxu0 0.0
        %9992 = vmatpush.msra.mxu0 0.0
        %9993 = vmatpush.msra.mxu0 0.0
        %9994 = vmatpush.msra.mxu0 0.0
        %9995 = vmatpush.msra.mxu0 0.0
        %9996 = vmatpush.msra.mxu0 0.0
        %9997 = vmatpush.msra.mxu0 0.0
        %9998 = vmatpush.msra.mxu0 0.0
        %9999 = vmatpush.msra.mxu0 0.0
        %10000 = vmatpush.msra.mxu0 0.0
        %10001 = vmatpush.msra.mxu0 0.0
        %10002 = vmatpush.msra.mxu0 0.0
        %10003 = vmatpush.msra.mxu0 0.0
        %10004 = vmatpush.msra.mxu0 0.0
        %10005 = vmatpush.msra.mxu0 0.0
        %10006 = vmatpush.msra.mxu0 %v9989
        %10007 = vmatmul.f32.gmra.mxu0 %v9893
        %v10008 = vpop.f32.mrf.mxu0
        %v10009 = vadd.f32 0.0, %v10008
        %10010 = vmatmul.f32.gmra.mxu0 %v9896
        %v10011 = vpop.f32.mrf.mxu0
        %v10012 = vadd.f32 0.0, %v10011
        %10013 = vmatmul.f32.gmra.mxu0 %v9899
        %v10014 = vpop.f32.mrf.mxu0
        %v10015 = vadd.f32 0.0, %v10014
        %10016 = vmatmul.f32.gmra.mxu0 %v9902
        %v10017 = vpop.f32.mrf.mxu0
        %v10018 = vadd.f32 0.0, %v10017
        %10019 = vmatmul.f32.gmra.mxu0 %v9905
        %v10020 = vpop.f32.mrf.mxu0
        %v10021 = vadd.f32 0.0, %v10020
        %10022 = vmatmul.f32.gmra.mxu0 %v9908
        %v10023 = vpop.f32.mrf.mxu0
        %v10024 = vadd.f32 0.0, %v10023
        %10025 = vmatmul.f32.gmra.mxu0 %v9911
        %v10026 = vpop.f32.mrf.mxu0
        %v10027 = vadd.f32 0.0, %v10026
        %10028 = vmatmul.f32.gmra.mxu0 %v9914
        %v10029 = vpop.f32.mrf.mxu0
        %v10030 = vadd.f32 0.0, %v10029
        %10031 = vmatmul.f32.gmra.mxu0 %v9917
        %v10032 = vpop.f32.mrf.mxu0
        %v10033 = vadd.f32 0.0, %v10032
        %10034 = vmatmul.f32.gmra.mxu0 %v9920
        %v10035 = vpop.f32.mrf.mxu0
        %v10036 = vadd.f32 0.0, %v10035
        %10037 = vmatmul.f32.gmra.mxu0 %v9923
        %v10038 = vpop.f32.mrf.mxu0
        %v10039 = vadd.f32 0.0, %v10038
        %10040 = vmatmul.f32.gmra.mxu0 %v9926
        %v10041 = vpop.f32.mrf.mxu0
        %v10042 = vadd.f32 0.0, %v10041
        %10043 = vmatmul.f32.gmra.mxu0 %v9929
        %v10044 = vpop.f32.mrf.mxu0
        %v10045 = vadd.f32 0.0, %v10044
        %10046 = vmatmul.f32.gmra.mxu0 %v9932
        %v10047 = vpop.f32.mrf.mxu0
        %v10048 = vadd.f32 0.0, %v10047
        %10049 = vmatmul.f32.gmra.mxu0 %v9935
        %v10050 = vpop.f32.mrf.mxu0
        %v10051 = vadd.f32 0.0, %v10050
        %10052 = vmatmul.f32.gmra.mxu0 %v9938
        %v10053 = vpop.f32.mrf.mxu0
        %v10054 = vadd.f32 0.0, %v10053
        %10055 = vmatmul.f32.gmra.mxu0 %v9941
        %v10056 = vpop.f32.mrf.mxu0
        %v10057 = vadd.f32 0.0, %v10056
        %10058 = vmatmul.f32.gmra.mxu0 %v9944
        %v10059 = vpop.f32.mrf.mxu0
        %v10060 = vadd.f32 0.0, %v10059
        %10061 = vmatmul.f32.gmra.mxu0 %v9947
        %v10062 = vpop.f32.mrf.mxu0
        %v10063 = vadd.f32 0.0, %v10062
        %10064 = vmatmul.f32.gmra.mxu0 %v9950
        %v10065 = vpop.f32.mrf.mxu0
        %v10066 = vadd.f32 0.0, %v10065
        %10067 = vmatmul.f32.gmra.mxu0 %v9953
        %v10068 = vpop.f32.mrf.mxu0
        %v10069 = vadd.f32 0.0, %v10068
        %10070 = vmatmul.f32.gmra.mxu0 %v9956
        %v10071 = vpop.f32.mrf.mxu0
        %v10072 = vadd.f32 0.0, %v10071
        %10073 = vmatmul.f32.gmra.mxu0 %v9959
        %v10074 = vpop.f32.mrf.mxu0
        %v10075 = vadd.f32 0.0, %v10074
        %10076 = vmatmul.f32.gmra.mxu0 %v9962
        %v10077 = vpop.f32.mrf.mxu0
        %v10078 = vadd.f32 0.0, %v10077
        %10079 = vmatmul.f32.gmra.mxu0 %v9965
        %v10080 = vpop.f32.mrf.mxu0
        %v10081 = vadd.f32 0.0, %v10080
        %10082 = vmatmul.f32.gmra.mxu0 %v9968
        %v10083 = vpop.f32.mrf.mxu0
        %v10084 = vadd.f32 0.0, %v10083
        %10085 = vmatmul.f32.gmra.mxu0 %v9971
        %v10086 = vpop.f32.mrf.mxu0
        %v10087 = vadd.f32 0.0, %v10086
        %10088 = vmatmul.f32.gmra.mxu0 %v9974
        %v10089 = vpop.f32.mrf.mxu0
        %v10090 = vadd.f32 0.0, %v10089
        %10091 = vmatmul.f32.gmra.mxu0 %v9977
        %v10092 = vpop.f32.mrf.mxu0
        %v10093 = vadd.f32 0.0, %v10092
        %10094 = vmatmul.f32.gmra.mxu0 %v9980
        %v10095 = vpop.f32.mrf.mxu0
        %v10096 = vadd.f32 0.0, %v10095
        %10097 = vmatmul.f32.gmra.mxu0 %v9983
        %v10098 = vpop.f32.mrf.mxu0
        %v10099 = vadd.f32 0.0, %v10098
        %10100 = vmatmul.f32.gmra.mxu0 %v9986
        %v10101 = vpop.f32.mrf.mxu0
        %v10102 = vadd.f32 0.0, %v10101
        %10103 = vdwg.mxu0
        %v10104 = vadd.f32 %v9826, %v10009
        %v10105 = vadd.f32 %v9827, %v10012
        %v10106 = vadd.f32 %v9828, %v10015
        %v10107 = vadd.f32 %v9829, %v10018
        %v10108 = vadd.f32 %v9830, %v10021
        %v10109 = vadd.f32 %v9831, %v10024
        %v10110 = vadd.f32 %v9832, %v10027
        %v10111 = vadd.f32 %v9833, %v10030
        %v10112 = vadd.f32 %v9834, %v10033
        %v10113 = vadd.f32 %v9835, %v10036
        %v10114 = vadd.f32 %v9836, %v10039
        %v10115 = vadd.f32 %v9837, %v10042
        %v10116 = vadd.f32 %v9838, %v10045
        %v10117 = vadd.f32 %v9839, %v10048
        %v10118 = vadd.f32 %v9840, %v10051
        %v10119 = vadd.f32 %v9841, %v10054
        %v10120 = vadd.f32 %v9842, %v10057
        %v10121 = vadd.f32 %v9843, %v10060
        %v10122 = vadd.f32 %v9844, %v10063
        %v10123 = vadd.f32 %v9845, %v10066
        %v10124 = vadd.f32 %v9846, %v10069
        %v10125 = vadd.f32 %v9847, %v10072
        %v10126 = vadd.f32 %v9848, %v10075
        %v10127 = vadd.f32 %v9849, %v10078
        %v10128 = vadd.f32 %v9850, %v10081
        %v10129 = vadd.f32 %v9851, %v10084
        %v10130 = vadd.f32 %v9852, %v10087
        %v10131 = vadd.f32 %v9853, %v10090
        %v10132 = vadd.f32 %v9854, %v10093
        %v10133 = vadd.f32 %v9855, %v10096
        %v10134 = vadd.f32 %v9856, %v10099
        %v10135 = vadd.f32 %v9857, %v10102
        %v10136 = vld [vmem:[%s9023 + $0x4] sm:$0xff]
        %v10137 = vld [vmem:[%s9023 + $0xc] sm:$0xff]
        %v10138 = vld [vmem:[%s9023 + $0x1c] sm:$0xff]
        %v10139 = vld [vmem:[%s9023 + $0x24] sm:$0xff]
        %v10140 = vld [vmem:[%s9023 + $0x34] sm:$0xff]
        %v10141 = vld [vmem:[%s9023 + $0x3c] sm:$0xff]
        %v10142 = vld [vmem:[%s9023 + $0x4c] sm:$0xff]
        %v10143 = vld [vmem:[%s9023 + $0x54] sm:$0xff]
        %v10144 = vld [vmem:[%s9023 + $0x64] sm:$0xff]
        %v10145 = vld [vmem:[%s9023 + $0x6c] sm:$0xff]
        %v10146 = vld [vmem:[%s9023 + $0x7c] sm:$0xff]
        %v10147 = vld [vmem:[%s9023 + $0x84] sm:$0xff]
        %v10148 = vld [vmem:[%s9023 + $0x94] sm:$0xff]
        %v10149 = vld [vmem:[%s9023 + $0x9c] sm:$0xff]
        %v10150 = vld [vmem:[%s9023 + $0xac] sm:$0xff]
        %v10151 = vld [vmem:[%s9023 + $0xb4] sm:$0xff]
        %v10152 = vld [vmem:[%s9023 + $0xc4] sm:$0xff]
        %v10153 = vld [vmem:[%s9023 + $0xcc] sm:$0xff]
        %v10154 = vld [vmem:[%s9023 + $0xdc] sm:$0xff]
        %v10155 = vld [vmem:[%s9023 + $0xe4] sm:$0xff]
        %v10156 = vld [vmem:[%s9023 + $0xf4] sm:$0xff]
        %v10157 = vld [vmem:[%s9023 + $0xfc] sm:$0xff]
        %v10158 = vld [vmem:[%s9023 + $0x10c] sm:$0xff]
        %v10159 = vld [vmem:[%s9023 + $0x114] sm:$0xff]
        %v10160 = vld [vmem:[%s9023 + $0x124] sm:$0xff]
        %v10161 = vld [vmem:[%s9023 + $0x12c] sm:$0xff]
        %v10162 = vld [vmem:[%s9023 + $0x13c] sm:$0xff]
        %v10163 = vld [vmem:[%s9023 + $0x144] sm:$0xff]
        %v10164 = vld [vmem:[%s9023 + $0x154] sm:$0xff]
        %v10165 = vld [vmem:[%s9023 + $0x15c] sm:$0xff]
        %v10166 = vld [vmem:[%s9023 + $0x16c] sm:$0xff]
        %v10167 = vld [vmem:[%s9023 + $0x174] sm:$0xff]
        %s10168 = scalar_lea.vmem %s5, 96
        %v10169 = vld [vmem:[%s10168] sm:$0xf]
        %v10171 = vsel %vm368, %v10136, 0
        %v10174 = vsel %vm368, %v10137, 0
        %v10177 = vsel %vm368, %v10138, 0
        %v10180 = vsel %vm368, %v10139, 0
        %v10183 = vsel %vm368, %v10140, 0
        %v10186 = vsel %vm368, %v10141, 0
        %v10189 = vsel %vm368, %v10142, 0
        %v10192 = vsel %vm368, %v10143, 0
        %v10195 = vsel %vm368, %v10144, 0
        %v10198 = vsel %vm368, %v10145, 0
        %v10201 = vsel %vm368, %v10146, 0
        %v10204 = vsel %vm368, %v10147, 0
        %v10207 = vsel %vm368, %v10148, 0
        %v10210 = vsel %vm368, %v10149, 0
        %v10213 = vsel %vm368, %v10150, 0
        %v10216 = vsel %vm368, %v10151, 0
        %v10219 = vsel %vm368, %v10152, 0
        %v10222 = vsel %vm368, %v10153, 0
        %v10225 = vsel %vm368, %v10154, 0
        %v10228 = vsel %vm368, %v10155, 0
        %v10231 = vsel %vm368, %v10156, 0
        %v10234 = vsel %vm368, %v10157, 0
        %v10237 = vsel %vm368, %v10158, 0
        %v10240 = vsel %vm368, %v10159, 0
        %v10243 = vsel %vm368, %v10160, 0
        %v10246 = vsel %vm368, %v10161, 0
        %v10249 = vsel %vm368, %v10162, 0
        %v10252 = vsel %vm368, %v10163, 0
        %v10255 = vsel %vm368, %v10164, 0
        %v10258 = vsel %vm368, %v10165, 0
        %v10261 = vsel %vm368, %v10166, 0
        %v10264 = vsel %vm368, %v10167, 0
        %v10267 = vsel %vm465, %v10169, 0
        %10269 = vmatpush.msra.mxu0 0.0
        %10270 = vmatpush.msra.mxu0 0.0
        %10271 = vmatpush.msra.mxu0 0.0
        %10272 = vmatpush.msra.mxu0 0.0
        %10273 = vmatpush.msra.mxu0 0.0
        %10274 = vmatpush.msra.mxu0 0.0
        %10275 = vmatpush.msra.mxu0 0.0
        %10276 = vmatpush.msra.mxu0 0.0
        %10277 = vmatpush.msra.mxu0 0.0
        %10278 = vmatpush.msra.mxu0 0.0
        %10279 = vmatpush.msra.mxu0 0.0
        %10280 = vmatpush.msra.mxu0 0.0
        %10281 = vmatpush.msra.mxu0 0.0
        %10282 = vmatpush.msra.mxu0 0.0
        %10283 = vmatpush.msra.mxu0 0.0
        %10284 = vmatpush.msra.mxu0 %v10267
        %10285 = vmatmul.f32.gmra.mxu0 %v10171
        %v10286 = vpop.f32.mrf.mxu0
        %v10287 = vadd.f32 0.0, %v10286
        %10288 = vmatmul.f32.gmra.mxu0 %v10174
        %v10289 = vpop.f32.mrf.mxu0
        %v10290 = vadd.f32 0.0, %v10289
        %10291 = vmatmul.f32.gmra.mxu0 %v10177
        %v10292 = vpop.f32.mrf.mxu0
        %v10293 = vadd.f32 0.0, %v10292
        %10294 = vmatmul.f32.gmra.mxu0 %v10180
        %v10295 = vpop.f32.mrf.mxu0
        %v10296 = vadd.f32 0.0, %v10295
        %10297 = vmatmul.f32.gmra.mxu0 %v10183
        %v10298 = vpop.f32.mrf.mxu0
        %v10299 = vadd.f32 0.0, %v10298
        %10300 = vmatmul.f32.gmra.mxu0 %v10186
        %v10301 = vpop.f32.mrf.mxu0
        %v10302 = vadd.f32 0.0, %v10301
        %10303 = vmatmul.f32.gmra.mxu0 %v10189
        %v10304 = vpop.f32.mrf.mxu0
        %v10305 = vadd.f32 0.0, %v10304
        %10306 = vmatmul.f32.gmra.mxu0 %v10192
        %v10307 = vpop.f32.mrf.mxu0
        %v10308 = vadd.f32 0.0, %v10307
        %10309 = vmatmul.f32.gmra.mxu0 %v10195
        %v10310 = vpop.f32.mrf.mxu0
        %v10311 = vadd.f32 0.0, %v10310
        %10312 = vmatmul.f32.gmra.mxu0 %v10198
        %v10313 = vpop.f32.mrf.mxu0
        %v10314 = vadd.f32 0.0, %v10313
        %10315 = vmatmul.f32.gmra.mxu0 %v10201
        %v10316 = vpop.f32.mrf.mxu0
        %v10317 = vadd.f32 0.0, %v10316
        %10318 = vmatmul.f32.gmra.mxu0 %v10204
        %v10319 = vpop.f32.mrf.mxu0
        %v10320 = vadd.f32 0.0, %v10319
        %10321 = vmatmul.f32.gmra.mxu0 %v10207
        %v10322 = vpop.f32.mrf.mxu0
        %v10323 = vadd.f32 0.0, %v10322
        %10324 = vmatmul.f32.gmra.mxu0 %v10210
        %v10325 = vpop.f32.mrf.mxu0
        %v10326 = vadd.f32 0.0, %v10325
        %10327 = vmatmul.f32.gmra.mxu0 %v10213
        %v10328 = vpop.f32.mrf.mxu0
        %v10329 = vadd.f32 0.0, %v10328
        %10330 = vmatmul.f32.gmra.mxu0 %v10216
        %v10331 = vpop.f32.mrf.mxu0
        %v10332 = vadd.f32 0.0, %v10331
        %10333 = vmatmul.f32.gmra.mxu0 %v10219
        %v10334 = vpop.f32.mrf.mxu0
        %v10335 = vadd.f32 0.0, %v10334
        %10336 = vmatmul.f32.gmra.mxu0 %v10222
        %v10337 = vpop.f32.mrf.mxu0
        %v10338 = vadd.f32 0.0, %v10337
        %10339 = vmatmul.f32.gmra.mxu0 %v10225
        %v10340 = vpop.f32.mrf.mxu0
        %v10341 = vadd.f32 0.0, %v10340
        %10342 = vmatmul.f32.gmra.mxu0 %v10228
        %v10343 = vpop.f32.mrf.mxu0
        %v10344 = vadd.f32 0.0, %v10343
        %10345 = vmatmul.f32.gmra.mxu0 %v10231
        %v10346 = vpop.f32.mrf.mxu0
        %v10347 = vadd.f32 0.0, %v10346
        %10348 = vmatmul.f32.gmra.mxu0 %v10234
        %v10349 = vpop.f32.mrf.mxu0
        %v10350 = vadd.f32 0.0, %v10349
        %10351 = vmatmul.f32.gmra.mxu0 %v10237
        %v10352 = vpop.f32.mrf.mxu0
        %v10353 = vadd.f32 0.0, %v10352
        %10354 = vmatmul.f32.gmra.mxu0 %v10240
        %v10355 = vpop.f32.mrf.mxu0
        %v10356 = vadd.f32 0.0, %v10355
        %10357 = vmatmul.f32.gmra.mxu0 %v10243
        %v10358 = vpop.f32.mrf.mxu0
        %v10359 = vadd.f32 0.0, %v10358
        %10360 = vmatmul.f32.gmra.mxu0 %v10246
        %v10361 = vpop.f32.mrf.mxu0
        %v10362 = vadd.f32 0.0, %v10361
        %10363 = vmatmul.f32.gmra.mxu0 %v10249
        %v10364 = vpop.f32.mrf.mxu0
        %v10365 = vadd.f32 0.0, %v10364
        %10366 = vmatmul.f32.gmra.mxu0 %v10252
        %v10367 = vpop.f32.mrf.mxu0
        %v10368 = vadd.f32 0.0, %v10367
        %10369 = vmatmul.f32.gmra.mxu0 %v10255
        %v10370 = vpop.f32.mrf.mxu0
        %v10371 = vadd.f32 0.0, %v10370
        %10372 = vmatmul.f32.gmra.mxu0 %v10258
        %v10373 = vpop.f32.mrf.mxu0
        %v10374 = vadd.f32 0.0, %v10373
        %10375 = vmatmul.f32.gmra.mxu0 %v10261
        %v10376 = vpop.f32.mrf.mxu0
        %v10377 = vadd.f32 0.0, %v10376
        %10378 = vmatmul.f32.gmra.mxu0 %v10264
        %v10379 = vpop.f32.mrf.mxu0
        %v10380 = vadd.f32 0.0, %v10379
        %10381 = vdwg.mxu0
        %v10382 = vadd.f32 %v10104, %v10287
        %v10383 = vadd.f32 %v10105, %v10290
        %v10384 = vadd.f32 %v10106, %v10293
        %v10385 = vadd.f32 %v10107, %v10296
        %v10386 = vadd.f32 %v10108, %v10299
        %v10387 = vadd.f32 %v10109, %v10302
        %v10388 = vadd.f32 %v10110, %v10305
        %v10389 = vadd.f32 %v10111, %v10308
        %v10390 = vadd.f32 %v10112, %v10311
        %v10391 = vadd.f32 %v10113, %v10314
        %v10392 = vadd.f32 %v10114, %v10317
        %v10393 = vadd.f32 %v10115, %v10320
        %v10394 = vadd.f32 %v10116, %v10323
        %v10395 = vadd.f32 %v10117, %v10326
        %v10396 = vadd.f32 %v10118, %v10329
        %v10397 = vadd.f32 %v10119, %v10332
        %v10398 = vadd.f32 %v10120, %v10335
        %v10399 = vadd.f32 %v10121, %v10338
        %v10400 = vadd.f32 %v10122, %v10341
        %v10401 = vadd.f32 %v10123, %v10344
        %v10402 = vadd.f32 %v10124, %v10347
        %v10403 = vadd.f32 %v10125, %v10350
        %v10404 = vadd.f32 %v10126, %v10353
        %v10405 = vadd.f32 %v10127, %v10356
        %v10406 = vadd.f32 %v10128, %v10359
        %v10407 = vadd.f32 %v10129, %v10362
        %v10408 = vadd.f32 %v10130, %v10365
        %v10409 = vadd.f32 %v10131, %v10368
        %v10410 = vadd.f32 %v10132, %v10371
        %v10411 = vadd.f32 %v10133, %v10374
        %v10412 = vadd.f32 %v10134, %v10377
        %v10413 = vadd.f32 %v10135, %v10380
        %v10414 = vld [vmem:[%s6] sm:$0x1]
        %v10416 = vperm.slane %v10414, 0
        %v10418 = vadd.f32 %v10382, %v10416
        %v10419 = vadd.f32 %v10383, %v10416
        %v10420 = vadd.f32 %v10384, %v10416
        %v10421 = vadd.f32 %v10385, %v10416
        %v10422 = vadd.f32 %v10386, %v10416
        %v10423 = vadd.f32 %v10387, %v10416
        %v10424 = vadd.f32 %v10388, %v10416
        %v10425 = vadd.f32 %v10389, %v10416
        %v10426 = vadd.f32 %v10390, %v10416
        %v10427 = vadd.f32 %v10391, %v10416
        %v10428 = vadd.f32 %v10392, %v10416
        %v10429 = vadd.f32 %v10393, %v10416
        %v10430 = vadd.f32 %v10394, %v10416
        %v10431 = vadd.f32 %v10395, %v10416
        %v10432 = vadd.f32 %v10396, %v10416
        %v10433 = vadd.f32 %v10397, %v10416
        %v10434 = vadd.f32 %v10398, %v10416
        %v10435 = vadd.f32 %v10399, %v10416
        %v10436 = vadd.f32 %v10400, %v10416
        %v10437 = vadd.f32 %v10401, %v10416
        %v10438 = vadd.f32 %v10402, %v10416
        %v10439 = vadd.f32 %v10403, %v10416
        %v10440 = vadd.f32 %v10404, %v10416
        %v10441 = vadd.f32 %v10405, %v10416
        %v10442 = vadd.f32 %v10406, %v10416
        %v10443 = vadd.f32 %v10407, %v10416
        %v10444 = vadd.f32 %v10408, %v10416
        %v10445 = vadd.f32 %v10409, %v10416
        %v10446 = vadd.f32 %v10410, %v10416
        %v10447 = vadd.f32 %v10411, %v10416
        %v10448 = vadd.f32 %v10412, %v10416
        %v10449 = vadd.f32 %v10413, %v10416
        %v10450 = vmax.f32 %v10418, 0.0
        %v10451 = vmax.f32 %v10419, 0.0
        %v10452 = vmax.f32 %v10420, 0.0
        %v10453 = vmax.f32 %v10421, 0.0
        %v10454 = vmax.f32 %v10422, 0.0
        %v10455 = vmax.f32 %v10423, 0.0
        %v10456 = vmax.f32 %v10424, 0.0
        %v10457 = vmax.f32 %v10425, 0.0
        %v10458 = vmax.f32 %v10426, 0.0
        %v10459 = vmax.f32 %v10427, 0.0
        %v10460 = vmax.f32 %v10428, 0.0
        %v10461 = vmax.f32 %v10429, 0.0
        %v10462 = vmax.f32 %v10430, 0.0
        %v10463 = vmax.f32 %v10431, 0.0
        %v10464 = vmax.f32 %v10432, 0.0
        %v10465 = vmax.f32 %v10433, 0.0
        %v10466 = vmax.f32 %v10434, 0.0
        %v10467 = vmax.f32 %v10435, 0.0
        %v10468 = vmax.f32 %v10436, 0.0
        %v10469 = vmax.f32 %v10437, 0.0
        %v10470 = vmax.f32 %v10438, 0.0
        %v10471 = vmax.f32 %v10439, 0.0
        %v10472 = vmax.f32 %v10440, 0.0
        %v10473 = vmax.f32 %v10441, 0.0
        %v10474 = vmax.f32 %v10442, 0.0
        %v10475 = vmax.f32 %v10443, 0.0
        %v10476 = vmax.f32 %v10444, 0.0
        %v10477 = vmax.f32 %v10445, 0.0
        %v10478 = vmax.f32 %v10446, 0.0
        %v10479 = vmax.f32 %v10447, 0.0
        %v10480 = vmax.f32 %v10448, 0.0
        %v10481 = vmax.f32 %v10449, 0.0
        %10482 = vst.msk [vmem:[#allocation4] sm:$0xff] %vm368, -3.4028235e+38
        %10483 = vst.msk [vmem:[#allocation4 + $0x8] sm:$0xff] %vm368, -3.4028235e+38
        %10484 = vst.msk [vmem:[#allocation4 + $0x10] sm:$0x3] %vm616, -3.4028235e+38
        %10485 = vst.msk [vmem:[#allocation4 + $0x18] sm:$0xff] %vm368, -3.4028235e+38
        %10486 = vst.msk [vmem:[#allocation4 + $0x20] sm:$0xff] %vm368, -3.4028235e+38
        %10487 = vst.msk [vmem:[#allocation4 + $0x28] sm:$0x3] %vm616, -3.4028235e+38
        %10488 = vst.msk [vmem:[#allocation4 + $0x30] sm:$0xff] %vm368, -3.4028235e+38
        %10489 = vst.msk [vmem:[#allocation4 + $0x38] sm:$0xff] %vm368, -3.4028235e+38
        %10490 = vst.msk [vmem:[#allocation4 + $0x40] sm:$0x3] %vm616, -3.4028235e+38
        %10491 = vst.msk [vmem:[#allocation4 + $0x48] sm:$0xff] %vm368, -3.4028235e+38
        %10492 = vst.msk [vmem:[#allocation4 + $0x50] sm:$0xff] %vm368, -3.4028235e+38
        %10493 = vst.msk [vmem:[#allocation4 + $0x58] sm:$0x3] %vm616, -3.4028235e+38
        %10494 = vst.msk [vmem:[#allocation4 + $0x60] sm:$0xff] %vm368, -3.4028235e+38
        %10495 = vst.msk [vmem:[#allocation4 + $0x68] sm:$0xff] %vm368, -3.4028235e+38
        %10496 = vst.msk [vmem:[#allocation4 + $0x70] sm:$0x3] %vm616, -3.4028235e+38
        %10497 = vst.msk [vmem:[#allocation4 + $0x78] sm:$0xff] %vm368, -3.4028235e+38
        %10498 = vst.msk [vmem:[#allocation4 + $0x80] sm:$0xff] %vm368, -3.4028235e+38
        %10499 = vst.msk [vmem:[#allocation4 + $0x88] sm:$0x3] %vm616, -3.4028235e+38
        %10500 = vst.msk [vmem:[#allocation4 + $0x90] sm:$0xff] %vm368, -3.4028235e+38
        %10501 = vst.msk [vmem:[#allocation4 + $0x98] sm:$0xff] %vm368, -3.4028235e+38
        %10502 = vst.msk [vmem:[#allocation4 + $0xa0] sm:$0x3] %vm616, -3.4028235e+38
        %10503 = vst.msk [vmem:[#allocation4 + $0xa8] sm:$0xff] %vm368, -3.4028235e+38
        %10504 = vst.msk [vmem:[#allocation4 + $0xb0] sm:$0xff] %vm368, -3.4028235e+38
        %10505 = vst.msk [vmem:[#allocation4 + $0xb8] sm:$0x3] %vm616, -3.4028235e+38
        %10506 = vst.msk [vmem:[#allocation4 + $0xc0] sm:$0xff] %vm368, -3.4028235e+38
        %10507 = vst.msk [vmem:[#allocation4 + $0xc8] sm:$0xff] %vm368, -3.4028235e+38
        %10508 = vst.msk [vmem:[#allocation4 + $0xd0] sm:$0x3] %vm616, -3.4028235e+38
        %10509 = vst.msk [vmem:[#allocation4 + $0xd8] sm:$0xff] %vm368, -3.4028235e+38
        %10510 = vst.msk [vmem:[#allocation4 + $0xe0] sm:$0xff] %vm368, -3.4028235e+38
        %10511 = vst.msk [vmem:[#allocation4 + $0xe8] sm:$0x3] %vm616, -3.4028235e+38
        %10512 = vst.msk [vmem:[#allocation4 + $0xf0] sm:$0xff] %vm368, -3.4028235e+38
        %10513 = vst.msk [vmem:[#allocation4 + $0xf8] sm:$0xff] %vm368, -3.4028235e+38
        %10514 = vst.msk [vmem:[#allocation4 + $0x100] sm:$0x3] %vm616, -3.4028235e+38
        %10515 = vst.msk [vmem:[#allocation4 + $0x108] sm:$0xff] %vm368, -3.4028235e+38
        %10516 = vst.msk [vmem:[#allocation4 + $0x110] sm:$0xff] %vm368, -3.4028235e+38
        %10517 = vst.msk [vmem:[#allocation4 + $0x118] sm:$0x3] %vm616, -3.4028235e+38
        %10518 = vst.msk [vmem:[#allocation4 + $0x120] sm:$0xff] %vm368, -3.4028235e+38
        %10519 = vst.msk [vmem:[#allocation4 + $0x128] sm:$0xff] %vm368, -3.4028235e+38
        %10520 = vst.msk [vmem:[#allocation4 + $0x130] sm:$0x3] %vm616, -3.4028235e+38
        %10521 = vst.msk [vmem:[#allocation4 + $0x138] sm:$0xff] %vm368, -3.4028235e+38
        %10522 = vst.msk [vmem:[#allocation4 + $0x140] sm:$0xff] %vm368, -3.4028235e+38
        %10523 = vst.msk [vmem:[#allocation4 + $0x148] sm:$0x3] %vm616, -3.4028235e+38
        %10524 = vst.msk [vmem:[#allocation4 + $0x150] sm:$0xff] %vm368, -3.4028235e+38
        %10525 = vst.msk [vmem:[#allocation4 + $0x158] sm:$0xff] %vm368, -3.4028235e+38
        %10526 = vst.msk [vmem:[#allocation4 + $0x160] sm:$0x3] %vm616, -3.4028235e+38
        %10527 = vst.msk [vmem:[#allocation4 + $0x168] sm:$0xff] %vm368, -3.4028235e+38
        %10528 = vst.msk [vmem:[#allocation4 + $0x170] sm:$0xff] %vm368, -3.4028235e+38
        %10529 = vst.msk [vmem:[#allocation4 + $0x178] sm:$0x3] %vm616, -3.4028235e+38
        %10530 = vst.msk [vmem:[#allocation4 + $0x180] sm:$0xff] %vm368, -3.4028235e+38
        %10531 = vst.msk [vmem:[#allocation4 + $0x188] sm:$0xff] %vm368, -3.4028235e+38
        %10532 = vst.msk [vmem:[#allocation4 + $0x190] sm:$0x3] %vm616, -3.4028235e+38
        %10533 = vst.msk [vmem:[#allocation4 + $0x198] sm:$0xff] %vm368, -3.4028235e+38
        %10534 = vst.msk [vmem:[#allocation4 + $0x1a0] sm:$0xff] %vm368, -3.4028235e+38
        %10535 = vst.msk [vmem:[#allocation4 + $0x1a8] sm:$0x3] %vm616, -3.4028235e+38
        %s10536 = scalar_lea.vmem [#allocation4], 24
        %10537 = vst.msk [vmem:[%s10536 + $0x1] sm:$0xff] %vm368, %v331
        %10538 = vst.msk [vmem:[%s10536 + $0x9] sm:$0xff] %vm368, %v332
        %10539 = vst.msk [vmem:[%s10536 + $0x19] sm:$0xff] %vm368, %v333
        %10540 = vst.msk [vmem:[%s10536 + $0x21] sm:$0xff] %vm368, %v334
        %10541 = vst.msk [vmem:[%s10536 + $0x31] sm:$0xff] %vm368, %v335
        %10542 = vst.msk [vmem:[%s10536 + $0x39] sm:$0xff] %vm368, %v336
        %10543 = vst.msk [vmem:[%s10536 + $0x49] sm:$0xff] %vm368, %v337
        %10544 = vst.msk [vmem:[%s10536 + $0x51] sm:$0xff] %vm368, %v338
        %10545 = vst.msk [vmem:[%s10536 + $0x61] sm:$0xff] %vm368, %v339
        %10546 = vst.msk [vmem:[%s10536 + $0x69] sm:$0xff] %vm368, %v340
        %10547 = vst.msk [vmem:[%s10536 + $0x79] sm:$0xff] %vm368, %v341
        %10548 = vst.msk [vmem:[%s10536 + $0x81] sm:$0xff] %vm368, %v342
        %10549 = vst.msk [vmem:[%s10536 + $0x91] sm:$0xff] %vm368, %v343
        %10550 = vst.msk [vmem:[%s10536 + $0x99] sm:$0xff] %vm368, %v344
        %10551 = vst.msk [vmem:[%s10536 + $0xa9] sm:$0xff] %vm368, %v345
        %10552 = vst.msk [vmem:[%s10536 + $0xb1] sm:$0xff] %vm368, %v346
        %10553 = vst.msk [vmem:[%s10536 + $0xc1] sm:$0xff] %vm368, %v347
        %10554 = vst.msk [vmem:[%s10536 + $0xc9] sm:$0xff] %vm368, %v348
        %10555 = vst.msk [vmem:[%s10536 + $0xd9] sm:$0xff] %vm368, %v349
        %10556 = vst.msk [vmem:[%s10536 + $0xe1] sm:$0xff] %vm368, %v350
        %10557 = vst.msk [vmem:[%s10536 + $0xf1] sm:$0xff] %vm368, %v351
        %10558 = vst.msk [vmem:[%s10536 + $0xf9] sm:$0xff] %vm368, %v352
        %10559 = vst.msk [vmem:[%s10536 + $0x109] sm:$0xff] %vm368, %v353
        %10560 = vst.msk [vmem:[%s10536 + $0x111] sm:$0xff] %vm368, %v354
        %10561 = vst.msk [vmem:[%s10536 + $0x121] sm:$0xff] %vm368, %v355
        %10562 = vst.msk [vmem:[%s10536 + $0x129] sm:$0xff] %vm368, %v356
        %10563 = vst.msk [vmem:[%s10536 + $0x139] sm:$0xff] %vm368, %v357
        %10564 = vst.msk [vmem:[%s10536 + $0x141] sm:$0xff] %vm368, %v358
        %10565 = vst.msk [vmem:[%s10536 + $0x151] sm:$0xff] %vm368, %v359
        %10566 = vst.msk [vmem:[%s10536 + $0x159] sm:$0xff] %vm368, %v360
        %10567 = vst.msk [vmem:[%s10536 + $0x169] sm:$0xff] %vm368, %v361
        %10568 = vst.msk [vmem:[%s10536 + $0x171] sm:$0xff] %vm368, %v362
        %v10569 = vld [vmem:[#allocation4] sm:$0xff]
        %v10570 = vld [vmem:[#allocation4 + $0x8] sm:$0xff]
        %v10571 = vld [vmem:[#allocation4 + $0x10] sm:$0x3]
        %v10572 = vld [vmem:[#allocation4 + $0x18] sm:$0xff]
        %v10573 = vld [vmem:[#allocation4 + $0x20] sm:$0xff]
        %v10574 = vld [vmem:[#allocation4 + $0x28] sm:$0x3]
        %v10575 = vld [vmem:[#allocation4 + $0x30] sm:$0xff]
        %v10576 = vld [vmem:[#allocation4 + $0x38] sm:$0xff]
        %v10577 = vld [vmem:[#allocation4 + $0x40] sm:$0x3]
        %v10578 = vld [vmem:[#allocation4 + $0x48] sm:$0xff]
        %v10579 = vld [vmem:[#allocation4 + $0x50] sm:$0xff]
        %v10580 = vld [vmem:[#allocation4 + $0x58] sm:$0x3]
        %v10581 = vld [vmem:[#allocation4 + $0x60] sm:$0xff]
        %v10582 = vld [vmem:[#allocation4 + $0x68] sm:$0xff]
        %v10583 = vld [vmem:[#allocation4 + $0x70] sm:$0x3]
        %v10584 = vld [vmem:[#allocation4 + $0x78] sm:$0xff]
        %v10585 = vld [vmem:[#allocation4 + $0x80] sm:$0xff]
        %v10586 = vld [vmem:[#allocation4 + $0x88] sm:$0x3]
        %v10587 = vld [vmem:[#allocation4 + $0x90] sm:$0xff]
        %v10588 = vld [vmem:[#allocation4 + $0x98] sm:$0xff]
        %v10589 = vld [vmem:[#allocation4 + $0xa0] sm:$0x3]
        %v10590 = vld [vmem:[#allocation4 + $0xa8] sm:$0xff]
        %v10591 = vld [vmem:[#allocation4 + $0xb0] sm:$0xff]
        %v10592 = vld [vmem:[#allocation4 + $0xb8] sm:$0x3]
        %v10593 = vld [vmem:[#allocation4 + $0xc0] sm:$0xff]
        %v10594 = vld [vmem:[#allocation4 + $0xc8] sm:$0xff]
        %v10595 = vld [vmem:[#allocation4 + $0xd0] sm:$0x3]
        %v10596 = vld [vmem:[#allocation4 + $0xd8] sm:$0xff]
        %v10597 = vld [vmem:[#allocation4 + $0xe0] sm:$0xff]
        %v10598 = vld [vmem:[#allocation4 + $0xe8] sm:$0x3]
        %v10599 = vld [vmem:[#allocation4 + $0xf0] sm:$0xff]
        %v10600 = vld [vmem:[#allocation4 + $0xf8] sm:$0xff]
        %v10601 = vld [vmem:[#allocation4 + $0x100] sm:$0x3]
        %v10602 = vld [vmem:[#allocation4 + $0x108] sm:$0xff]
        %v10603 = vld [vmem:[#allocation4 + $0x110] sm:$0xff]
        %v10604 = vld [vmem:[#allocation4 + $0x118] sm:$0x3]
        %v10605 = vld [vmem:[#allocation4 + $0x120] sm:$0xff]
        %v10606 = vld [vmem:[#allocation4 + $0x128] sm:$0xff]
        %v10607 = vld [vmem:[#allocation4 + $0x130] sm:$0x3]
        %v10608 = vld [vmem:[#allocation4 + $0x138] sm:$0xff]
        %v10609 = vld [vmem:[#allocation4 + $0x140] sm:$0xff]
        %v10610 = vld [vmem:[#allocation4 + $0x148] sm:$0x3]
        %v10611 = vld [vmem:[#allocation4 + $0x150] sm:$0xff]
        %v10612 = vld [vmem:[#allocation4 + $0x158] sm:$0xff]
        %v10613 = vld [vmem:[#allocation4 + $0x160] sm:$0x3]
        %v10614 = vld [vmem:[#allocation4 + $0x168] sm:$0xff]
        %v10615 = vld [vmem:[#allocation4 + $0x170] sm:$0xff]
        %v10616 = vld [vmem:[#allocation4 + $0x178] sm:$0x3]
        %v10617 = vld [vmem:[%s10536] sm:$0xff]
        %v10618 = vld [vmem:[%s10536 + $0x8] sm:$0xff]
        %v10619 = vld [vmem:[%s10536 + $0x10] sm:$0x3]
        %v10620 = vld [vmem:[%s10536 + $0x18] sm:$0xff]
        %v10621 = vld [vmem:[%s10536 + $0x20] sm:$0xff]
        %v10622 = vld [vmem:[%s10536 + $0x28] sm:$0x3]
        %v10623 = vld [vmem:[%s10536 + $0x30] sm:$0xff]
        %v10624 = vld [vmem:[%s10536 + $0x38] sm:$0xff]
        %v10625 = vld [vmem:[%s10536 + $0x40] sm:$0x3]
        %v10626 = vld [vmem:[%s10536 + $0x48] sm:$0xff]
        %v10627 = vld [vmem:[%s10536 + $0x50] sm:$0xff]
        %v10628 = vld [vmem:[%s10536 + $0x58] sm:$0x3]
        %v10629 = vld [vmem:[%s10536 + $0x60] sm:$0xff]
        %v10630 = vld [vmem:[%s10536 + $0x68] sm:$0xff]
        %v10631 = vld [vmem:[%s10536 + $0x70] sm:$0x3]
        %v10632 = vld [vmem:[%s10536 + $0x78] sm:$0xff]
        %v10633 = vld [vmem:[%s10536 + $0x80] sm:$0xff]
        %v10634 = vld [vmem:[%s10536 + $0x88] sm:$0x3]
        %v10635 = vld [vmem:[%s10536 + $0x90] sm:$0xff]
        %v10636 = vld [vmem:[%s10536 + $0x98] sm:$0xff]
        %v10637 = vld [vmem:[%s10536 + $0xa0] sm:$0x3]
        %v10638 = vld [vmem:[%s10536 + $0xa8] sm:$0xff]
        %v10639 = vld [vmem:[%s10536 + $0xb0] sm:$0xff]
        %v10640 = vld [vmem:[%s10536 + $0xb8] sm:$0x3]
        %v10641 = vld [vmem:[%s10536 + $0xc0] sm:$0xff]
        %v10642 = vld [vmem:[%s10536 + $0xc8] sm:$0xff]
        %v10643 = vld [vmem:[%s10536 + $0xd0] sm:$0x3]
        %v10644 = vld [vmem:[%s10536 + $0xd8] sm:$0xff]
        %v10645 = vld [vmem:[%s10536 + $0xe0] sm:$0xff]
        %v10646 = vld [vmem:[%s10536 + $0xe8] sm:$0x3]
        %v10647 = vld [vmem:[%s10536 + $0xf0] sm:$0xff]
        %v10648 = vld [vmem:[%s10536 + $0xf8] sm:$0xff]
        %v10649 = vld [vmem:[%s10536 + $0x100] sm:$0x3]
        %v10650 = vld [vmem:[%s10536 + $0x108] sm:$0xff]
        %v10651 = vld [vmem:[%s10536 + $0x110] sm:$0xff]
        %v10652 = vld [vmem:[%s10536 + $0x118] sm:$0x3]
        %v10653 = vld [vmem:[%s10536 + $0x120] sm:$0xff]
        %v10654 = vld [vmem:[%s10536 + $0x128] sm:$0xff]
        %v10655 = vld [vmem:[%s10536 + $0x130] sm:$0x3]
        %v10656 = vld [vmem:[%s10536 + $0x138] sm:$0xff]
        %v10657 = vld [vmem:[%s10536 + $0x140] sm:$0xff]
        %v10658 = vld [vmem:[%s10536 + $0x148] sm:$0x3]
        %v10659 = vld [vmem:[%s10536 + $0x150] sm:$0xff]
        %v10660 = vld [vmem:[%s10536 + $0x158] sm:$0xff]
        %v10661 = vld [vmem:[%s10536 + $0x160] sm:$0x3]
        %v10662 = vld [vmem:[%s10536 + $0x168] sm:$0xff]
        %v10663 = vld [vmem:[%s10536 + $0x170] sm:$0xff]
        %v10664 = vld [vmem:[%s10536 + $0x178] sm:$0x3]
        %v10665 = vmax.f32 %v10569, %v10617
        %v10666 = vmax.f32 %v10570, %v10618
        %v10667 = vmax.f32 %v10571, %v10619
        %v10668 = vmax.f32 %v10572, %v10620
        %v10669 = vmax.f32 %v10573, %v10621
        %v10670 = vmax.f32 %v10574, %v10622
        %v10671 = vmax.f32 %v10575, %v10623
        %v10672 = vmax.f32 %v10576, %v10624
        %v10673 = vmax.f32 %v10577, %v10625
        %v10674 = vmax.f32 %v10578, %v10626
        %v10675 = vmax.f32 %v10579, %v10627
        %v10676 = vmax.f32 %v10580, %v10628
        %v10677 = vmax.f32 %v10581, %v10629
        %v10678 = vmax.f32 %v10582, %v10630
        %v10679 = vmax.f32 %v10583, %v10631
        %v10680 = vmax.f32 %v10584, %v10632
        %v10681 = vmax.f32 %v10585, %v10633
        %v10682 = vmax.f32 %v10586, %v10634
        %v10683 = vmax.f32 %v10587, %v10635
        %v10684 = vmax.f32 %v10588, %v10636
        %v10685 = vmax.f32 %v10589, %v10637
        %v10686 = vmax.f32 %v10590, %v10638
        %v10687 = vmax.f32 %v10591, %v10639
        %v10688 = vmax.f32 %v10592, %v10640
        %v10689 = vmax.f32 %v10593, %v10641
        %v10690 = vmax.f32 %v10594, %v10642
        %v10691 = vmax.f32 %v10595, %v10643
        %v10692 = vmax.f32 %v10596, %v10644
        %v10693 = vmax.f32 %v10597, %v10645
        %v10694 = vmax.f32 %v10598, %v10646
        %v10695 = vmax.f32 %v10599, %v10647
        %v10696 = vmax.f32 %v10600, %v10648
        %v10697 = vmax.f32 %v10601, %v10649
        %v10698 = vmax.f32 %v10602, %v10650
        %v10699 = vmax.f32 %v10603, %v10651
        %v10700 = vmax.f32 %v10604, %v10652
        %v10701 = vmax.f32 %v10605, %v10653
        %v10702 = vmax.f32 %v10606, %v10654
        %v10703 = vmax.f32 %v10607, %v10655
        %v10704 = vmax.f32 %v10608, %v10656
        %v10705 = vmax.f32 %v10609, %v10657
        %v10706 = vmax.f32 %v10610, %v10658
        %v10707 = vmax.f32 %v10611, %v10659
        %v10708 = vmax.f32 %v10612, %v10660
        %v10709 = vmax.f32 %v10613, %v10661
        %v10710 = vmax.f32 %v10614, %v10662
        %v10711 = vmax.f32 %v10615, %v10663
        %v10712 = vmax.f32 %v10616, %v10664
        %s10713 = scalar_lea.vmem [#allocation4], 48
        %v10714 = vld [vmem:[%s10713] sm:$0xff]
        %v10715 = vld [vmem:[%s10713 + $0x8] sm:$0xff]
        %v10716 = vld [vmem:[%s10713 + $0x10] sm:$0x3]
        %v10717 = vld [vmem:[%s10713 + $0x18] sm:$0xff]
        %v10718 = vld [vmem:[%s10713 + $0x20] sm:$0xff]
        %v10719 = vld [vmem:[%s10713 + $0x28] sm:$0x3]
        %v10720 = vld [vmem:[%s10713 + $0x30] sm:$0xff]
        %v10721 = vld [vmem:[%s10713 + $0x38] sm:$0xff]
        %v10722 = vld [vmem:[%s10713 + $0x40] sm:$0x3]
        %v10723 = vld [vmem:[%s10713 + $0x48] sm:$0xff]
        %v10724 = vld [vmem:[%s10713 + $0x50] sm:$0xff]
        %v10725 = vld [vmem:[%s10713 + $0x58] sm:$0x3]
        %v10726 = vld [vmem:[%s10713 + $0x60] sm:$0xff]
        %v10727 = vld [vmem:[%s10713 + $0x68] sm:$0xff]
        %v10728 = vld [vmem:[%s10713 + $0x70] sm:$0x3]
        %v10729 = vld [vmem:[%s10713 + $0x78] sm:$0xff]
        %v10730 = vld [vmem:[%s10713 + $0x80] sm:$0xff]
        %v10731 = vld [vmem:[%s10713 + $0x88] sm:$0x3]
        %v10732 = vld [vmem:[%s10713 + $0x90] sm:$0xff]
        %v10733 = vld [vmem:[%s10713 + $0x98] sm:$0xff]
        %v10734 = vld [vmem:[%s10713 + $0xa0] sm:$0x3]
        %v10735 = vld [vmem:[%s10713 + $0xa8] sm:$0xff]
        %v10736 = vld [vmem:[%s10713 + $0xb0] sm:$0xff]
        %v10737 = vld [vmem:[%s10713 + $0xb8] sm:$0x3]
        %v10738 = vld [vmem:[%s10713 + $0xc0] sm:$0xff]
        %v10739 = vld [vmem:[%s10713 + $0xc8] sm:$0xff]
        %v10740 = vld [vmem:[%s10713 + $0xd0] sm:$0x3]
        %v10741 = vld [vmem:[%s10713 + $0xd8] sm:$0xff]
        %v10742 = vld [vmem:[%s10713 + $0xe0] sm:$0xff]
        %v10743 = vld [vmem:[%s10713 + $0xe8] sm:$0x3]
        %v10744 = vld [vmem:[%s10713 + $0xf0] sm:$0xff]
        %v10745 = vld [vmem:[%s10713 + $0xf8] sm:$0xff]
        %v10746 = vld [vmem:[%s10713 + $0x100] sm:$0x3]
        %v10747 = vld [vmem:[%s10713 + $0x108] sm:$0xff]
        %v10748 = vld [vmem:[%s10713 + $0x110] sm:$0xff]
        %v10749 = vld [vmem:[%s10713 + $0x118] sm:$0x3]
        %v10750 = vld [vmem:[%s10713 + $0x120] sm:$0xff]
        %v10751 = vld [vmem:[%s10713 + $0x128] sm:$0xff]
        %v10752 = vld [vmem:[%s10713 + $0x130] sm:$0x3]
        %v10753 = vld [vmem:[%s10713 + $0x138] sm:$0xff]
        %v10754 = vld [vmem:[%s10713 + $0x140] sm:$0xff]
        %v10755 = vld [vmem:[%s10713 + $0x148] sm:$0x3]
        %v10756 = vld [vmem:[%s10713 + $0x150] sm:$0xff]
        %v10757 = vld [vmem:[%s10713 + $0x158] sm:$0xff]
        %v10758 = vld [vmem:[%s10713 + $0x160] sm:$0x3]
        %v10759 = vld [vmem:[%s10713 + $0x168] sm:$0xff]
        %v10760 = vld [vmem:[%s10713 + $0x170] sm:$0xff]
        %v10761 = vld [vmem:[%s10713 + $0x178] sm:$0x3]
        %v10762 = vmax.f32 %v10665, %v10714
        %v10763 = vmax.f32 %v10666, %v10715
        %v10764 = vmax.f32 %v10667, %v10716
        %v10765 = vmax.f32 %v10668, %v10717
        %v10766 = vmax.f32 %v10669, %v10718
        %v10767 = vmax.f32 %v10670, %v10719
        %v10768 = vmax.f32 %v10671, %v10720
        %v10769 = vmax.f32 %v10672, %v10721
        %v10770 = vmax.f32 %v10673, %v10722
        %v10771 = vmax.f32 %v10674, %v10723
        %v10772 = vmax.f32 %v10675, %v10724
        %v10773 = vmax.f32 %v10676, %v10725
        %v10774 = vmax.f32 %v10677, %v10726
        %v10775 = vmax.f32 %v10678, %v10727
        %v10776 = vmax.f32 %v10679, %v10728
        %v10777 = vmax.f32 %v10680, %v10729
        %v10778 = vmax.f32 %v10681, %v10730
        %v10779 = vmax.f32 %v10682, %v10731
        %v10780 = vmax.f32 %v10683, %v10732
        %v10781 = vmax.f32 %v10684, %v10733
        %v10782 = vmax.f32 %v10685, %v10734
        %v10783 = vmax.f32 %v10686, %v10735
        %v10784 = vmax.f32 %v10687, %v10736
        %v10785 = vmax.f32 %v10688, %v10737
        %v10786 = vmax.f32 %v10689, %v10738
        %v10787 = vmax.f32 %v10690, %v10739
        %v10788 = vmax.f32 %v10691, %v10740
        %v10789 = vmax.f32 %v10692, %v10741
        %v10790 = vmax.f32 %v10693, %v10742
        %v10791 = vmax.f32 %v10694, %v10743
        %v10792 = vmax.f32 %v10695, %v10744
        %v10793 = vmax.f32 %v10696, %v10745
        %v10794 = vmax.f32 %v10697, %v10746
        %v10795 = vmax.f32 %v10698, %v10747
        %v10796 = vmax.f32 %v10699, %v10748
        %v10797 = vmax.f32 %v10700, %v10749
        %v10798 = vmax.f32 %v10701, %v10750
        %v10799 = vmax.f32 %v10702, %v10751
        %v10800 = vmax.f32 %v10703, %v10752
        %v10801 = vmax.f32 %v10704, %v10753
        %v10802 = vmax.f32 %v10705, %v10754
        %v10803 = vmax.f32 %v10706, %v10755
        %v10804 = vmax.f32 %v10707, %v10756
        %v10805 = vmax.f32 %v10708, %v10757
        %v10806 = vmax.f32 %v10709, %v10758
        %v10807 = vmax.f32 %v10710, %v10759
        %v10808 = vmax.f32 %v10711, %v10760
        %v10809 = vmax.f32 %v10712, %v10761
        %vm10858 = vcmask 1046528
        %v10859 = vrot.slane %v10762, 1
        %v10860 = vrot.slane %v10763, 1
        %v10861 = vsel %vm10858, %v10859, %v10860
        %v10862 = vrot.slane %v10764, 1
        %v10863 = vsel %vm10858, %v10860, %v10862
        %v10864 = vrot.slane %v10765, 1
        %v10865 = vrot.slane %v10766, 1
        %v10866 = vsel %vm10858, %v10864, %v10865
        %v10867 = vrot.slane %v10767, 1
        %v10868 = vsel %vm10858, %v10865, %v10867
        %v10869 = vrot.slane %v10768, 1
        %v10870 = vrot.slane %v10769, 1
        %v10871 = vsel %vm10858, %v10869, %v10870
        %v10872 = vrot.slane %v10770, 1
        %v10873 = vsel %vm10858, %v10870, %v10872
        %v10874 = vrot.slane %v10771, 1
        %v10875 = vrot.slane %v10772, 1
        %v10876 = vsel %vm10858, %v10874, %v10875
        %v10877 = vrot.slane %v10773, 1
        %v10878 = vsel %vm10858, %v10875, %v10877
        %v10879 = vrot.slane %v10774, 1
        %v10880 = vrot.slane %v10775, 1
        %v10881 = vsel %vm10858, %v10879, %v10880
        %v10882 = vrot.slane %v10776, 1
        %v10883 = vsel %vm10858, %v10880, %v10882
        %v10884 = vrot.slane %v10777, 1
        %v10885 = vrot.slane %v10778, 1
        %v10886 = vsel %vm10858, %v10884, %v10885
        %v10887 = vrot.slane %v10779, 1
        %v10888 = vsel %vm10858, %v10885, %v10887
        %v10889 = vrot.slane %v10780, 1
        %v10890 = vrot.slane %v10781, 1
        %v10891 = vsel %vm10858, %v10889, %v10890
        %v10892 = vrot.slane %v10782, 1
        %v10893 = vsel %vm10858, %v10890, %v10892
        %v10894 = vrot.slane %v10783, 1
        %v10895 = vrot.slane %v10784, 1
        %v10896 = vsel %vm10858, %v10894, %v10895
        %v10897 = vrot.slane %v10785, 1
        %v10898 = vsel %vm10858, %v10895, %v10897
        %v10899 = vrot.slane %v10786, 1
        %v10900 = vrot.slane %v10787, 1
        %v10901 = vsel %vm10858, %v10899, %v10900
        %v10902 = vrot.slane %v10788, 1
        %v10903 = vsel %vm10858, %v10900, %v10902
        %v10904 = vrot.slane %v10789, 1
        %v10905 = vrot.slane %v10790, 1
        %v10906 = vsel %vm10858, %v10904, %v10905
        %v10907 = vrot.slane %v10791, 1
        %v10908 = vsel %vm10858, %v10905, %v10907
        %v10909 = vrot.slane %v10792, 1
        %v10910 = vrot.slane %v10793, 1
        %v10911 = vsel %vm10858, %v10909, %v10910
        %v10912 = vrot.slane %v10794, 1
        %v10913 = vsel %vm10858, %v10910, %v10912
        %v10914 = vrot.slane %v10795, 1
        %v10915 = vrot.slane %v10796, 1
        %v10916 = vsel %vm10858, %v10914, %v10915
        %v10917 = vrot.slane %v10797, 1
        %v10918 = vsel %vm10858, %v10915, %v10917
        %v10919 = vrot.slane %v10798, 1
        %v10920 = vrot.slane %v10799, 1
        %v10921 = vsel %vm10858, %v10919, %v10920
        %v10922 = vrot.slane %v10800, 1
        %v10923 = vsel %vm10858, %v10920, %v10922
        %v10924 = vrot.slane %v10801, 1
        %v10925 = vrot.slane %v10802, 1
        %v10926 = vsel %vm10858, %v10924, %v10925
        %v10927 = vrot.slane %v10803, 1
        %v10928 = vsel %vm10858, %v10925, %v10927
        %v10929 = vrot.slane %v10804, 1
        %v10930 = vrot.slane %v10805, 1
        %v10931 = vsel %vm10858, %v10929, %v10930
        %v10932 = vrot.slane %v10806, 1
        %v10933 = vsel %vm10858, %v10930, %v10932
        %v10934 = vrot.slane %v10807, 1
        %v10935 = vrot.slane %v10808, 1
        %v10936 = vsel %vm10858, %v10934, %v10935
        %v10937 = vrot.slane %v10809, 1
        %v10938 = vsel %vm10858, %v10935, %v10937
        %v10971 = vmax.f32 %v10762, %v10861
        %v10972 = vmax.f32 %v10763, %v10863
        %v10973 = vmax.f32 %v10765, %v10866
        %v10974 = vmax.f32 %v10766, %v10868
        %v10975 = vmax.f32 %v10768, %v10871
        %v10976 = vmax.f32 %v10769, %v10873
        %v10977 = vmax.f32 %v10771, %v10876
        %v10978 = vmax.f32 %v10772, %v10878
        %v10979 = vmax.f32 %v10774, %v10881
        %v10980 = vmax.f32 %v10775, %v10883
        %v10981 = vmax.f32 %v10777, %v10886
        %v10982 = vmax.f32 %v10778, %v10888
        %v10983 = vmax.f32 %v10780, %v10891
        %v10984 = vmax.f32 %v10781, %v10893
        %v10985 = vmax.f32 %v10783, %v10896
        %v10986 = vmax.f32 %v10784, %v10898
        %v10987 = vmax.f32 %v10786, %v10901
        %v10988 = vmax.f32 %v10787, %v10903
        %v10989 = vmax.f32 %v10789, %v10906
        %v10990 = vmax.f32 %v10790, %v10908
        %v10991 = vmax.f32 %v10792, %v10911
        %v10992 = vmax.f32 %v10793, %v10913
        %v10993 = vmax.f32 %v10795, %v10916
        %v10994 = vmax.f32 %v10796, %v10918
        %v10995 = vmax.f32 %v10798, %v10921
        %v10996 = vmax.f32 %v10799, %v10923
        %v10997 = vmax.f32 %v10801, %v10926
        %v10998 = vmax.f32 %v10802, %v10928
        %v10999 = vmax.f32 %v10804, %v10931
        %v11000 = vmax.f32 %v10805, %v10933
        %v11001 = vmax.f32 %v10807, %v10936
        %v11002 = vmax.f32 %v10808, %v10938
        %vm11003 = vcmask 1045504
        %v11004 = vrot.slane %v10762, 2
        %v11005 = vrot.slane %v10763, 2
        %v11006 = vsel %vm11003, %v11004, %v11005
        %v11007 = vrot.slane %v10764, 2
        %v11008 = vsel %vm11003, %v11005, %v11007
        %v11009 = vrot.slane %v10765, 2
        %v11010 = vrot.slane %v10766, 2
        %v11011 = vsel %vm11003, %v11009, %v11010
        %v11012 = vrot.slane %v10767, 2
        %v11013 = vsel %vm11003, %v11010, %v11012
        %v11014 = vrot.slane %v10768, 2
        %v11015 = vrot.slane %v10769, 2
        %v11016 = vsel %vm11003, %v11014, %v11015
        %v11017 = vrot.slane %v10770, 2
        %v11018 = vsel %vm11003, %v11015, %v11017
        %v11019 = vrot.slane %v10771, 2
        %v11020 = vrot.slane %v10772, 2
        %v11021 = vsel %vm11003, %v11019, %v11020
        %v11022 = vrot.slane %v10773, 2
        %v11023 = vsel %vm11003, %v11020, %v11022
        %v11024 = vrot.slane %v10774, 2
        %v11025 = vrot.slane %v10775, 2
        %v11026 = vsel %vm11003, %v11024, %v11025
        %v11027 = vrot.slane %v10776, 2
        %v11028 = vsel %vm11003, %v11025, %v11027
        %v11029 = vrot.slane %v10777, 2
        %v11030 = vrot.slane %v10778, 2
        %v11031 = vsel %vm11003, %v11029, %v11030
        %v11032 = vrot.slane %v10779, 2
        %v11033 = vsel %vm11003, %v11030, %v11032
        %v11034 = vrot.slane %v10780, 2
        %v11035 = vrot.slane %v10781, 2
        %v11036 = vsel %vm11003, %v11034, %v11035
        %v11037 = vrot.slane %v10782, 2
        %v11038 = vsel %vm11003, %v11035, %v11037
        %v11039 = vrot.slane %v10783, 2
        %v11040 = vrot.slane %v10784, 2
        %v11041 = vsel %vm11003, %v11039, %v11040
        %v11042 = vrot.slane %v10785, 2
        %v11043 = vsel %vm11003, %v11040, %v11042
        %v11044 = vrot.slane %v10786, 2
        %v11045 = vrot.slane %v10787, 2
        %v11046 = vsel %vm11003, %v11044, %v11045
        %v11047 = vrot.slane %v10788, 2
        %v11048 = vsel %vm11003, %v11045, %v11047
        %v11049 = vrot.slane %v10789, 2
        %v11050 = vrot.slane %v10790, 2
        %v11051 = vsel %vm11003, %v11049, %v11050
        %v11052 = vrot.slane %v10791, 2
        %v11053 = vsel %vm11003, %v11050, %v11052
        %v11054 = vrot.slane %v10792, 2
        %v11055 = vrot.slane %v10793, 2
        %v11056 = vsel %vm11003, %v11054, %v11055
        %v11057 = vrot.slane %v10794, 2
        %v11058 = vsel %vm11003, %v11055, %v11057
        %v11059 = vrot.slane %v10795, 2
        %v11060 = vrot.slane %v10796, 2
        %v11061 = vsel %vm11003, %v11059, %v11060
        %v11062 = vrot.slane %v10797, 2
        %v11063 = vsel %vm11003, %v11060, %v11062
        %v11064 = vrot.slane %v10798, 2
        %v11065 = vrot.slane %v10799, 2
        %v11066 = vsel %vm11003, %v11064, %v11065
        %v11067 = vrot.slane %v10800, 2
        %v11068 = vsel %vm11003, %v11065, %v11067
        %v11069 = vrot.slane %v10801, 2
        %v11070 = vrot.slane %v10802, 2
        %v11071 = vsel %vm11003, %v11069, %v11070
        %v11072 = vrot.slane %v10803, 2
        %v11073 = vsel %vm11003, %v11070, %v11072
        %v11074 = vrot.slane %v10804, 2
        %v11075 = vrot.slane %v10805, 2
        %v11076 = vsel %vm11003, %v11074, %v11075
        %v11077 = vrot.slane %v10806, 2
        %v11078 = vsel %vm11003, %v11075, %v11077
        %v11079 = vrot.slane %v10807, 2
        %v11080 = vrot.slane %v10808, 2
        %v11081 = vsel %vm11003, %v11079, %v11080
        %v11082 = vrot.slane %v10809, 2
        %v11083 = vsel %vm11003, %v11080, %v11082
        %v11116 = vmax.f32 %v10971, %v11006
        %v11117 = vmax.f32 %v10972, %v11008
        %v11118 = vmax.f32 %v10973, %v11011
        %v11119 = vmax.f32 %v10974, %v11013
        %v11120 = vmax.f32 %v10975, %v11016
        %v11121 = vmax.f32 %v10976, %v11018
        %v11122 = vmax.f32 %v10977, %v11021
        %v11123 = vmax.f32 %v10978, %v11023
        %v11124 = vmax.f32 %v10979, %v11026
        %v11125 = vmax.f32 %v10980, %v11028
        %v11126 = vmax.f32 %v10981, %v11031
        %v11127 = vmax.f32 %v10982, %v11033
        %v11128 = vmax.f32 %v10983, %v11036
        %v11129 = vmax.f32 %v10984, %v11038
        %v11130 = vmax.f32 %v10985, %v11041
        %v11131 = vmax.f32 %v10986, %v11043
        %v11132 = vmax.f32 %v10987, %v11046
        %v11133 = vmax.f32 %v10988, %v11048
        %v11134 = vmax.f32 %v10989, %v11051
        %v11135 = vmax.f32 %v10990, %v11053
        %v11136 = vmax.f32 %v10991, %v11056
        %v11137 = vmax.f32 %v10992, %v11058
        %v11138 = vmax.f32 %v10993, %v11061
        %v11139 = vmax.f32 %v10994, %v11063
        %v11140 = vmax.f32 %v10995, %v11066
        %v11141 = vmax.f32 %v10996, %v11068
        %v11142 = vmax.f32 %v10997, %v11071
        %v11143 = vmax.f32 %v10998, %v11073
        %v11144 = vmax.f32 %v10999, %v11076
        %v11145 = vmax.f32 %v11000, %v11078
        %v11146 = vmax.f32 %v11001, %v11081
        %v11147 = vmax.f32 %v11002, %v11083
        %v11148 = vld [vmem:[%s7] sm:$0xf]
        %v11149 = vld [vmem:[%s8] sm:$0x1]
        %v11151 = vperm.slane %v11149, 0
        %v11154 = vsel %vm368, %v11116, 0
        %v11157 = vsel %vm368, %v11117, 0
        %v11160 = vsel %vm368, %v11118, 0
        %v11163 = vsel %vm368, %v11119, 0
        %v11166 = vsel %vm368, %v11120, 0
        %v11169 = vsel %vm368, %v11121, 0
        %v11172 = vsel %vm368, %v11122, 0
        %v11175 = vsel %vm368, %v11123, 0
        %v11178 = vsel %vm368, %v11124, 0
        %v11181 = vsel %vm368, %v11125, 0
        %v11184 = vsel %vm368, %v11126, 0
        %v11187 = vsel %vm368, %v11127, 0
        %v11190 = vsel %vm368, %v11128, 0
        %v11193 = vsel %vm368, %v11129, 0
        %v11196 = vsel %vm368, %v11130, 0
        %v11199 = vsel %vm368, %v11131, 0
        %v11202 = vsel %vm368, %v11132, 0
        %v11205 = vsel %vm368, %v11133, 0
        %v11208 = vsel %vm368, %v11134, 0
        %v11211 = vsel %vm368, %v11135, 0
        %v11214 = vsel %vm368, %v11136, 0
        %v11217 = vsel %vm368, %v11137, 0
        %v11220 = vsel %vm368, %v11138, 0
        %v11223 = vsel %vm368, %v11139, 0
        %v11226 = vsel %vm368, %v11140, 0
        %v11229 = vsel %vm368, %v11141, 0
        %v11232 = vsel %vm368, %v11142, 0
        %v11235 = vsel %vm368, %v11143, 0
        %v11238 = vsel %vm368, %v11144, 0
        %v11241 = vsel %vm368, %v11145, 0
        %v11244 = vsel %vm368, %v11146, 0
        %v11247 = vsel %vm368, %v11147, 0
        %v11250 = vsel %vm465, %v11148, 0
        %11252 = vmatpush.msra.mxu0 0.0
        %11253 = vmatpush.msra.mxu0 0.0
        %11254 = vmatpush.msra.mxu0 0.0
        %11255 = vmatpush.msra.mxu0 0.0
        %11256 = vmatpush.msra.mxu0 0.0
        %11257 = vmatpush.msra.mxu0 0.0
        %11258 = vmatpush.msra.mxu0 0.0
        %11259 = vmatpush.msra.mxu0 0.0
        %11260 = vmatpush.msra.mxu0 0.0
        %11261 = vmatpush.msra.mxu0 0.0
        %11262 = vmatpush.msra.mxu0 0.0
        %11263 = vmatpush.msra.mxu0 0.0
        %11264 = vmatpush.msra.mxu0 0.0
        %11265 = vmatpush.msra.mxu0 0.0
        %11266 = vmatpush.msra.mxu0 0.0
        %11267 = vmatpush.msra.mxu0 %v11250
        %11268 = vmatmul.f32.gmra.mxu0 %v11154
        %v11269 = vpop.f32.mrf.mxu0
        %v11270 = vadd.f32 %v11151, %v11269
        %11271 = vmatmul.f32.gmra.mxu0 %v11157
        %v11272 = vpop.f32.mrf.mxu0
        %v11273 = vadd.f32 %v11151, %v11272
        %11274 = vmatmul.f32.gmra.mxu0 %v11160
        %v11275 = vpop.f32.mrf.mxu0
        %v11276 = vadd.f32 %v11151, %v11275
        %11277 = vmatmul.f32.gmra.mxu0 %v11163
        %v11278 = vpop.f32.mrf.mxu0
        %v11279 = vadd.f32 %v11151, %v11278
        %11280 = vmatmul.f32.gmra.mxu0 %v11166
        %v11281 = vpop.f32.mrf.mxu0
        %v11282 = vadd.f32 %v11151, %v11281
        %11283 = vmatmul.f32.gmra.mxu0 %v11169
        %v11284 = vpop.f32.mrf.mxu0
        %v11285 = vadd.f32 %v11151, %v11284
        %11286 = vmatmul.f32.gmra.mxu0 %v11172
        %v11287 = vpop.f32.mrf.mxu0
        %v11288 = vadd.f32 %v11151, %v11287
        %11289 = vmatmul.f32.gmra.mxu0 %v11175
        %v11290 = vpop.f32.mrf.mxu0
        %v11291 = vadd.f32 %v11151, %v11290
        %11292 = vmatmul.f32.gmra.mxu0 %v11178
        %v11293 = vpop.f32.mrf.mxu0
        %v11294 = vadd.f32 %v11151, %v11293
        %11295 = vmatmul.f32.gmra.mxu0 %v11181
        %v11296 = vpop.f32.mrf.mxu0
        %v11297 = vadd.f32 %v11151, %v11296
        %11298 = vmatmul.f32.gmra.mxu0 %v11184
        %v11299 = vpop.f32.mrf.mxu0
        %v11300 = vadd.f32 %v11151, %v11299
        %11301 = vmatmul.f32.gmra.mxu0 %v11187
        %v11302 = vpop.f32.mrf.mxu0
        %v11303 = vadd.f32 %v11151, %v11302
        %11304 = vmatmul.f32.gmra.mxu0 %v11190
        %v11305 = vpop.f32.mrf.mxu0
        %v11306 = vadd.f32 %v11151, %v11305
        %11307 = vmatmul.f32.gmra.mxu0 %v11193
        %v11308 = vpop.f32.mrf.mxu0
        %v11309 = vadd.f32 %v11151, %v11308
        %11310 = vmatmul.f32.gmra.mxu0 %v11196
        %v11311 = vpop.f32.mrf.mxu0
        %v11312 = vadd.f32 %v11151, %v11311
        %11313 = vmatmul.f32.gmra.mxu0 %v11199
        %v11314 = vpop.f32.mrf.mxu0
        %v11315 = vadd.f32 %v11151, %v11314
        %11316 = vmatmul.f32.gmra.mxu0 %v11202
        %v11317 = vpop.f32.mrf.mxu0
        %v11318 = vadd.f32 %v11151, %v11317
        %11319 = vmatmul.f32.gmra.mxu0 %v11205
        %v11320 = vpop.f32.mrf.mxu0
        %v11321 = vadd.f32 %v11151, %v11320
        %11322 = vmatmul.f32.gmra.mxu0 %v11208
        %v11323 = vpop.f32.mrf.mxu0
        %v11324 = vadd.f32 %v11151, %v11323
        %11325 = vmatmul.f32.gmra.mxu0 %v11211
        %v11326 = vpop.f32.mrf.mxu0
        %v11327 = vadd.f32 %v11151, %v11326
        %11328 = vmatmul.f32.gmra.mxu0 %v11214
        %v11329 = vpop.f32.mrf.mxu0
        %v11330 = vadd.f32 %v11151, %v11329
        %11331 = vmatmul.f32.gmra.mxu0 %v11217
        %v11332 = vpop.f32.mrf.mxu0
        %v11333 = vadd.f32 %v11151, %v11332
        %11334 = vmatmul.f32.gmra.mxu0 %v11220
        %v11335 = vpop.f32.mrf.mxu0
        %v11336 = vadd.f32 %v11151, %v11335
        %11337 = vmatmul.f32.gmra.mxu0 %v11223
        %v11338 = vpop.f32.mrf.mxu0
        %v11339 = vadd.f32 %v11151, %v11338
        %11340 = vmatmul.f32.gmra.mxu0 %v11226
        %v11341 = vpop.f32.mrf.mxu0
        %v11342 = vadd.f32 %v11151, %v11341
        %11343 = vmatmul.f32.gmra.mxu0 %v11229
        %v11344 = vpop.f32.mrf.mxu0
        %v11345 = vadd.f32 %v11151, %v11344
        %11346 = vmatmul.f32.gmra.mxu0 %v11232
        %v11347 = vpop.f32.mrf.mxu0
        %v11348 = vadd.f32 %v11151, %v11347
        %11349 = vmatmul.f32.gmra.mxu0 %v11235
        %v11350 = vpop.f32.mrf.mxu0
        %v11351 = vadd.f32 %v11151, %v11350
        %11352 = vmatmul.f32.gmra.mxu0 %v11238
        %v11353 = vpop.f32.mrf.mxu0
        %v11354 = vadd.f32 %v11151, %v11353
        %11355 = vmatmul.f32.gmra.mxu0 %v11241
        %v11356 = vpop.f32.mrf.mxu0
        %v11357 = vadd.f32 %v11151, %v11356
        %11358 = vmatmul.f32.gmra.mxu0 %v11244
        %v11359 = vpop.f32.mrf.mxu0
        %v11360 = vadd.f32 %v11151, %v11359
        %11361 = vmatmul.f32.gmra.mxu0 %v11247
        %v11362 = vpop.f32.mrf.mxu0
        %v11363 = vadd.f32 %v11151, %v11362
        %11364 = vdwg.mxu0
        %v11365 = vmax.f32 %v11270, 0.0
        %v11366 = vmax.f32 %v11273, 0.0
        %v11367 = vmax.f32 %v11276, 0.0
        %v11368 = vmax.f32 %v11279, 0.0
        %v11369 = vmax.f32 %v11282, 0.0
        %v11370 = vmax.f32 %v11285, 0.0
        %v11371 = vmax.f32 %v11288, 0.0
        %v11372 = vmax.f32 %v11291, 0.0
        %v11373 = vmax.f32 %v11294, 0.0
        %v11374 = vmax.f32 %v11297, 0.0
        %v11375 = vmax.f32 %v11300, 0.0
        %v11376 = vmax.f32 %v11303, 0.0
        %v11377 = vmax.f32 %v11306, 0.0
        %v11378 = vmax.f32 %v11309, 0.0
        %v11379 = vmax.f32 %v11312, 0.0
        %v11380 = vmax.f32 %v11315, 0.0
        %v11381 = vmax.f32 %v11318, 0.0
        %v11382 = vmax.f32 %v11321, 0.0
        %v11383 = vmax.f32 %v11324, 0.0
        %v11384 = vmax.f32 %v11327, 0.0
        %v11385 = vmax.f32 %v11330, 0.0
        %v11386 = vmax.f32 %v11333, 0.0
        %v11387 = vmax.f32 %v11336, 0.0
        %v11388 = vmax.f32 %v11339, 0.0
        %v11389 = vmax.f32 %v11342, 0.0
        %v11390 = vmax.f32 %v11345, 0.0
        %v11391 = vmax.f32 %v11348, 0.0
        %v11392 = vmax.f32 %v11351, 0.0
        %v11393 = vmax.f32 %v11354, 0.0
        %v11394 = vmax.f32 %v11357, 0.0
        %v11395 = vmax.f32 %v11360, 0.0
        %v11396 = vmax.f32 %v11363, 0.0
        %11429 = vrot.lane.b32.xlu0 %v3494, 8
        %v11430 = vpop.permute.xlu0 %11429
        %11431 = vrot.lane.b32.xlu0 %v3495, 8
        %v11432 = vpop.permute.xlu0 %11431
        %11433 = vrot.lane.b32.xlu0 %v3496, 8
        %v11434 = vpop.permute.xlu0 %11433
        %11435 = vrot.lane.b32.xlu0 %v3497, 8
        %v11436 = vpop.permute.xlu0 %11435
        %11437 = vrot.lane.b32.xlu0 %v3498, 8
        %v11438 = vpop.permute.xlu0 %11437
        %11439 = vrot.lane.b32.xlu0 %v3499, 8
        %v11440 = vpop.permute.xlu0 %11439
        %11441 = vrot.lane.b32.xlu0 %v3500, 8
        %v11442 = vpop.permute.xlu0 %11441
        %11443 = vrot.lane.b32.xlu0 %v3501, 8
        %v11444 = vpop.permute.xlu0 %11443
        %11445 = vrot.lane.b32.xlu0 %v3502, 8
        %v11446 = vpop.permute.xlu0 %11445
        %11447 = vrot.lane.b32.xlu0 %v3503, 8
        %v11448 = vpop.permute.xlu0 %11447
        %11449 = vrot.lane.b32.xlu0 %v3504, 8
        %v11450 = vpop.permute.xlu0 %11449
        %11451 = vrot.lane.b32.xlu0 %v3505, 8
        %v11452 = vpop.permute.xlu0 %11451
        %11453 = vrot.lane.b32.xlu0 %v3506, 8
        %v11454 = vpop.permute.xlu0 %11453
        %11455 = vrot.lane.b32.xlu0 %v3507, 8
        %v11456 = vpop.permute.xlu0 %11455
        %11457 = vrot.lane.b32.xlu0 %v3508, 8
        %v11458 = vpop.permute.xlu0 %11457
        %11459 = vrot.lane.b32.xlu0 %v3509, 8
        %v11460 = vpop.permute.xlu0 %11459
        %11461 = vrot.lane.b32.xlu0 %v3510, 8
        %v11462 = vpop.permute.xlu0 %11461
        %11463 = vrot.lane.b32.xlu0 %v3511, 8
        %v11464 = vpop.permute.xlu0 %11463
        %11465 = vrot.lane.b32.xlu0 %v3512, 8
        %v11466 = vpop.permute.xlu0 %11465
        %11467 = vrot.lane.b32.xlu0 %v3513, 8
        %v11468 = vpop.permute.xlu0 %11467
        %11469 = vrot.lane.b32.xlu0 %v3514, 8
        %v11470 = vpop.permute.xlu0 %11469
        %11471 = vrot.lane.b32.xlu0 %v3515, 8
        %v11472 = vpop.permute.xlu0 %11471
        %11473 = vrot.lane.b32.xlu0 %v3516, 8
        %v11474 = vpop.permute.xlu0 %11473
        %11475 = vrot.lane.b32.xlu0 %v3517, 8
        %v11476 = vpop.permute.xlu0 %11475
        %11477 = vrot.lane.b32.xlu0 %v3518, 8
        %v11478 = vpop.permute.xlu0 %11477
        %11479 = vrot.lane.b32.xlu0 %v3519, 8
        %v11480 = vpop.permute.xlu0 %11479
        %11481 = vrot.lane.b32.xlu0 %v3520, 8
        %v11482 = vpop.permute.xlu0 %11481
        %11483 = vrot.lane.b32.xlu0 %v3521, 8
        %v11484 = vpop.permute.xlu0 %11483
        %11485 = vrot.lane.b32.xlu0 %v3522, 8
        %v11486 = vpop.permute.xlu0 %11485
        %11487 = vrot.lane.b32.xlu0 %v3523, 8
        %v11488 = vpop.permute.xlu0 %11487
        %11489 = vrot.lane.b32.xlu0 %v3524, 8
        %v11490 = vpop.permute.xlu0 %11489
        %11491 = vrot.lane.b32.xlu0 %v3525, 8
        %v11492 = vpop.permute.xlu0 %11491
        %11557 = vrot.lane.b32.xlu0 %v10450, 16
        %v11558 = vpop.permute.xlu0 %11557
        %11559 = vrot.lane.b32.xlu0 %v10451, 16
        %v11560 = vpop.permute.xlu0 %11559
        %11561 = vrot.lane.b32.xlu0 %v10452, 16
        %v11562 = vpop.permute.xlu0 %11561
        %11563 = vrot.lane.b32.xlu0 %v10453, 16
        %v11564 = vpop.permute.xlu0 %11563
        %11565 = vrot.lane.b32.xlu0 %v10454, 16
        %v11566 = vpop.permute.xlu0 %11565
        %11567 = vrot.lane.b32.xlu0 %v10455, 16
        %v11568 = vpop.permute.xlu0 %11567
        %11569 = vrot.lane.b32.xlu0 %v10456, 16
        %v11570 = vpop.permute.xlu0 %11569
        %11571 = vrot.lane.b32.xlu0 %v10457, 16
        %v11572 = vpop.permute.xlu0 %11571
        %11573 = vrot.lane.b32.xlu0 %v10458, 16
        %v11574 = vpop.permute.xlu0 %11573
        %11575 = vrot.lane.b32.xlu0 %v10459, 16
        %v11576 = vpop.permute.xlu0 %11575
        %11577 = vrot.lane.b32.xlu0 %v10460, 16
        %v11578 = vpop.permute.xlu0 %11577
        %11579 = vrot.lane.b32.xlu0 %v10461, 16
        %v11580 = vpop.permute.xlu0 %11579
        %11581 = vrot.lane.b32.xlu0 %v10462, 16
        %v11582 = vpop.permute.xlu0 %11581
        %11583 = vrot.lane.b32.xlu0 %v10463, 16
        %v11584 = vpop.permute.xlu0 %11583
        %11585 = vrot.lane.b32.xlu0 %v10464, 16
        %v11586 = vpop.permute.xlu0 %11585
        %11587 = vrot.lane.b32.xlu0 %v10465, 16
        %v11588 = vpop.permute.xlu0 %11587
        %11589 = vrot.lane.b32.xlu0 %v10466, 16
        %v11590 = vpop.permute.xlu0 %11589
        %11591 = vrot.lane.b32.xlu0 %v10467, 16
        %v11592 = vpop.permute.xlu0 %11591
        %11593 = vrot.lane.b32.xlu0 %v10468, 16
        %v11594 = vpop.permute.xlu0 %11593
        %11595 = vrot.lane.b32.xlu0 %v10469, 16
        %v11596 = vpop.permute.xlu0 %11595
        %11597 = vrot.lane.b32.xlu0 %v10470, 16
        %v11598 = vpop.permute.xlu0 %11597
        %11599 = vrot.lane.b32.xlu0 %v10471, 16
        %v11600 = vpop.permute.xlu0 %11599
        %11601 = vrot.lane.b32.xlu0 %v10472, 16
        %v11602 = vpop.permute.xlu0 %11601
        %11603 = vrot.lane.b32.xlu0 %v10473, 16
        %v11604 = vpop.permute.xlu0 %11603
        %11605 = vrot.lane.b32.xlu0 %v10474, 16
        %v11606 = vpop.permute.xlu0 %11605
        %11607 = vrot.lane.b32.xlu0 %v10475, 16
        %v11608 = vpop.permute.xlu0 %11607
        %11609 = vrot.lane.b32.xlu0 %v10476, 16
        %v11610 = vpop.permute.xlu0 %11609
        %11611 = vrot.lane.b32.xlu0 %v10477, 16
        %v11612 = vpop.permute.xlu0 %11611
        %11613 = vrot.lane.b32.xlu0 %v10478, 16
        %v11614 = vpop.permute.xlu0 %11613
        %11615 = vrot.lane.b32.xlu0 %v10479, 16
        %v11616 = vpop.permute.xlu0 %11615
        %11617 = vrot.lane.b32.xlu0 %v10480, 16
        %v11618 = vpop.permute.xlu0 %11617
        %11619 = vrot.lane.b32.xlu0 %v10481, 16
        %v11620 = vpop.permute.xlu0 %11619
        %11685 = vrot.lane.b32.xlu0 %v11365, 24
        %v11686 = vpop.permute.xlu0 %11685
        %11687 = vrot.lane.b32.xlu0 %v11366, 24
        %v11688 = vpop.permute.xlu0 %11687
        %11689 = vrot.lane.b32.xlu0 %v11367, 24
        %v11690 = vpop.permute.xlu0 %11689
        %11691 = vrot.lane.b32.xlu0 %v11368, 24
        %v11692 = vpop.permute.xlu0 %11691
        %11693 = vrot.lane.b32.xlu0 %v11369, 24
        %v11694 = vpop.permute.xlu0 %11693
        %11695 = vrot.lane.b32.xlu0 %v11370, 24
        %v11696 = vpop.permute.xlu0 %11695
        %11697 = vrot.lane.b32.xlu0 %v11371, 24
        %v11698 = vpop.permute.xlu0 %11697
        %11699 = vrot.lane.b32.xlu0 %v11372, 24
        %v11700 = vpop.permute.xlu0 %11699
        %11701 = vrot.lane.b32.xlu0 %v11373, 24
        %v11702 = vpop.permute.xlu0 %11701
        %11703 = vrot.lane.b32.xlu0 %v11374, 24
        %v11704 = vpop.permute.xlu0 %11703
        %11705 = vrot.lane.b32.xlu0 %v11375, 24
        %v11706 = vpop.permute.xlu0 %11705
        %11707 = vrot.lane.b32.xlu0 %v11376, 24
        %v11708 = vpop.permute.xlu0 %11707
        %11709 = vrot.lane.b32.xlu0 %v11377, 24
        %v11710 = vpop.permute.xlu0 %11709
        %11711 = vrot.lane.b32.xlu0 %v11378, 24
        %v11712 = vpop.permute.xlu0 %11711
        %11713 = vrot.lane.b32.xlu0 %v11379, 24
        %v11714 = vpop.permute.xlu0 %11713
        %11715 = vrot.lane.b32.xlu0 %v11380, 24
        %v11716 = vpop.permute.xlu0 %11715
        %11717 = vrot.lane.b32.xlu0 %v11381, 24
        %v11718 = vpop.permute.xlu0 %11717
        %11719 = vrot.lane.b32.xlu0 %v11382, 24
        %v11720 = vpop.permute.xlu0 %11719
        %11721 = vrot.lane.b32.xlu0 %v11383, 24
        %v11722 = vpop.permute.xlu0 %11721
        %11723 = vrot.lane.b32.xlu0 %v11384, 24
        %v11724 = vpop.permute.xlu0 %11723
        %11725 = vrot.lane.b32.xlu0 %v11385, 24
        %v11726 = vpop.permute.xlu0 %11725
        %11727 = vrot.lane.b32.xlu0 %v11386, 24
        %v11728 = vpop.permute.xlu0 %11727
        %11729 = vrot.lane.b32.xlu0 %v11387, 24
        %v11730 = vpop.permute.xlu0 %11729
        %11731 = vrot.lane.b32.xlu0 %v11388, 24
        %v11732 = vpop.permute.xlu0 %11731
        %11733 = vrot.lane.b32.xlu0 %v11389, 24
        %v11734 = vpop.permute.xlu0 %11733
        %11735 = vrot.lane.b32.xlu0 %v11390, 24
        %v11736 = vpop.permute.xlu0 %11735
        %11737 = vrot.lane.b32.xlu0 %v11391, 24
        %v11738 = vpop.permute.xlu0 %11737
        %11739 = vrot.lane.b32.xlu0 %v11392, 24
        %v11740 = vpop.permute.xlu0 %11739
        %11741 = vrot.lane.b32.xlu0 %v11393, 24
        %v11742 = vpop.permute.xlu0 %11741
        %11743 = vrot.lane.b32.xlu0 %v11394, 24
        %v11744 = vpop.permute.xlu0 %11743
        %11745 = vrot.lane.b32.xlu0 %v11395, 24
        %v11746 = vpop.permute.xlu0 %11745
        %11747 = vrot.lane.b32.xlu0 %v11396, 24
        %v11748 = vpop.permute.xlu0 %11747
        %vm11781 = vcmask 64512
        %v11782 = vsel %vm11781, %v582, %v11430
        %v11783 = vsel %vm11781, %v583, %v11432
        %v11784 = vsel %vm11781, %v584, %v11434
        %v11785 = vsel %vm11781, %v585, %v11436
        %v11786 = vsel %vm11781, %v586, %v11438
        %v11787 = vsel %vm11781, %v587, %v11440
        %v11788 = vsel %vm11781, %v588, %v11442
        %v11789 = vsel %vm11781, %v589, %v11444
        %v11790 = vsel %vm11781, %v590, %v11446
        %v11791 = vsel %vm11781, %v591, %v11448
        %v11792 = vsel %vm11781, %v592, %v11450
        %v11793 = vsel %vm11781, %v593, %v11452
        %v11794 = vsel %vm11781, %v594, %v11454
        %v11795 = vsel %vm11781, %v595, %v11456
        %v11796 = vsel %vm11781, %v596, %v11458
        %v11797 = vsel %vm11781, %v597, %v11460
        %v11798 = vsel %vm11781, %v598, %v11462
        %v11799 = vsel %vm11781, %v599, %v11464
        %v11800 = vsel %vm11781, %v600, %v11466
        %v11801 = vsel %vm11781, %v601, %v11468
        %v11802 = vsel %vm11781, %v602, %v11470
        %v11803 = vsel %vm11781, %v603, %v11472
        %v11804 = vsel %vm11781, %v604, %v11474
        %v11805 = vsel %vm11781, %v605, %v11476
        %v11806 = vsel %vm11781, %v606, %v11478
        %v11807 = vsel %vm11781, %v607, %v11480
        %v11808 = vsel %vm11781, %v608, %v11482
        %v11809 = vsel %vm11781, %v609, %v11484
        %v11810 = vsel %vm11781, %v610, %v11486
        %v11811 = vsel %vm11781, %v611, %v11488
        %v11812 = vsel %vm11781, %v612, %v11490
        %v11813 = vsel %vm11781, %v613, %v11492
        %vm11814 = vcmask 130048
        %v11815 = vsel %vm11814, %v11782, %v11558
        %v11816 = vsel %vm11814, %v11783, %v11560
        %v11817 = vsel %vm11814, %v11784, %v11562
        %v11818 = vsel %vm11814, %v11785, %v11564
        %v11819 = vsel %vm11814, %v11786, %v11566
        %v11820 = vsel %vm11814, %v11787, %v11568
        %v11821 = vsel %vm11814, %v11788, %v11570
        %v11822 = vsel %vm11814, %v11789, %v11572
        %v11823 = vsel %vm11814, %v11790, %v11574
        %v11824 = vsel %vm11814, %v11791, %v11576
        %v11825 = vsel %vm11814, %v11792, %v11578
        %v11826 = vsel %vm11814, %v11793, %v11580
        %v11827 = vsel %vm11814, %v11794, %v11582
        %v11828 = vsel %vm11814, %v11795, %v11584
        %v11829 = vsel %vm11814, %v11796, %v11586
        %v11830 = vsel %vm11814, %v11797, %v11588
        %v11831 = vsel %vm11814, %v11798, %v11590
        %v11832 = vsel %vm11814, %v11799, %v11592
        %v11833 = vsel %vm11814, %v11800, %v11594
        %v11834 = vsel %vm11814, %v11801, %v11596
        %v11835 = vsel %vm11814, %v11802, %v11598
        %v11836 = vsel %vm11814, %v11803, %v11600
        %v11837 = vsel %vm11814, %v11804, %v11602
        %v11838 = vsel %vm11814, %v11805, %v11604
        %v11839 = vsel %vm11814, %v11806, %v11606
        %v11840 = vsel %vm11814, %v11807, %v11608
        %v11841 = vsel %vm11814, %v11808, %v11610
        %v11842 = vsel %vm11814, %v11809, %v11612
        %v11843 = vsel %vm11814, %v11810, %v11614
        %v11844 = vsel %vm11814, %v11811, %v11616
        %v11845 = vsel %vm11814, %v11812, %v11618
        %v11846 = vsel %vm11814, %v11813, %v11620
        %vm11847 = vcmask 195584
        %v11848 = vsel %vm11847, %v11815, %v11686
        %v11849 = vsel %vm11847, %v11816, %v11688
        %v11850 = vsel %vm11847, %v11817, %v11690
        %v11851 = vsel %vm11847, %v11818, %v11692
        %v11852 = vsel %vm11847, %v11819, %v11694
        %v11853 = vsel %vm11847, %v11820, %v11696
        %v11854 = vsel %vm11847, %v11821, %v11698
        %v11855 = vsel %vm11847, %v11822, %v11700
        %v11856 = vsel %vm11847, %v11823, %v11702
        %v11857 = vsel %vm11847, %v11824, %v11704
        %v11858 = vsel %vm11847, %v11825, %v11706
        %v11859 = vsel %vm11847, %v11826, %v11708
        %v11860 = vsel %vm11847, %v11827, %v11710
        %v11861 = vsel %vm11847, %v11828, %v11712
        %v11862 = vsel %vm11847, %v11829, %v11714
        %v11863 = vsel %vm11847, %v11830, %v11716
        %v11864 = vsel %vm11847, %v11831, %v11718
        %v11865 = vsel %vm11847, %v11832, %v11720
        %v11866 = vsel %vm11847, %v11833, %v11722
        %v11867 = vsel %vm11847, %v11834, %v11724
        %v11868 = vsel %vm11847, %v11835, %v11726
        %v11869 = vsel %vm11847, %v11836, %v11728
        %v11870 = vsel %vm11847, %v11837, %v11730
        %v11871 = vsel %vm11847, %v11838, %v11732
        %v11872 = vsel %vm11847, %v11839, %v11734
        %v11873 = vsel %vm11847, %v11840, %v11736
        %v11874 = vsel %vm11847, %v11841, %v11738
        %v11875 = vsel %vm11847, %v11842, %v11740
        %v11876 = vsel %vm11847, %v11843, %v11742
        %v11877 = vsel %vm11847, %v11844, %v11744
        %v11878 = vsel %vm11847, %v11845, %v11746
        %v11879 = vsel %vm11847, %v11846, %v11748
        %vm11880 = vcmask 261120
        %11881 = vst.msk [vmem:[%s325] sm:$0xff] %vm11880, %v11848
        %11882 = vst.msk [vmem:[%s325 + $0x8] sm:$0xff] %vm11880, %v11849
        %11883 = vst.msk [vmem:[%s325 + $0x10] sm:$0xff] %vm11880, %v11850
        %11884 = vst.msk [vmem:[%s325 + $0x18] sm:$0xff] %vm11880, %v11851
        %11885 = vst.msk [vmem:[%s325 + $0x20] sm:$0xff] %vm11880, %v11852
        %11886 = vst.msk [vmem:[%s325 + $0x28] sm:$0xff] %vm11880, %v11853
        %11887 = vst.msk [vmem:[%s325 + $0x30] sm:$0xff] %vm11880, %v11854
        %11888 = vst.msk [vmem:[%s325 + $0x38] sm:$0xff] %vm11880, %v11855
        %11889 = vst.msk [vmem:[%s325 + $0x40] sm:$0xff] %vm11880, %v11856
        %11890 = vst.msk [vmem:[%s325 + $0x48] sm:$0xff] %vm11880, %v11857
        %11891 = vst.msk [vmem:[%s325 + $0x50] sm:$0xff] %vm11880, %v11858
        %11892 = vst.msk [vmem:[%s325 + $0x58] sm:$0xff] %vm11880, %v11859
        %11893 = vst.msk [vmem:[%s325 + $0x60] sm:$0xff] %vm11880, %v11860
        %11894 = vst.msk [vmem:[%s325 + $0x68] sm:$0xff] %vm11880, %v11861
        %11895 = vst.msk [vmem:[%s325 + $0x70] sm:$0xff] %vm11880, %v11862
        %11896 = vst.msk [vmem:[%s325 + $0x78] sm:$0xff] %vm11880, %v11863
        %11897 = vst.msk [vmem:[%s325 + $0x80] sm:$0xff] %vm11880, %v11864
        %11898 = vst.msk [vmem:[%s325 + $0x88] sm:$0xff] %vm11880, %v11865
        %11899 = vst.msk [vmem:[%s325 + $0x90] sm:$0xff] %vm11880, %v11866
        %11900 = vst.msk [vmem:[%s325 + $0x98] sm:$0xff] %vm11880, %v11867
        %11901 = vst.msk [vmem:[%s325 + $0xa0] sm:$0xff] %vm11880, %v11868
        %11902 = vst.msk [vmem:[%s325 + $0xa8] sm:$0xff] %vm11880, %v11869
        %11903 = vst.msk [vmem:[%s325 + $0xb0] sm:$0xff] %vm11880, %v11870
        %11904 = vst.msk [vmem:[%s325 + $0xb8] sm:$0xff] %vm11880, %v11871
        %11905 = vst.msk [vmem:[%s325 + $0xc0] sm:$0xff] %vm11880, %v11872
        %11906 = vst.msk [vmem:[%s325 + $0xc8] sm:$0xff] %vm11880, %v11873
        %11907 = vst.msk [vmem:[%s325 + $0xd0] sm:$0xff] %vm11880, %v11874
        %11908 = vst.msk [vmem:[%s325 + $0xd8] sm:$0xff] %vm11880, %v11875
        %11909 = vst.msk [vmem:[%s325 + $0xe0] sm:$0xff] %vm11880, %v11876
        %11910 = vst.msk [vmem:[%s325 + $0xe8] sm:$0xff] %vm11880, %v11877
        %11911 = vst.msk [vmem:[%s325 + $0xf0] sm:$0xff] %vm11880, %v11878
        %11912 = vst.msk [vmem:[%s325 + $0xf8] sm:$0xff] %vm11880, %v11879
        %s11913 = sand.u32 %s225, 1
        %s11914 = scalar_lea.sflag [#allocation6], %s11913
        %s11915 = sand.u32 %s225, 1
        %s11916 = smul.addr %s11915, 256
        %s11917 = scalar_lea.vmem [#allocation5], %s11916
        // Predicated region
        $region57: #{inception_forward.1} parent=55 // pred_check
          %p11918 = pneg %p235
        $region58: #{inception_forward.1} parent=55 // pred_check_branch
          %11920 = sbr.rel (%p11918) target = $region60
        $region59: #{inception_forward.1} parent=55 // pred_region
          %11922 = vsyncadd %s11914, 0
          %s11923 = smul.addr %s23, 32
          %s11924 = smul.addr %s11923, 8
          %s11925 = scalar_lea.hbm %s9, %s11924
          %s11926 = sshll.u32 %s11917, 4
          %s11927 = int_to_ptr.vmem [resolvable:$true] %s11926
          %s11928 = sshll.u32 %s11925, 4
          %s11929 = int_to_ptr.hbm [resolvable:$true] %s11928
          %11934 = dma.vmem_to_hbm [thread:$0]  %s11927, 4096, %s11929, %s11914, 128, 128, 8
        $region60: #{inception_forward.1} parent=55 // pred_fallthru
          _
      $region56: #{inception_forward.1} parent=5 // pred_fallthru
        _
      %p11935 = scmp.le.s32.totalorder 2, %s18
      // Predicated region
      $region61: #{inception_forward.1} parent=5 // pred_check
        %p11936 = pneg %p11935
      $region62: #{inception_forward.1} parent=5 // pred_check_branch
        %11938 = sbr.rel (%p11936) target = $region64
      $region63: #{inception_forward.1} parent=5 // pred_region
        %s11939 = ssub.s32 %s18, 2
        // Predicated region
        $region65: #{inception_forward.1} parent=63 // pred_check
          %p11940 = pneg %p241
        $region66: #{inception_forward.1} parent=63 // pred_check_branch
          %11942 = sbr.rel (%p11940) target = $region68
        $region67: #{inception_forward.1} parent=63 // pred_region
          %s11943 = sand.u32 %s226, 1
          %s11944 = scalar_lea.sflag [#allocation6], %s11943
          %s11945 = sand.u32 %s226, 1
          %s11946 = smul.addr %s11945, 256
          %s11947 = scalar_lea.vmem [#allocation5], %s11946
          %11949 = dma.done %s11944, 4096
        $region68: #{inception_forward.1} parent=63 // pred_fallthru
          _
      $region64: #{inception_forward.1} parent=5 // pred_fallthru
        _
    $region6: #{inception_forward.1} parent=1 // loop_footer
      %s22 = sadd.s32 1, %s18
    $region7: #{inception_forward.1} parent=1 // loop_footer_branch
      %17 = sbr.rel target = $region3
    $region8: #{inception_forward.1} parent=1 // loop_exit
      _
    %11950 = vsyncpa [#allocation6], 1
    %s11951 = scalar_lea.sflag [#allocation6], 1
    %11952 = vsyncpa %s11951, 1

</llo_original>
